<compile_context>
chip_gen: v6e
topology: v6e:2x2x1
jax: 0.10.0
libtpu: 0.0.40
codegen_flags: <defaults>
</compile_context>

<pallas_src>
import numpy as np
import jax
import jax.numpy as jnp
from jax.experimental import pallas as pl
from jax.experimental.pallas import tpu as pltpu

BN_EPS = 1e-5


# ----------------------------- hparams ------------------------------------ #
def get_hparams(window, CL_max=10000):
    if window == 80:
        W = np.asarray([11, 11, 11, 11]); AR = np.asarray([1, 1, 1, 1])
    elif window == 400:
        W = np.asarray([11] * 8); AR = np.asarray([1, 1, 1, 1, 4, 4, 4, 4])
    elif window == 2000:
        W = np.asarray([11] * 8 + [21] * 4)
        AR = np.asarray([1, 1, 1, 1, 4, 4, 4, 4, 10, 10, 10, 10])
    elif window == 10000:
        W = np.asarray([11] * 8 + [21] * 4 + [41] * 4)
        AR = np.asarray([1, 1, 1, 1, 4, 4, 4, 4, 10, 10, 10, 10, 25, 25, 25, 25])
    else:
        raise AssertionError("Invalid window: {}".format(window))
    CL = 2 * int(np.sum(AR * (W - 1)))
    assert CL <= CL_max and CL == window
    return W, AR, CL


def _skip_indices(n_units):
    return [i for i in range(n_units) if (i + 1) % 4 == 0 or i + 1 == n_units]


# ----------------------------- kernel -------------------------------------- #
def make_spliceai_kernel(W, AR, T, NT_pad, L, skip_idx, kmax):
    n_units = len(W)

    def kernel(x_ref, pos_ref, w1_ref, w1x1_ref, wdil_ref, uvec_ref, bvec_ref,
               wout_ref, bout_ref, o_ref):
        x = x_ref[...].astype(jnp.float32)            # (Cin, NTp), channels-first
        pos = pos_ref[...]                            # (1, NTp) int32 local time idx

        def mm(w, h):
            return jnp.dot(w, h, preferred_element_type=jnp.float32)

        def dilated_conv(h, w_flat, b_col, k, dil):
            # 'same'-padded dilated 1-D conv via im2col:
            #   one (L, k*L) @ (k*L, NTp) MXU matmul per conv.
            pad = (k - 1) // 2 * dil
            parts = []
            for tap in range(k):
                shift = tap * dil - pad               # out[:, p] += w[tap] @ h[:, p+shift]
                if shift == 0:
                    parts.append(h)
                else:
                    rolled = pltpu.roll(h, shift=(-shift) % NT_pad, axis=1)
                    valid = (pos + shift >= 0) & (pos + shift < T)
                    parts.append(jnp.where(valid, rolled, 0.0))
            col = jnp.concatenate(parts, axis=0)      # (k*L, NTp), sublane-aligned
            w_use = w_flat if k == kmax else w_flat[:, :k * L]
            return mm(w_use, col) + b_col

        conv = mm(w1_ref[...], x) + bvec_ref[0]       # conv1 (1x1)   -> (L, NTp)
        skip = mm(w1x1_ref[0], conv) + bvec_ref[1]    # conv2 (1x1)

        si = 0
        for i in range(n_units):
            k, dil = W[i], AR[i]
            s1, h1b, cb1 = uvec_ref[i, 0], uvec_ref[i, 1], uvec_ref[i, 2]
            s2, h2b, cb2 = uvec_ref[i, 3], uvec_ref[i, 4], uvec_ref[i, 5]
            h = jnp.maximum(conv * s1 + h1b, 0.0)                   # BN1 + ReLU
            h = dilated_conv(h, wdil_ref[2 * i], cb1, k, dil)
            h = jnp.maximum(h * s2 + h2b, 0.0)                      # BN2 + ReLU
            h = dilated_conv(h, wdil_ref[2 * i + 1], cb2, k, dil)
            conv = conv + h                                         # residual
            if i in skip_idx:
                skip = skip + mm(w1x1_ref[1 + si], conv) + bvec_ref[2 + si]
                si += 1

        y = mm(wout_ref[...], skip) + bout_ref[...]                 # output (1x1)
        o_ref[...] = y.astype(o_ref.dtype)

    return kernel


# --------------------------- parameter packing ------------------------------ #
def _pack_params(p, W, L, kmax):
    def col(v):
        return v.astype(jnp.float32)[:, None]          # (C,) -> (C, 1)

    def flat_dil(w, k):                                # (L, L, k) -> (L, kmax*L)
        wf = jnp.transpose(w, (0, 2, 1)).reshape(L, k * L)
        if k < kmax:
            wf = jnp.pad(wf, ((0, 0), (0, (kmax - k) * L)))
        return wf.astype(jnp.float32)

    w1 = p["conv1_w"][:, :, 0].astype(jnp.float32)                       # (L, Cin)
    w1x1 = jnp.stack([p["conv2_w"][:, :, 0]] +
                     [s["w"][:, :, 0] for s in p["skip"]]).astype(jnp.float32)
    wdil, uvec = [], []
    for i, u in enumerate(p["units"]):
        k = int(W[i])
        wdil += [flat_dil(u["conv1_w"], k), flat_dil(u["conv2_w"], k)]
        s1 = u["bn1_gamma"] / jnp.sqrt(u["bn1_var"] + BN_EPS)
        h1 = u["bn1_beta"] - u["bn1_mean"] * s1
        s2 = u["bn2_gamma"] / jnp.sqrt(u["bn2_var"] + BN_EPS)
        h2 = u["bn2_beta"] - u["bn2_mean"] * s2
        uvec.append(jnp.stack([col(s1), col(h1), col(u["conv1_b"]),
                               col(s2), col(h2), col(u["conv2_b"])]))
    wdil = jnp.stack(wdil)                               # (2*n_units, L, kmax*L)
    uvec = jnp.stack(uvec)                               # (n_units, 6, L, 1)
    bvec = jnp.stack([col(p["conv1_b"]), col(p["conv2_b"])] +
                     [col(s["b"]) for s in p["skip"]])   # (2+n_skip, L, 1)
    wout = p["out_w"][:, :, 0].astype(jnp.float32)       # (Couto, L)
    bout = col(p["out_b"])                               # (Couto, 1)
    return w1, w1x1, wdil, uvec, bvec, wout, bout


# --------------------------- wrapper / glue -------------------------------- #
def spliceai_forward_pallas(x, params, W, AR):
    W = np.asarray(W); AR = np.asarray(AR)
    N, T, Cin = x.shape
    CL = 2 * int(np.sum(AR * (W - 1)))
    L = params["conv2_w"].shape[0]
    Couto = params["out_w"].shape[0]
    n_units = len(W)
    skip_idx = _skip_indices(n_units)
    kmax = int(np.max(W))
    # roll+mask 'same' padding requires the half-window to fit inside one sequence
    assert max((int(k) - 1) // 2 * int(d) for k, d in zip(W, AR)) < T

    NT = N * T
    NT_pad = -(-NT // 128) * 128                        # lane-align folded batch*time

    # activations: channels-first, batch folded into the lane (time) axis
    x2 = jnp.transpose(x, (2, 0, 1)).reshape(Cin, NT).astype(jnp.float32)
    x2 = jnp.pad(x2, ((0, 0), (0, NT_pad - NT)))
    pos = jnp.tile(jnp.arange(T, dtype=jnp.int32), N)
    pos = jnp.pad(pos, (0, NT_pad - NT), constant_values=2 * T)[None, :]   # (1, NTp)

    w1, w1x1, wdil, uvec, bvec, wout, bout = _pack_params(params, W, L, kmax)
    args = (x2, pos, w1, w1x1, wdil, uvec, bvec, wout, bout)

    kernel = make_spliceai_kernel(tuple(int(k) for k in W),
                                  tuple(int(a) for a in AR),
                                  T, NT_pad, L, skip_idx, kmax)
    in_specs = [pl.BlockSpec(a.shape, (lambda i, nd=a.ndim: (0,) * nd)) for a in args]

    y_full = pl.pallas_call(
        kernel,
        out_shape=jax.ShapeDtypeStruct((Couto, NT_pad), jnp.float32),
        grid=(1,),                                       # single step, batch folded
        in_specs=in_specs,
        out_specs=pl.BlockSpec((Couto, NT_pad), lambda i: (0, 0)),
        compiler_params=pltpu.CompilerParams(dimension_semantics=("arbitrary",)),
    )(*args)

    # layout plumbing back to (N, T-CL, Couto) is done by XLA outside the kernel
    y = y_full[:, :NT].reshape(Couto, N, T)
    y = jnp.transpose(y, (1, 2, 0))[:, CL // 2: T - CL // 2, :]
    return y


# --------------------------- pure-JAX reference ---------------------------- #
def spliceai_forward_ref(x, params, W, AR):
    xc = jnp.transpose(x, (0, 2, 1))                     # (N, C, T)

    def conv1d(h, w, b, dil=1):
        k = w.shape[2]
        pad = (k - 1) * dil // 2
        o = jax.lax.conv_general_dilated(
            h, w, window_strides=(1,), padding=[(pad, pad)],
            rhs_dilation=(dil,), dimension_numbers=("NCH", "OIH", "NCH"),
            precision=jax.lax.Precision.HIGHEST)
        return o + b[None, :, None]

    def bn(h, g, be, m, v):
        s = g / jnp.sqrt(v + BN_EPS)
        return h * s[None, :, None] + (be - m * s)[None, :, None]

    conv = conv1d(xc, params["conv1_w"], params["conv1_b"])
    skip = conv1d(conv, params["conv2_w"], params["conv2_b"])
    n_units = len(W)
    skip_idx = _skip_indices(n_units)
    si = 0
    for i in range(n_units):
        u = params["units"][i]
        h = jax.nn.relu(bn(conv, u["bn1_gamma"], u["bn1_beta"], u["bn1_mean"], u["bn1_var"]))
        h = conv1d(h, u["conv1_w"], u["conv1_b"], int(AR[i]))
        h = jax.nn.relu(bn(h, u["bn2_gamma"], u["bn2_beta"], u["bn2_mean"], u["bn2_var"]))
        h = conv1d(h, u["conv2_w"], u["conv2_b"], int(AR[i]))
        conv = conv + h
        if i in skip_idx:
            s = params["skip"][si]; si += 1
            skip = skip + conv1d(conv, s["w"], s["b"])
    CL = 2 * int(np.sum(np.asarray(AR) * (np.asarray(W) - 1)))
    skip = skip[:, :, CL // 2: -(CL // 2)]
    y = conv1d(skip, params["out_w"], params["out_b"])
    return jnp.transpose(y, (0, 2, 1))


# ------------------------------ init --------------------------------------- #
def init_params(key, L, input_size, output_size, W):
    keys = iter(jax.random.split(key, 256))

    def nrm(shape, scale=0.1):
        return (scale * jax.random.normal(next(keys), shape)).astype(jnp.float32)

    p = {"conv1_w": nrm((L, input_size, 1)), "conv1_b": nrm((L,), 0.05),
         "conv2_w": nrm((L, L, 1)), "conv2_b": nrm((L,), 0.05),
         "units": [], "skip": []}
    for i in range(len(W)):
        k = int(W[i])
        p["units"].append(dict(
            bn1_gamma=1.0 + nrm((L,)), bn1_beta=nrm((L,), 0.05),
            bn1_mean=nrm((L,), 0.05), bn1_var=1.0 + jnp.abs(nrm((L,))),
            conv1_w=nrm((L, L, k)), conv1_b=nrm((L,), 0.05),
            bn2_gamma=1.0 + nrm((L,)), bn2_beta=nrm((L,), 0.05),
            bn2_mean=nrm((L,), 0.05), bn2_var=1.0 + jnp.abs(nrm((L,))),
            conv2_w=nrm((L, L, k)), conv2_b=nrm((L,), 0.05)))
    for _ in _skip_indices(len(W)):
        p["skip"].append(dict(w=nrm((L, L, 1)), b=nrm((L,), 0.05)))
    p["out_w"] = nrm((output_size, L, 1))
    p["out_b"] = nrm((output_size,), 0.05)
    return p


# ------------------------------ main ---------------------------------------- #
if __name__ == "__main__":
    window = 80
    L, input_size, output_size = 32, 4, 3
    W, AR, CL = get_hparams(window)

    key = jax.random.PRNGKey(0)
    k_par, k_x = jax.random.split(key)
    params = init_params(k_par, L, input_size, output_size, W)

    N, T = 2, CL + 16                                  # (2, 96, 4) input
    x = jax.random.normal(k_x, (N, T, input_size), dtype=jnp.float32)

    out = spliceai_forward_pallas(x, params, W, AR)
    out = jax.block_until_ready(out)

    ref = spliceai_forward_ref(x, params, W, AR)
    assert out.shape == (N, T - CL, output_size), out.shape
    assert bool(jnp.allclose(out, ref, atol=2e-3, rtol=2e-3)), (
        "mismatch, max abs err = %e" % float(jnp.max(jnp.abs(out - ref))))

    print("KERNEL_OK")
</pallas_src>

<mosaic_0001>
module attributes {stable_mosaic.version = 11 : i64} {
  func.func @kernel(%arg0: i32, %arg1: memref<4x256xf32, #tpu.memory_space<vmem>>, %arg2: memref<1x256xi32, #tpu.memory_space<vmem>>, %arg3: memref<32x4xf32, #tpu.memory_space<vmem>>, %arg4: memref<2x32x32xf32, #tpu.memory_space<vmem>>, %arg5: memref<8x32x352xf32, #tpu.memory_space<vmem>>, %arg6: memref<4x6x32x1xf32, #tpu.memory_space<vmem>>, %arg7: memref<3x32x1xf32, #tpu.memory_space<vmem>>, %arg8: memref<3x32xf32, #tpu.memory_space<vmem>>, %arg9: memref<3x1xf32, #tpu.memory_space<vmem>>, %arg10: memref<3x256xf32, #tpu.memory_space<vmem>>) attributes {dimension_semantics = [#tpu.dimension_semantics<arbitrary>], iteration_bounds = array<i64: 1>, scalar_prefetch = 0 : i64, scratch_operands = 0 : i64, tpu.core_type = #tpu.core_type<tc>, window_params = [{pipeline_mode = #tpu.pipeline_mode<synchronous>, transform_indices = @transform_0, window_bounds = array<i64: 4, 256>}, {pipeline_mode = #tpu.pipeline_mode<synchronous>, transform_indices = @transform_1, window_bounds = array<i64: 1, 256>}, {pipeline_mode = #tpu.pipeline_mode<synchronous>, transform_indices = @transform_2, window_bounds = array<i64: 32, 4>}, {pipeline_mode = #tpu.pipeline_mode<synchronous>, transform_indices = @transform_3, window_bounds = array<i64: 2, 32, 32>}, {pipeline_mode = #tpu.pipeline_mode<synchronous>, transform_indices = @transform_4, window_bounds = array<i64: 8, 32, 352>}, {pipeline_mode = #tpu.pipeline_mode<synchronous>, transform_indices = @transform_5, window_bounds = array<i64: 4, 6, 32, 1>}, {pipeline_mode = #tpu.pipeline_mode<synchronous>, transform_indices = @transform_6, window_bounds = array<i64: 3, 32, 1>}, {pipeline_mode = #tpu.pipeline_mode<synchronous>, transform_indices = @transform_7, window_bounds = array<i64: 3, 32>}, {pipeline_mode = #tpu.pipeline_mode<synchronous>, transform_indices = @transform_8, window_bounds = array<i64: 3, 1>}, {pipeline_mode = #tpu.pipeline_mode<synchronous>, transform_indices = @transform_9, window_bounds = array<i64: 3, 256>}]} {
    %c0 = arith.constant 0 : index
    %c0_0 = arith.constant 0 : index
    %0 = vector.load %arg1[%c0, %c0_0] : memref<4x256xf32, #tpu.memory_space<vmem>>, vector<4x256xf32>
    %c0_1 = arith.constant 0 : index
    %c0_2 = arith.constant 0 : index
    %1 = vector.load %arg2[%c0_1, %c0_2] : memref<1x256xi32, #tpu.memory_space<vmem>>, vector<1x256xi32>
    %c0_3 = arith.constant 0 : index
    %c0_4 = arith.constant 0 : index
    %2 = vector.load %arg3[%c0_3, %c0_4] : memref<32x4xf32, #tpu.memory_space<vmem>>, vector<32x4xf32>
    %cst = arith.constant dense<0.000000e+00> : vector<32x256xf32>
    %3 = tpu.matmul %2, %0, %cst {dimension_numbers = #tpu.dot_dimension_numbers<[1], [0], [0], [1], [0, 0, 1, 1], [], []>} : vector<32x4xf32>, vector<4x256xf32>, vector<32x256xf32> -> vector<32x256xf32>
    %c0_5 = arith.constant 0 : index
    %c0_6 = arith.constant 0 : index
    %c0_7 = arith.constant 0 : index
    %4 = vector.load %arg7[%c0_5, %c0_6, %c0_7] : memref<3x32x1xf32, #tpu.memory_space<vmem>>, vector<1x32x1xf32>
    %5 = vector.shape_cast %4 : vector<1x32x1xf32> to vector<32x1xf32>
    %6 = vector.broadcast %5 : vector<32x1xf32> to vector<32x256xf32>
    %7 = arith.addf %3, %6 : vector<32x256xf32>
    %c0_8 = arith.constant 0 : index
    %c0_9 = arith.constant 0 : index
    %c0_10 = arith.constant 0 : index
    %8 = vector.load %arg4[%c0_8, %c0_9, %c0_10] : memref<2x32x32xf32, #tpu.memory_space<vmem>>, vector<1x32x32xf32>
    %9 = vector.shape_cast %8 : vector<1x32x32xf32> to vector<32x32xf32>
    %cst_11 = arith.constant dense<0.000000e+00> : vector<32x256xf32>
    %10 = tpu.matmul %9, %7, %cst_11 {dimension_numbers = #tpu.dot_dimension_numbers<[1], [0], [0], [1], [0, 0, 1, 1], [], []>} : vector<32x32xf32>, vector<32x256xf32>, vector<32x256xf32> -> vector<32x256xf32>
    %c1 = arith.constant 1 : index
    %c0_12 = arith.constant 0 : index
    %c0_13 = arith.constant 0 : index
    %11 = vector.load %arg7[%c1, %c0_12, %c0_13] : memref<3x32x1xf32, #tpu.memory_space<vmem>>, vector<1x32x1xf32>
    %12 = vector.shape_cast %11 : vector<1x32x1xf32> to vector<32x1xf32>
    %13 = vector.broadcast %12 : vector<32x1xf32> to vector<32x256xf32>
    %14 = arith.addf %10, %13 : vector<32x256xf32>
    %c0_14 = arith.constant 0 : index
    %c0_15 = arith.constant 0 : index
    %c0_16 = arith.constant 0 : index
    %c0_17 = arith.constant 0 : index
    %15 = vector.load %arg6[%c0_14, %c0_15, %c0_16, %c0_17] : memref<4x6x32x1xf32, #tpu.memory_space<vmem>>, vector<1x1x32x1xf32>
    %16 = vector.shape_cast %15 : vector<1x1x32x1xf32> to vector<32x1xf32>
    %c0_18 = arith.constant 0 : index
    %c1_19 = arith.constant 1 : index
    %c0_20 = arith.constant 0 : index
    %c0_21 = arith.constant 0 : index
    %17 = vector.load %arg6[%c0_18, %c1_19, %c0_20, %c0_21] : memref<4x6x32x1xf32, #tpu.memory_space<vmem>>, vector<1x1x32x1xf32>
    %18 = vector.shape_cast %17 : vector<1x1x32x1xf32> to vector<32x1xf32>
    %c0_22 = arith.constant 0 : index
    %c2 = arith.constant 2 : index
    %c0_23 = arith.constant 0 : index
    %c0_24 = arith.constant 0 : index
    %19 = vector.load %arg6[%c0_22, %c2, %c0_23, %c0_24] : memref<4x6x32x1xf32, #tpu.memory_space<vmem>>, vector<1x1x32x1xf32>
    %20 = vector.shape_cast %19 : vector<1x1x32x1xf32> to vector<32x1xf32>
    %c0_25 = arith.constant 0 : index
    %c3 = arith.constant 3 : index
    %c0_26 = arith.constant 0 : index
    %c0_27 = arith.constant 0 : index
    %21 = vector.load %arg6[%c0_25, %c3, %c0_26, %c0_27] : memref<4x6x32x1xf32, #tpu.memory_space<vmem>>, vector<1x1x32x1xf32>
    %22 = vector.shape_cast %21 : vector<1x1x32x1xf32> to vector<32x1xf32>
    %c0_28 = arith.constant 0 : index
    %c4 = arith.constant 4 : index
    %c0_29 = arith.constant 0 : index
    %c0_30 = arith.constant 0 : index
    %23 = vector.load %arg6[%c0_28, %c4, %c0_29, %c0_30] : memref<4x6x32x1xf32, #tpu.memory_space<vmem>>, vector<1x1x32x1xf32>
    %24 = vector.shape_cast %23 : vector<1x1x32x1xf32> to vector<32x1xf32>
    %c0_31 = arith.constant 0 : index
    %c5 = arith.constant 5 : index
    %c0_32 = arith.constant 0 : index
    %c0_33 = arith.constant 0 : index
    %25 = vector.load %arg6[%c0_31, %c5, %c0_32, %c0_33] : memref<4x6x32x1xf32, #tpu.memory_space<vmem>>, vector<1x1x32x1xf32>
    %26 = vector.shape_cast %25 : vector<1x1x32x1xf32> to vector<32x1xf32>
    %27 = vector.broadcast %16 : vector<32x1xf32> to vector<32x256xf32>
    %28 = arith.mulf %7, %27 : vector<32x256xf32>
    %29 = vector.broadcast %18 : vector<32x1xf32> to vector<32x256xf32>
    %30 = arith.addf %28, %29 : vector<32x256xf32>
    %cst_34 = arith.constant 0.000000e+00 : f32
    %31 = vector.broadcast %cst_34 : f32 to vector<32x256xf32>
    %32 = arith.maximumf %30, %31 : vector<32x256xf32>
    %c0_35 = arith.constant 0 : index
    %c0_36 = arith.constant 0 : index
    %c0_37 = arith.constant 0 : index
    %33 = vector.load %arg5[%c0_35, %c0_36, %c0_37] : memref<8x32x352xf32, #tpu.memory_space<vmem>>, vector<1x32x352xf32>
    %34 = vector.shape_cast %33 : vector<1x32x352xf32> to vector<32x352xf32>
    %c5_i32 = arith.constant 5 : i32
    %35 = tpu.dynamic_rotate %32 by %c5_i32 dim 1 : vector<32x256xf32>, i32 -> vector<32x256xf32>
    %c-5_i32 = arith.constant -5 : i32
    %36 = vector.broadcast %c-5_i32 : i32 to vector<1x256xi32>
    %37 = arith.addi %1, %36 : vector<1x256xi32>
    %c0_i32 = arith.constant 0 : i32
    %38 = vector.broadcast %c0_i32 : i32 to vector<1x256xi32>
    %39 = arith.cmpi sge, %37, %38 : vector<1x256xi32>
    %c-5_i32_38 = arith.constant -5 : i32
    %40 = vector.broadcast %c-5_i32_38 : i32 to vector<1x256xi32>
    %41 = arith.addi %1, %40 : vector<1x256xi32>
    %c96_i32 = arith.constant 96 : i32
    %42 = vector.broadcast %c96_i32 : i32 to vector<1x256xi32>
    %43 = arith.cmpi slt, %41, %42 : vector<1x256xi32>
    %44 = arith.andi %39, %43 : vector<1x256xi1>
    %cst_39 = arith.constant 0.000000e+00 : f32
    %45 = vector.shape_cast %44 : vector<1x256xi1> to vector<1x256xi1>
    %46 = vector.broadcast %45 : vector<1x256xi1> to vector<32x256xi1>
    %47 = vector.broadcast %cst_39 : f32 to vector<32x256xf32>
    %48 = arith.select %46, %35, %47 : vector<32x256xi1>, vector<32x256xf32>
    %c4_i32 = arith.constant 4 : i32
    %49 = tpu.dynamic_rotate %32 by %c4_i32 dim 1 : vector<32x256xf32>, i32 -> vector<32x256xf32>
    %c-4_i32 = arith.constant -4 : i32
    %50 = vector.broadcast %c-4_i32 : i32 to vector<1x256xi32>
    %51 = arith.addi %1, %50 : vector<1x256xi32>
    %c0_i32_40 = arith.constant 0 : i32
    %52 = vector.broadcast %c0_i32_40 : i32 to vector<1x256xi32>
    %53 = arith.cmpi sge, %51, %52 : vector<1x256xi32>
    %c-4_i32_41 = arith.constant -4 : i32
    %54 = vector.broadcast %c-4_i32_41 : i32 to vector<1x256xi32>
    %55 = arith.addi %1, %54 : vector<1x256xi32>
    %c96_i32_42 = arith.constant 96 : i32
    %56 = vector.broadcast %c96_i32_42 : i32 to vector<1x256xi32>
    %57 = arith.cmpi slt, %55, %56 : vector<1x256xi32>
    %58 = arith.andi %53, %57 : vector<1x256xi1>
    %cst_43 = arith.constant 0.000000e+00 : f32
    %59 = vector.shape_cast %58 : vector<1x256xi1> to vector<1x256xi1>
    %60 = vector.broadcast %59 : vector<1x256xi1> to vector<32x256xi1>
    %61 = vector.broadcast %cst_43 : f32 to vector<32x256xf32>
    %62 = arith.select %60, %49, %61 : vector<32x256xi1>, vector<32x256xf32>
    %c3_i32 = arith.constant 3 : i32
    %63 = tpu.dynamic_rotate %32 by %c3_i32 dim 1 : vector<32x256xf32>, i32 -> vector<32x256xf32>
    %c-3_i32 = arith.constant -3 : i32
    %64 = vector.broadcast %c-3_i32 : i32 to vector<1x256xi32>
    %65 = arith.addi %1, %64 : vector<1x256xi32>
    %c0_i32_44 = arith.constant 0 : i32
    %66 = vector.broadcast %c0_i32_44 : i32 to vector<1x256xi32>
    %67 = arith.cmpi sge, %65, %66 : vector<1x256xi32>
    %c-3_i32_45 = arith.constant -3 : i32
    %68 = vector.broadcast %c-3_i32_45 : i32 to vector<1x256xi32>
    %69 = arith.addi %1, %68 : vector<1x256xi32>
    %c96_i32_46 = arith.constant 96 : i32
    %70 = vector.broadcast %c96_i32_46 : i32 to vector<1x256xi32>
    %71 = arith.cmpi slt, %69, %70 : vector<1x256xi32>
    %72 = arith.andi %67, %71 : vector<1x256xi1>
    %cst_47 = arith.constant 0.000000e+00 : f32
    %73 = vector.shape_cast %72 : vector<1x256xi1> to vector<1x256xi1>
    %74 = vector.broadcast %73 : vector<1x256xi1> to vector<32x256xi1>
    %75 = vector.broadcast %cst_47 : f32 to vector<32x256xf32>
    %76 = arith.select %74, %63, %75 : vector<32x256xi1>, vector<32x256xf32>
    %c2_i32 = arith.constant 2 : i32
    %77 = tpu.dynamic_rotate %32 by %c2_i32 dim 1 : vector<32x256xf32>, i32 -> vector<32x256xf32>
    %c-2_i32 = arith.constant -2 : i32
    %78 = vector.broadcast %c-2_i32 : i32 to vector<1x256xi32>
    %79 = arith.addi %1, %78 : vector<1x256xi32>
    %c0_i32_48 = arith.constant 0 : i32
    %80 = vector.broadcast %c0_i32_48 : i32 to vector<1x256xi32>
    %81 = arith.cmpi sge, %79, %80 : vector<1x256xi32>
    %c-2_i32_49 = arith.constant -2 : i32
    %82 = vector.broadcast %c-2_i32_49 : i32 to vector<1x256xi32>
    %83 = arith.addi %1, %82 : vector<1x256xi32>
    %c96_i32_50 = arith.constant 96 : i32
    %84 = vector.broadcast %c96_i32_50 : i32 to vector<1x256xi32>
    %85 = arith.cmpi slt, %83, %84 : vector<1x256xi32>
    %86 = arith.andi %81, %85 : vector<1x256xi1>
    %cst_51 = arith.constant 0.000000e+00 : f32
    %87 = vector.shape_cast %86 : vector<1x256xi1> to vector<1x256xi1>
    %88 = vector.broadcast %87 : vector<1x256xi1> to vector<32x256xi1>
    %89 = vector.broadcast %cst_51 : f32 to vector<32x256xf32>
    %90 = arith.select %88, %77, %89 : vector<32x256xi1>, vector<32x256xf32>
    %c1_i32 = arith.constant 1 : i32
    %91 = tpu.dynamic_rotate %32 by %c1_i32 dim 1 : vector<32x256xf32>, i32 -> vector<32x256xf32>
    %c-1_i32 = arith.constant -1 : i32
    %92 = vector.broadcast %c-1_i32 : i32 to vector<1x256xi32>
    %93 = arith.addi %1, %92 : vector<1x256xi32>
    %c0_i32_52 = arith.constant 0 : i32
    %94 = vector.broadcast %c0_i32_52 : i32 to vector<1x256xi32>
    %95 = arith.cmpi sge, %93, %94 : vector<1x256xi32>
    %c-1_i32_53 = arith.constant -1 : i32
    %96 = vector.broadcast %c-1_i32_53 : i32 to vector<1x256xi32>
    %97 = arith.addi %1, %96 : vector<1x256xi32>
    %c96_i32_54 = arith.constant 96 : i32
    %98 = vector.broadcast %c96_i32_54 : i32 to vector<1x256xi32>
    %99 = arith.cmpi slt, %97, %98 : vector<1x256xi32>
    %100 = arith.andi %95, %99 : vector<1x256xi1>
    %cst_55 = arith.constant 0.000000e+00 : f32
    %101 = vector.shape_cast %100 : vector<1x256xi1> to vector<1x256xi1>
    %102 = vector.broadcast %101 : vector<1x256xi1> to vector<32x256xi1>
    %103 = vector.broadcast %cst_55 : f32 to vector<32x256xf32>
    %104 = arith.select %102, %91, %103 : vector<32x256xi1>, vector<32x256xf32>
    %c255_i32 = arith.constant 255 : i32
    %105 = tpu.dynamic_rotate %32 by %c255_i32 dim 1 : vector<32x256xf32>, i32 -> vector<32x256xf32>
    %c1_i32_56 = arith.constant 1 : i32
    %106 = vector.broadcast %c1_i32_56 : i32 to vector<1x256xi32>
    %107 = arith.addi %1, %106 : vector<1x256xi32>
    %c0_i32_57 = arith.constant 0 : i32
    %108 = vector.broadcast %c0_i32_57 : i32 to vector<1x256xi32>
    %109 = arith.cmpi sge, %107, %108 : vector<1x256xi32>
    %c1_i32_58 = arith.constant 1 : i32
    %110 = vector.broadcast %c1_i32_58 : i32 to vector<1x256xi32>
    %111 = arith.addi %1, %110 : vector<1x256xi32>
    %c96_i32_59 = arith.constant 96 : i32
    %112 = vector.broadcast %c96_i32_59 : i32 to vector<1x256xi32>
    %113 = arith.cmpi slt, %111, %112 : vector<1x256xi32>
    %114 = arith.andi %109, %113 : vector<1x256xi1>
    %cst_60 = arith.constant 0.000000e+00 : f32
    %115 = vector.shape_cast %114 : vector<1x256xi1> to vector<1x256xi1>
    %116 = vector.broadcast %115 : vector<1x256xi1> to vector<32x256xi1>
    %117 = vector.broadcast %cst_60 : f32 to vector<32x256xf32>
    %118 = arith.select %116, %105, %117 : vector<32x256xi1>, vector<32x256xf32>
    %c254_i32 = arith.constant 254 : i32
    %119 = tpu.dynamic_rotate %32 by %c254_i32 dim 1 : vector<32x256xf32>, i32 -> vector<32x256xf32>
    %c2_i32_61 = arith.constant 2 : i32
    %120 = vector.broadcast %c2_i32_61 : i32 to vector<1x256xi32>
    %121 = arith.addi %1, %120 : vector<1x256xi32>
    %c0_i32_62 = arith.constant 0 : i32
    %122 = vector.broadcast %c0_i32_62 : i32 to vector<1x256xi32>
    %123 = arith.cmpi sge, %121, %122 : vector<1x256xi32>
    %c2_i32_63 = arith.constant 2 : i32
    %124 = vector.broadcast %c2_i32_63 : i32 to vector<1x256xi32>
    %125 = arith.addi %1, %124 : vector<1x256xi32>
    %c96_i32_64 = arith.constant 96 : i32
    %126 = vector.broadcast %c96_i32_64 : i32 to vector<1x256xi32>
    %127 = arith.cmpi slt, %125, %126 : vector<1x256xi32>
    %128 = arith.andi %123, %127 : vector<1x256xi1>
    %cst_65 = arith.constant 0.000000e+00 : f32
    %129 = vector.shape_cast %128 : vector<1x256xi1> to vector<1x256xi1>
    %130 = vector.broadcast %129 : vector<1x256xi1> to vector<32x256xi1>
    %131 = vector.broadcast %cst_65 : f32 to vector<32x256xf32>
    %132 = arith.select %130, %119, %131 : vector<32x256xi1>, vector<32x256xf32>
    %c253_i32 = arith.constant 253 : i32
    %133 = tpu.dynamic_rotate %32 by %c253_i32 dim 1 : vector<32x256xf32>, i32 -> vector<32x256xf32>
    %c3_i32_66 = arith.constant 3 : i32
    %134 = vector.broadcast %c3_i32_66 : i32 to vector<1x256xi32>
    %135 = arith.addi %1, %134 : vector<1x256xi32>
    %c0_i32_67 = arith.constant 0 : i32
    %136 = vector.broadcast %c0_i32_67 : i32 to vector<1x256xi32>
    %137 = arith.cmpi sge, %135, %136 : vector<1x256xi32>
    %c3_i32_68 = arith.constant 3 : i32
    %138 = vector.broadcast %c3_i32_68 : i32 to vector<1x256xi32>
    %139 = arith.addi %1, %138 : vector<1x256xi32>
    %c96_i32_69 = arith.constant 96 : i32
    %140 = vector.broadcast %c96_i32_69 : i32 to vector<1x256xi32>
    %141 = arith.cmpi slt, %139, %140 : vector<1x256xi32>
    %142 = arith.andi %137, %141 : vector<1x256xi1>
    %cst_70 = arith.constant 0.000000e+00 : f32
    %143 = vector.shape_cast %142 : vector<1x256xi1> to vector<1x256xi1>
    %144 = vector.broadcast %143 : vector<1x256xi1> to vector<32x256xi1>
    %145 = vector.broadcast %cst_70 : f32 to vector<32x256xf32>
    %146 = arith.select %144, %133, %145 : vector<32x256xi1>, vector<32x256xf32>
    %c252_i32 = arith.constant 252 : i32
    %147 = tpu.dynamic_rotate %32 by %c252_i32 dim 1 : vector<32x256xf32>, i32 -> vector<32x256xf32>
    %c4_i32_71 = arith.constant 4 : i32
    %148 = vector.broadcast %c4_i32_71 : i32 to vector<1x256xi32>
    %149 = arith.addi %1, %148 : vector<1x256xi32>
    %c0_i32_72 = arith.constant 0 : i32
    %150 = vector.broadcast %c0_i32_72 : i32 to vector<1x256xi32>
    %151 = arith.cmpi sge, %149, %150 : vector<1x256xi32>
    %c4_i32_73 = arith.constant 4 : i32
    %152 = vector.broadcast %c4_i32_73 : i32 to vector<1x256xi32>
    %153 = arith.addi %1, %152 : vector<1x256xi32>
    %c96_i32_74 = arith.constant 96 : i32
    %154 = vector.broadcast %c96_i32_74 : i32 to vector<1x256xi32>
    %155 = arith.cmpi slt, %153, %154 : vector<1x256xi32>
    %156 = arith.andi %151, %155 : vector<1x256xi1>
    %cst_75 = arith.constant 0.000000e+00 : f32
    %157 = vector.shape_cast %156 : vector<1x256xi1> to vector<1x256xi1>
    %158 = vector.broadcast %157 : vector<1x256xi1> to vector<32x256xi1>
    %159 = vector.broadcast %cst_75 : f32 to vector<32x256xf32>
    %160 = arith.select %158, %147, %159 : vector<32x256xi1>, vector<32x256xf32>
    %c251_i32 = arith.constant 251 : i32
    %161 = tpu.dynamic_rotate %32 by %c251_i32 dim 1 : vector<32x256xf32>, i32 -> vector<32x256xf32>
    %c5_i32_76 = arith.constant 5 : i32
    %162 = vector.broadcast %c5_i32_76 : i32 to vector<1x256xi32>
    %163 = arith.addi %1, %162 : vector<1x256xi32>
    %c0_i32_77 = arith.constant 0 : i32
    %164 = vector.broadcast %c0_i32_77 : i32 to vector<1x256xi32>
    %165 = arith.cmpi sge, %163, %164 : vector<1x256xi32>
    %c5_i32_78 = arith.constant 5 : i32
    %166 = vector.broadcast %c5_i32_78 : i32 to vector<1x256xi32>
    %167 = arith.addi %1, %166 : vector<1x256xi32>
    %c96_i32_79 = arith.constant 96 : i32
    %168 = vector.broadcast %c96_i32_79 : i32 to vector<1x256xi32>
    %169 = arith.cmpi slt, %167, %168 : vector<1x256xi32>
    %170 = arith.andi %165, %169 : vector<1x256xi1>
    %cst_80 = arith.constant 0.000000e+00 : f32
    %171 = vector.shape_cast %170 : vector<1x256xi1> to vector<1x256xi1>
    %172 = vector.broadcast %171 : vector<1x256xi1> to vector<32x256xi1>
    %173 = vector.broadcast %cst_80 : f32 to vector<32x256xf32>
    %174 = arith.select %172, %161, %173 : vector<32x256xi1>, vector<32x256xf32>
    %175 = tpu.concatenate %48, %62, %76, %90, %104, %32, %118, %132, %146, %160, %174 in 0 : vector<32x256xf32>, vector<32x256xf32>, vector<32x256xf32>, vector<32x256xf32>, vector<32x256xf32>, vector<32x256xf32>, vector<32x256xf32>, vector<32x256xf32>, vector<32x256xf32>, vector<32x256xf32>, vector<32x256xf32> -> vector<352x256xf32>
    %cst_81 = arith.constant dense<0.000000e+00> : vector<32x256xf32>
    %176 = tpu.matmul %34, %175, %cst_81 {dimension_numbers = #tpu.dot_dimension_numbers<[1], [0], [0], [1], [0, 0, 1, 1], [], []>} : vector<32x352xf32>, vector<352x256xf32>, vector<32x256xf32> -> vector<32x256xf32>
    %177 = vector.broadcast %20 : vector<32x1xf32> to vector<32x256xf32>
    %178 = arith.addf %176, %177 : vector<32x256xf32>
    %179 = vector.broadcast %22 : vector<32x1xf32> to vector<32x256xf32>
    %180 = arith.mulf %178, %179 : vector<32x256xf32>
    %181 = vector.broadcast %24 : vector<32x1xf32> to vector<32x256xf32>
    %182 = arith.addf %180, %181 : vector<32x256xf32>
    %cst_82 = arith.constant 0.000000e+00 : f32
    %183 = vector.broadcast %cst_82 : f32 to vector<32x256xf32>
    %184 = arith.maximumf %182, %183 : vector<32x256xf32>
    %c1_83 = arith.constant 1 : index
    %c0_84 = arith.constant 0 : index
    %c0_85 = arith.constant 0 : index
    %185 = vector.load %arg5[%c1_83, %c0_84, %c0_85] : memref<8x32x352xf32, #tpu.memory_space<vmem>>, vector<1x32x352xf32>
    %186 = vector.shape_cast %185 : vector<1x32x352xf32> to vector<32x352xf32>
    %c5_i32_86 = arith.constant 5 : i32
    %187 = tpu.dynamic_rotate %184 by %c5_i32_86 dim 1 : vector<32x256xf32>, i32 -> vector<32x256xf32>
    %c-5_i32_87 = arith.constant -5 : i32
    %188 = vector.broadcast %c-5_i32_87 : i32 to vector<1x256xi32>
    %189 = arith.addi %1, %188 : vector<1x256xi32>
    %c0_i32_88 = arith.constant 0 : i32
    %190 = vector.broadcast %c0_i32_88 : i32 to vector<1x256xi32>
    %191 = arith.cmpi sge, %189, %190 : vector<1x256xi32>
    %c-5_i32_89 = arith.constant -5 : i32
    %192 = vector.broadcast %c-5_i32_89 : i32 to vector<1x256xi32>
    %193 = arith.addi %1, %192 : vector<1x256xi32>
    %c96_i32_90 = arith.constant 96 : i32
    %194 = vector.broadcast %c96_i32_90 : i32 to vector<1x256xi32>
    %195 = arith.cmpi slt, %193, %194 : vector<1x256xi32>
    %196 = arith.andi %191, %195 : vector<1x256xi1>
    %cst_91 = arith.constant 0.000000e+00 : f32
    %197 = vector.shape_cast %196 : vector<1x256xi1> to vector<1x256xi1>
    %198 = vector.broadcast %197 : vector<1x256xi1> to vector<32x256xi1>
    %199 = vector.broadcast %cst_91 : f32 to vector<32x256xf32>
    %200 = arith.select %198, %187, %199 : vector<32x256xi1>, vector<32x256xf32>
    %c4_i32_92 = arith.constant 4 : i32
    %201 = tpu.dynamic_rotate %184 by %c4_i32_92 dim 1 : vector<32x256xf32>, i32 -> vector<32x256xf32>
    %c-4_i32_93 = arith.constant -4 : i32
    %202 = vector.broadcast %c-4_i32_93 : i32 to vector<1x256xi32>
    %203 = arith.addi %1, %202 : vector<1x256xi32>
    %c0_i32_94 = arith.constant 0 : i32
    %204 = vector.broadcast %c0_i32_94 : i32 to vector<1x256xi32>
    %205 = arith.cmpi sge, %203, %204 : vector<1x256xi32>
    %c-4_i32_95 = arith.constant -4 : i32
    %206 = vector.broadcast %c-4_i32_95 : i32 to vector<1x256xi32>
    %207 = arith.addi %1, %206 : vector<1x256xi32>
    %c96_i32_96 = arith.constant 96 : i32
    %208 = vector.broadcast %c96_i32_96 : i32 to vector<1x256xi32>
    %209 = arith.cmpi slt, %207, %208 : vector<1x256xi32>
    %210 = arith.andi %205, %209 : vector<1x256xi1>
    %cst_97 = arith.constant 0.000000e+00 : f32
    %211 = vector.shape_cast %210 : vector<1x256xi1> to vector<1x256xi1>
    %212 = vector.broadcast %211 : vector<1x256xi1> to vector<32x256xi1>
    %213 = vector.broadcast %cst_97 : f32 to vector<32x256xf32>
    %214 = arith.select %212, %201, %213 : vector<32x256xi1>, vector<32x256xf32>
    %c3_i32_98 = arith.constant 3 : i32
    %215 = tpu.dynamic_rotate %184 by %c3_i32_98 dim 1 : vector<32x256xf32>, i32 -> vector<32x256xf32>
    %c-3_i32_99 = arith.constant -3 : i32
    %216 = vector.broadcast %c-3_i32_99 : i32 to vector<1x256xi32>
    %217 = arith.addi %1, %216 : vector<1x256xi32>
    %c0_i32_100 = arith.constant 0 : i32
    %218 = vector.broadcast %c0_i32_100 : i32 to vector<1x256xi32>
    %219 = arith.cmpi sge, %217, %218 : vector<1x256xi32>
    %c-3_i32_101 = arith.constant -3 : i32
    %220 = vector.broadcast %c-3_i32_101 : i32 to vector<1x256xi32>
    %221 = arith.addi %1, %220 : vector<1x256xi32>
    %c96_i32_102 = arith.constant 96 : i32
    %222 = vector.broadcast %c96_i32_102 : i32 to vector<1x256xi32>
    %223 = arith.cmpi slt, %221, %222 : vector<1x256xi32>
    %224 = arith.andi %219, %223 : vector<1x256xi1>
    %cst_103 = arith.constant 0.000000e+00 : f32
    %225 = vector.shape_cast %224 : vector<1x256xi1> to vector<1x256xi1>
    %226 = vector.broadcast %225 : vector<1x256xi1> to vector<32x256xi1>
    %227 = vector.broadcast %cst_103 : f32 to vector<32x256xf32>
    %228 = arith.select %226, %215, %227 : vector<32x256xi1>, vector<32x256xf32>
    %c2_i32_104 = arith.constant 2 : i32
    %229 = tpu.dynamic_rotate %184 by %c2_i32_104 dim 1 : vector<32x256xf32>, i32 -> vector<32x256xf32>
    %c-2_i32_105 = arith.constant -2 : i32
    %230 = vector.broadcast %c-2_i32_105 : i32 to vector<1x256xi32>
    %231 = arith.addi %1, %230 : vector<1x256xi32>
    %c0_i32_106 = arith.constant 0 : i32
    %232 = vector.broadcast %c0_i32_106 : i32 to vector<1x256xi32>
    %233 = arith.cmpi sge, %231, %232 : vector<1x256xi32>
    %c-2_i32_107 = arith.constant -2 : i32
    %234 = vector.broadcast %c-2_i32_107 : i32 to vector<1x256xi32>
    %235 = arith.addi %1, %234 : vector<1x256xi32>
    %c96_i32_108 = arith.constant 96 : i32
    %236 = vector.broadcast %c96_i32_108 : i32 to vector<1x256xi32>
    %237 = arith.cmpi slt, %235, %236 : vector<1x256xi32>
    %238 = arith.andi %233, %237 : vector<1x256xi1>
    %cst_109 = arith.constant 0.000000e+00 : f32
    %239 = vector.shape_cast %238 : vector<1x256xi1> to vector<1x256xi1>
    %240 = vector.broadcast %239 : vector<1x256xi1> to vector<32x256xi1>
    %241 = vector.broadcast %cst_109 : f32 to vector<32x256xf32>
    %242 = arith.select %240, %229, %241 : vector<32x256xi1>, vector<32x256xf32>
    %c1_i32_110 = arith.constant 1 : i32
    %243 = tpu.dynamic_rotate %184 by %c1_i32_110 dim 1 : vector<32x256xf32>, i32 -> vector<32x256xf32>
    %c-1_i32_111 = arith.constant -1 : i32
    %244 = vector.broadcast %c-1_i32_111 : i32 to vector<1x256xi32>
    %245 = arith.addi %1, %244 : vector<1x256xi32>
    %c0_i32_112 = arith.constant 0 : i32
    %246 = vector.broadcast %c0_i32_112 : i32 to vector<1x256xi32>
    %247 = arith.cmpi sge, %245, %246 : vector<1x256xi32>
    %c-1_i32_113 = arith.constant -1 : i32
    %248 = vector.broadcast %c-1_i32_113 : i32 to vector<1x256xi32>
    %249 = arith.addi %1, %248 : vector<1x256xi32>
    %c96_i32_114 = arith.constant 96 : i32
    %250 = vector.broadcast %c96_i32_114 : i32 to vector<1x256xi32>
    %251 = arith.cmpi slt, %249, %250 : vector<1x256xi32>
    %252 = arith.andi %247, %251 : vector<1x256xi1>
    %cst_115 = arith.constant 0.000000e+00 : f32
    %253 = vector.shape_cast %252 : vector<1x256xi1> to vector<1x256xi1>
    %254 = vector.broadcast %253 : vector<1x256xi1> to vector<32x256xi1>
    %255 = vector.broadcast %cst_115 : f32 to vector<32x256xf32>
    %256 = arith.select %254, %243, %255 : vector<32x256xi1>, vector<32x256xf32>
    %c255_i32_116 = arith.constant 255 : i32
    %257 = tpu.dynamic_rotate %184 by %c255_i32_116 dim 1 : vector<32x256xf32>, i32 -> vector<32x256xf32>
    %c1_i32_117 = arith.constant 1 : i32
    %258 = vector.broadcast %c1_i32_117 : i32 to vector<1x256xi32>
    %259 = arith.addi %1, %258 : vector<1x256xi32>
    %c0_i32_118 = arith.constant 0 : i32
    %260 = vector.broadcast %c0_i32_118 : i32 to vector<1x256xi32>
    %261 = arith.cmpi sge, %259, %260 : vector<1x256xi32>
    %c1_i32_119 = arith.constant 1 : i32
    %262 = vector.broadcast %c1_i32_119 : i32 to vector<1x256xi32>
    %263 = arith.addi %1, %262 : vector<1x256xi32>
    %c96_i32_120 = arith.constant 96 : i32
    %264 = vector.broadcast %c96_i32_120 : i32 to vector<1x256xi32>
    %265 = arith.cmpi slt, %263, %264 : vector<1x256xi32>
    %266 = arith.andi %261, %265 : vector<1x256xi1>
    %cst_121 = arith.constant 0.000000e+00 : f32
    %267 = vector.shape_cast %266 : vector<1x256xi1> to vector<1x256xi1>
    %268 = vector.broadcast %267 : vector<1x256xi1> to vector<32x256xi1>
    %269 = vector.broadcast %cst_121 : f32 to vector<32x256xf32>
    %270 = arith.select %268, %257, %269 : vector<32x256xi1>, vector<32x256xf32>
    %c254_i32_122 = arith.constant 254 : i32
    %271 = tpu.dynamic_rotate %184 by %c254_i32_122 dim 1 : vector<32x256xf32>, i32 -> vector<32x256xf32>
    %c2_i32_123 = arith.constant 2 : i32
    %272 = vector.broadcast %c2_i32_123 : i32 to vector<1x256xi32>
    %273 = arith.addi %1, %272 : vector<1x256xi32>
    %c0_i32_124 = arith.constant 0 : i32
    %274 = vector.broadcast %c0_i32_124 : i32 to vector<1x256xi32>
    %275 = arith.cmpi sge, %273, %274 : vector<1x256xi32>
    %c2_i32_125 = arith.constant 2 : i32
    %276 = vector.broadcast %c2_i32_125 : i32 to vector<1x256xi32>
    %277 = arith.addi %1, %276 : vector<1x256xi32>
    %c96_i32_126 = arith.constant 96 : i32
    %278 = vector.broadcast %c96_i32_126 : i32 to vector<1x256xi32>
    %279 = arith.cmpi slt, %277, %278 : vector<1x256xi32>
    %280 = arith.andi %275, %279 : vector<1x256xi1>
    %cst_127 = arith.constant 0.000000e+00 : f32
    %281 = vector.shape_cast %280 : vector<1x256xi1> to vector<1x256xi1>
    %282 = vector.broadcast %281 : vector<1x256xi1> to vector<32x256xi1>
    %283 = vector.broadcast %cst_127 : f32 to vector<32x256xf32>
    %284 = arith.select %282, %271, %283 : vector<32x256xi1>, vector<32x256xf32>
    %c253_i32_128 = arith.constant 253 : i32
    %285 = tpu.dynamic_rotate %184 by %c253_i32_128 dim 1 : vector<32x256xf32>, i32 -> vector<32x256xf32>
    %c3_i32_129 = arith.constant 3 : i32
    %286 = vector.broadcast %c3_i32_129 : i32 to vector<1x256xi32>
    %287 = arith.addi %1, %286 : vector<1x256xi32>
    %c0_i32_130 = arith.constant 0 : i32
    %288 = vector.broadcast %c0_i32_130 : i32 to vector<1x256xi32>
    %289 = arith.cmpi sge, %287, %288 : vector<1x256xi32>
    %c3_i32_131 = arith.constant 3 : i32
    %290 = vector.broadcast %c3_i32_131 : i32 to vector<1x256xi32>
    %291 = arith.addi %1, %290 : vector<1x256xi32>
    %c96_i32_132 = arith.constant 96 : i32
    %292 = vector.broadcast %c96_i32_132 : i32 to vector<1x256xi32>
    %293 = arith.cmpi slt, %291, %292 : vector<1x256xi32>
    %294 = arith.andi %289, %293 : vector<1x256xi1>
    %cst_133 = arith.constant 0.000000e+00 : f32
    %295 = vector.shape_cast %294 : vector<1x256xi1> to vector<1x256xi1>
    %296 = vector.broadcast %295 : vector<1x256xi1> to vector<32x256xi1>
    %297 = vector.broadcast %cst_133 : f32 to vector<32x256xf32>
    %298 = arith.select %296, %285, %297 : vector<32x256xi1>, vector<32x256xf32>
    %c252_i32_134 = arith.constant 252 : i32
    %299 = tpu.dynamic_rotate %184 by %c252_i32_134 dim 1 : vector<32x256xf32>, i32 -> vector<32x256xf32>
    %c4_i32_135 = arith.constant 4 : i32
    %300 = vector.broadcast %c4_i32_135 : i32 to vector<1x256xi32>
    %301 = arith.addi %1, %300 : vector<1x256xi32>
    %c0_i32_136 = arith.constant 0 : i32
    %302 = vector.broadcast %c0_i32_136 : i32 to vector<1x256xi32>
    %303 = arith.cmpi sge, %301, %302 : vector<1x256xi32>
    %c4_i32_137 = arith.constant 4 : i32
    %304 = vector.broadcast %c4_i32_137 : i32 to vector<1x256xi32>
    %305 = arith.addi %1, %304 : vector<1x256xi32>
    %c96_i32_138 = arith.constant 96 : i32
    %306 = vector.broadcast %c96_i32_138 : i32 to vector<1x256xi32>
    %307 = arith.cmpi slt, %305, %306 : vector<1x256xi32>
    %308 = arith.andi %303, %307 : vector<1x256xi1>
    %cst_139 = arith.constant 0.000000e+00 : f32
    %309 = vector.shape_cast %308 : vector<1x256xi1> to vector<1x256xi1>
    %310 = vector.broadcast %309 : vector<1x256xi1> to vector<32x256xi1>
    %311 = vector.broadcast %cst_139 : f32 to vector<32x256xf32>
    %312 = arith.select %310, %299, %311 : vector<32x256xi1>, vector<32x256xf32>
    %c251_i32_140 = arith.constant 251 : i32
    %313 = tpu.dynamic_rotate %184 by %c251_i32_140 dim 1 : vector<32x256xf32>, i32 -> vector<32x256xf32>
    %c5_i32_141 = arith.constant 5 : i32
    %314 = vector.broadcast %c5_i32_141 : i32 to vector<1x256xi32>
    %315 = arith.addi %1, %314 : vector<1x256xi32>
    %c0_i32_142 = arith.constant 0 : i32
    %316 = vector.broadcast %c0_i32_142 : i32 to vector<1x256xi32>
    %317 = arith.cmpi sge, %315, %316 : vector<1x256xi32>
    %c5_i32_143 = arith.constant 5 : i32
    %318 = vector.broadcast %c5_i32_143 : i32 to vector<1x256xi32>
    %319 = arith.addi %1, %318 : vector<1x256xi32>
    %c96_i32_144 = arith.constant 96 : i32
    %320 = vector.broadcast %c96_i32_144 : i32 to vector<1x256xi32>
    %321 = arith.cmpi slt, %319, %320 : vector<1x256xi32>
    %322 = arith.andi %317, %321 : vector<1x256xi1>
    %cst_145 = arith.constant 0.000000e+00 : f32
    %323 = vector.shape_cast %322 : vector<1x256xi1> to vector<1x256xi1>
    %324 = vector.broadcast %323 : vector<1x256xi1> to vector<32x256xi1>
    %325 = vector.broadcast %cst_145 : f32 to vector<32x256xf32>
    %326 = arith.select %324, %313, %325 : vector<32x256xi1>, vector<32x256xf32>
    %327 = tpu.concatenate %200, %214, %228, %242, %256, %184, %270, %284, %298, %312, %326 in 0 : vector<32x256xf32>, vector<32x256xf32>, vector<32x256xf32>, vector<32x256xf32>, vector<32x256xf32>, vector<32x256xf32>, vector<32x256xf32>, vector<32x256xf32>, vector<32x256xf32>, vector<32x256xf32>, vector<32x256xf32> -> vector<352x256xf32>
    %cst_146 = arith.constant dense<0.000000e+00> : vector<32x256xf32>
    %328 = tpu.matmul %186, %327, %cst_146 {dimension_numbers = #tpu.dot_dimension_numbers<[1], [0], [0], [1], [0, 0, 1, 1], [], []>} : vector<32x352xf32>, vector<352x256xf32>, vector<32x256xf32> -> vector<32x256xf32>
    %329 = vector.broadcast %26 : vector<32x1xf32> to vector<32x256xf32>
    %330 = arith.addf %328, %329 : vector<32x256xf32>
    %331 = arith.addf %7, %330 : vector<32x256xf32>
    %c1_147 = arith.constant 1 : index
    %c0_148 = arith.constant 0 : index
    %c0_149 = arith.constant 0 : index
    %c0_150 = arith.constant 0 : index
    %332 = vector.load %arg6[%c1_147, %c0_148, %c0_149, %c0_150] : memref<4x6x32x1xf32, #tpu.memory_space<vmem>>, vector<1x1x32x1xf32>
    %333 = vector.shape_cast %332 : vector<1x1x32x1xf32> to vector<32x1xf32>
    %c1_151 = arith.constant 1 : index
    %c1_152 = arith.constant 1 : index
    %c0_153 = arith.constant 0 : index
    %c0_154 = arith.constant 0 : index
    %334 = vector.load %arg6[%c1_151, %c1_152, %c0_153, %c0_154] : memref<4x6x32x1xf32, #tpu.memory_space<vmem>>, vector<1x1x32x1xf32>
    %335 = vector.shape_cast %334 : vector<1x1x32x1xf32> to vector<32x1xf32>
    %c1_155 = arith.constant 1 : index
    %c2_156 = arith.constant 2 : index
    %c0_157 = arith.constant 0 : index
    %c0_158 = arith.constant 0 : index
    %336 = vector.load %arg6[%c1_155, %c2_156, %c0_157, %c0_158] : memref<4x6x32x1xf32, #tpu.memory_space<vmem>>, vector<1x1x32x1xf32>
    %337 = vector.shape_cast %336 : vector<1x1x32x1xf32> to vector<32x1xf32>
    %c1_159 = arith.constant 1 : index
    %c3_160 = arith.constant 3 : index
    %c0_161 = arith.constant 0 : index
    %c0_162 = arith.constant 0 : index
    %338 = vector.load %arg6[%c1_159, %c3_160, %c0_161, %c0_162] : memref<4x6x32x1xf32, #tpu.memory_space<vmem>>, vector<1x1x32x1xf32>
    %339 = vector.shape_cast %338 : vector<1x1x32x1xf32> to vector<32x1xf32>
    %c1_163 = arith.constant 1 : index
    %c4_164 = arith.constant 4 : index
    %c0_165 = arith.constant 0 : index
    %c0_166 = arith.constant 0 : index
    %340 = vector.load %arg6[%c1_163, %c4_164, %c0_165, %c0_166] : memref<4x6x32x1xf32, #tpu.memory_space<vmem>>, vector<1x1x32x1xf32>
    %341 = vector.shape_cast %340 : vector<1x1x32x1xf32> to vector<32x1xf32>
    %c1_167 = arith.constant 1 : index
    %c5_168 = arith.constant 5 : index
    %c0_169 = arith.constant 0 : index
    %c0_170 = arith.constant 0 : index
    %342 = vector.load %arg6[%c1_167, %c5_168, %c0_169, %c0_170] : memref<4x6x32x1xf32, #tpu.memory_space<vmem>>, vector<1x1x32x1xf32>
    %343 = vector.shape_cast %342 : vector<1x1x32x1xf32> to vector<32x1xf32>
    %344 = vector.broadcast %333 : vector<32x1xf32> to vector<32x256xf32>
    %345 = arith.mulf %331, %344 : vector<32x256xf32>
    %346 = vector.broadcast %335 : vector<32x1xf32> to vector<32x256xf32>
    %347 = arith.addf %345, %346 : vector<32x256xf32>
    %cst_171 = arith.constant 0.000000e+00 : f32
    %348 = vector.broadcast %cst_171 : f32 to vector<32x256xf32>
    %349 = arith.maximumf %347, %348 : vector<32x256xf32>
    %c2_172 = arith.constant 2 : index
    %c0_173 = arith.constant 0 : index
    %c0_174 = arith.constant 0 : index
    %350 = vector.load %arg5[%c2_172, %c0_173, %c0_174] : memref<8x32x352xf32, #tpu.memory_space<vmem>>, vector<1x32x352xf32>
    %351 = vector.shape_cast %350 : vector<1x32x352xf32> to vector<32x352xf32>
    %c5_i32_175 = arith.constant 5 : i32
    %352 = tpu.dynamic_rotate %349 by %c5_i32_175 dim 1 : vector<32x256xf32>, i32 -> vector<32x256xf32>
    %c-5_i32_176 = arith.constant -5 : i32
    %353 = vector.broadcast %c-5_i32_176 : i32 to vector<1x256xi32>
    %354 = arith.addi %1, %353 : vector<1x256xi32>
    %c0_i32_177 = arith.constant 0 : i32
    %355 = vector.broadcast %c0_i32_177 : i32 to vector<1x256xi32>
    %356 = arith.cmpi sge, %354, %355 : vector<1x256xi32>
    %c-5_i32_178 = arith.constant -5 : i32
    %357 = vector.broadcast %c-5_i32_178 : i32 to vector<1x256xi32>
    %358 = arith.addi %1, %357 : vector<1x256xi32>
    %c96_i32_179 = arith.constant 96 : i32
    %359 = vector.broadcast %c96_i32_179 : i32 to vector<1x256xi32>
    %360 = arith.cmpi slt, %358, %359 : vector<1x256xi32>
    %361 = arith.andi %356, %360 : vector<1x256xi1>
    %cst_180 = arith.constant 0.000000e+00 : f32
    %362 = vector.shape_cast %361 : vector<1x256xi1> to vector<1x256xi1>
    %363 = vector.broadcast %362 : vector<1x256xi1> to vector<32x256xi1>
    %364 = vector.broadcast %cst_180 : f32 to vector<32x256xf32>
    %365 = arith.select %363, %352, %364 : vector<32x256xi1>, vector<32x256xf32>
    %c4_i32_181 = arith.constant 4 : i32
    %366 = tpu.dynamic_rotate %349 by %c4_i32_181 dim 1 : vector<32x256xf32>, i32 -> vector<32x256xf32>
    %c-4_i32_182 = arith.constant -4 : i32
    %367 = vector.broadcast %c-4_i32_182 : i32 to vector<1x256xi32>
    %368 = arith.addi %1, %367 : vector<1x256xi32>
    %c0_i32_183 = arith.constant 0 : i32
    %369 = vector.broadcast %c0_i32_183 : i32 to vector<1x256xi32>
    %370 = arith.cmpi sge, %368, %369 : vector<1x256xi32>
    %c-4_i32_184 = arith.constant -4 : i32
    %371 = vector.broadcast %c-4_i32_184 : i32 to vector<1x256xi32>
    %372 = arith.addi %1, %371 : vector<1x256xi32>
    %c96_i32_185 = arith.constant 96 : i32
    %373 = vector.broadcast %c96_i32_185 : i32 to vector<1x256xi32>
    %374 = arith.cmpi slt, %372, %373 : vector<1x256xi32>
    %375 = arith.andi %370, %374 : vector<1x256xi1>
    %cst_186 = arith.constant 0.000000e+00 : f32
    %376 = vector.shape_cast %375 : vector<1x256xi1> to vector<1x256xi1>
    %377 = vector.broadcast %376 : vector<1x256xi1> to vector<32x256xi1>
    %378 = vector.broadcast %cst_186 : f32 to vector<32x256xf32>
    %379 = arith.select %377, %366, %378 : vector<32x256xi1>, vector<32x256xf32>
    %c3_i32_187 = arith.constant 3 : i32
    %380 = tpu.dynamic_rotate %349 by %c3_i32_187 dim 1 : vector<32x256xf32>, i32 -> vector<32x256xf32>
    %c-3_i32_188 = arith.constant -3 : i32
    %381 = vector.broadcast %c-3_i32_188 : i32 to vector<1x256xi32>
    %382 = arith.addi %1, %381 : vector<1x256xi32>
    %c0_i32_189 = arith.constant 0 : i32
    %383 = vector.broadcast %c0_i32_189 : i32 to vector<1x256xi32>
    %384 = arith.cmpi sge, %382, %383 : vector<1x256xi32>
    %c-3_i32_190 = arith.constant -3 : i32
    %385 = vector.broadcast %c-3_i32_190 : i32 to vector<1x256xi32>
    %386 = arith.addi %1, %385 : vector<1x256xi32>
    %c96_i32_191 = arith.constant 96 : i32
    %387 = vector.broadcast %c96_i32_191 : i32 to vector<1x256xi32>
    %388 = arith.cmpi slt, %386, %387 : vector<1x256xi32>
    %389 = arith.andi %384, %388 : vector<1x256xi1>
    %cst_192 = arith.constant 0.000000e+00 : f32
    %390 = vector.shape_cast %389 : vector<1x256xi1> to vector<1x256xi1>
    %391 = vector.broadcast %390 : vector<1x256xi1> to vector<32x256xi1>
    %392 = vector.broadcast %cst_192 : f32 to vector<32x256xf32>
    %393 = arith.select %391, %380, %392 : vector<32x256xi1>, vector<32x256xf32>
    %c2_i32_193 = arith.constant 2 : i32
    %394 = tpu.dynamic_rotate %349 by %c2_i32_193 dim 1 : vector<32x256xf32>, i32 -> vector<32x256xf32>
    %c-2_i32_194 = arith.constant -2 : i32
    %395 = vector.broadcast %c-2_i32_194 : i32 to vector<1x256xi32>
    %396 = arith.addi %1, %395 : vector<1x256xi32>
    %c0_i32_195 = arith.constant 0 : i32
    %397 = vector.broadcast %c0_i32_195 : i32 to vector<1x256xi32>
    %398 = arith.cmpi sge, %396, %397 : vector<1x256xi32>
    %c-2_i32_196 = arith.constant -2 : i32
    %399 = vector.broadcast %c-2_i32_196 : i32 to vector<1x256xi32>
    %400 = arith.addi %1, %399 : vector<1x256xi32>
    %c96_i32_197 = arith.constant 96 : i32
    %401 = vector.broadcast %c96_i32_197 : i32 to vector<1x256xi32>
    %402 = arith.cmpi slt, %400, %401 : vector<1x256xi32>
    %403 = arith.andi %398, %402 : vector<1x256xi1>
    %cst_198 = arith.constant 0.000000e+00 : f32
    %404 = vector.shape_cast %403 : vector<1x256xi1> to vector<1x256xi1>
    %405 = vector.broadcast %404 : vector<1x256xi1> to vector<32x256xi1>
    %406 = vector.broadcast %cst_198 : f32 to vector<32x256xf32>
    %407 = arith.select %405, %394, %406 : vector<32x256xi1>, vector<32x256xf32>
    %c1_i32_199 = arith.constant 1 : i32
    %408 = tpu.dynamic_rotate %349 by %c1_i32_199 dim 1 : vector<32x256xf32>, i32 -> vector<32x256xf32>
    %c-1_i32_200 = arith.constant -1 : i32
    %409 = vector.broadcast %c-1_i32_200 : i32 to vector<1x256xi32>
    %410 = arith.addi %1, %409 : vector<1x256xi32>
    %c0_i32_201 = arith.constant 0 : i32
    %411 = vector.broadcast %c0_i32_201 : i32 to vector<1x256xi32>
    %412 = arith.cmpi sge, %410, %411 : vector<1x256xi32>
    %c-1_i32_202 = arith.constant -1 : i32
    %413 = vector.broadcast %c-1_i32_202 : i32 to vector<1x256xi32>
    %414 = arith.addi %1, %413 : vector<1x256xi32>
    %c96_i32_203 = arith.constant 96 : i32
    %415 = vector.broadcast %c96_i32_203 : i32 to vector<1x256xi32>
    %416 = arith.cmpi slt, %414, %415 : vector<1x256xi32>
    %417 = arith.andi %412, %416 : vector<1x256xi1>
    %cst_204 = arith.constant 0.000000e+00 : f32
    %418 = vector.shape_cast %417 : vector<1x256xi1> to vector<1x256xi1>
    %419 = vector.broadcast %418 : vector<1x256xi1> to vector<32x256xi1>
    %420 = vector.broadcast %cst_204 : f32 to vector<32x256xf32>
    %421 = arith.select %419, %408, %420 : vector<32x256xi1>, vector<32x256xf32>
    %c255_i32_205 = arith.constant 255 : i32
    %422 = tpu.dynamic_rotate %349 by %c255_i32_205 dim 1 : vector<32x256xf32>, i32 -> vector<32x256xf32>
    %c1_i32_206 = arith.constant 1 : i32
    %423 = vector.broadcast %c1_i32_206 : i32 to vector<1x256xi32>
    %424 = arith.addi %1, %423 : vector<1x256xi32>
    %c0_i32_207 = arith.constant 0 : i32
    %425 = vector.broadcast %c0_i32_207 : i32 to vector<1x256xi32>
    %426 = arith.cmpi sge, %424, %425 : vector<1x256xi32>
    %c1_i32_208 = arith.constant 1 : i32
    %427 = vector.broadcast %c1_i32_208 : i32 to vector<1x256xi32>
    %428 = arith.addi %1, %427 : vector<1x256xi32>
    %c96_i32_209 = arith.constant 96 : i32
    %429 = vector.broadcast %c96_i32_209 : i32 to vector<1x256xi32>
    %430 = arith.cmpi slt, %428, %429 : vector<1x256xi32>
    %431 = arith.andi %426, %430 : vector<1x256xi1>
    %cst_210 = arith.constant 0.000000e+00 : f32
    %432 = vector.shape_cast %431 : vector<1x256xi1> to vector<1x256xi1>
    %433 = vector.broadcast %432 : vector<1x256xi1> to vector<32x256xi1>
    %434 = vector.broadcast %cst_210 : f32 to vector<32x256xf32>
    %435 = arith.select %433, %422, %434 : vector<32x256xi1>, vector<32x256xf32>
    %c254_i32_211 = arith.constant 254 : i32
    %436 = tpu.dynamic_rotate %349 by %c254_i32_211 dim 1 : vector<32x256xf32>, i32 -> vector<32x256xf32>
    %c2_i32_212 = arith.constant 2 : i32
    %437 = vector.broadcast %c2_i32_212 : i32 to vector<1x256xi32>
    %438 = arith.addi %1, %437 : vector<1x256xi32>
    %c0_i32_213 = arith.constant 0 : i32
    %439 = vector.broadcast %c0_i32_213 : i32 to vector<1x256xi32>
    %440 = arith.cmpi sge, %438, %439 : vector<1x256xi32>
    %c2_i32_214 = arith.constant 2 : i32
    %441 = vector.broadcast %c2_i32_214 : i32 to vector<1x256xi32>
    %442 = arith.addi %1, %441 : vector<1x256xi32>
    %c96_i32_215 = arith.constant 96 : i32
    %443 = vector.broadcast %c96_i32_215 : i32 to vector<1x256xi32>
    %444 = arith.cmpi slt, %442, %443 : vector<1x256xi32>
    %445 = arith.andi %440, %444 : vector<1x256xi1>
    %cst_216 = arith.constant 0.000000e+00 : f32
    %446 = vector.shape_cast %445 : vector<1x256xi1> to vector<1x256xi1>
    %447 = vector.broadcast %446 : vector<1x256xi1> to vector<32x256xi1>
    %448 = vector.broadcast %cst_216 : f32 to vector<32x256xf32>
    %449 = arith.select %447, %436, %448 : vector<32x256xi1>, vector<32x256xf32>
    %c253_i32_217 = arith.constant 253 : i32
    %450 = tpu.dynamic_rotate %349 by %c253_i32_217 dim 1 : vector<32x256xf32>, i32 -> vector<32x256xf32>
    %c3_i32_218 = arith.constant 3 : i32
    %451 = vector.broadcast %c3_i32_218 : i32 to vector<1x256xi32>
    %452 = arith.addi %1, %451 : vector<1x256xi32>
    %c0_i32_219 = arith.constant 0 : i32
    %453 = vector.broadcast %c0_i32_219 : i32 to vector<1x256xi32>
    %454 = arith.cmpi sge, %452, %453 : vector<1x256xi32>
    %c3_i32_220 = arith.constant 3 : i32
    %455 = vector.broadcast %c3_i32_220 : i32 to vector<1x256xi32>
    %456 = arith.addi %1, %455 : vector<1x256xi32>
    %c96_i32_221 = arith.constant 96 : i32
    %457 = vector.broadcast %c96_i32_221 : i32 to vector<1x256xi32>
    %458 = arith.cmpi slt, %456, %457 : vector<1x256xi32>
    %459 = arith.andi %454, %458 : vector<1x256xi1>
    %cst_222 = arith.constant 0.000000e+00 : f32
    %460 = vector.shape_cast %459 : vector<1x256xi1> to vector<1x256xi1>
    %461 = vector.broadcast %460 : vector<1x256xi1> to vector<32x256xi1>
    %462 = vector.broadcast %cst_222 : f32 to vector<32x256xf32>
    %463 = arith.select %461, %450, %462 : vector<32x256xi1>, vector<32x256xf32>
    %c252_i32_223 = arith.constant 252 : i32
    %464 = tpu.dynamic_rotate %349 by %c252_i32_223 dim 1 : vector<32x256xf32>, i32 -> vector<32x256xf32>
    %c4_i32_224 = arith.constant 4 : i32
    %465 = vector.broadcast %c4_i32_224 : i32 to vector<1x256xi32>
    %466 = arith.addi %1, %465 : vector<1x256xi32>
    %c0_i32_225 = arith.constant 0 : i32
    %467 = vector.broadcast %c0_i32_225 : i32 to vector<1x256xi32>
    %468 = arith.cmpi sge, %466, %467 : vector<1x256xi32>
    %c4_i32_226 = arith.constant 4 : i32
    %469 = vector.broadcast %c4_i32_226 : i32 to vector<1x256xi32>
    %470 = arith.addi %1, %469 : vector<1x256xi32>
    %c96_i32_227 = arith.constant 96 : i32
    %471 = vector.broadcast %c96_i32_227 : i32 to vector<1x256xi32>
    %472 = arith.cmpi slt, %470, %471 : vector<1x256xi32>
    %473 = arith.andi %468, %472 : vector<1x256xi1>
    %cst_228 = arith.constant 0.000000e+00 : f32
    %474 = vector.shape_cast %473 : vector<1x256xi1> to vector<1x256xi1>
    %475 = vector.broadcast %474 : vector<1x256xi1> to vector<32x256xi1>
    %476 = vector.broadcast %cst_228 : f32 to vector<32x256xf32>
    %477 = arith.select %475, %464, %476 : vector<32x256xi1>, vector<32x256xf32>
    %c251_i32_229 = arith.constant 251 : i32
    %478 = tpu.dynamic_rotate %349 by %c251_i32_229 dim 1 : vector<32x256xf32>, i32 -> vector<32x256xf32>
    %c5_i32_230 = arith.constant 5 : i32
    %479 = vector.broadcast %c5_i32_230 : i32 to vector<1x256xi32>
    %480 = arith.addi %1, %479 : vector<1x256xi32>
    %c0_i32_231 = arith.constant 0 : i32
    %481 = vector.broadcast %c0_i32_231 : i32 to vector<1x256xi32>
    %482 = arith.cmpi sge, %480, %481 : vector<1x256xi32>
    %c5_i32_232 = arith.constant 5 : i32
    %483 = vector.broadcast %c5_i32_232 : i32 to vector<1x256xi32>
    %484 = arith.addi %1, %483 : vector<1x256xi32>
    %c96_i32_233 = arith.constant 96 : i32
    %485 = vector.broadcast %c96_i32_233 : i32 to vector<1x256xi32>
    %486 = arith.cmpi slt, %484, %485 : vector<1x256xi32>
    %487 = arith.andi %482, %486 : vector<1x256xi1>
    %cst_234 = arith.constant 0.000000e+00 : f32
    %488 = vector.shape_cast %487 : vector<1x256xi1> to vector<1x256xi1>
    %489 = vector.broadcast %488 : vector<1x256xi1> to vector<32x256xi1>
    %490 = vector.broadcast %cst_234 : f32 to vector<32x256xf32>
    %491 = arith.select %489, %478, %490 : vector<32x256xi1>, vector<32x256xf32>
    %492 = tpu.concatenate %365, %379, %393, %407, %421, %349, %435, %449, %463, %477, %491 in 0 : vector<32x256xf32>, vector<32x256xf32>, vector<32x256xf32>, vector<32x256xf32>, vector<32x256xf32>, vector<32x256xf32>, vector<32x256xf32>, vector<32x256xf32>, vector<32x256xf32>, vector<32x256xf32>, vector<32x256xf32> -> vector<352x256xf32>
    %cst_235 = arith.constant dense<0.000000e+00> : vector<32x256xf32>
    %493 = tpu.matmul %351, %492, %cst_235 {dimension_numbers = #tpu.dot_dimension_numbers<[1], [0], [0], [1], [0, 0, 1, 1], [], []>} : vector<32x352xf32>, vector<352x256xf32>, vector<32x256xf32> -> vector<32x256xf32>
    %494 = vector.broadcast %337 : vector<32x1xf32> to vector<32x256xf32>
    %495 = arith.addf %493, %494 : vector<32x256xf32>
    %496 = vector.broadcast %339 : vector<32x1xf32> to vector<32x256xf32>
    %497 = arith.mulf %495, %496 : vector<32x256xf32>
    %498 = vector.broadcast %341 : vector<32x1xf32> to vector<32x256xf32>
    %499 = arith.addf %497, %498 : vector<32x256xf32>
    %cst_236 = arith.constant 0.000000e+00 : f32
    %500 = vector.broadcast %cst_236 : f32 to vector<32x256xf32>
    %501 = arith.maximumf %499, %500 : vector<32x256xf32>
    %c3_237 = arith.constant 3 : index
    %c0_238 = arith.constant 0 : index
    %c0_239 = arith.constant 0 : index
    %502 = vector.load %arg5[%c3_237, %c0_238, %c0_239] : memref<8x32x352xf32, #tpu.memory_space<vmem>>, vector<1x32x352xf32>
    %503 = vector.shape_cast %502 : vector<1x32x352xf32> to vector<32x352xf32>
    %c5_i32_240 = arith.constant 5 : i32
    %504 = tpu.dynamic_rotate %501 by %c5_i32_240 dim 1 : vector<32x256xf32>, i32 -> vector<32x256xf32>
    %c-5_i32_241 = arith.constant -5 : i32
    %505 = vector.broadcast %c-5_i32_241 : i32 to vector<1x256xi32>
    %506 = arith.addi %1, %505 : vector<1x256xi32>
    %c0_i32_242 = arith.constant 0 : i32
    %507 = vector.broadcast %c0_i32_242 : i32 to vector<1x256xi32>
    %508 = arith.cmpi sge, %506, %507 : vector<1x256xi32>
    %c-5_i32_243 = arith.constant -5 : i32
    %509 = vector.broadcast %c-5_i32_243 : i32 to vector<1x256xi32>
    %510 = arith.addi %1, %509 : vector<1x256xi32>
    %c96_i32_244 = arith.constant 96 : i32
    %511 = vector.broadcast %c96_i32_244 : i32 to vector<1x256xi32>
    %512 = arith.cmpi slt, %510, %511 : vector<1x256xi32>
    %513 = arith.andi %508, %512 : vector<1x256xi1>
    %cst_245 = arith.constant 0.000000e+00 : f32
    %514 = vector.shape_cast %513 : vector<1x256xi1> to vector<1x256xi1>
    %515 = vector.broadcast %514 : vector<1x256xi1> to vector<32x256xi1>
    %516 = vector.broadcast %cst_245 : f32 to vector<32x256xf32>
    %517 = arith.select %515, %504, %516 : vector<32x256xi1>, vector<32x256xf32>
    %c4_i32_246 = arith.constant 4 : i32
    %518 = tpu.dynamic_rotate %501 by %c4_i32_246 dim 1 : vector<32x256xf32>, i32 -> vector<32x256xf32>
    %c-4_i32_247 = arith.constant -4 : i32
    %519 = vector.broadcast %c-4_i32_247 : i32 to vector<1x256xi32>
    %520 = arith.addi %1, %519 : vector<1x256xi32>
    %c0_i32_248 = arith.constant 0 : i32
    %521 = vector.broadcast %c0_i32_248 : i32 to vector<1x256xi32>
    %522 = arith.cmpi sge, %520, %521 : vector<1x256xi32>
    %c-4_i32_249 = arith.constant -4 : i32
    %523 = vector.broadcast %c-4_i32_249 : i32 to vector<1x256xi32>
    %524 = arith.addi %1, %523 : vector<1x256xi32>
    %c96_i32_250 = arith.constant 96 : i32
    %525 = vector.broadcast %c96_i32_250 : i32 to vector<1x256xi32>
    %526 = arith.cmpi slt, %524, %525 : vector<1x256xi32>
    %527 = arith.andi %522, %526 : vector<1x256xi1>
    %cst_251 = arith.constant 0.000000e+00 : f32
    %528 = vector.shape_cast %527 : vector<1x256xi1> to vector<1x256xi1>
    %529 = vector.broadcast %528 : vector<1x256xi1> to vector<32x256xi1>
    %530 = vector.broadcast %cst_251 : f32 to vector<32x256xf32>
    %531 = arith.select %529, %518, %530 : vector<32x256xi1>, vector<32x256xf32>
    %c3_i32_252 = arith.constant 3 : i32
    %532 = tpu.dynamic_rotate %501 by %c3_i32_252 dim 1 : vector<32x256xf32>, i32 -> vector<32x256xf32>
    %c-3_i32_253 = arith.constant -3 : i32
    %533 = vector.broadcast %c-3_i32_253 : i32 to vector<1x256xi32>
    %534 = arith.addi %1, %533 : vector<1x256xi32>
    %c0_i32_254 = arith.constant 0 : i32
    %535 = vector.broadcast %c0_i32_254 : i32 to vector<1x256xi32>
    %536 = arith.cmpi sge, %534, %535 : vector<1x256xi32>
    %c-3_i32_255 = arith.constant -3 : i32
    %537 = vector.broadcast %c-3_i32_255 : i32 to vector<1x256xi32>
    %538 = arith.addi %1, %537 : vector<1x256xi32>
    %c96_i32_256 = arith.constant 96 : i32
    %539 = vector.broadcast %c96_i32_256 : i32 to vector<1x256xi32>
    %540 = arith.cmpi slt, %538, %539 : vector<1x256xi32>
    %541 = arith.andi %536, %540 : vector<1x256xi1>
    %cst_257 = arith.constant 0.000000e+00 : f32
    %542 = vector.shape_cast %541 : vector<1x256xi1> to vector<1x256xi1>
    %543 = vector.broadcast %542 : vector<1x256xi1> to vector<32x256xi1>
    %544 = vector.broadcast %cst_257 : f32 to vector<32x256xf32>
    %545 = arith.select %543, %532, %544 : vector<32x256xi1>, vector<32x256xf32>
    %c2_i32_258 = arith.constant 2 : i32
    %546 = tpu.dynamic_rotate %501 by %c2_i32_258 dim 1 : vector<32x256xf32>, i32 -> vector<32x256xf32>
    %c-2_i32_259 = arith.constant -2 : i32
    %547 = vector.broadcast %c-2_i32_259 : i32 to vector<1x256xi32>
    %548 = arith.addi %1, %547 : vector<1x256xi32>
    %c0_i32_260 = arith.constant 0 : i32
    %549 = vector.broadcast %c0_i32_260 : i32 to vector<1x256xi32>
    %550 = arith.cmpi sge, %548, %549 : vector<1x256xi32>
    %c-2_i32_261 = arith.constant -2 : i32
    %551 = vector.broadcast %c-2_i32_261 : i32 to vector<1x256xi32>
    %552 = arith.addi %1, %551 : vector<1x256xi32>
    %c96_i32_262 = arith.constant 96 : i32
    %553 = vector.broadcast %c96_i32_262 : i32 to vector<1x256xi32>
    %554 = arith.cmpi slt, %552, %553 : vector<1x256xi32>
    %555 = arith.andi %550, %554 : vector<1x256xi1>
    %cst_263 = arith.constant 0.000000e+00 : f32
    %556 = vector.shape_cast %555 : vector<1x256xi1> to vector<1x256xi1>
    %557 = vector.broadcast %556 : vector<1x256xi1> to vector<32x256xi1>
    %558 = vector.broadcast %cst_263 : f32 to vector<32x256xf32>
    %559 = arith.select %557, %546, %558 : vector<32x256xi1>, vector<32x256xf32>
    %c1_i32_264 = arith.constant 1 : i32
    %560 = tpu.dynamic_rotate %501 by %c1_i32_264 dim 1 : vector<32x256xf32>, i32 -> vector<32x256xf32>
    %c-1_i32_265 = arith.constant -1 : i32
    %561 = vector.broadcast %c-1_i32_265 : i32 to vector<1x256xi32>
    %562 = arith.addi %1, %561 : vector<1x256xi32>
    %c0_i32_266 = arith.constant 0 : i32
    %563 = vector.broadcast %c0_i32_266 : i32 to vector<1x256xi32>
    %564 = arith.cmpi sge, %562, %563 : vector<1x256xi32>
    %c-1_i32_267 = arith.constant -1 : i32
    %565 = vector.broadcast %c-1_i32_267 : i32 to vector<1x256xi32>
    %566 = arith.addi %1, %565 : vector<1x256xi32>
    %c96_i32_268 = arith.constant 96 : i32
    %567 = vector.broadcast %c96_i32_268 : i32 to vector<1x256xi32>
    %568 = arith.cmpi slt, %566, %567 : vector<1x256xi32>
    %569 = arith.andi %564, %568 : vector<1x256xi1>
    %cst_269 = arith.constant 0.000000e+00 : f32
    %570 = vector.shape_cast %569 : vector<1x256xi1> to vector<1x256xi1>
    %571 = vector.broadcast %570 : vector<1x256xi1> to vector<32x256xi1>
    %572 = vector.broadcast %cst_269 : f32 to vector<32x256xf32>
    %573 = arith.select %571, %560, %572 : vector<32x256xi1>, vector<32x256xf32>
    %c255_i32_270 = arith.constant 255 : i32
    %574 = tpu.dynamic_rotate %501 by %c255_i32_270 dim 1 : vector<32x256xf32>, i32 -> vector<32x256xf32>
    %c1_i32_271 = arith.constant 1 : i32
    %575 = vector.broadcast %c1_i32_271 : i32 to vector<1x256xi32>
    %576 = arith.addi %1, %575 : vector<1x256xi32>
    %c0_i32_272 = arith.constant 0 : i32
    %577 = vector.broadcast %c0_i32_272 : i32 to vector<1x256xi32>
    %578 = arith.cmpi sge, %576, %577 : vector<1x256xi32>
    %c1_i32_273 = arith.constant 1 : i32
    %579 = vector.broadcast %c1_i32_273 : i32 to vector<1x256xi32>
    %580 = arith.addi %1, %579 : vector<1x256xi32>
    %c96_i32_274 = arith.constant 96 : i32
    %581 = vector.broadcast %c96_i32_274 : i32 to vector<1x256xi32>
    %582 = arith.cmpi slt, %580, %581 : vector<1x256xi32>
    %583 = arith.andi %578, %582 : vector<1x256xi1>
    %cst_275 = arith.constant 0.000000e+00 : f32
    %584 = vector.shape_cast %583 : vector<1x256xi1> to vector<1x256xi1>
    %585 = vector.broadcast %584 : vector<1x256xi1> to vector<32x256xi1>
    %586 = vector.broadcast %cst_275 : f32 to vector<32x256xf32>
    %587 = arith.select %585, %574, %586 : vector<32x256xi1>, vector<32x256xf32>
    %c254_i32_276 = arith.constant 254 : i32
    %588 = tpu.dynamic_rotate %501 by %c254_i32_276 dim 1 : vector<32x256xf32>, i32 -> vector<32x256xf32>
    %c2_i32_277 = arith.constant 2 : i32
    %589 = vector.broadcast %c2_i32_277 : i32 to vector<1x256xi32>
    %590 = arith.addi %1, %589 : vector<1x256xi32>
    %c0_i32_278 = arith.constant 0 : i32
    %591 = vector.broadcast %c0_i32_278 : i32 to vector<1x256xi32>
    %592 = arith.cmpi sge, %590, %591 : vector<1x256xi32>
    %c2_i32_279 = arith.constant 2 : i32
    %593 = vector.broadcast %c2_i32_279 : i32 to vector<1x256xi32>
    %594 = arith.addi %1, %593 : vector<1x256xi32>
    %c96_i32_280 = arith.constant 96 : i32
    %595 = vector.broadcast %c96_i32_280 : i32 to vector<1x256xi32>
    %596 = arith.cmpi slt, %594, %595 : vector<1x256xi32>
    %597 = arith.andi %592, %596 : vector<1x256xi1>
    %cst_281 = arith.constant 0.000000e+00 : f32
    %598 = vector.shape_cast %597 : vector<1x256xi1> to vector<1x256xi1>
    %599 = vector.broadcast %598 : vector<1x256xi1> to vector<32x256xi1>
    %600 = vector.broadcast %cst_281 : f32 to vector<32x256xf32>
    %601 = arith.select %599, %588, %600 : vector<32x256xi1>, vector<32x256xf32>
    %c253_i32_282 = arith.constant 253 : i32
    %602 = tpu.dynamic_rotate %501 by %c253_i32_282 dim 1 : vector<32x256xf32>, i32 -> vector<32x256xf32>
    %c3_i32_283 = arith.constant 3 : i32
    %603 = vector.broadcast %c3_i32_283 : i32 to vector<1x256xi32>
    %604 = arith.addi %1, %603 : vector<1x256xi32>
    %c0_i32_284 = arith.constant 0 : i32
    %605 = vector.broadcast %c0_i32_284 : i32 to vector<1x256xi32>
    %606 = arith.cmpi sge, %604, %605 : vector<1x256xi32>
    %c3_i32_285 = arith.constant 3 : i32
    %607 = vector.broadcast %c3_i32_285 : i32 to vector<1x256xi32>
    %608 = arith.addi %1, %607 : vector<1x256xi32>
    %c96_i32_286 = arith.constant 96 : i32
    %609 = vector.broadcast %c96_i32_286 : i32 to vector<1x256xi32>
    %610 = arith.cmpi slt, %608, %609 : vector<1x256xi32>
    %611 = arith.andi %606, %610 : vector<1x256xi1>
    %cst_287 = arith.constant 0.000000e+00 : f32
    %612 = vector.shape_cast %611 : vector<1x256xi1> to vector<1x256xi1>
    %613 = vector.broadcast %612 : vector<1x256xi1> to vector<32x256xi1>
    %614 = vector.broadcast %cst_287 : f32 to vector<32x256xf32>
    %615 = arith.select %613, %602, %614 : vector<32x256xi1>, vector<32x256xf32>
    %c252_i32_288 = arith.constant 252 : i32
    %616 = tpu.dynamic_rotate %501 by %c252_i32_288 dim 1 : vector<32x256xf32>, i32 -> vector<32x256xf32>
    %c4_i32_289 = arith.constant 4 : i32
    %617 = vector.broadcast %c4_i32_289 : i32 to vector<1x256xi32>
    %618 = arith.addi %1, %617 : vector<1x256xi32>
    %c0_i32_290 = arith.constant 0 : i32
    %619 = vector.broadcast %c0_i32_290 : i32 to vector<1x256xi32>
    %620 = arith.cmpi sge, %618, %619 : vector<1x256xi32>
    %c4_i32_291 = arith.constant 4 : i32
    %621 = vector.broadcast %c4_i32_291 : i32 to vector<1x256xi32>
    %622 = arith.addi %1, %621 : vector<1x256xi32>
    %c96_i32_292 = arith.constant 96 : i32
    %623 = vector.broadcast %c96_i32_292 : i32 to vector<1x256xi32>
    %624 = arith.cmpi slt, %622, %623 : vector<1x256xi32>
    %625 = arith.andi %620, %624 : vector<1x256xi1>
    %cst_293 = arith.constant 0.000000e+00 : f32
    %626 = vector.shape_cast %625 : vector<1x256xi1> to vector<1x256xi1>
    %627 = vector.broadcast %626 : vector<1x256xi1> to vector<32x256xi1>
    %628 = vector.broadcast %cst_293 : f32 to vector<32x256xf32>
    %629 = arith.select %627, %616, %628 : vector<32x256xi1>, vector<32x256xf32>
    %c251_i32_294 = arith.constant 251 : i32
    %630 = tpu.dynamic_rotate %501 by %c251_i32_294 dim 1 : vector<32x256xf32>, i32 -> vector<32x256xf32>
    %c5_i32_295 = arith.constant 5 : i32
    %631 = vector.broadcast %c5_i32_295 : i32 to vector<1x256xi32>
    %632 = arith.addi %1, %631 : vector<1x256xi32>
    %c0_i32_296 = arith.constant 0 : i32
    %633 = vector.broadcast %c0_i32_296 : i32 to vector<1x256xi32>
    %634 = arith.cmpi sge, %632, %633 : vector<1x256xi32>
    %c5_i32_297 = arith.constant 5 : i32
    %635 = vector.broadcast %c5_i32_297 : i32 to vector<1x256xi32>
    %636 = arith.addi %1, %635 : vector<1x256xi32>
    %c96_i32_298 = arith.constant 96 : i32
    %637 = vector.broadcast %c96_i32_298 : i32 to vector<1x256xi32>
    %638 = arith.cmpi slt, %636, %637 : vector<1x256xi32>
    %639 = arith.andi %634, %638 : vector<1x256xi1>
    %cst_299 = arith.constant 0.000000e+00 : f32
    %640 = vector.shape_cast %639 : vector<1x256xi1> to vector<1x256xi1>
    %641 = vector.broadcast %640 : vector<1x256xi1> to vector<32x256xi1>
    %642 = vector.broadcast %cst_299 : f32 to vector<32x256xf32>
    %643 = arith.select %641, %630, %642 : vector<32x256xi1>, vector<32x256xf32>
    %644 = tpu.concatenate %517, %531, %545, %559, %573, %501, %587, %601, %615, %629, %643 in 0 : vector<32x256xf32>, vector<32x256xf32>, vector<32x256xf32>, vector<32x256xf32>, vector<32x256xf32>, vector<32x256xf32>, vector<32x256xf32>, vector<32x256xf32>, vector<32x256xf32>, vector<32x256xf32>, vector<32x256xf32> -> vector<352x256xf32>
    %cst_300 = arith.constant dense<0.000000e+00> : vector<32x256xf32>
    %645 = tpu.matmul %503, %644, %cst_300 {dimension_numbers = #tpu.dot_dimension_numbers<[1], [0], [0], [1], [0, 0, 1, 1], [], []>} : vector<32x352xf32>, vector<352x256xf32>, vector<32x256xf32> -> vector<32x256xf32>
    %646 = vector.broadcast %343 : vector<32x1xf32> to vector<32x256xf32>
    %647 = arith.addf %645, %646 : vector<32x256xf32>
    %648 = arith.addf %331, %647 : vector<32x256xf32>
    %c2_301 = arith.constant 2 : index
    %c0_302 = arith.constant 0 : index
    %c0_303 = arith.constant 0 : index
    %c0_304 = arith.constant 0 : index
    %649 = vector.load %arg6[%c2_301, %c0_302, %c0_303, %c0_304] : memref<4x6x32x1xf32, #tpu.memory_space<vmem>>, vector<1x1x32x1xf32>
    %650 = vector.shape_cast %649 : vector<1x1x32x1xf32> to vector<32x1xf32>
    %c2_305 = arith.constant 2 : index
    %c1_306 = arith.constant 1 : index
    %c0_307 = arith.constant 0 : index
    %c0_308 = arith.constant 0 : index
    %651 = vector.load %arg6[%c2_305, %c1_306, %c0_307, %c0_308] : memref<4x6x32x1xf32, #tpu.memory_space<vmem>>, vector<1x1x32x1xf32>
    %652 = vector.shape_cast %651 : vector<1x1x32x1xf32> to vector<32x1xf32>
    %c2_309 = arith.constant 2 : index
    %c2_310 = arith.constant 2 : index
    %c0_311 = arith.constant 0 : index
    %c0_312 = arith.constant 0 : index
    %653 = vector.load %arg6[%c2_309, %c2_310, %c0_311, %c0_312] : memref<4x6x32x1xf32, #tpu.memory_space<vmem>>, vector<1x1x32x1xf32>
    %654 = vector.shape_cast %653 : vector<1x1x32x1xf32> to vector<32x1xf32>
    %c2_313 = arith.constant 2 : index
    %c3_314 = arith.constant 3 : index
    %c0_315 = arith.constant 0 : index
    %c0_316 = arith.constant 0 : index
    %655 = vector.load %arg6[%c2_313, %c3_314, %c0_315, %c0_316] : memref<4x6x32x1xf32, #tpu.memory_space<vmem>>, vector<1x1x32x1xf32>
    %656 = vector.shape_cast %655 : vector<1x1x32x1xf32> to vector<32x1xf32>
    %c2_317 = arith.constant 2 : index
    %c4_318 = arith.constant 4 : index
    %c0_319 = arith.constant 0 : index
    %c0_320 = arith.constant 0 : index
    %657 = vector.load %arg6[%c2_317, %c4_318, %c0_319, %c0_320] : memref<4x6x32x1xf32, #tpu.memory_space<vmem>>, vector<1x1x32x1xf32>
    %658 = vector.shape_cast %657 : vector<1x1x32x1xf32> to vector<32x1xf32>
    %c2_321 = arith.constant 2 : index
    %c5_322 = arith.constant 5 : index
    %c0_323 = arith.constant 0 : index
    %c0_324 = arith.constant 0 : index
    %659 = vector.load %arg6[%c2_321, %c5_322, %c0_323, %c0_324] : memref<4x6x32x1xf32, #tpu.memory_space<vmem>>, vector<1x1x32x1xf32>
    %660 = vector.shape_cast %659 : vector<1x1x32x1xf32> to vector<32x1xf32>
    %661 = vector.broadcast %650 : vector<32x1xf32> to vector<32x256xf32>
    %662 = arith.mulf %648, %661 : vector<32x256xf32>
    %663 = vector.broadcast %652 : vector<32x1xf32> to vector<32x256xf32>
    %664 = arith.addf %662, %663 : vector<32x256xf32>
    %cst_325 = arith.constant 0.000000e+00 : f32
    %665 = vector.broadcast %cst_325 : f32 to vector<32x256xf32>
    %666 = arith.maximumf %664, %665 : vector<32x256xf32>
    %c4_326 = arith.constant 4 : index
    %c0_327 = arith.constant 0 : index
    %c0_328 = arith.constant 0 : index
    %667 = vector.load %arg5[%c4_326, %c0_327, %c0_328] : memref<8x32x352xf32, #tpu.memory_space<vmem>>, vector<1x32x352xf32>
    %668 = vector.shape_cast %667 : vector<1x32x352xf32> to vector<32x352xf32>
    %c5_i32_329 = arith.constant 5 : i32
    %669 = tpu.dynamic_rotate %666 by %c5_i32_329 dim 1 : vector<32x256xf32>, i32 -> vector<32x256xf32>
    %c-5_i32_330 = arith.constant -5 : i32
    %670 = vector.broadcast %c-5_i32_330 : i32 to vector<1x256xi32>
    %671 = arith.addi %1, %670 : vector<1x256xi32>
    %c0_i32_331 = arith.constant 0 : i32
    %672 = vector.broadcast %c0_i32_331 : i32 to vector<1x256xi32>
    %673 = arith.cmpi sge, %671, %672 : vector<1x256xi32>
    %c-5_i32_332 = arith.constant -5 : i32
    %674 = vector.broadcast %c-5_i32_332 : i32 to vector<1x256xi32>
    %675 = arith.addi %1, %674 : vector<1x256xi32>
    %c96_i32_333 = arith.constant 96 : i32
    %676 = vector.broadcast %c96_i32_333 : i32 to vector<1x256xi32>
    %677 = arith.cmpi slt, %675, %676 : vector<1x256xi32>
    %678 = arith.andi %673, %677 : vector<1x256xi1>
    %cst_334 = arith.constant 0.000000e+00 : f32
    %679 = vector.shape_cast %678 : vector<1x256xi1> to vector<1x256xi1>
    %680 = vector.broadcast %679 : vector<1x256xi1> to vector<32x256xi1>
    %681 = vector.broadcast %cst_334 : f32 to vector<32x256xf32>
    %682 = arith.select %680, %669, %681 : vector<32x256xi1>, vector<32x256xf32>
    %c4_i32_335 = arith.constant 4 : i32
    %683 = tpu.dynamic_rotate %666 by %c4_i32_335 dim 1 : vector<32x256xf32>, i32 -> vector<32x256xf32>
    %c-4_i32_336 = arith.constant -4 : i32
    %684 = vector.broadcast %c-4_i32_336 : i32 to vector<1x256xi32>
    %685 = arith.addi %1, %684 : vector<1x256xi32>
    %c0_i32_337 = arith.constant 0 : i32
    %686 = vector.broadcast %c0_i32_337 : i32 to vector<1x256xi32>
    %687 = arith.cmpi sge, %685, %686 : vector<1x256xi32>
    %c-4_i32_338 = arith.constant -4 : i32
    %688 = vector.broadcast %c-4_i32_338 : i32 to vector<1x256xi32>
    %689 = arith.addi %1, %688 : vector<1x256xi32>
    %c96_i32_339 = arith.constant 96 : i32
    %690 = vector.broadcast %c96_i32_339 : i32 to vector<1x256xi32>
    %691 = arith.cmpi slt, %689, %690 : vector<1x256xi32>
    %692 = arith.andi %687, %691 : vector<1x256xi1>
    %cst_340 = arith.constant 0.000000e+00 : f32
    %693 = vector.shape_cast %692 : vector<1x256xi1> to vector<1x256xi1>
    %694 = vector.broadcast %693 : vector<1x256xi1> to vector<32x256xi1>
    %695 = vector.broadcast %cst_340 : f32 to vector<32x256xf32>
    %696 = arith.select %694, %683, %695 : vector<32x256xi1>, vector<32x256xf32>
    %c3_i32_341 = arith.constant 3 : i32
    %697 = tpu.dynamic_rotate %666 by %c3_i32_341 dim 1 : vector<32x256xf32>, i32 -> vector<32x256xf32>
    %c-3_i32_342 = arith.constant -3 : i32
    %698 = vector.broadcast %c-3_i32_342 : i32 to vector<1x256xi32>
    %699 = arith.addi %1, %698 : vector<1x256xi32>
    %c0_i32_343 = arith.constant 0 : i32
    %700 = vector.broadcast %c0_i32_343 : i32 to vector<1x256xi32>
    %701 = arith.cmpi sge, %699, %700 : vector<1x256xi32>
    %c-3_i32_344 = arith.constant -3 : i32
    %702 = vector.broadcast %c-3_i32_344 : i32 to vector<1x256xi32>
    %703 = arith.addi %1, %702 : vector<1x256xi32>
    %c96_i32_345 = arith.constant 96 : i32
    %704 = vector.broadcast %c96_i32_345 : i32 to vector<1x256xi32>
    %705 = arith.cmpi slt, %703, %704 : vector<1x256xi32>
    %706 = arith.andi %701, %705 : vector<1x256xi1>
    %cst_346 = arith.constant 0.000000e+00 : f32
    %707 = vector.shape_cast %706 : vector<1x256xi1> to vector<1x256xi1>
    %708 = vector.broadcast %707 : vector<1x256xi1> to vector<32x256xi1>
    %709 = vector.broadcast %cst_346 : f32 to vector<32x256xf32>
    %710 = arith.select %708, %697, %709 : vector<32x256xi1>, vector<32x256xf32>
    %c2_i32_347 = arith.constant 2 : i32
    %711 = tpu.dynamic_rotate %666 by %c2_i32_347 dim 1 : vector<32x256xf32>, i32 -> vector<32x256xf32>
    %c-2_i32_348 = arith.constant -2 : i32
    %712 = vector.broadcast %c-2_i32_348 : i32 to vector<1x256xi32>
    %713 = arith.addi %1, %712 : vector<1x256xi32>
    %c0_i32_349 = arith.constant 0 : i32
    %714 = vector.broadcast %c0_i32_349 : i32 to vector<1x256xi32>
    %715 = arith.cmpi sge, %713, %714 : vector<1x256xi32>
    %c-2_i32_350 = arith.constant -2 : i32
    %716 = vector.broadcast %c-2_i32_350 : i32 to vector<1x256xi32>
    %717 = arith.addi %1, %716 : vector<1x256xi32>
    %c96_i32_351 = arith.constant 96 : i32
    %718 = vector.broadcast %c96_i32_351 : i32 to vector<1x256xi32>
    %719 = arith.cmpi slt, %717, %718 : vector<1x256xi32>
    %720 = arith.andi %715, %719 : vector<1x256xi1>
    %cst_352 = arith.constant 0.000000e+00 : f32
    %721 = vector.shape_cast %720 : vector<1x256xi1> to vector<1x256xi1>
    %722 = vector.broadcast %721 : vector<1x256xi1> to vector<32x256xi1>
    %723 = vector.broadcast %cst_352 : f32 to vector<32x256xf32>
    %724 = arith.select %722, %711, %723 : vector<32x256xi1>, vector<32x256xf32>
    %c1_i32_353 = arith.constant 1 : i32
    %725 = tpu.dynamic_rotate %666 by %c1_i32_353 dim 1 : vector<32x256xf32>, i32 -> vector<32x256xf32>
    %c-1_i32_354 = arith.constant -1 : i32
    %726 = vector.broadcast %c-1_i32_354 : i32 to vector<1x256xi32>
    %727 = arith.addi %1, %726 : vector<1x256xi32>
    %c0_i32_355 = arith.constant 0 : i32
    %728 = vector.broadcast %c0_i32_355 : i32 to vector<1x256xi32>
    %729 = arith.cmpi sge, %727, %728 : vector<1x256xi32>
    %c-1_i32_356 = arith.constant -1 : i32
    %730 = vector.broadcast %c-1_i32_356 : i32 to vector<1x256xi32>
    %731 = arith.addi %1, %730 : vector<1x256xi32>
    %c96_i32_357 = arith.constant 96 : i32
    %732 = vector.broadcast %c96_i32_357 : i32 to vector<1x256xi32>
    %733 = arith.cmpi slt, %731, %732 : vector<1x256xi32>
    %734 = arith.andi %729, %733 : vector<1x256xi1>
    %cst_358 = arith.constant 0.000000e+00 : f32
    %735 = vector.shape_cast %734 : vector<1x256xi1> to vector<1x256xi1>
    %736 = vector.broadcast %735 : vector<1x256xi1> to vector<32x256xi1>
    %737 = vector.broadcast %cst_358 : f32 to vector<32x256xf32>
    %738 = arith.select %736, %725, %737 : vector<32x256xi1>, vector<32x256xf32>
    %c255_i32_359 = arith.constant 255 : i32
    %739 = tpu.dynamic_rotate %666 by %c255_i32_359 dim 1 : vector<32x256xf32>, i32 -> vector<32x256xf32>
    %c1_i32_360 = arith.constant 1 : i32
    %740 = vector.broadcast %c1_i32_360 : i32 to vector<1x256xi32>
    %741 = arith.addi %1, %740 : vector<1x256xi32>
    %c0_i32_361 = arith.constant 0 : i32
    %742 = vector.broadcast %c0_i32_361 : i32 to vector<1x256xi32>
    %743 = arith.cmpi sge, %741, %742 : vector<1x256xi32>
    %c1_i32_362 = arith.constant 1 : i32
    %744 = vector.broadcast %c1_i32_362 : i32 to vector<1x256xi32>
    %745 = arith.addi %1, %744 : vector<1x256xi32>
    %c96_i32_363 = arith.constant 96 : i32
    %746 = vector.broadcast %c96_i32_363 : i32 to vector<1x256xi32>
    %747 = arith.cmpi slt, %745, %746 : vector<1x256xi32>
    %748 = arith.andi %743, %747 : vector<1x256xi1>
    %cst_364 = arith.constant 0.000000e+00 : f32
    %749 = vector.shape_cast %748 : vector<1x256xi1> to vector<1x256xi1>
    %750 = vector.broadcast %749 : vector<1x256xi1> to vector<32x256xi1>
    %751 = vector.broadcast %cst_364 : f32 to vector<32x256xf32>
    %752 = arith.select %750, %739, %751 : vector<32x256xi1>, vector<32x256xf32>
    %c254_i32_365 = arith.constant 254 : i32
    %753 = tpu.dynamic_rotate %666 by %c254_i32_365 dim 1 : vector<32x256xf32>, i32 -> vector<32x256xf32>
    %c2_i32_366 = arith.constant 2 : i32
    %754 = vector.broadcast %c2_i32_366 : i32 to vector<1x256xi32>
    %755 = arith.addi %1, %754 : vector<1x256xi32>
    %c0_i32_367 = arith.constant 0 : i32
    %756 = vector.broadcast %c0_i32_367 : i32 to vector<1x256xi32>
    %757 = arith.cmpi sge, %755, %756 : vector<1x256xi32>
    %c2_i32_368 = arith.constant 2 : i32
    %758 = vector.broadcast %c2_i32_368 : i32 to vector<1x256xi32>
    %759 = arith.addi %1, %758 : vector<1x256xi32>
    %c96_i32_369 = arith.constant 96 : i32
    %760 = vector.broadcast %c96_i32_369 : i32 to vector<1x256xi32>
    %761 = arith.cmpi slt, %759, %760 : vector<1x256xi32>
    %762 = arith.andi %757, %761 : vector<1x256xi1>
    %cst_370 = arith.constant 0.000000e+00 : f32
    %763 = vector.shape_cast %762 : vector<1x256xi1> to vector<1x256xi1>
    %764 = vector.broadcast %763 : vector<1x256xi1> to vector<32x256xi1>
    %765 = vector.broadcast %cst_370 : f32 to vector<32x256xf32>
    %766 = arith.select %764, %753, %765 : vector<32x256xi1>, vector<32x256xf32>
    %c253_i32_371 = arith.constant 253 : i32
    %767 = tpu.dynamic_rotate %666 by %c253_i32_371 dim 1 : vector<32x256xf32>, i32 -> vector<32x256xf32>
    %c3_i32_372 = arith.constant 3 : i32
    %768 = vector.broadcast %c3_i32_372 : i32 to vector<1x256xi32>
    %769 = arith.addi %1, %768 : vector<1x256xi32>
    %c0_i32_373 = arith.constant 0 : i32
    %770 = vector.broadcast %c0_i32_373 : i32 to vector<1x256xi32>
    %771 = arith.cmpi sge, %769, %770 : vector<1x256xi32>
    %c3_i32_374 = arith.constant 3 : i32
    %772 = vector.broadcast %c3_i32_374 : i32 to vector<1x256xi32>
    %773 = arith.addi %1, %772 : vector<1x256xi32>
    %c96_i32_375 = arith.constant 96 : i32
    %774 = vector.broadcast %c96_i32_375 : i32 to vector<1x256xi32>
    %775 = arith.cmpi slt, %773, %774 : vector<1x256xi32>
    %776 = arith.andi %771, %775 : vector<1x256xi1>
    %cst_376 = arith.constant 0.000000e+00 : f32
    %777 = vector.shape_cast %776 : vector<1x256xi1> to vector<1x256xi1>
    %778 = vector.broadcast %777 : vector<1x256xi1> to vector<32x256xi1>
    %779 = vector.broadcast %cst_376 : f32 to vector<32x256xf32>
    %780 = arith.select %778, %767, %779 : vector<32x256xi1>, vector<32x256xf32>
    %c252_i32_377 = arith.constant 252 : i32
    %781 = tpu.dynamic_rotate %666 by %c252_i32_377 dim 1 : vector<32x256xf32>, i32 -> vector<32x256xf32>
    %c4_i32_378 = arith.constant 4 : i32
    %782 = vector.broadcast %c4_i32_378 : i32 to vector<1x256xi32>
    %783 = arith.addi %1, %782 : vector<1x256xi32>
    %c0_i32_379 = arith.constant 0 : i32
    %784 = vector.broadcast %c0_i32_379 : i32 to vector<1x256xi32>
    %785 = arith.cmpi sge, %783, %784 : vector<1x256xi32>
    %c4_i32_380 = arith.constant 4 : i32
    %786 = vector.broadcast %c4_i32_380 : i32 to vector<1x256xi32>
    %787 = arith.addi %1, %786 : vector<1x256xi32>
    %c96_i32_381 = arith.constant 96 : i32
    %788 = vector.broadcast %c96_i32_381 : i32 to vector<1x256xi32>
    %789 = arith.cmpi slt, %787, %788 : vector<1x256xi32>
    %790 = arith.andi %785, %789 : vector<1x256xi1>
    %cst_382 = arith.constant 0.000000e+00 : f32
    %791 = vector.shape_cast %790 : vector<1x256xi1> to vector<1x256xi1>
    %792 = vector.broadcast %791 : vector<1x256xi1> to vector<32x256xi1>
    %793 = vector.broadcast %cst_382 : f32 to vector<32x256xf32>
    %794 = arith.select %792, %781, %793 : vector<32x256xi1>, vector<32x256xf32>
    %c251_i32_383 = arith.constant 251 : i32
    %795 = tpu.dynamic_rotate %666 by %c251_i32_383 dim 1 : vector<32x256xf32>, i32 -> vector<32x256xf32>
    %c5_i32_384 = arith.constant 5 : i32
    %796 = vector.broadcast %c5_i32_384 : i32 to vector<1x256xi32>
    %797 = arith.addi %1, %796 : vector<1x256xi32>
    %c0_i32_385 = arith.constant 0 : i32
    %798 = vector.broadcast %c0_i32_385 : i32 to vector<1x256xi32>
    %799 = arith.cmpi sge, %797, %798 : vector<1x256xi32>
    %c5_i32_386 = arith.constant 5 : i32
    %800 = vector.broadcast %c5_i32_386 : i32 to vector<1x256xi32>
    %801 = arith.addi %1, %800 : vector<1x256xi32>
    %c96_i32_387 = arith.constant 96 : i32
    %802 = vector.broadcast %c96_i32_387 : i32 to vector<1x256xi32>
    %803 = arith.cmpi slt, %801, %802 : vector<1x256xi32>
    %804 = arith.andi %799, %803 : vector<1x256xi1>
    %cst_388 = arith.constant 0.000000e+00 : f32
    %805 = vector.shape_cast %804 : vector<1x256xi1> to vector<1x256xi1>
    %806 = vector.broadcast %805 : vector<1x256xi1> to vector<32x256xi1>
    %807 = vector.broadcast %cst_388 : f32 to vector<32x256xf32>
    %808 = arith.select %806, %795, %807 : vector<32x256xi1>, vector<32x256xf32>
    %809 = tpu.concatenate %682, %696, %710, %724, %738, %666, %752, %766, %780, %794, %808 in 0 : vector<32x256xf32>, vector<32x256xf32>, vector<32x256xf32>, vector<32x256xf32>, vector<32x256xf32>, vector<32x256xf32>, vector<32x256xf32>, vector<32x256xf32>, vector<32x256xf32>, vector<32x256xf32>, vector<32x256xf32> -> vector<352x256xf32>
    %cst_389 = arith.constant dense<0.000000e+00> : vector<32x256xf32>
    %810 = tpu.matmul %668, %809, %cst_389 {dimension_numbers = #tpu.dot_dimension_numbers<[1], [0], [0], [1], [0, 0, 1, 1], [], []>} : vector<32x352xf32>, vector<352x256xf32>, vector<32x256xf32> -> vector<32x256xf32>
    %811 = vector.broadcast %654 : vector<32x1xf32> to vector<32x256xf32>
    %812 = arith.addf %810, %811 : vector<32x256xf32>
    %813 = vector.broadcast %656 : vector<32x1xf32> to vector<32x256xf32>
    %814 = arith.mulf %812, %813 : vector<32x256xf32>
    %815 = vector.broadcast %658 : vector<32x1xf32> to vector<32x256xf32>
    %816 = arith.addf %814, %815 : vector<32x256xf32>
    %cst_390 = arith.constant 0.000000e+00 : f32
    %817 = vector.broadcast %cst_390 : f32 to vector<32x256xf32>
    %818 = arith.maximumf %816, %817 : vector<32x256xf32>
    %c5_391 = arith.constant 5 : index
    %c0_392 = arith.constant 0 : index
    %c0_393 = arith.constant 0 : index
    %819 = vector.load %arg5[%c5_391, %c0_392, %c0_393] : memref<8x32x352xf32, #tpu.memory_space<vmem>>, vector<1x32x352xf32>
    %820 = vector.shape_cast %819 : vector<1x32x352xf32> to vector<32x352xf32>
    %c5_i32_394 = arith.constant 5 : i32
    %821 = tpu.dynamic_rotate %818 by %c5_i32_394 dim 1 : vector<32x256xf32>, i32 -> vector<32x256xf32>
    %c-5_i32_395 = arith.constant -5 : i32
    %822 = vector.broadcast %c-5_i32_395 : i32 to vector<1x256xi32>
    %823 = arith.addi %1, %822 : vector<1x256xi32>
    %c0_i32_396 = arith.constant 0 : i32
    %824 = vector.broadcast %c0_i32_396 : i32 to vector<1x256xi32>
    %825 = arith.cmpi sge, %823, %824 : vector<1x256xi32>
    %c-5_i32_397 = arith.constant -5 : i32
    %826 = vector.broadcast %c-5_i32_397 : i32 to vector<1x256xi32>
    %827 = arith.addi %1, %826 : vector<1x256xi32>
    %c96_i32_398 = arith.constant 96 : i32
    %828 = vector.broadcast %c96_i32_398 : i32 to vector<1x256xi32>
    %829 = arith.cmpi slt, %827, %828 : vector<1x256xi32>
    %830 = arith.andi %825, %829 : vector<1x256xi1>
    %cst_399 = arith.constant 0.000000e+00 : f32
    %831 = vector.shape_cast %830 : vector<1x256xi1> to vector<1x256xi1>
    %832 = vector.broadcast %831 : vector<1x256xi1> to vector<32x256xi1>
    %833 = vector.broadcast %cst_399 : f32 to vector<32x256xf32>
    %834 = arith.select %832, %821, %833 : vector<32x256xi1>, vector<32x256xf32>
    %c4_i32_400 = arith.constant 4 : i32
    %835 = tpu.dynamic_rotate %818 by %c4_i32_400 dim 1 : vector<32x256xf32>, i32 -> vector<32x256xf32>
    %c-4_i32_401 = arith.constant -4 : i32
    %836 = vector.broadcast %c-4_i32_401 : i32 to vector<1x256xi32>
    %837 = arith.addi %1, %836 : vector<1x256xi32>
    %c0_i32_402 = arith.constant 0 : i32
    %838 = vector.broadcast %c0_i32_402 : i32 to vector<1x256xi32>
    %839 = arith.cmpi sge, %837, %838 : vector<1x256xi32>
    %c-4_i32_403 = arith.constant -4 : i32
    %840 = vector.broadcast %c-4_i32_403 : i32 to vector<1x256xi32>
    %841 = arith.addi %1, %840 : vector<1x256xi32>
    %c96_i32_404 = arith.constant 96 : i32
    %842 = vector.broadcast %c96_i32_404 : i32 to vector<1x256xi32>
    %843 = arith.cmpi slt, %841, %842 : vector<1x256xi32>
    %844 = arith.andi %839, %843 : vector<1x256xi1>
    %cst_405 = arith.constant 0.000000e+00 : f32
    %845 = vector.shape_cast %844 : vector<1x256xi1> to vector<1x256xi1>
    %846 = vector.broadcast %845 : vector<1x256xi1> to vector<32x256xi1>
    %847 = vector.broadcast %cst_405 : f32 to vector<32x256xf32>
    %848 = arith.select %846, %835, %847 : vector<32x256xi1>, vector<32x256xf32>
    %c3_i32_406 = arith.constant 3 : i32
    %849 = tpu.dynamic_rotate %818 by %c3_i32_406 dim 1 : vector<32x256xf32>, i32 -> vector<32x256xf32>
    %c-3_i32_407 = arith.constant -3 : i32
    %850 = vector.broadcast %c-3_i32_407 : i32 to vector<1x256xi32>
    %851 = arith.addi %1, %850 : vector<1x256xi32>
    %c0_i32_408 = arith.constant 0 : i32
    %852 = vector.broadcast %c0_i32_408 : i32 to vector<1x256xi32>
    %853 = arith.cmpi sge, %851, %852 : vector<1x256xi32>
    %c-3_i32_409 = arith.constant -3 : i32
    %854 = vector.broadcast %c-3_i32_409 : i32 to vector<1x256xi32>
    %855 = arith.addi %1, %854 : vector<1x256xi32>
    %c96_i32_410 = arith.constant 96 : i32
    %856 = vector.broadcast %c96_i32_410 : i32 to vector<1x256xi32>
    %857 = arith.cmpi slt, %855, %856 : vector<1x256xi32>
    %858 = arith.andi %853, %857 : vector<1x256xi1>
    %cst_411 = arith.constant 0.000000e+00 : f32
    %859 = vector.shape_cast %858 : vector<1x256xi1> to vector<1x256xi1>
    %860 = vector.broadcast %859 : vector<1x256xi1> to vector<32x256xi1>
    %861 = vector.broadcast %cst_411 : f32 to vector<32x256xf32>
    %862 = arith.select %860, %849, %861 : vector<32x256xi1>, vector<32x256xf32>
    %c2_i32_412 = arith.constant 2 : i32
    %863 = tpu.dynamic_rotate %818 by %c2_i32_412 dim 1 : vector<32x256xf32>, i32 -> vector<32x256xf32>
    %c-2_i32_413 = arith.constant -2 : i32
    %864 = vector.broadcast %c-2_i32_413 : i32 to vector<1x256xi32>
    %865 = arith.addi %1, %864 : vector<1x256xi32>
    %c0_i32_414 = arith.constant 0 : i32
    %866 = vector.broadcast %c0_i32_414 : i32 to vector<1x256xi32>
    %867 = arith.cmpi sge, %865, %866 : vector<1x256xi32>
    %c-2_i32_415 = arith.constant -2 : i32
    %868 = vector.broadcast %c-2_i32_415 : i32 to vector<1x256xi32>
    %869 = arith.addi %1, %868 : vector<1x256xi32>
    %c96_i32_416 = arith.constant 96 : i32
    %870 = vector.broadcast %c96_i32_416 : i32 to vector<1x256xi32>
    %871 = arith.cmpi slt, %869, %870 : vector<1x256xi32>
    %872 = arith.andi %867, %871 : vector<1x256xi1>
    %cst_417 = arith.constant 0.000000e+00 : f32
    %873 = vector.shape_cast %872 : vector<1x256xi1> to vector<1x256xi1>
    %874 = vector.broadcast %873 : vector<1x256xi1> to vector<32x256xi1>
    %875 = vector.broadcast %cst_417 : f32 to vector<32x256xf32>
    %876 = arith.select %874, %863, %875 : vector<32x256xi1>, vector<32x256xf32>
    %c1_i32_418 = arith.constant 1 : i32
    %877 = tpu.dynamic_rotate %818 by %c1_i32_418 dim 1 : vector<32x256xf32>, i32 -> vector<32x256xf32>
    %c-1_i32_419 = arith.constant -1 : i32
    %878 = vector.broadcast %c-1_i32_419 : i32 to vector<1x256xi32>
    %879 = arith.addi %1, %878 : vector<1x256xi32>
    %c0_i32_420 = arith.constant 0 : i32
    %880 = vector.broadcast %c0_i32_420 : i32 to vector<1x256xi32>
    %881 = arith.cmpi sge, %879, %880 : vector<1x256xi32>
    %c-1_i32_421 = arith.constant -1 : i32
    %882 = vector.broadcast %c-1_i32_421 : i32 to vector<1x256xi32>
    %883 = arith.addi %1, %882 : vector<1x256xi32>
    %c96_i32_422 = arith.constant 96 : i32
    %884 = vector.broadcast %c96_i32_422 : i32 to vector<1x256xi32>
    %885 = arith.cmpi slt, %883, %884 : vector<1x256xi32>
    %886 = arith.andi %881, %885 : vector<1x256xi1>
    %cst_423 = arith.constant 0.000000e+00 : f32
    %887 = vector.shape_cast %886 : vector<1x256xi1> to vector<1x256xi1>
    %888 = vector.broadcast %887 : vector<1x256xi1> to vector<32x256xi1>
    %889 = vector.broadcast %cst_423 : f32 to vector<32x256xf32>
    %890 = arith.select %888, %877, %889 : vector<32x256xi1>, vector<32x256xf32>
    %c255_i32_424 = arith.constant 255 : i32
    %891 = tpu.dynamic_rotate %818 by %c255_i32_424 dim 1 : vector<32x256xf32>, i32 -> vector<32x256xf32>
    %c1_i32_425 = arith.constant 1 : i32
    %892 = vector.broadcast %c1_i32_425 : i32 to vector<1x256xi32>
    %893 = arith.addi %1, %892 : vector<1x256xi32>
    %c0_i32_426 = arith.constant 0 : i32
    %894 = vector.broadcast %c0_i32_426 : i32 to vector<1x256xi32>
    %895 = arith.cmpi sge, %893, %894 : vector<1x256xi32>
    %c1_i32_427 = arith.constant 1 : i32
    %896 = vector.broadcast %c1_i32_427 : i32 to vector<1x256xi32>
    %897 = arith.addi %1, %896 : vector<1x256xi32>
    %c96_i32_428 = arith.constant 96 : i32
    %898 = vector.broadcast %c96_i32_428 : i32 to vector<1x256xi32>
    %899 = arith.cmpi slt, %897, %898 : vector<1x256xi32>
    %900 = arith.andi %895, %899 : vector<1x256xi1>
    %cst_429 = arith.constant 0.000000e+00 : f32
    %901 = vector.shape_cast %900 : vector<1x256xi1> to vector<1x256xi1>
    %902 = vector.broadcast %901 : vector<1x256xi1> to vector<32x256xi1>
    %903 = vector.broadcast %cst_429 : f32 to vector<32x256xf32>
    %904 = arith.select %902, %891, %903 : vector<32x256xi1>, vector<32x256xf32>
    %c254_i32_430 = arith.constant 254 : i32
    %905 = tpu.dynamic_rotate %818 by %c254_i32_430 dim 1 : vector<32x256xf32>, i32 -> vector<32x256xf32>
    %c2_i32_431 = arith.constant 2 : i32
    %906 = vector.broadcast %c2_i32_431 : i32 to vector<1x256xi32>
    %907 = arith.addi %1, %906 : vector<1x256xi32>
    %c0_i32_432 = arith.constant 0 : i32
    %908 = vector.broadcast %c0_i32_432 : i32 to vector<1x256xi32>
    %909 = arith.cmpi sge, %907, %908 : vector<1x256xi32>
    %c2_i32_433 = arith.constant 2 : i32
    %910 = vector.broadcast %c2_i32_433 : i32 to vector<1x256xi32>
    %911 = arith.addi %1, %910 : vector<1x256xi32>
    %c96_i32_434 = arith.constant 96 : i32
    %912 = vector.broadcast %c96_i32_434 : i32 to vector<1x256xi32>
    %913 = arith.cmpi slt, %911, %912 : vector<1x256xi32>
    %914 = arith.andi %909, %913 : vector<1x256xi1>
    %cst_435 = arith.constant 0.000000e+00 : f32
    %915 = vector.shape_cast %914 : vector<1x256xi1> to vector<1x256xi1>
    %916 = vector.broadcast %915 : vector<1x256xi1> to vector<32x256xi1>
    %917 = vector.broadcast %cst_435 : f32 to vector<32x256xf32>
    %918 = arith.select %916, %905, %917 : vector<32x256xi1>, vector<32x256xf32>
    %c253_i32_436 = arith.constant 253 : i32
    %919 = tpu.dynamic_rotate %818 by %c253_i32_436 dim 1 : vector<32x256xf32>, i32 -> vector<32x256xf32>
    %c3_i32_437 = arith.constant 3 : i32
    %920 = vector.broadcast %c3_i32_437 : i32 to vector<1x256xi32>
    %921 = arith.addi %1, %920 : vector<1x256xi32>
    %c0_i32_438 = arith.constant 0 : i32
    %922 = vector.broadcast %c0_i32_438 : i32 to vector<1x256xi32>
    %923 = arith.cmpi sge, %921, %922 : vector<1x256xi32>
    %c3_i32_439 = arith.constant 3 : i32
    %924 = vector.broadcast %c3_i32_439 : i32 to vector<1x256xi32>
    %925 = arith.addi %1, %924 : vector<1x256xi32>
    %c96_i32_440 = arith.constant 96 : i32
    %926 = vector.broadcast %c96_i32_440 : i32 to vector<1x256xi32>
    %927 = arith.cmpi slt, %925, %926 : vector<1x256xi32>
    %928 = arith.andi %923, %927 : vector<1x256xi1>
    %cst_441 = arith.constant 0.000000e+00 : f32
    %929 = vector.shape_cast %928 : vector<1x256xi1> to vector<1x256xi1>
    %930 = vector.broadcast %929 : vector<1x256xi1> to vector<32x256xi1>
    %931 = vector.broadcast %cst_441 : f32 to vector<32x256xf32>
    %932 = arith.select %930, %919, %931 : vector<32x256xi1>, vector<32x256xf32>
    %c252_i32_442 = arith.constant 252 : i32
    %933 = tpu.dynamic_rotate %818 by %c252_i32_442 dim 1 : vector<32x256xf32>, i32 -> vector<32x256xf32>
    %c4_i32_443 = arith.constant 4 : i32
    %934 = vector.broadcast %c4_i32_443 : i32 to vector<1x256xi32>
    %935 = arith.addi %1, %934 : vector<1x256xi32>
    %c0_i32_444 = arith.constant 0 : i32
    %936 = vector.broadcast %c0_i32_444 : i32 to vector<1x256xi32>
    %937 = arith.cmpi sge, %935, %936 : vector<1x256xi32>
    %c4_i32_445 = arith.constant 4 : i32
    %938 = vector.broadcast %c4_i32_445 : i32 to vector<1x256xi32>
    %939 = arith.addi %1, %938 : vector<1x256xi32>
    %c96_i32_446 = arith.constant 96 : i32
    %940 = vector.broadcast %c96_i32_446 : i32 to vector<1x256xi32>
    %941 = arith.cmpi slt, %939, %940 : vector<1x256xi32>
    %942 = arith.andi %937, %941 : vector<1x256xi1>
    %cst_447 = arith.constant 0.000000e+00 : f32
    %943 = vector.shape_cast %942 : vector<1x256xi1> to vector<1x256xi1>
    %944 = vector.broadcast %943 : vector<1x256xi1> to vector<32x256xi1>
    %945 = vector.broadcast %cst_447 : f32 to vector<32x256xf32>
    %946 = arith.select %944, %933, %945 : vector<32x256xi1>, vector<32x256xf32>
    %c251_i32_448 = arith.constant 251 : i32
    %947 = tpu.dynamic_rotate %818 by %c251_i32_448 dim 1 : vector<32x256xf32>, i32 -> vector<32x256xf32>
    %c5_i32_449 = arith.constant 5 : i32
    %948 = vector.broadcast %c5_i32_449 : i32 to vector<1x256xi32>
    %949 = arith.addi %1, %948 : vector<1x256xi32>
    %c0_i32_450 = arith.constant 0 : i32
    %950 = vector.broadcast %c0_i32_450 : i32 to vector<1x256xi32>
    %951 = arith.cmpi sge, %949, %950 : vector<1x256xi32>
    %c5_i32_451 = arith.constant 5 : i32
    %952 = vector.broadcast %c5_i32_451 : i32 to vector<1x256xi32>
    %953 = arith.addi %1, %952 : vector<1x256xi32>
    %c96_i32_452 = arith.constant 96 : i32
    %954 = vector.broadcast %c96_i32_452 : i32 to vector<1x256xi32>
    %955 = arith.cmpi slt, %953, %954 : vector<1x256xi32>
    %956 = arith.andi %951, %955 : vector<1x256xi1>
    %cst_453 = arith.constant 0.000000e+00 : f32
    %957 = vector.shape_cast %956 : vector<1x256xi1> to vector<1x256xi1>
    %958 = vector.broadcast %957 : vector<1x256xi1> to vector<32x256xi1>
    %959 = vector.broadcast %cst_453 : f32 to vector<32x256xf32>
    %960 = arith.select %958, %947, %959 : vector<32x256xi1>, vector<32x256xf32>
    %961 = tpu.concatenate %834, %848, %862, %876, %890, %818, %904, %918, %932, %946, %960 in 0 : vector<32x256xf32>, vector<32x256xf32>, vector<32x256xf32>, vector<32x256xf32>, vector<32x256xf32>, vector<32x256xf32>, vector<32x256xf32>, vector<32x256xf32>, vector<32x256xf32>, vector<32x256xf32>, vector<32x256xf32> -> vector<352x256xf32>
    %cst_454 = arith.constant dense<0.000000e+00> : vector<32x256xf32>
    %962 = tpu.matmul %820, %961, %cst_454 {dimension_numbers = #tpu.dot_dimension_numbers<[1], [0], [0], [1], [0, 0, 1, 1], [], []>} : vector<32x352xf32>, vector<352x256xf32>, vector<32x256xf32> -> vector<32x256xf32>
    %963 = vector.broadcast %660 : vector<32x1xf32> to vector<32x256xf32>
    %964 = arith.addf %962, %963 : vector<32x256xf32>
    %965 = arith.addf %648, %964 : vector<32x256xf32>
    %c3_455 = arith.constant 3 : index
    %c0_456 = arith.constant 0 : index
    %c0_457 = arith.constant 0 : index
    %c0_458 = arith.constant 0 : index
    %966 = vector.load %arg6[%c3_455, %c0_456, %c0_457, %c0_458] : memref<4x6x32x1xf32, #tpu.memory_space<vmem>>, vector<1x1x32x1xf32>
    %967 = vector.shape_cast %966 : vector<1x1x32x1xf32> to vector<32x1xf32>
    %c3_459 = arith.constant 3 : index
    %c1_460 = arith.constant 1 : index
    %c0_461 = arith.constant 0 : index
    %c0_462 = arith.constant 0 : index
    %968 = vector.load %arg6[%c3_459, %c1_460, %c0_461, %c0_462] : memref<4x6x32x1xf32, #tpu.memory_space<vmem>>, vector<1x1x32x1xf32>
    %969 = vector.shape_cast %968 : vector<1x1x32x1xf32> to vector<32x1xf32>
    %c3_463 = arith.constant 3 : index
    %c2_464 = arith.constant 2 : index
    %c0_465 = arith.constant 0 : index
    %c0_466 = arith.constant 0 : index
    %970 = vector.load %arg6[%c3_463, %c2_464, %c0_465, %c0_466] : memref<4x6x32x1xf32, #tpu.memory_space<vmem>>, vector<1x1x32x1xf32>
    %971 = vector.shape_cast %970 : vector<1x1x32x1xf32> to vector<32x1xf32>
    %c3_467 = arith.constant 3 : index
    %c3_468 = arith.constant 3 : index
    %c0_469 = arith.constant 0 : index
    %c0_470 = arith.constant 0 : index
    %972 = vector.load %arg6[%c3_467, %c3_468, %c0_469, %c0_470] : memref<4x6x32x1xf32, #tpu.memory_space<vmem>>, vector<1x1x32x1xf32>
    %973 = vector.shape_cast %972 : vector<1x1x32x1xf32> to vector<32x1xf32>
    %c3_471 = arith.constant 3 : index
    %c4_472 = arith.constant 4 : index
    %c0_473 = arith.constant 0 : index
    %c0_474 = arith.constant 0 : index
    %974 = vector.load %arg6[%c3_471, %c4_472, %c0_473, %c0_474] : memref<4x6x32x1xf32, #tpu.memory_space<vmem>>, vector<1x1x32x1xf32>
    %975 = vector.shape_cast %974 : vector<1x1x32x1xf32> to vector<32x1xf32>
    %c3_475 = arith.constant 3 : index
    %c5_476 = arith.constant 5 : index
    %c0_477 = arith.constant 0 : index
    %c0_478 = arith.constant 0 : index
    %976 = vector.load %arg6[%c3_475, %c5_476, %c0_477, %c0_478] : memref<4x6x32x1xf32, #tpu.memory_space<vmem>>, vector<1x1x32x1xf32>
    %977 = vector.shape_cast %976 : vector<1x1x32x1xf32> to vector<32x1xf32>
    %978 = vector.broadcast %967 : vector<32x1xf32> to vector<32x256xf32>
    %979 = arith.mulf %965, %978 : vector<32x256xf32>
    %980 = vector.broadcast %969 : vector<32x1xf32> to vector<32x256xf32>
    %981 = arith.addf %979, %980 : vector<32x256xf32>
    %cst_479 = arith.constant 0.000000e+00 : f32
    %982 = vector.broadcast %cst_479 : f32 to vector<32x256xf32>
    %983 = arith.maximumf %981, %982 : vector<32x256xf32>
    %c6 = arith.constant 6 : index
    %c0_480 = arith.constant 0 : index
    %c0_481 = arith.constant 0 : index
    %984 = vector.load %arg5[%c6, %c0_480, %c0_481] : memref<8x32x352xf32, #tpu.memory_space<vmem>>, vector<1x32x352xf32>
    %985 = vector.shape_cast %984 : vector<1x32x352xf32> to vector<32x352xf32>
    %c5_i32_482 = arith.constant 5 : i32
    %986 = tpu.dynamic_rotate %983 by %c5_i32_482 dim 1 : vector<32x256xf32>, i32 -> vector<32x256xf32>
    %c-5_i32_483 = arith.constant -5 : i32
    %987 = vector.broadcast %c-5_i32_483 : i32 to vector<1x256xi32>
    %988 = arith.addi %1, %987 : vector<1x256xi32>
    %c0_i32_484 = arith.constant 0 : i32
    %989 = vector.broadcast %c0_i32_484 : i32 to vector<1x256xi32>
    %990 = arith.cmpi sge, %988, %989 : vector<1x256xi32>
    %c-5_i32_485 = arith.constant -5 : i32
    %991 = vector.broadcast %c-5_i32_485 : i32 to vector<1x256xi32>
    %992 = arith.addi %1, %991 : vector<1x256xi32>
    %c96_i32_486 = arith.constant 96 : i32
    %993 = vector.broadcast %c96_i32_486 : i32 to vector<1x256xi32>
    %994 = arith.cmpi slt, %992, %993 : vector<1x256xi32>
    %995 = arith.andi %990, %994 : vector<1x256xi1>
    %cst_487 = arith.constant 0.000000e+00 : f32
    %996 = vector.shape_cast %995 : vector<1x256xi1> to vector<1x256xi1>
    %997 = vector.broadcast %996 : vector<1x256xi1> to vector<32x256xi1>
    %998 = vector.broadcast %cst_487 : f32 to vector<32x256xf32>
    %999 = arith.select %997, %986, %998 : vector<32x256xi1>, vector<32x256xf32>
    %c4_i32_488 = arith.constant 4 : i32
    %1000 = tpu.dynamic_rotate %983 by %c4_i32_488 dim 1 : vector<32x256xf32>, i32 -> vector<32x256xf32>
    %c-4_i32_489 = arith.constant -4 : i32
    %1001 = vector.broadcast %c-4_i32_489 : i32 to vector<1x256xi32>
    %1002 = arith.addi %1, %1001 : vector<1x256xi32>
    %c0_i32_490 = arith.constant 0 : i32
    %1003 = vector.broadcast %c0_i32_490 : i32 to vector<1x256xi32>
    %1004 = arith.cmpi sge, %1002, %1003 : vector<1x256xi32>
    %c-4_i32_491 = arith.constant -4 : i32
    %1005 = vector.broadcast %c-4_i32_491 : i32 to vector<1x256xi32>
    %1006 = arith.addi %1, %1005 : vector<1x256xi32>
    %c96_i32_492 = arith.constant 96 : i32
    %1007 = vector.broadcast %c96_i32_492 : i32 to vector<1x256xi32>
    %1008 = arith.cmpi slt, %1006, %1007 : vector<1x256xi32>
    %1009 = arith.andi %1004, %1008 : vector<1x256xi1>
    %cst_493 = arith.constant 0.000000e+00 : f32
    %1010 = vector.shape_cast %1009 : vector<1x256xi1> to vector<1x256xi1>
    %1011 = vector.broadcast %1010 : vector<1x256xi1> to vector<32x256xi1>
    %1012 = vector.broadcast %cst_493 : f32 to vector<32x256xf32>
    %1013 = arith.select %1011, %1000, %1012 : vector<32x256xi1>, vector<32x256xf32>
    %c3_i32_494 = arith.constant 3 : i32
    %1014 = tpu.dynamic_rotate %983 by %c3_i32_494 dim 1 : vector<32x256xf32>, i32 -> vector<32x256xf32>
    %c-3_i32_495 = arith.constant -3 : i32
    %1015 = vector.broadcast %c-3_i32_495 : i32 to vector<1x256xi32>
    %1016 = arith.addi %1, %1015 : vector<1x256xi32>
    %c0_i32_496 = arith.constant 0 : i32
    %1017 = vector.broadcast %c0_i32_496 : i32 to vector<1x256xi32>
    %1018 = arith.cmpi sge, %1016, %1017 : vector<1x256xi32>
    %c-3_i32_497 = arith.constant -3 : i32
    %1019 = vector.broadcast %c-3_i32_497 : i32 to vector<1x256xi32>
    %1020 = arith.addi %1, %1019 : vector<1x256xi32>
    %c96_i32_498 = arith.constant 96 : i32
    %1021 = vector.broadcast %c96_i32_498 : i32 to vector<1x256xi32>
    %1022 = arith.cmpi slt, %1020, %1021 : vector<1x256xi32>
    %1023 = arith.andi %1018, %1022 : vector<1x256xi1>
    %cst_499 = arith.constant 0.000000e+00 : f32
    %1024 = vector.shape_cast %1023 : vector<1x256xi1> to vector<1x256xi1>
    %1025 = vector.broadcast %1024 : vector<1x256xi1> to vector<32x256xi1>
    %1026 = vector.broadcast %cst_499 : f32 to vector<32x256xf32>
    %1027 = arith.select %1025, %1014, %1026 : vector<32x256xi1>, vector<32x256xf32>
    %c2_i32_500 = arith.constant 2 : i32
    %1028 = tpu.dynamic_rotate %983 by %c2_i32_500 dim 1 : vector<32x256xf32>, i32 -> vector<32x256xf32>
    %c-2_i32_501 = arith.constant -2 : i32
    %1029 = vector.broadcast %c-2_i32_501 : i32 to vector<1x256xi32>
    %1030 = arith.addi %1, %1029 : vector<1x256xi32>
    %c0_i32_502 = arith.constant 0 : i32
    %1031 = vector.broadcast %c0_i32_502 : i32 to vector<1x256xi32>
    %1032 = arith.cmpi sge, %1030, %1031 : vector<1x256xi32>
    %c-2_i32_503 = arith.constant -2 : i32
    %1033 = vector.broadcast %c-2_i32_503 : i32 to vector<1x256xi32>
    %1034 = arith.addi %1, %1033 : vector<1x256xi32>
    %c96_i32_504 = arith.constant 96 : i32
    %1035 = vector.broadcast %c96_i32_504 : i32 to vector<1x256xi32>
    %1036 = arith.cmpi slt, %1034, %1035 : vector<1x256xi32>
    %1037 = arith.andi %1032, %1036 : vector<1x256xi1>
    %cst_505 = arith.constant 0.000000e+00 : f32
    %1038 = vector.shape_cast %1037 : vector<1x256xi1> to vector<1x256xi1>
    %1039 = vector.broadcast %1038 : vector<1x256xi1> to vector<32x256xi1>
    %1040 = vector.broadcast %cst_505 : f32 to vector<32x256xf32>
    %1041 = arith.select %1039, %1028, %1040 : vector<32x256xi1>, vector<32x256xf32>
    %c1_i32_506 = arith.constant 1 : i32
    %1042 = tpu.dynamic_rotate %983 by %c1_i32_506 dim 1 : vector<32x256xf32>, i32 -> vector<32x256xf32>
    %c-1_i32_507 = arith.constant -1 : i32
    %1043 = vector.broadcast %c-1_i32_507 : i32 to vector<1x256xi32>
    %1044 = arith.addi %1, %1043 : vector<1x256xi32>
    %c0_i32_508 = arith.constant 0 : i32
    %1045 = vector.broadcast %c0_i32_508 : i32 to vector<1x256xi32>
    %1046 = arith.cmpi sge, %1044, %1045 : vector<1x256xi32>
    %c-1_i32_509 = arith.constant -1 : i32
    %1047 = vector.broadcast %c-1_i32_509 : i32 to vector<1x256xi32>
    %1048 = arith.addi %1, %1047 : vector<1x256xi32>
    %c96_i32_510 = arith.constant 96 : i32
    %1049 = vector.broadcast %c96_i32_510 : i32 to vector<1x256xi32>
    %1050 = arith.cmpi slt, %1048, %1049 : vector<1x256xi32>
    %1051 = arith.andi %1046, %1050 : vector<1x256xi1>
    %cst_511 = arith.constant 0.000000e+00 : f32
    %1052 = vector.shape_cast %1051 : vector<1x256xi1> to vector<1x256xi1>
    %1053 = vector.broadcast %1052 : vector<1x256xi1> to vector<32x256xi1>
    %1054 = vector.broadcast %cst_511 : f32 to vector<32x256xf32>
    %1055 = arith.select %1053, %1042, %1054 : vector<32x256xi1>, vector<32x256xf32>
    %c255_i32_512 = arith.constant 255 : i32
    %1056 = tpu.dynamic_rotate %983 by %c255_i32_512 dim 1 : vector<32x256xf32>, i32 -> vector<32x256xf32>
    %c1_i32_513 = arith.constant 1 : i32
    %1057 = vector.broadcast %c1_i32_513 : i32 to vector<1x256xi32>
    %1058 = arith.addi %1, %1057 : vector<1x256xi32>
    %c0_i32_514 = arith.constant 0 : i32
    %1059 = vector.broadcast %c0_i32_514 : i32 to vector<1x256xi32>
    %1060 = arith.cmpi sge, %1058, %1059 : vector<1x256xi32>
    %c1_i32_515 = arith.constant 1 : i32
    %1061 = vector.broadcast %c1_i32_515 : i32 to vector<1x256xi32>
    %1062 = arith.addi %1, %1061 : vector<1x256xi32>
    %c96_i32_516 = arith.constant 96 : i32
    %1063 = vector.broadcast %c96_i32_516 : i32 to vector<1x256xi32>
    %1064 = arith.cmpi slt, %1062, %1063 : vector<1x256xi32>
    %1065 = arith.andi %1060, %1064 : vector<1x256xi1>
    %cst_517 = arith.constant 0.000000e+00 : f32
    %1066 = vector.shape_cast %1065 : vector<1x256xi1> to vector<1x256xi1>
    %1067 = vector.broadcast %1066 : vector<1x256xi1> to vector<32x256xi1>
    %1068 = vector.broadcast %cst_517 : f32 to vector<32x256xf32>
    %1069 = arith.select %1067, %1056, %1068 : vector<32x256xi1>, vector<32x256xf32>
    %c254_i32_518 = arith.constant 254 : i32
    %1070 = tpu.dynamic_rotate %983 by %c254_i32_518 dim 1 : vector<32x256xf32>, i32 -> vector<32x256xf32>
    %c2_i32_519 = arith.constant 2 : i32
    %1071 = vector.broadcast %c2_i32_519 : i32 to vector<1x256xi32>
    %1072 = arith.addi %1, %1071 : vector<1x256xi32>
    %c0_i32_520 = arith.constant 0 : i32
    %1073 = vector.broadcast %c0_i32_520 : i32 to vector<1x256xi32>
    %1074 = arith.cmpi sge, %1072, %1073 : vector<1x256xi32>
    %c2_i32_521 = arith.constant 2 : i32
    %1075 = vector.broadcast %c2_i32_521 : i32 to vector<1x256xi32>
    %1076 = arith.addi %1, %1075 : vector<1x256xi32>
    %c96_i32_522 = arith.constant 96 : i32
    %1077 = vector.broadcast %c96_i32_522 : i32 to vector<1x256xi32>
    %1078 = arith.cmpi slt, %1076, %1077 : vector<1x256xi32>
    %1079 = arith.andi %1074, %1078 : vector<1x256xi1>
    %cst_523 = arith.constant 0.000000e+00 : f32
    %1080 = vector.shape_cast %1079 : vector<1x256xi1> to vector<1x256xi1>
    %1081 = vector.broadcast %1080 : vector<1x256xi1> to vector<32x256xi1>
    %1082 = vector.broadcast %cst_523 : f32 to vector<32x256xf32>
    %1083 = arith.select %1081, %1070, %1082 : vector<32x256xi1>, vector<32x256xf32>
    %c253_i32_524 = arith.constant 253 : i32
    %1084 = tpu.dynamic_rotate %983 by %c253_i32_524 dim 1 : vector<32x256xf32>, i32 -> vector<32x256xf32>
    %c3_i32_525 = arith.constant 3 : i32
    %1085 = vector.broadcast %c3_i32_525 : i32 to vector<1x256xi32>
    %1086 = arith.addi %1, %1085 : vector<1x256xi32>
    %c0_i32_526 = arith.constant 0 : i32
    %1087 = vector.broadcast %c0_i32_526 : i32 to vector<1x256xi32>
    %1088 = arith.cmpi sge, %1086, %1087 : vector<1x256xi32>
    %c3_i32_527 = arith.constant 3 : i32
    %1089 = vector.broadcast %c3_i32_527 : i32 to vector<1x256xi32>
    %1090 = arith.addi %1, %1089 : vector<1x256xi32>
    %c96_i32_528 = arith.constant 96 : i32
    %1091 = vector.broadcast %c96_i32_528 : i32 to vector<1x256xi32>
    %1092 = arith.cmpi slt, %1090, %1091 : vector<1x256xi32>
    %1093 = arith.andi %1088, %1092 : vector<1x256xi1>
    %cst_529 = arith.constant 0.000000e+00 : f32
    %1094 = vector.shape_cast %1093 : vector<1x256xi1> to vector<1x256xi1>
    %1095 = vector.broadcast %1094 : vector<1x256xi1> to vector<32x256xi1>
    %1096 = vector.broadcast %cst_529 : f32 to vector<32x256xf32>
    %1097 = arith.select %1095, %1084, %1096 : vector<32x256xi1>, vector<32x256xf32>
    %c252_i32_530 = arith.constant 252 : i32
    %1098 = tpu.dynamic_rotate %983 by %c252_i32_530 dim 1 : vector<32x256xf32>, i32 -> vector<32x256xf32>
    %c4_i32_531 = arith.constant 4 : i32
    %1099 = vector.broadcast %c4_i32_531 : i32 to vector<1x256xi32>
    %1100 = arith.addi %1, %1099 : vector<1x256xi32>
    %c0_i32_532 = arith.constant 0 : i32
    %1101 = vector.broadcast %c0_i32_532 : i32 to vector<1x256xi32>
    %1102 = arith.cmpi sge, %1100, %1101 : vector<1x256xi32>
    %c4_i32_533 = arith.constant 4 : i32
    %1103 = vector.broadcast %c4_i32_533 : i32 to vector<1x256xi32>
    %1104 = arith.addi %1, %1103 : vector<1x256xi32>
    %c96_i32_534 = arith.constant 96 : i32
    %1105 = vector.broadcast %c96_i32_534 : i32 to vector<1x256xi32>
    %1106 = arith.cmpi slt, %1104, %1105 : vector<1x256xi32>
    %1107 = arith.andi %1102, %1106 : vector<1x256xi1>
    %cst_535 = arith.constant 0.000000e+00 : f32
    %1108 = vector.shape_cast %1107 : vector<1x256xi1> to vector<1x256xi1>
    %1109 = vector.broadcast %1108 : vector<1x256xi1> to vector<32x256xi1>
    %1110 = vector.broadcast %cst_535 : f32 to vector<32x256xf32>
    %1111 = arith.select %1109, %1098, %1110 : vector<32x256xi1>, vector<32x256xf32>
    %c251_i32_536 = arith.constant 251 : i32
    %1112 = tpu.dynamic_rotate %983 by %c251_i32_536 dim 1 : vector<32x256xf32>, i32 -> vector<32x256xf32>
    %c5_i32_537 = arith.constant 5 : i32
    %1113 = vector.broadcast %c5_i32_537 : i32 to vector<1x256xi32>
    %1114 = arith.addi %1, %1113 : vector<1x256xi32>
    %c0_i32_538 = arith.constant 0 : i32
    %1115 = vector.broadcast %c0_i32_538 : i32 to vector<1x256xi32>
    %1116 = arith.cmpi sge, %1114, %1115 : vector<1x256xi32>
    %c5_i32_539 = arith.constant 5 : i32
    %1117 = vector.broadcast %c5_i32_539 : i32 to vector<1x256xi32>
    %1118 = arith.addi %1, %1117 : vector<1x256xi32>
    %c96_i32_540 = arith.constant 96 : i32
    %1119 = vector.broadcast %c96_i32_540 : i32 to vector<1x256xi32>
    %1120 = arith.cmpi slt, %1118, %1119 : vector<1x256xi32>
    %1121 = arith.andi %1116, %1120 : vector<1x256xi1>
    %cst_541 = arith.constant 0.000000e+00 : f32
    %1122 = vector.shape_cast %1121 : vector<1x256xi1> to vector<1x256xi1>
    %1123 = vector.broadcast %1122 : vector<1x256xi1> to vector<32x256xi1>
    %1124 = vector.broadcast %cst_541 : f32 to vector<32x256xf32>
    %1125 = arith.select %1123, %1112, %1124 : vector<32x256xi1>, vector<32x256xf32>
    %1126 = tpu.concatenate %999, %1013, %1027, %1041, %1055, %983, %1069, %1083, %1097, %1111, %1125 in 0 : vector<32x256xf32>, vector<32x256xf32>, vector<32x256xf32>, vector<32x256xf32>, vector<32x256xf32>, vector<32x256xf32>, vector<32x256xf32>, vector<32x256xf32>, vector<32x256xf32>, vector<32x256xf32>, vector<32x256xf32> -> vector<352x256xf32>
    %cst_542 = arith.constant dense<0.000000e+00> : vector<32x256xf32>
    %1127 = tpu.matmul %985, %1126, %cst_542 {dimension_numbers = #tpu.dot_dimension_numbers<[1], [0], [0], [1], [0, 0, 1, 1], [], []>} : vector<32x352xf32>, vector<352x256xf32>, vector<32x256xf32> -> vector<32x256xf32>
    %1128 = vector.broadcast %971 : vector<32x1xf32> to vector<32x256xf32>
    %1129 = arith.addf %1127, %1128 : vector<32x256xf32>
    %1130 = vector.broadcast %973 : vector<32x1xf32> to vector<32x256xf32>
    %1131 = arith.mulf %1129, %1130 : vector<32x256xf32>
    %1132 = vector.broadcast %975 : vector<32x1xf32> to vector<32x256xf32>
    %1133 = arith.addf %1131, %1132 : vector<32x256xf32>
    %cst_543 = arith.constant 0.000000e+00 : f32
    %1134 = vector.broadcast %cst_543 : f32 to vector<32x256xf32>
    %1135 = arith.maximumf %1133, %1134 : vector<32x256xf32>
    %c7 = arith.constant 7 : index
    %c0_544 = arith.constant 0 : index
    %c0_545 = arith.constant 0 : index
    %1136 = vector.load %arg5[%c7, %c0_544, %c0_545] : memref<8x32x352xf32, #tpu.memory_space<vmem>>, vector<1x32x352xf32>
    %1137 = vector.shape_cast %1136 : vector<1x32x352xf32> to vector<32x352xf32>
    %c5_i32_546 = arith.constant 5 : i32
    %1138 = tpu.dynamic_rotate %1135 by %c5_i32_546 dim 1 : vector<32x256xf32>, i32 -> vector<32x256xf32>
    %c-5_i32_547 = arith.constant -5 : i32
    %1139 = vector.broadcast %c-5_i32_547 : i32 to vector<1x256xi32>
    %1140 = arith.addi %1, %1139 : vector<1x256xi32>
    %c0_i32_548 = arith.constant 0 : i32
    %1141 = vector.broadcast %c0_i32_548 : i32 to vector<1x256xi32>
    %1142 = arith.cmpi sge, %1140, %1141 : vector<1x256xi32>
    %c-5_i32_549 = arith.constant -5 : i32
    %1143 = vector.broadcast %c-5_i32_549 : i32 to vector<1x256xi32>
    %1144 = arith.addi %1, %1143 : vector<1x256xi32>
    %c96_i32_550 = arith.constant 96 : i32
    %1145 = vector.broadcast %c96_i32_550 : i32 to vector<1x256xi32>
    %1146 = arith.cmpi slt, %1144, %1145 : vector<1x256xi32>
    %1147 = arith.andi %1142, %1146 : vector<1x256xi1>
    %cst_551 = arith.constant 0.000000e+00 : f32
    %1148 = vector.shape_cast %1147 : vector<1x256xi1> to vector<1x256xi1>
    %1149 = vector.broadcast %1148 : vector<1x256xi1> to vector<32x256xi1>
    %1150 = vector.broadcast %cst_551 : f32 to vector<32x256xf32>
    %1151 = arith.select %1149, %1138, %1150 : vector<32x256xi1>, vector<32x256xf32>
    %c4_i32_552 = arith.constant 4 : i32
    %1152 = tpu.dynamic_rotate %1135 by %c4_i32_552 dim 1 : vector<32x256xf32>, i32 -> vector<32x256xf32>
    %c-4_i32_553 = arith.constant -4 : i32
    %1153 = vector.broadcast %c-4_i32_553 : i32 to vector<1x256xi32>
    %1154 = arith.addi %1, %1153 : vector<1x256xi32>
    %c0_i32_554 = arith.constant 0 : i32
    %1155 = vector.broadcast %c0_i32_554 : i32 to vector<1x256xi32>
    %1156 = arith.cmpi sge, %1154, %1155 : vector<1x256xi32>
    %c-4_i32_555 = arith.constant -4 : i32
    %1157 = vector.broadcast %c-4_i32_555 : i32 to vector<1x256xi32>
    %1158 = arith.addi %1, %1157 : vector<1x256xi32>
    %c96_i32_556 = arith.constant 96 : i32
    %1159 = vector.broadcast %c96_i32_556 : i32 to vector<1x256xi32>
    %1160 = arith.cmpi slt, %1158, %1159 : vector<1x256xi32>
    %1161 = arith.andi %1156, %1160 : vector<1x256xi1>
    %cst_557 = arith.constant 0.000000e+00 : f32
    %1162 = vector.shape_cast %1161 : vector<1x256xi1> to vector<1x256xi1>
    %1163 = vector.broadcast %1162 : vector<1x256xi1> to vector<32x256xi1>
    %1164 = vector.broadcast %cst_557 : f32 to vector<32x256xf32>
    %1165 = arith.select %1163, %1152, %1164 : vector<32x256xi1>, vector<32x256xf32>
    %c3_i32_558 = arith.constant 3 : i32
    %1166 = tpu.dynamic_rotate %1135 by %c3_i32_558 dim 1 : vector<32x256xf32>, i32 -> vector<32x256xf32>
    %c-3_i32_559 = arith.constant -3 : i32
    %1167 = vector.broadcast %c-3_i32_559 : i32 to vector<1x256xi32>
    %1168 = arith.addi %1, %1167 : vector<1x256xi32>
    %c0_i32_560 = arith.constant 0 : i32
    %1169 = vector.broadcast %c0_i32_560 : i32 to vector<1x256xi32>
    %1170 = arith.cmpi sge, %1168, %1169 : vector<1x256xi32>
    %c-3_i32_561 = arith.constant -3 : i32
    %1171 = vector.broadcast %c-3_i32_561 : i32 to vector<1x256xi32>
    %1172 = arith.addi %1, %1171 : vector<1x256xi32>
    %c96_i32_562 = arith.constant 96 : i32
    %1173 = vector.broadcast %c96_i32_562 : i32 to vector<1x256xi32>
    %1174 = arith.cmpi slt, %1172, %1173 : vector<1x256xi32>
    %1175 = arith.andi %1170, %1174 : vector<1x256xi1>
    %cst_563 = arith.constant 0.000000e+00 : f32
    %1176 = vector.shape_cast %1175 : vector<1x256xi1> to vector<1x256xi1>
    %1177 = vector.broadcast %1176 : vector<1x256xi1> to vector<32x256xi1>
    %1178 = vector.broadcast %cst_563 : f32 to vector<32x256xf32>
    %1179 = arith.select %1177, %1166, %1178 : vector<32x256xi1>, vector<32x256xf32>
    %c2_i32_564 = arith.constant 2 : i32
    %1180 = tpu.dynamic_rotate %1135 by %c2_i32_564 dim 1 : vector<32x256xf32>, i32 -> vector<32x256xf32>
    %c-2_i32_565 = arith.constant -2 : i32
    %1181 = vector.broadcast %c-2_i32_565 : i32 to vector<1x256xi32>
    %1182 = arith.addi %1, %1181 : vector<1x256xi32>
    %c0_i32_566 = arith.constant 0 : i32
    %1183 = vector.broadcast %c0_i32_566 : i32 to vector<1x256xi32>
    %1184 = arith.cmpi sge, %1182, %1183 : vector<1x256xi32>
    %c-2_i32_567 = arith.constant -2 : i32
    %1185 = vector.broadcast %c-2_i32_567 : i32 to vector<1x256xi32>
    %1186 = arith.addi %1, %1185 : vector<1x256xi32>
    %c96_i32_568 = arith.constant 96 : i32
    %1187 = vector.broadcast %c96_i32_568 : i32 to vector<1x256xi32>
    %1188 = arith.cmpi slt, %1186, %1187 : vector<1x256xi32>
    %1189 = arith.andi %1184, %1188 : vector<1x256xi1>
    %cst_569 = arith.constant 0.000000e+00 : f32
    %1190 = vector.shape_cast %1189 : vector<1x256xi1> to vector<1x256xi1>
    %1191 = vector.broadcast %1190 : vector<1x256xi1> to vector<32x256xi1>
    %1192 = vector.broadcast %cst_569 : f32 to vector<32x256xf32>
    %1193 = arith.select %1191, %1180, %1192 : vector<32x256xi1>, vector<32x256xf32>
    %c1_i32_570 = arith.constant 1 : i32
    %1194 = tpu.dynamic_rotate %1135 by %c1_i32_570 dim 1 : vector<32x256xf32>, i32 -> vector<32x256xf32>
    %c-1_i32_571 = arith.constant -1 : i32
    %1195 = vector.broadcast %c-1_i32_571 : i32 to vector<1x256xi32>
    %1196 = arith.addi %1, %1195 : vector<1x256xi32>
    %c0_i32_572 = arith.constant 0 : i32
    %1197 = vector.broadcast %c0_i32_572 : i32 to vector<1x256xi32>
    %1198 = arith.cmpi sge, %1196, %1197 : vector<1x256xi32>
    %c-1_i32_573 = arith.constant -1 : i32
    %1199 = vector.broadcast %c-1_i32_573 : i32 to vector<1x256xi32>
    %1200 = arith.addi %1, %1199 : vector<1x256xi32>
    %c96_i32_574 = arith.constant 96 : i32
    %1201 = vector.broadcast %c96_i32_574 : i32 to vector<1x256xi32>
    %1202 = arith.cmpi slt, %1200, %1201 : vector<1x256xi32>
    %1203 = arith.andi %1198, %1202 : vector<1x256xi1>
    %cst_575 = arith.constant 0.000000e+00 : f32
    %1204 = vector.shape_cast %1203 : vector<1x256xi1> to vector<1x256xi1>
    %1205 = vector.broadcast %1204 : vector<1x256xi1> to vector<32x256xi1>
    %1206 = vector.broadcast %cst_575 : f32 to vector<32x256xf32>
    %1207 = arith.select %1205, %1194, %1206 : vector<32x256xi1>, vector<32x256xf32>
    %c255_i32_576 = arith.constant 255 : i32
    %1208 = tpu.dynamic_rotate %1135 by %c255_i32_576 dim 1 : vector<32x256xf32>, i32 -> vector<32x256xf32>
    %c1_i32_577 = arith.constant 1 : i32
    %1209 = vector.broadcast %c1_i32_577 : i32 to vector<1x256xi32>
    %1210 = arith.addi %1, %1209 : vector<1x256xi32>
    %c0_i32_578 = arith.constant 0 : i32
    %1211 = vector.broadcast %c0_i32_578 : i32 to vector<1x256xi32>
    %1212 = arith.cmpi sge, %1210, %1211 : vector<1x256xi32>
    %c1_i32_579 = arith.constant 1 : i32
    %1213 = vector.broadcast %c1_i32_579 : i32 to vector<1x256xi32>
    %1214 = arith.addi %1, %1213 : vector<1x256xi32>
    %c96_i32_580 = arith.constant 96 : i32
    %1215 = vector.broadcast %c96_i32_580 : i32 to vector<1x256xi32>
    %1216 = arith.cmpi slt, %1214, %1215 : vector<1x256xi32>
    %1217 = arith.andi %1212, %1216 : vector<1x256xi1>
    %cst_581 = arith.constant 0.000000e+00 : f32
    %1218 = vector.shape_cast %1217 : vector<1x256xi1> to vector<1x256xi1>
    %1219 = vector.broadcast %1218 : vector<1x256xi1> to vector<32x256xi1>
    %1220 = vector.broadcast %cst_581 : f32 to vector<32x256xf32>
    %1221 = arith.select %1219, %1208, %1220 : vector<32x256xi1>, vector<32x256xf32>
    %c254_i32_582 = arith.constant 254 : i32
    %1222 = tpu.dynamic_rotate %1135 by %c254_i32_582 dim 1 : vector<32x256xf32>, i32 -> vector<32x256xf32>
    %c2_i32_583 = arith.constant 2 : i32
    %1223 = vector.broadcast %c2_i32_583 : i32 to vector<1x256xi32>
    %1224 = arith.addi %1, %1223 : vector<1x256xi32>
    %c0_i32_584 = arith.constant 0 : i32
    %1225 = vector.broadcast %c0_i32_584 : i32 to vector<1x256xi32>
    %1226 = arith.cmpi sge, %1224, %1225 : vector<1x256xi32>
    %c2_i32_585 = arith.constant 2 : i32
    %1227 = vector.broadcast %c2_i32_585 : i32 to vector<1x256xi32>
    %1228 = arith.addi %1, %1227 : vector<1x256xi32>
    %c96_i32_586 = arith.constant 96 : i32
    %1229 = vector.broadcast %c96_i32_586 : i32 to vector<1x256xi32>
    %1230 = arith.cmpi slt, %1228, %1229 : vector<1x256xi32>
    %1231 = arith.andi %1226, %1230 : vector<1x256xi1>
    %cst_587 = arith.constant 0.000000e+00 : f32
    %1232 = vector.shape_cast %1231 : vector<1x256xi1> to vector<1x256xi1>
    %1233 = vector.broadcast %1232 : vector<1x256xi1> to vector<32x256xi1>
    %1234 = vector.broadcast %cst_587 : f32 to vector<32x256xf32>
    %1235 = arith.select %1233, %1222, %1234 : vector<32x256xi1>, vector<32x256xf32>
    %c253_i32_588 = arith.constant 253 : i32
    %1236 = tpu.dynamic_rotate %1135 by %c253_i32_588 dim 1 : vector<32x256xf32>, i32 -> vector<32x256xf32>
    %c3_i32_589 = arith.constant 3 : i32
    %1237 = vector.broadcast %c3_i32_589 : i32 to vector<1x256xi32>
    %1238 = arith.addi %1, %1237 : vector<1x256xi32>
    %c0_i32_590 = arith.constant 0 : i32
    %1239 = vector.broadcast %c0_i32_590 : i32 to vector<1x256xi32>
    %1240 = arith.cmpi sge, %1238, %1239 : vector<1x256xi32>
    %c3_i32_591 = arith.constant 3 : i32
    %1241 = vector.broadcast %c3_i32_591 : i32 to vector<1x256xi32>
    %1242 = arith.addi %1, %1241 : vector<1x256xi32>
    %c96_i32_592 = arith.constant 96 : i32
    %1243 = vector.broadcast %c96_i32_592 : i32 to vector<1x256xi32>
    %1244 = arith.cmpi slt, %1242, %1243 : vector<1x256xi32>
    %1245 = arith.andi %1240, %1244 : vector<1x256xi1>
    %cst_593 = arith.constant 0.000000e+00 : f32
    %1246 = vector.shape_cast %1245 : vector<1x256xi1> to vector<1x256xi1>
    %1247 = vector.broadcast %1246 : vector<1x256xi1> to vector<32x256xi1>
    %1248 = vector.broadcast %cst_593 : f32 to vector<32x256xf32>
    %1249 = arith.select %1247, %1236, %1248 : vector<32x256xi1>, vector<32x256xf32>
    %c252_i32_594 = arith.constant 252 : i32
    %1250 = tpu.dynamic_rotate %1135 by %c252_i32_594 dim 1 : vector<32x256xf32>, i32 -> vector<32x256xf32>
    %c4_i32_595 = arith.constant 4 : i32
    %1251 = vector.broadcast %c4_i32_595 : i32 to vector<1x256xi32>
    %1252 = arith.addi %1, %1251 : vector<1x256xi32>
    %c0_i32_596 = arith.constant 0 : i32
    %1253 = vector.broadcast %c0_i32_596 : i32 to vector<1x256xi32>
    %1254 = arith.cmpi sge, %1252, %1253 : vector<1x256xi32>
    %c4_i32_597 = arith.constant 4 : i32
    %1255 = vector.broadcast %c4_i32_597 : i32 to vector<1x256xi32>
    %1256 = arith.addi %1, %1255 : vector<1x256xi32>
    %c96_i32_598 = arith.constant 96 : i32
    %1257 = vector.broadcast %c96_i32_598 : i32 to vector<1x256xi32>
    %1258 = arith.cmpi slt, %1256, %1257 : vector<1x256xi32>
    %1259 = arith.andi %1254, %1258 : vector<1x256xi1>
    %cst_599 = arith.constant 0.000000e+00 : f32
    %1260 = vector.shape_cast %1259 : vector<1x256xi1> to vector<1x256xi1>
    %1261 = vector.broadcast %1260 : vector<1x256xi1> to vector<32x256xi1>
    %1262 = vector.broadcast %cst_599 : f32 to vector<32x256xf32>
    %1263 = arith.select %1261, %1250, %1262 : vector<32x256xi1>, vector<32x256xf32>
    %c251_i32_600 = arith.constant 251 : i32
    %1264 = tpu.dynamic_rotate %1135 by %c251_i32_600 dim 1 : vector<32x256xf32>, i32 -> vector<32x256xf32>
    %c5_i32_601 = arith.constant 5 : i32
    %1265 = vector.broadcast %c5_i32_601 : i32 to vector<1x256xi32>
    %1266 = arith.addi %1, %1265 : vector<1x256xi32>
    %c0_i32_602 = arith.constant 0 : i32
    %1267 = vector.broadcast %c0_i32_602 : i32 to vector<1x256xi32>
    %1268 = arith.cmpi sge, %1266, %1267 : vector<1x256xi32>
    %c5_i32_603 = arith.constant 5 : i32
    %1269 = vector.broadcast %c5_i32_603 : i32 to vector<1x256xi32>
    %1270 = arith.addi %1, %1269 : vector<1x256xi32>
    %c96_i32_604 = arith.constant 96 : i32
    %1271 = vector.broadcast %c96_i32_604 : i32 to vector<1x256xi32>
    %1272 = arith.cmpi slt, %1270, %1271 : vector<1x256xi32>
    %1273 = arith.andi %1268, %1272 : vector<1x256xi1>
    %cst_605 = arith.constant 0.000000e+00 : f32
    %1274 = vector.shape_cast %1273 : vector<1x256xi1> to vector<1x256xi1>
    %1275 = vector.broadcast %1274 : vector<1x256xi1> to vector<32x256xi1>
    %1276 = vector.broadcast %cst_605 : f32 to vector<32x256xf32>
    %1277 = arith.select %1275, %1264, %1276 : vector<32x256xi1>, vector<32x256xf32>
    %1278 = tpu.concatenate %1151, %1165, %1179, %1193, %1207, %1135, %1221, %1235, %1249, %1263, %1277 in 0 : vector<32x256xf32>, vector<32x256xf32>, vector<32x256xf32>, vector<32x256xf32>, vector<32x256xf32>, vector<32x256xf32>, vector<32x256xf32>, vector<32x256xf32>, vector<32x256xf32>, vector<32x256xf32>, vector<32x256xf32> -> vector<352x256xf32>
    %cst_606 = arith.constant dense<0.000000e+00> : vector<32x256xf32>
    %1279 = tpu.matmul %1137, %1278, %cst_606 {dimension_numbers = #tpu.dot_dimension_numbers<[1], [0], [0], [1], [0, 0, 1, 1], [], []>} : vector<32x352xf32>, vector<352x256xf32>, vector<32x256xf32> -> vector<32x256xf32>
    %1280 = vector.broadcast %977 : vector<32x1xf32> to vector<32x256xf32>
    %1281 = arith.addf %1279, %1280 : vector<32x256xf32>
    %1282 = arith.addf %965, %1281 : vector<32x256xf32>
    %c1_607 = arith.constant 1 : index
    %c0_608 = arith.constant 0 : index
    %c0_609 = arith.constant 0 : index
    %1283 = vector.load %arg4[%c1_607, %c0_608, %c0_609] : memref<2x32x32xf32, #tpu.memory_space<vmem>>, vector<1x32x32xf32>
    %1284 = vector.shape_cast %1283 : vector<1x32x32xf32> to vector<32x32xf32>
    %cst_610 = arith.constant dense<0.000000e+00> : vector<32x256xf32>
    %1285 = tpu.matmul %1284, %1282, %cst_610 {dimension_numbers = #tpu.dot_dimension_numbers<[1], [0], [0], [1], [0, 0, 1, 1], [], []>} : vector<32x32xf32>, vector<32x256xf32>, vector<32x256xf32> -> vector<32x256xf32>
    %1286 = arith.addf %14, %1285 : vector<32x256xf32>
    %c2_611 = arith.constant 2 : index
    %c0_612 = arith.constant 0 : index
    %c0_613 = arith.constant 0 : index
    %1287 = vector.load %arg7[%c2_611, %c0_612, %c0_613] : memref<3x32x1xf32, #tpu.memory_space<vmem>>, vector<1x32x1xf32>
    %1288 = vector.shape_cast %1287 : vector<1x32x1xf32> to vector<32x1xf32>
    %1289 = vector.broadcast %1288 : vector<32x1xf32> to vector<32x256xf32>
    %1290 = arith.addf %1286, %1289 : vector<32x256xf32>
    %c0_614 = arith.constant 0 : index
    %c0_615 = arith.constant 0 : index
    %1291 = vector.load %arg8[%c0_614, %c0_615] : memref<3x32xf32, #tpu.memory_space<vmem>>, vector<3x32xf32>
    %cst_616 = arith.constant dense<0.000000e+00> : vector<3x256xf32>
    %1292 = tpu.matmul %1291, %1290, %cst_616 {dimension_numbers = #tpu.dot_dimension_numbers<[1], [0], [0], [1], [0, 0, 1, 1], [], []>} : vector<3x32xf32>, vector<32x256xf32>, vector<3x256xf32> -> vector<3x256xf32>
    %c0_617 = arith.constant 0 : index
    %c0_618 = arith.constant 0 : index
    %1293 = vector.load %arg9[%c0_617, %c0_618] : memref<3x1xf32, #tpu.memory_space<vmem>>, vector<3x1xf32>
    %1294 = vector.broadcast %1293 : vector<3x1xf32> to vector<3x256xf32>
    %1295 = arith.addf %1292, %1294 : vector<3x256xf32>
    %c0_619 = arith.constant 0 : index
    %c0_620 = arith.constant 0 : index
    %1296 = vector.load %arg10[%c0_619, %c0_620] : memref<3x256xf32, #tpu.memory_space<vmem>>, vector<3x256xf32>
    tpu.vector_store %arg10[%c0_619, %c0_620], %1295 {strides = array<i32>} : memref<3x256xf32, #tpu.memory_space<vmem>>, vector<3x256xf32>,
    return
  }
  func.func @transform_0(%arg0: i32) -> (i32, i32) {
    %c0_i32 = arith.constant 0 : i32
    %c0_i32_0 = arith.constant 0 : i32
    %c0_i32_1 = arith.constant 0 : i32
    return %c0_i32, %c0_i32_0 : i32, i32
  }
  func.func @transform_1(%arg0: i32) -> (i32, i32) {
    %c0_i32 = arith.constant 0 : i32
    %c0_i32_0 = arith.constant 0 : i32
    %c0_i32_1 = arith.constant 0 : i32
    return %c0_i32, %c0_i32_0 : i32, i32
  }
  func.func @transform_2(%arg0: i32) -> (i32, i32) {
    %c0_i32 = arith.constant 0 : i32
    %c0_i32_0 = arith.constant 0 : i32
    %c0_i32_1 = arith.constant 0 : i32
    return %c0_i32, %c0_i32_0 : i32, i32
  }
  func.func @transform_3(%arg0: i32) -> (i32, i32, i32) {
    %c0_i32 = arith.constant 0 : i32
    %c0_i32_0 = arith.constant 0 : i32
    %c0_i32_1 = arith.constant 0 : i32
    %c0_i32_2 = arith.constant 0 : i32
    return %c0_i32, %c0_i32_0, %c0_i32_1 : i32, i32, i32
  }
  func.func @transform_4(%arg0: i32) -> (i32, i32, i32) {
    %c0_i32 = arith.constant 0 : i32
    %c0_i32_0 = arith.constant 0 : i32
    %c0_i32_1 = arith.constant 0 : i32
    %c0_i32_2 = arith.constant 0 : i32
    return %c0_i32, %c0_i32_0, %c0_i32_1 : i32, i32, i32
  }
  func.func @transform_5(%arg0: i32) -> (i32, i32, i32, i32) {
    %c0_i32 = arith.constant 0 : i32
    %c0_i32_0 = arith.constant 0 : i32
    %c0_i32_1 = arith.constant 0 : i32
    %c0_i32_2 = arith.constant 0 : i32
    %c0_i32_3 = arith.constant 0 : i32
    return %c0_i32, %c0_i32_0, %c0_i32_1, %c0_i32_2 : i32, i32, i32, i32
  }
  func.func @transform_6(%arg0: i32) -> (i32, i32, i32) {
    %c0_i32 = arith.constant 0 : i32
    %c0_i32_0 = arith.constant 0 : i32
    %c0_i32_1 = arith.constant 0 : i32
    %c0_i32_2 = arith.constant 0 : i32
    return %c0_i32, %c0_i32_0, %c0_i32_1 : i32, i32, i32
  }
  func.func @transform_7(%arg0: i32) -> (i32, i32) {
    %c0_i32 = arith.constant 0 : i32
    %c0_i32_0 = arith.constant 0 : i32
    %c0_i32_1 = arith.constant 0 : i32
    return %c0_i32, %c0_i32_0 : i32, i32
  }
  func.func @transform_8(%arg0: i32) -> (i32, i32) {
    %c0_i32 = arith.constant 0 : i32
    %c0_i32_0 = arith.constant 0 : i32
    %c0_i32_1 = arith.constant 0 : i32
    return %c0_i32, %c0_i32_0 : i32, i32
  }
  func.func @transform_9(%arg0: i32) -> (i32, i32) {
    %c0_i32 = arith.constant 0 : i32
    %c0_i32_0 = arith.constant 0 : i32
    %c0_i32_1 = arith.constant 0 : i32
    return %c0_i32, %c0_i32_0 : i32, i32
  }
}

</mosaic_0001>

<llo_original>
// kernel: tpu_custom_call.1
$region0: #{tpu_custom_call.1}
  #allocation0 [shape = 'u32[]', space=smem, size = 0x4, offset = 0x4, fixed_abs, tag = 'smem constant byte address 0x4 - core index']
  #allocation1 [shape = 'u32[144,128]{1,0:T(1,128)}', space=vmem, size = 0x12000, scoped, tag = 'internal scratch']
  %s0 = inlined_call_operand.vmem [shape: f32[4,256], index: 0, kind: input, shape index: {}]
  %s1 = inlined_call_operand.vmem [shape: s32[1,256], index: 1, kind: input, shape index: {}]
  %s2 = inlined_call_operand.vmem [shape: f32[32,4], index: 2, kind: input, shape index: {}]
  %s3 = inlined_call_operand.vmem [shape: f32[2,32,32], index: 3, kind: input, shape index: {}]
  %s4 = inlined_call_operand.vmem [shape: f32[8,32,352], index: 4, kind: input, shape index: {}]
  %s5 = inlined_call_operand.vmem [shape: f32[4,6,32,1], index: 5, kind: input, shape index: {}]
  %s6 = inlined_call_operand.vmem [shape: f32[3,32,1], index: 6, kind: input, shape index: {}]
  %s7 = inlined_call_operand.vmem [shape: f32[3,32], index: 7, kind: input, shape index: {}]
  %s8 = inlined_call_operand.vmem [shape: f32[3,1], index: 8, kind: input, shape index: {}]
  %s9 = inlined_call_operand.hbm [shape: f32[3,256], index: 9, kind: output, shape index: {}]
  %s10 = sld [smem:[#allocation0]]
  $region46: #{tpu_custom_call.1} parent=0
    _
  %s12 = ssub.s32 1, %s10
  %s13 = scalar_select 0, %s12, %s10
  $region1: #{tpu_custom_call.1} parent=0
    #allocation2 [shape = 'u8[4096]{0}', space=vmem, size = 0x1000, scoped, tag = 'output window, operand 0, single buffered']
    #allocation3 [shape = 's32[1]{0}', space=sflag, size = 0x4, scoped, tag = 'scoped memory for tpu_custom_call.1']
    %14 = vsyncpa [#allocation3], 0
    // Predicated region
    $region2: #{tpu_custom_call.1} parent=1 // pred_check
      _
    $region3: #{tpu_custom_call.1} parent=1 // pred_check_branch
      %16 = sbr.rel (0) target = $region5
    $region4: #{tpu_custom_call.1} parent=1 // pred_region
      _
    $region5: #{tpu_custom_call.1} parent=1 // pred_fallthru
      _
    // Predicated region
    $region6: #{tpu_custom_call.1} parent=1 // pred_check
      _
    $region7: #{tpu_custom_call.1} parent=1 // pred_check_branch
      %18 = sbr.rel (0) target = $region9
    $region8: #{tpu_custom_call.1} parent=1 // pred_region
      _
    $region9: #{tpu_custom_call.1} parent=1 // pred_fallthru
      _
    // Predicated region
    $region10: #{tpu_custom_call.1} parent=1 // pred_check
      _
    $region11: #{tpu_custom_call.1} parent=1 // pred_check_branch
      %20 = sbr.rel (0) target = $region13
    $region12: #{tpu_custom_call.1} parent=1 // pred_region
      _
    $region13: #{tpu_custom_call.1} parent=1 // pred_fallthru
      _
    // Predicated region
    $region14: #{tpu_custom_call.1} parent=1 // pred_check
      _
    $region15: #{tpu_custom_call.1} parent=1 // pred_check_branch
      %22 = sbr.rel (0) target = $region17
    $region16: #{tpu_custom_call.1} parent=1 // pred_region
      _
    $region17: #{tpu_custom_call.1} parent=1 // pred_fallthru
      _
    // Predicated region
    $region18: #{tpu_custom_call.1} parent=1 // pred_check
      _
    $region19: #{tpu_custom_call.1} parent=1 // pred_check_branch
      %24 = sbr.rel (0) target = $region21
    $region20: #{tpu_custom_call.1} parent=1 // pred_region
      _
    $region21: #{tpu_custom_call.1} parent=1 // pred_fallthru
      _
    // Predicated region
    $region22: #{tpu_custom_call.1} parent=1 // pred_check
      _
    $region23: #{tpu_custom_call.1} parent=1 // pred_check_branch
      %26 = sbr.rel (0) target = $region25
    $region24: #{tpu_custom_call.1} parent=1 // pred_region
      _
    $region25: #{tpu_custom_call.1} parent=1 // pred_fallthru
      _
    // Predicated region
    $region26: #{tpu_custom_call.1} parent=1 // pred_check
      _
    $region27: #{tpu_custom_call.1} parent=1 // pred_check_branch
      %28 = sbr.rel (0) target = $region29
    $region28: #{tpu_custom_call.1} parent=1 // pred_region
      _
    $region29: #{tpu_custom_call.1} parent=1 // pred_fallthru
      _
    // Predicated region
    $region30: #{tpu_custom_call.1} parent=1 // pred_check
      _
    $region31: #{tpu_custom_call.1} parent=1 // pred_check_branch
      %30 = sbr.rel (0) target = $region33
    $region32: #{tpu_custom_call.1} parent=1 // pred_region
      _
    $region33: #{tpu_custom_call.1} parent=1 // pred_fallthru
      _
    // Predicated region
    $region34: #{tpu_custom_call.1} parent=1 // pred_check
      _
    $region35: #{tpu_custom_call.1} parent=1 // pred_check_branch
      %32 = sbr.rel (0) target = $region37
    $region36: #{tpu_custom_call.1} parent=1 // pred_region
      _
    $region37: #{tpu_custom_call.1} parent=1 // pred_fallthru
      _
    %v33 = vld [vmem:[%s0] sm:$0xff]
    %v34 = vld [vmem:[%s1] sm:$0x3]
    %v35 = vld [vmem:[%s2] sm:$0xff]
    %v36 = vld [vmem:[%s2 + $0x8] sm:$0xff]
    %v37 = vld [vmem:[%s2 + $0x10] sm:$0xff]
    %v38 = vld [vmem:[%s2 + $0x18] sm:$0xff]
    %v39 = vld [vmem:[%s6] sm:$0xff]
    %v40 = vld [vmem:[%s6 + $0x8] sm:$0xff]
    %v41 = vld [vmem:[%s6 + $0x10] sm:$0xff]
    %v42 = vld [vmem:[%s6 + $0x18] sm:$0xff]
    %44 = vset.pattern.permute.xlu0 0
    %45 = vperm.xlu0 %44, %v39
    %v46 = vpop.permute.xlu0 %45
    %49 = vset.pattern.permute.xlu0 0
    %50 = vperm.xlu0 %49, %v40
    %v51 = vpop.permute.xlu0 %50
    %54 = vset.pattern.permute.xlu0 0
    %55 = vperm.xlu0 %54, %v41
    %v56 = vpop.permute.xlu0 %55
    %59 = vset.pattern.permute.xlu0 0
    %60 = vperm.xlu0 %59, %v42
    %v61 = vpop.permute.xlu0 %60
    %v64 = vcombine.high %v33, %v33
    %vm65 = vcmask 31744
    %v67 = vsel %vm65, %v35, 0
    %v70 = vsel %vm65, %v36, 0
    %v73 = vsel %vm65, %v37, 0
    %v76 = vsel %vm65, %v38, 0
    %vm78 = vcmask 1043456
    %v79 = vsel %vm78, %v33, 0
    %v81 = vsel %vm78, %v64, 0
    %83 = vmatprep.subr.mxu0 0.0
    %84 = vmatpush1.msra.mxu0 0.0
    %85 = vmatprep.subr.mxu0 0.0
    %86 = vmatpush1.msra.mxu0 0.0
    %87 = vmatprep.subr.mxu0 0.0
    %88 = vmatpush1.msra.mxu0 0.0
    %89 = vmatprep.subr.mxu0 0.0
    %90 = vmatpush1.msra.mxu0 0.0
    %91 = vmatprep.subr.mxu0 0.0
    %92 = vmatpush1.msra.mxu0 0.0
    %93 = vmatprep.subr.mxu0 0.0
    %94 = vmatpush1.msra.mxu0 0.0
    %95 = vmatprep.subr.mxu0 0.0
    %96 = vmatpush1.msra.mxu0 0.0
    %97 = vmatprep.subr.mxu0 0.0
    %98 = vmatpush1.msra.mxu0 0.0
    %99 = vmatprep.subr.mxu0 0.0
    %100 = vmatpush1.msra.mxu0 0.0
    %101 = vmatprep.subr.mxu0 0.0
    %102 = vmatpush1.msra.mxu0 0.0
    %103 = vmatprep.subr.mxu0 0.0
    %104 = vmatpush1.msra.mxu0 0.0
    %105 = vmatprep.subr.mxu0 0.0
    %106 = vmatpush1.msra.mxu0 0.0
    %107 = vmatprep.subr.mxu0 0.0
    %108 = vmatpush1.msra.mxu0 0.0
    %109 = vmatprep.subr.mxu0 0.0
    %110 = vmatpush1.msra.mxu0 0.0
    %111 = vmatprep.subr.mxu0 0.0
    %112 = vmatpush1.msra.mxu0 0.0
    %113 = vmatprep.subr.mxu0 %v81
    %114 = vmatpush1.msra.mxu0 %v79
    %115 = vmatprep.subr.mxu0 0.0
    %116 = vmatpush2.msra.mxu0 0.0
    %117 = vmatprep.subr.mxu0 0.0
    %118 = vmatpush2.msra.mxu0 0.0
    %119 = vmatprep.subr.mxu0 0.0
    %120 = vmatpush2.msra.mxu0 0.0
    %121 = vmatprep.subr.mxu0 0.0
    %122 = vmatpush2.msra.mxu0 0.0
    %123 = vmatprep.subr.mxu0 0.0
    %124 = vmatpush2.msra.mxu0 0.0
    %125 = vmatprep.subr.mxu0 0.0
    %126 = vmatpush2.msra.mxu0 0.0
    %127 = vmatprep.subr.mxu0 0.0
    %128 = vmatpush2.msra.mxu0 0.0
    %129 = vmatprep.subr.mxu0 0.0
    %130 = vmatpush2.msra.mxu0 0.0
    %131 = vmatprep.subr.mxu0 0.0
    %132 = vmatpush2.msra.mxu0 0.0
    %133 = vmatprep.subr.mxu0 0.0
    %134 = vmatpush2.msra.mxu0 0.0
    %135 = vmatprep.subr.mxu0 0.0
    %136 = vmatpush2.msra.mxu0 0.0
    %137 = vmatprep.subr.mxu0 0.0
    %138 = vmatpush2.msra.mxu0 0.0
    %139 = vmatprep.subr.mxu0 0.0
    %140 = vmatpush2.msra.mxu0 0.0
    %141 = vmatprep.subr.mxu0 0.0
    %142 = vmatpush2.msra.mxu0 0.0
    %143 = vmatprep.subr.mxu0 0.0
    %144 = vmatpush2.msra.mxu0 0.0
    %145 = vmatprep.subr.mxu0 0.0
    %146 = vmatpush2.msra.mxu0 0.0
    %147 = vmatprep.mubr.f32.mxu0 0.0
    %148 = vmatmul.mubr.f32.gmra.mxu0 %v67
    %v149 = vpop.f32.mrf.mxu0
    %v150 = vadd.f32 %v46, %v149
    %v151 = vpop.f32.mrf.mxu0
    %v152 = vadd.f32 %v46, %v151
    %153 = vmatprep.mubr.f32.mxu0 0.0
    %154 = vmatmul.mubr.f32.gmra.mxu0 %v70
    %v155 = vpop.f32.mrf.mxu0
    %v156 = vadd.f32 %v51, %v155
    %v157 = vpop.f32.mrf.mxu0
    %v158 = vadd.f32 %v51, %v157
    %159 = vmatprep.mubr.f32.mxu0 0.0
    %160 = vmatmul.mubr.f32.gmra.mxu0 %v73
    %v161 = vpop.f32.mrf.mxu0
    %v162 = vadd.f32 %v56, %v161
    %v163 = vpop.f32.mrf.mxu0
    %v164 = vadd.f32 %v56, %v163
    %165 = vmatprep.mubr.f32.mxu0 0.0
    %166 = vmatmul.mubr.f32.gmra.mxu0 %v76
    %v167 = vpop.f32.mrf.mxu0
    %v168 = vadd.f32 %v61, %v167
    %v169 = vpop.f32.mrf.mxu0
    %v170 = vadd.f32 %v61, %v169
    %171 = vdwg.mxu0
    %v172 = vld [vmem:[%s3] sm:$0xff]
    %v173 = vld [vmem:[%s3 + $0x8] sm:$0xff]
    %v174 = vld [vmem:[%s3 + $0x10] sm:$0xff]
    %v175 = vld [vmem:[%s3 + $0x18] sm:$0xff]
    %s176 = scalar_lea.vmem %s6, 32
    %v177 = vld [vmem:[%s176] sm:$0xff]
    %v178 = vld [vmem:[%s176 + $0x8] sm:$0xff]
    %v179 = vld [vmem:[%s176 + $0x10] sm:$0xff]
    %v180 = vld [vmem:[%s176 + $0x18] sm:$0xff]
    %182 = vset.pattern.permute.xlu0 0
    %183 = vperm.xlu0 %182, %v177
    %v184 = vpop.permute.xlu0 %183
    %187 = vset.pattern.permute.xlu0 0
    %188 = vperm.xlu0 %187, %v178
    %v189 = vpop.permute.xlu0 %188
    %192 = vset.pattern.permute.xlu0 0
    %193 = vperm.xlu0 %192, %v179
    %v194 = vpop.permute.xlu0 %193
    %197 = vset.pattern.permute.xlu0 0
    %198 = vperm.xlu0 %197, %v180
    %v199 = vpop.permute.xlu0 %198
    %vm201 = vcmask 261120
    %v203 = vsel %vm201, %v172, 0
    %v206 = vsel %vm201, %v173, 0
    %v209 = vsel %vm201, %v174, 0
    %v212 = vsel %vm201, %v175, 0
    %214 = vmatprep.subr.mxu0 0.0
    %215 = vmatpush1.msra.mxu0 0.0
    %216 = vmatprep.subr.mxu0 0.0
    %217 = vmatpush1.msra.mxu0 0.0
    %218 = vmatprep.subr.mxu0 0.0
    %219 = vmatpush1.msra.mxu0 0.0
    %220 = vmatprep.subr.mxu0 0.0
    %221 = vmatpush1.msra.mxu0 0.0
    %222 = vmatprep.subr.mxu0 0.0
    %223 = vmatpush1.msra.mxu0 0.0
    %224 = vmatprep.subr.mxu0 0.0
    %225 = vmatpush1.msra.mxu0 0.0
    %226 = vmatprep.subr.mxu0 0.0
    %227 = vmatpush1.msra.mxu0 0.0
    %228 = vmatprep.subr.mxu0 0.0
    %229 = vmatpush1.msra.mxu0 0.0
    %230 = vmatprep.subr.mxu0 0.0
    %231 = vmatpush1.msra.mxu0 0.0
    %232 = vmatprep.subr.mxu0 0.0
    %233 = vmatpush1.msra.mxu0 0.0
    %234 = vmatprep.subr.mxu0 0.0
    %235 = vmatpush1.msra.mxu0 0.0
    %236 = vmatprep.subr.mxu0 0.0
    %237 = vmatpush1.msra.mxu0 0.0
    %238 = vmatprep.subr.mxu0 %v170
    %239 = vmatpush1.msra.mxu0 %v168
    %240 = vmatprep.subr.mxu0 %v164
    %241 = vmatpush1.msra.mxu0 %v162
    %242 = vmatprep.subr.mxu0 %v158
    %243 = vmatpush1.msra.mxu0 %v156
    %244 = vmatprep.subr.mxu0 %v152
    %245 = vmatpush1.msra.mxu0 %v150
    %246 = vmatprep.subr.mxu0 0.0
    %247 = vmatpush2.msra.mxu0 0.0
    %248 = vmatprep.subr.mxu0 0.0
    %249 = vmatpush2.msra.mxu0 0.0
    %250 = vmatprep.subr.mxu0 0.0
    %251 = vmatpush2.msra.mxu0 0.0
    %252 = vmatprep.subr.mxu0 0.0
    %253 = vmatpush2.msra.mxu0 0.0
    %254 = vmatprep.subr.mxu0 0.0
    %255 = vmatpush2.msra.mxu0 0.0
    %256 = vmatprep.subr.mxu0 0.0
    %257 = vmatpush2.msra.mxu0 0.0
    %258 = vmatprep.subr.mxu0 0.0
    %259 = vmatpush2.msra.mxu0 0.0
    %260 = vmatprep.subr.mxu0 0.0
    %261 = vmatpush2.msra.mxu0 0.0
    %262 = vmatprep.subr.mxu0 0.0
    %263 = vmatpush2.msra.mxu0 0.0
    %264 = vmatprep.subr.mxu0 0.0
    %265 = vmatpush2.msra.mxu0 0.0
    %266 = vmatprep.subr.mxu0 0.0
    %267 = vmatpush2.msra.mxu0 0.0
    %268 = vmatprep.subr.mxu0 0.0
    %269 = vmatpush2.msra.mxu0 0.0
    %270 = vmatprep.subr.mxu0 0.0
    %271 = vmatpush2.msra.mxu0 0.0
    %272 = vmatprep.subr.mxu0 0.0
    %273 = vmatpush2.msra.mxu0 0.0
    %274 = vmatprep.subr.mxu0 0.0
    %275 = vmatpush2.msra.mxu0 0.0
    %276 = vmatprep.subr.mxu0 0.0
    %277 = vmatpush2.msra.mxu0 0.0
    %278 = vmatprep.mubr.f32.mxu0 0.0
    %279 = vmatmul.mubr.f32.gmra.mxu0 %v203
    %v280 = vpop.f32.mrf.mxu0
    %v281 = vadd.f32 %v184, %v280
    %v282 = vpop.f32.mrf.mxu0
    %v283 = vadd.f32 %v184, %v282
    %284 = vmatprep.mubr.f32.mxu0 0.0
    %285 = vmatmul.mubr.f32.gmra.mxu0 %v206
    %v286 = vpop.f32.mrf.mxu0
    %v287 = vadd.f32 %v189, %v286
    %v288 = vpop.f32.mrf.mxu0
    %v289 = vadd.f32 %v189, %v288
    %290 = vmatprep.mubr.f32.mxu0 0.0
    %291 = vmatmul.mubr.f32.gmra.mxu0 %v209
    %v292 = vpop.f32.mrf.mxu0
    %v293 = vadd.f32 %v194, %v292
    %v294 = vpop.f32.mrf.mxu0
    %v295 = vadd.f32 %v194, %v294
    %296 = vmatprep.mubr.f32.mxu0 0.0
    %297 = vmatmul.mubr.f32.gmra.mxu0 %v212
    %v298 = vpop.f32.mrf.mxu0
    %v299 = vadd.f32 %v199, %v298
    %v300 = vpop.f32.mrf.mxu0
    %v301 = vadd.f32 %v199, %v300
    %302 = vdwg.mxu0
    %v303 = vld [vmem:[%s5] sm:$0xff]
    %v304 = vld [vmem:[%s5 + $0x8] sm:$0xff]
    %v305 = vld [vmem:[%s5 + $0x10] sm:$0xff]
    %v306 = vld [vmem:[%s5 + $0x18] sm:$0xff]
    %s307 = scalar_lea.vmem %s5, 32
    %v308 = vld [vmem:[%s307] sm:$0xff]
    %v309 = vld [vmem:[%s307 + $0x8] sm:$0xff]
    %v310 = vld [vmem:[%s307 + $0x10] sm:$0xff]
    %v311 = vld [vmem:[%s307 + $0x18] sm:$0xff]
    %s312 = scalar_lea.vmem %s5, 64
    %v313 = vld [vmem:[%s312] sm:$0xff]
    %v314 = vld [vmem:[%s312 + $0x8] sm:$0xff]
    %v315 = vld [vmem:[%s312 + $0x10] sm:$0xff]
    %v316 = vld [vmem:[%s312 + $0x18] sm:$0xff]
    %s317 = scalar_lea.vmem %s5, 96
    %v318 = vld [vmem:[%s317] sm:$0xff]
    %v319 = vld [vmem:[%s317 + $0x8] sm:$0xff]
    %v320 = vld [vmem:[%s317 + $0x10] sm:$0xff]
    %v321 = vld [vmem:[%s317 + $0x18] sm:$0xff]
    %s322 = scalar_lea.vmem %s5, 128
    %v323 = vld [vmem:[%s322] sm:$0xff]
    %v324 = vld [vmem:[%s322 + $0x8] sm:$0xff]
    %v325 = vld [vmem:[%s322 + $0x10] sm:$0xff]
    %v326 = vld [vmem:[%s322 + $0x18] sm:$0xff]
    %s327 = scalar_lea.vmem %s5, 160
    %v328 = vld [vmem:[%s327] sm:$0xff]
    %v329 = vld [vmem:[%s327 + $0x8] sm:$0xff]
    %v330 = vld [vmem:[%s327 + $0x10] sm:$0xff]
    %v331 = vld [vmem:[%s327 + $0x18] sm:$0xff]
    %333 = vset.pattern.permute.xlu0 0
    %334 = vperm.xlu0 %333, %v303
    %v335 = vpop.permute.xlu0 %334
    %338 = vset.pattern.permute.xlu0 0
    %339 = vperm.xlu0 %338, %v304
    %v340 = vpop.permute.xlu0 %339
    %343 = vset.pattern.permute.xlu0 0
    %344 = vperm.xlu0 %343, %v305
    %v345 = vpop.permute.xlu0 %344
    %348 = vset.pattern.permute.xlu0 0
    %349 = vperm.xlu0 %348, %v306
    %v350 = vpop.permute.xlu0 %349
    %v352 = vmul.f32 %v150, %v335
    %v353 = vmul.f32 %v152, %v335
    %v354 = vmul.f32 %v156, %v340
    %v355 = vmul.f32 %v158, %v340
    %v356 = vmul.f32 %v162, %v345
    %v357 = vmul.f32 %v164, %v345
    %v358 = vmul.f32 %v168, %v350
    %v359 = vmul.f32 %v170, %v350
    %361 = vset.pattern.permute.xlu0 0
    %362 = vperm.xlu0 %361, %v308
    %v363 = vpop.permute.xlu0 %362
    %366 = vset.pattern.permute.xlu0 0
    %367 = vperm.xlu0 %366, %v309
    %v368 = vpop.permute.xlu0 %367
    %371 = vset.pattern.permute.xlu0 0
    %372 = vperm.xlu0 %371, %v310
    %v373 = vpop.permute.xlu0 %372
    %376 = vset.pattern.permute.xlu0 0
    %377 = vperm.xlu0 %376, %v311
    %v378 = vpop.permute.xlu0 %377
    %v380 = vadd.f32 %v352, %v363
    %v381 = vadd.f32 %v353, %v363
    %v382 = vadd.f32 %v354, %v368
    %v383 = vadd.f32 %v355, %v368
    %v384 = vadd.f32 %v356, %v373
    %v385 = vadd.f32 %v357, %v373
    %v386 = vadd.f32 %v358, %v378
    %v387 = vadd.f32 %v359, %v378
    %v388 = vmax.f32 %v380, 0.0
    %v389 = vmax.f32 %v381, 0.0
    %v390 = vmax.f32 %v382, 0.0
    %v391 = vmax.f32 %v383, 0.0
    %v392 = vmax.f32 %v384, 0.0
    %v393 = vmax.f32 %v385, 0.0
    %v394 = vmax.f32 %v386, 0.0
    %v395 = vmax.f32 %v387, 0.0
    %v396 = vld [vmem:[%s4] sm:$0xff]
    %v397 = vld [vmem:[%s4 + $0x8] sm:$0xff]
    %v398 = vld [vmem:[%s4 + $0x10] sm:$0xff]
    %v399 = vld [vmem:[%s4 + $0x18] sm:$0xff]
    %v400 = vld [vmem:[%s4 + $0x20] sm:$0xff]
    %v401 = vld [vmem:[%s4 + $0x28] sm:$0xff]
    %v402 = vld [vmem:[%s4 + $0x30] sm:$0xff]
    %v403 = vld [vmem:[%s4 + $0x38] sm:$0xff]
    %v404 = vld [vmem:[%s4 + $0x40] sm:$0xff]
    %v405 = vld [vmem:[%s4 + $0x48] sm:$0xff]
    %v406 = vld [vmem:[%s4 + $0x50] sm:$0xff]
    %v407 = vld [vmem:[%s4 + $0x58] sm:$0xff]
    %408 = vrot.lane.b32.xlu0 %v388, 5
    %v409 = vpop.permute.xlu0 %408
    %410 = vrot.lane.b32.xlu0 %v390, 5
    %v411 = vpop.permute.xlu0 %410
    %412 = vrot.lane.b32.xlu0 %v392, 5
    %v413 = vpop.permute.xlu0 %412
    %414 = vrot.lane.b32.xlu0 %v394, 5
    %v415 = vpop.permute.xlu0 %414
    %416 = vrot.lane.b32.xlu0 %v389, 5
    %v417 = vpop.permute.xlu0 %416
    %418 = vrot.lane.b32.xlu0 %v391, 5
    %v419 = vpop.permute.xlu0 %418
    %420 = vrot.lane.b32.xlu0 %v393, 5
    %v421 = vpop.permute.xlu0 %420
    %422 = vrot.lane.b32.xlu0 %v395, 5
    %v423 = vpop.permute.xlu0 %422
    %v424 = vlaneseq
    %v425 = vand.u32 %v424, 127
    %vm426 = vcmp.lt.s32.totalorder %v425, 5
    %v427 = vsel %vm426, %v409, %v417
    %v428 = vsel %vm426, %v411, %v419
    %v429 = vsel %vm426, %v413, %v421
    %v430 = vsel %vm426, %v415, %v423
    %v431 = vsel %vm426, %v417, %v409
    %v432 = vsel %vm426, %v419, %v411
    %v433 = vsel %vm426, %v421, %v413
    %v434 = vsel %vm426, %v423, %v415
    %v435 = vadd.s32 %v34, 4294967291
    %vm436 = vcmp.ge.s32.totalorder %v435, 0
    %vm437 = vcmp.lt.s32.totalorder %v435, 96
    %vm438 = vmand %vm436, %vm437
    %v439 = vsel %vm438, 1, 0
    %v440 = vlaneseq
    %v441 = vshrl.u32 %v440, 7
    %v442 = vsub.s32 0, %v441
    %v443 = vrot.slane %v439, %v442
    %v444 = vlaneseq
    %v445 = vshrl.u32 %v444, 7
    %v446 = vsub.s32 1, %v445
    %v447 = vrot.slane %v439, %v446
    %vm448 = vcmp.eq.s32.totalorder %v443, 1
    %vm449 = vcmp.eq.s32.totalorder %v447, 1
    %v450 = vsel %vm448, %v431, 0.0
    %v451 = vsel %vm449, %v427, 0.0
    %v452 = vsel %vm448, %v432, 0.0
    %v453 = vsel %vm449, %v428, 0.0
    %v454 = vsel %vm448, %v433, 0.0
    %v455 = vsel %vm449, %v429, 0.0
    %v456 = vsel %vm448, %v434, 0.0
    %v457 = vsel %vm449, %v430, 0.0
    %458 = vrot.lane.b32.xlu0 %v388, 4
    %v459 = vpop.permute.xlu0 %458
    %460 = vrot.lane.b32.xlu0 %v390, 4
    %v461 = vpop.permute.xlu0 %460
    %462 = vrot.lane.b32.xlu0 %v392, 4
    %v463 = vpop.permute.xlu0 %462
    %464 = vrot.lane.b32.xlu0 %v394, 4
    %v465 = vpop.permute.xlu0 %464
    %466 = vrot.lane.b32.xlu0 %v389, 4
    %v467 = vpop.permute.xlu0 %466
    %468 = vrot.lane.b32.xlu0 %v391, 4
    %v469 = vpop.permute.xlu0 %468
    %470 = vrot.lane.b32.xlu0 %v393, 4
    %v471 = vpop.permute.xlu0 %470
    %472 = vrot.lane.b32.xlu0 %v395, 4
    %v473 = vpop.permute.xlu0 %472
    %vm474 = vcmp.lt.s32.totalorder %v425, 4
    %v475 = vsel %vm474, %v459, %v467
    %v476 = vsel %vm474, %v461, %v469
    %v477 = vsel %vm474, %v463, %v471
    %v478 = vsel %vm474, %v465, %v473
    %v479 = vsel %vm474, %v467, %v459
    %v480 = vsel %vm474, %v469, %v461
    %v481 = vsel %vm474, %v471, %v463
    %v482 = vsel %vm474, %v473, %v465
    %v483 = vadd.s32 %v34, 4294967292
    %vm484 = vcmp.ge.s32.totalorder %v483, 0
    %vm485 = vcmp.lt.s32.totalorder %v483, 96
    %vm486 = vmand %vm484, %vm485
    %v487 = vsel %vm486, 1, 0
    %v488 = vlaneseq
    %v489 = vshrl.u32 %v488, 7
    %v490 = vsub.s32 0, %v489
    %v491 = vrot.slane %v487, %v490
    %v492 = vlaneseq
    %v493 = vshrl.u32 %v492, 7
    %v494 = vsub.s32 1, %v493
    %v495 = vrot.slane %v487, %v494
    %vm496 = vcmp.eq.s32.totalorder %v491, 1
    %vm497 = vcmp.eq.s32.totalorder %v495, 1
    %v498 = vsel %vm496, %v479, 0.0
    %v499 = vsel %vm497, %v475, 0.0
    %v500 = vsel %vm496, %v480, 0.0
    %v501 = vsel %vm497, %v476, 0.0
    %v502 = vsel %vm496, %v481, 0.0
    %v503 = vsel %vm497, %v477, 0.0
    %v504 = vsel %vm496, %v482, 0.0
    %v505 = vsel %vm497, %v478, 0.0
    %506 = vrot.lane.b32.xlu0 %v388, 3
    %v507 = vpop.permute.xlu0 %506
    %508 = vrot.lane.b32.xlu0 %v390, 3
    %v509 = vpop.permute.xlu0 %508
    %510 = vrot.lane.b32.xlu0 %v392, 3
    %v511 = vpop.permute.xlu0 %510
    %512 = vrot.lane.b32.xlu0 %v394, 3
    %v513 = vpop.permute.xlu0 %512
    %514 = vrot.lane.b32.xlu0 %v389, 3
    %v515 = vpop.permute.xlu0 %514
    %516 = vrot.lane.b32.xlu0 %v391, 3
    %v517 = vpop.permute.xlu0 %516
    %518 = vrot.lane.b32.xlu0 %v393, 3
    %v519 = vpop.permute.xlu0 %518
    %520 = vrot.lane.b32.xlu0 %v395, 3
    %v521 = vpop.permute.xlu0 %520
    %vm522 = vcmp.lt.s32.totalorder %v425, 3
    %v523 = vsel %vm522, %v507, %v515
    %v524 = vsel %vm522, %v509, %v517
    %v525 = vsel %vm522, %v511, %v519
    %v526 = vsel %vm522, %v513, %v521
    %v527 = vsel %vm522, %v515, %v507
    %v528 = vsel %vm522, %v517, %v509
    %v529 = vsel %vm522, %v519, %v511
    %v530 = vsel %vm522, %v521, %v513
    %v531 = vadd.s32 %v34, 4294967293
    %vm532 = vcmp.ge.s32.totalorder %v531, 0
    %vm533 = vcmp.lt.s32.totalorder %v531, 96
    %vm534 = vmand %vm532, %vm533
    %v535 = vsel %vm534, 1, 0
    %v536 = vlaneseq
    %v537 = vshrl.u32 %v536, 7
    %v538 = vsub.s32 0, %v537
    %v539 = vrot.slane %v535, %v538
    %v540 = vlaneseq
    %v541 = vshrl.u32 %v540, 7
    %v542 = vsub.s32 1, %v541
    %v543 = vrot.slane %v535, %v542
    %vm544 = vcmp.eq.s32.totalorder %v539, 1
    %vm545 = vcmp.eq.s32.totalorder %v543, 1
    %v546 = vsel %vm544, %v527, 0.0
    %v547 = vsel %vm545, %v523, 0.0
    %v548 = vsel %vm544, %v528, 0.0
    %v549 = vsel %vm545, %v524, 0.0
    %v550 = vsel %vm544, %v529, 0.0
    %v551 = vsel %vm545, %v525, 0.0
    %v552 = vsel %vm544, %v530, 0.0
    %v553 = vsel %vm545, %v526, 0.0
    %554 = vrot.lane.b32.xlu0 %v388, 2
    %v555 = vpop.permute.xlu0 %554
    %556 = vrot.lane.b32.xlu0 %v390, 2
    %v557 = vpop.permute.xlu0 %556
    %558 = vrot.lane.b32.xlu0 %v392, 2
    %v559 = vpop.permute.xlu0 %558
    %560 = vrot.lane.b32.xlu0 %v394, 2
    %v561 = vpop.permute.xlu0 %560
    %562 = vrot.lane.b32.xlu0 %v389, 2
    %v563 = vpop.permute.xlu0 %562
    %564 = vrot.lane.b32.xlu0 %v391, 2
    %v565 = vpop.permute.xlu0 %564
    %566 = vrot.lane.b32.xlu0 %v393, 2
    %v567 = vpop.permute.xlu0 %566
    %568 = vrot.lane.b32.xlu0 %v395, 2
    %v569 = vpop.permute.xlu0 %568
    %vm570 = vcmp.lt.s32.totalorder %v425, 2
    %v571 = vsel %vm570, %v555, %v563
    %v572 = vsel %vm570, %v557, %v565
    %v573 = vsel %vm570, %v559, %v567
    %v574 = vsel %vm570, %v561, %v569
    %v575 = vsel %vm570, %v563, %v555
    %v576 = vsel %vm570, %v565, %v557
    %v577 = vsel %vm570, %v567, %v559
    %v578 = vsel %vm570, %v569, %v561
    %v579 = vadd.s32 %v34, 4294967294
    %vm580 = vcmp.ge.s32.totalorder %v579, 0
    %vm581 = vcmp.lt.s32.totalorder %v579, 96
    %vm582 = vmand %vm580, %vm581
    %v583 = vsel %vm582, 1, 0
    %v584 = vlaneseq
    %v585 = vshrl.u32 %v584, 7
    %v586 = vsub.s32 0, %v585
    %v587 = vrot.slane %v583, %v586
    %v588 = vlaneseq
    %v589 = vshrl.u32 %v588, 7
    %v590 = vsub.s32 1, %v589
    %v591 = vrot.slane %v583, %v590
    %vm592 = vcmp.eq.s32.totalorder %v587, 1
    %vm593 = vcmp.eq.s32.totalorder %v591, 1
    %v594 = vsel %vm592, %v575, 0.0
    %v595 = vsel %vm593, %v571, 0.0
    %v596 = vsel %vm592, %v576, 0.0
    %v597 = vsel %vm593, %v572, 0.0
    %v598 = vsel %vm592, %v577, 0.0
    %v599 = vsel %vm593, %v573, 0.0
    %v600 = vsel %vm592, %v578, 0.0
    %v601 = vsel %vm593, %v574, 0.0
    %602 = vrot.lane.b32.xlu0 %v388, 1
    %v603 = vpop.permute.xlu0 %602
    %604 = vrot.lane.b32.xlu0 %v390, 1
    %v605 = vpop.permute.xlu0 %604
    %606 = vrot.lane.b32.xlu0 %v392, 1
    %v607 = vpop.permute.xlu0 %606
    %608 = vrot.lane.b32.xlu0 %v394, 1
    %v609 = vpop.permute.xlu0 %608
    %610 = vrot.lane.b32.xlu0 %v389, 1
    %v611 = vpop.permute.xlu0 %610
    %612 = vrot.lane.b32.xlu0 %v391, 1
    %v613 = vpop.permute.xlu0 %612
    %614 = vrot.lane.b32.xlu0 %v393, 1
    %v615 = vpop.permute.xlu0 %614
    %616 = vrot.lane.b32.xlu0 %v395, 1
    %v617 = vpop.permute.xlu0 %616
    %vm618 = vcmp.lt.s32.totalorder %v425, 1
    %v619 = vsel %vm618, %v603, %v611
    %v620 = vsel %vm618, %v605, %v613
    %v621 = vsel %vm618, %v607, %v615
    %v622 = vsel %vm618, %v609, %v617
    %v623 = vsel %vm618, %v611, %v603
    %v624 = vsel %vm618, %v613, %v605
    %v625 = vsel %vm618, %v615, %v607
    %v626 = vsel %vm618, %v617, %v609
    %v627 = vadd.s32 %v34, 4294967295
    %vm628 = vcmp.ge.s32.totalorder %v627, 0
    %vm629 = vcmp.lt.s32.totalorder %v627, 96
    %vm630 = vmand %vm628, %vm629
    %v631 = vsel %vm630, 1, 0
    %v632 = vlaneseq
    %v633 = vshrl.u32 %v632, 7
    %v634 = vsub.s32 0, %v633
    %v635 = vrot.slane %v631, %v634
    %v636 = vlaneseq
    %v637 = vshrl.u32 %v636, 7
    %v638 = vsub.s32 1, %v637
    %v639 = vrot.slane %v631, %v638
    %vm640 = vcmp.eq.s32.totalorder %v635, 1
    %vm641 = vcmp.eq.s32.totalorder %v639, 1
    %v642 = vsel %vm640, %v623, 0.0
    %v643 = vsel %vm641, %v619, 0.0
    %v644 = vsel %vm640, %v624, 0.0
    %v645 = vsel %vm641, %v620, 0.0
    %v646 = vsel %vm640, %v625, 0.0
    %v647 = vsel %vm641, %v621, 0.0
    %v648 = vsel %vm640, %v626, 0.0
    %v649 = vsel %vm641, %v622, 0.0
    %650 = vrot.lane.b32.xlu0 %v388, 127
    %v651 = vpop.permute.xlu0 %650
    %652 = vrot.lane.b32.xlu0 %v390, 127
    %v653 = vpop.permute.xlu0 %652
    %654 = vrot.lane.b32.xlu0 %v392, 127
    %v655 = vpop.permute.xlu0 %654
    %656 = vrot.lane.b32.xlu0 %v394, 127
    %v657 = vpop.permute.xlu0 %656
    %658 = vrot.lane.b32.xlu0 %v389, 127
    %v659 = vpop.permute.xlu0 %658
    %660 = vrot.lane.b32.xlu0 %v391, 127
    %v661 = vpop.permute.xlu0 %660
    %662 = vrot.lane.b32.xlu0 %v393, 127
    %v663 = vpop.permute.xlu0 %662
    %664 = vrot.lane.b32.xlu0 %v395, 127
    %v665 = vpop.permute.xlu0 %664
    %vm666 = vcmp.lt.s32.totalorder %v425, 127
    %v667 = vsel %vm666, %v651, %v659
    %v668 = vsel %vm666, %v653, %v661
    %v669 = vsel %vm666, %v655, %v663
    %v670 = vsel %vm666, %v657, %v665
    %v671 = vsel %vm666, %v659, %v651
    %v672 = vsel %vm666, %v661, %v653
    %v673 = vsel %vm666, %v663, %v655
    %v674 = vsel %vm666, %v665, %v657
    %v675 = vadd.s32 %v34, 1
    %vm676 = vcmp.ge.s32.totalorder %v675, 0
    %vm677 = vcmp.lt.s32.totalorder %v675, 96
    %vm678 = vmand %vm676, %vm677
    %v679 = vsel %vm678, 1, 0
    %v680 = vlaneseq
    %v681 = vshrl.u32 %v680, 7
    %v682 = vsub.s32 0, %v681
    %v683 = vrot.slane %v679, %v682
    %v684 = vlaneseq
    %v685 = vshrl.u32 %v684, 7
    %v686 = vsub.s32 1, %v685
    %v687 = vrot.slane %v679, %v686
    %vm688 = vcmp.eq.s32.totalorder %v683, 1
    %vm689 = vcmp.eq.s32.totalorder %v687, 1
    %v690 = vsel %vm688, %v667, 0.0
    %v691 = vsel %vm689, %v671, 0.0
    %v692 = vsel %vm688, %v668, 0.0
    %v693 = vsel %vm689, %v672, 0.0
    %v694 = vsel %vm688, %v669, 0.0
    %v695 = vsel %vm689, %v673, 0.0
    %v696 = vsel %vm688, %v670, 0.0
    %v697 = vsel %vm689, %v674, 0.0
    %698 = vrot.lane.b32.xlu0 %v388, 126
    %v699 = vpop.permute.xlu0 %698
    %700 = vrot.lane.b32.xlu0 %v390, 126
    %v701 = vpop.permute.xlu0 %700
    %702 = vrot.lane.b32.xlu0 %v392, 126
    %v703 = vpop.permute.xlu0 %702
    %704 = vrot.lane.b32.xlu0 %v394, 126
    %v705 = vpop.permute.xlu0 %704
    %706 = vrot.lane.b32.xlu0 %v389, 126
    %v707 = vpop.permute.xlu0 %706
    %708 = vrot.lane.b32.xlu0 %v391, 126
    %v709 = vpop.permute.xlu0 %708
    %710 = vrot.lane.b32.xlu0 %v393, 126
    %v711 = vpop.permute.xlu0 %710
    %712 = vrot.lane.b32.xlu0 %v395, 126
    %v713 = vpop.permute.xlu0 %712
    %vm714 = vcmp.lt.s32.totalorder %v425, 126
    %v715 = vsel %vm714, %v699, %v707
    %v716 = vsel %vm714, %v701, %v709
    %v717 = vsel %vm714, %v703, %v711
    %v718 = vsel %vm714, %v705, %v713
    %v719 = vsel %vm714, %v707, %v699
    %v720 = vsel %vm714, %v709, %v701
    %v721 = vsel %vm714, %v711, %v703
    %v722 = vsel %vm714, %v713, %v705
    %v723 = vadd.s32 %v34, 2
    %vm724 = vcmp.ge.s32.totalorder %v723, 0
    %vm725 = vcmp.lt.s32.totalorder %v723, 96
    %vm726 = vmand %vm724, %vm725
    %v727 = vsel %vm726, 1, 0
    %v728 = vlaneseq
    %v729 = vshrl.u32 %v728, 7
    %v730 = vsub.s32 0, %v729
    %v731 = vrot.slane %v727, %v730
    %v732 = vlaneseq
    %v733 = vshrl.u32 %v732, 7
    %v734 = vsub.s32 1, %v733
    %v735 = vrot.slane %v727, %v734
    %vm736 = vcmp.eq.s32.totalorder %v731, 1
    %vm737 = vcmp.eq.s32.totalorder %v735, 1
    %v738 = vsel %vm736, %v715, 0.0
    %v739 = vsel %vm737, %v719, 0.0
    %v740 = vsel %vm736, %v716, 0.0
    %v741 = vsel %vm737, %v720, 0.0
    %v742 = vsel %vm736, %v717, 0.0
    %v743 = vsel %vm737, %v721, 0.0
    %v744 = vsel %vm736, %v718, 0.0
    %v745 = vsel %vm737, %v722, 0.0
    %746 = vrot.lane.b32.xlu0 %v388, 125
    %v747 = vpop.permute.xlu0 %746
    %748 = vrot.lane.b32.xlu0 %v390, 125
    %v749 = vpop.permute.xlu0 %748
    %750 = vrot.lane.b32.xlu0 %v392, 125
    %v751 = vpop.permute.xlu0 %750
    %752 = vrot.lane.b32.xlu0 %v394, 125
    %v753 = vpop.permute.xlu0 %752
    %754 = vrot.lane.b32.xlu0 %v389, 125
    %v755 = vpop.permute.xlu0 %754
    %756 = vrot.lane.b32.xlu0 %v391, 125
    %v757 = vpop.permute.xlu0 %756
    %758 = vrot.lane.b32.xlu0 %v393, 125
    %v759 = vpop.permute.xlu0 %758
    %760 = vrot.lane.b32.xlu0 %v395, 125
    %v761 = vpop.permute.xlu0 %760
    %vm762 = vcmp.lt.s32.totalorder %v425, 125
    %v763 = vsel %vm762, %v747, %v755
    %v764 = vsel %vm762, %v749, %v757
    %v765 = vsel %vm762, %v751, %v759
    %v766 = vsel %vm762, %v753, %v761
    %v767 = vsel %vm762, %v755, %v747
    %v768 = vsel %vm762, %v757, %v749
    %v769 = vsel %vm762, %v759, %v751
    %v770 = vsel %vm762, %v761, %v753
    %v771 = vadd.s32 %v34, 3
    %vm772 = vcmp.ge.s32.totalorder %v771, 0
    %vm773 = vcmp.lt.s32.totalorder %v771, 96
    %vm774 = vmand %vm772, %vm773
    %v775 = vsel %vm774, 1, 0
    %v776 = vlaneseq
    %v777 = vshrl.u32 %v776, 7
    %v778 = vsub.s32 0, %v777
    %v779 = vrot.slane %v775, %v778
    %v780 = vlaneseq
    %v781 = vshrl.u32 %v780, 7
    %v782 = vsub.s32 1, %v781
    %v783 = vrot.slane %v775, %v782
    %vm784 = vcmp.eq.s32.totalorder %v779, 1
    %vm785 = vcmp.eq.s32.totalorder %v783, 1
    %v786 = vsel %vm784, %v763, 0.0
    %v787 = vsel %vm785, %v767, 0.0
    %v788 = vsel %vm784, %v764, 0.0
    %v789 = vsel %vm785, %v768, 0.0
    %v790 = vsel %vm784, %v765, 0.0
    %v791 = vsel %vm785, %v769, 0.0
    %v792 = vsel %vm784, %v766, 0.0
    %v793 = vsel %vm785, %v770, 0.0
    %794 = vrot.lane.b32.xlu0 %v388, 124
    %v795 = vpop.permute.xlu0 %794
    %796 = vrot.lane.b32.xlu0 %v390, 124
    %v797 = vpop.permute.xlu0 %796
    %798 = vrot.lane.b32.xlu0 %v392, 124
    %v799 = vpop.permute.xlu0 %798
    %800 = vrot.lane.b32.xlu0 %v394, 124
    %v801 = vpop.permute.xlu0 %800
    %802 = vrot.lane.b32.xlu0 %v389, 124
    %v803 = vpop.permute.xlu0 %802
    %804 = vrot.lane.b32.xlu0 %v391, 124
    %v805 = vpop.permute.xlu0 %804
    %806 = vrot.lane.b32.xlu0 %v393, 124
    %v807 = vpop.permute.xlu0 %806
    %808 = vrot.lane.b32.xlu0 %v395, 124
    %v809 = vpop.permute.xlu0 %808
    %vm810 = vcmp.lt.s32.totalorder %v425, 124
    %v811 = vsel %vm810, %v795, %v803
    %v812 = vsel %vm810, %v797, %v805
    %v813 = vsel %vm810, %v799, %v807
    %v814 = vsel %vm810, %v801, %v809
    %v815 = vsel %vm810, %v803, %v795
    %v816 = vsel %vm810, %v805, %v797
    %v817 = vsel %vm810, %v807, %v799
    %v818 = vsel %vm810, %v809, %v801
    %v819 = vadd.s32 %v34, 4
    %vm820 = vcmp.ge.s32.totalorder %v819, 0
    %vm821 = vcmp.lt.s32.totalorder %v819, 96
    %vm822 = vmand %vm820, %vm821
    %v823 = vsel %vm822, 1, 0
    %v824 = vlaneseq
    %v825 = vshrl.u32 %v824, 7
    %v826 = vsub.s32 0, %v825
    %v827 = vrot.slane %v823, %v826
    %v828 = vlaneseq
    %v829 = vshrl.u32 %v828, 7
    %v830 = vsub.s32 1, %v829
    %v831 = vrot.slane %v823, %v830
    %vm832 = vcmp.eq.s32.totalorder %v827, 1
    %vm833 = vcmp.eq.s32.totalorder %v831, 1
    %v834 = vsel %vm832, %v811, 0.0
    %v835 = vsel %vm833, %v815, 0.0
    %v836 = vsel %vm832, %v812, 0.0
    %v837 = vsel %vm833, %v816, 0.0
    %v838 = vsel %vm832, %v813, 0.0
    %v839 = vsel %vm833, %v817, 0.0
    %v840 = vsel %vm832, %v814, 0.0
    %v841 = vsel %vm833, %v818, 0.0
    %842 = vrot.lane.b32.xlu0 %v388, 123
    %v843 = vpop.permute.xlu0 %842
    %844 = vrot.lane.b32.xlu0 %v390, 123
    %v845 = vpop.permute.xlu0 %844
    %846 = vrot.lane.b32.xlu0 %v392, 123
    %v847 = vpop.permute.xlu0 %846
    %848 = vrot.lane.b32.xlu0 %v394, 123
    %v849 = vpop.permute.xlu0 %848
    %850 = vrot.lane.b32.xlu0 %v389, 123
    %v851 = vpop.permute.xlu0 %850
    %852 = vrot.lane.b32.xlu0 %v391, 123
    %v853 = vpop.permute.xlu0 %852
    %854 = vrot.lane.b32.xlu0 %v393, 123
    %v855 = vpop.permute.xlu0 %854
    %856 = vrot.lane.b32.xlu0 %v395, 123
    %v857 = vpop.permute.xlu0 %856
    %vm858 = vcmp.lt.s32.totalorder %v425, 123
    %v859 = vsel %vm858, %v843, %v851
    %v860 = vsel %vm858, %v845, %v853
    %v861 = vsel %vm858, %v847, %v855
    %v862 = vsel %vm858, %v849, %v857
    %v863 = vsel %vm858, %v851, %v843
    %v864 = vsel %vm858, %v853, %v845
    %v865 = vsel %vm858, %v855, %v847
    %v866 = vsel %vm858, %v857, %v849
    %v867 = vadd.s32 %v34, 5
    %vm868 = vcmp.ge.s32.totalorder %v867, 0
    %vm869 = vcmp.lt.s32.totalorder %v867, 96
    %vm870 = vmand %vm868, %vm869
    %v871 = vsel %vm870, 1, 0
    %v872 = vlaneseq
    %v873 = vshrl.u32 %v872, 7
    %v874 = vsub.s32 0, %v873
    %v875 = vrot.slane %v871, %v874
    %v876 = vlaneseq
    %v877 = vshrl.u32 %v876, 7
    %v878 = vsub.s32 1, %v877
    %v879 = vrot.slane %v871, %v878
    %vm880 = vcmp.eq.s32.totalorder %v875, 1
    %vm881 = vcmp.eq.s32.totalorder %v879, 1
    %v882 = vsel %vm880, %v859, 0.0
    %v883 = vsel %vm881, %v863, 0.0
    %v884 = vsel %vm880, %v860, 0.0
    %v885 = vsel %vm881, %v864, 0.0
    %v886 = vsel %vm880, %v861, 0.0
    %v887 = vsel %vm881, %v865, 0.0
    %v888 = vsel %vm880, %v862, 0.0
    %v889 = vsel %vm881, %v866, 0.0
    %891 = vset.pattern.permute.xlu0 0
    %892 = vperm.xlu0 %891, %v313
    %v893 = vpop.permute.xlu0 %892
    %896 = vset.pattern.permute.xlu0 0
    %897 = vperm.xlu0 %896, %v314
    %v898 = vpop.permute.xlu0 %897
    %901 = vset.pattern.permute.xlu0 0
    %902 = vperm.xlu0 %901, %v315
    %v903 = vpop.permute.xlu0 %902
    %906 = vset.pattern.permute.xlu0 0
    %907 = vperm.xlu0 %906, %v316
    %v908 = vpop.permute.xlu0 %907
    %vm910 = vcmask 785408
    %v912 = vsel %vm910, %v398, 0
    %v915 = vsel %vm910, %v401, 0
    %v918 = vsel %vm910, %v404, 0
    %v921 = vsel %vm910, %v407, 0
    %923 = vmatprep.subr.mxu0 %v601
    %924 = vmatpush1.msra.mxu0 %v600
    %925 = vmatprep.subr.mxu0 %v599
    %926 = vmatpush1.msra.mxu0 %v598
    %927 = vmatprep.subr.mxu0 %v597
    %928 = vmatpush1.msra.mxu0 %v596
    %929 = vmatprep.subr.mxu0 %v595
    %930 = vmatpush1.msra.mxu0 %v594
    %931 = vmatprep.subr.mxu0 %v553
    %932 = vmatpush1.msra.mxu0 %v552
    %933 = vmatprep.subr.mxu0 %v551
    %934 = vmatpush1.msra.mxu0 %v550
    %935 = vmatprep.subr.mxu0 %v549
    %936 = vmatpush1.msra.mxu0 %v548
    %937 = vmatprep.subr.mxu0 %v547
    %938 = vmatpush1.msra.mxu0 %v546
    %939 = vmatprep.subr.mxu0 %v505
    %940 = vmatpush1.msra.mxu0 %v504
    %941 = vmatprep.subr.mxu0 %v503
    %942 = vmatpush1.msra.mxu0 %v502
    %943 = vmatprep.subr.mxu0 %v501
    %944 = vmatpush1.msra.mxu0 %v500
    %945 = vmatprep.subr.mxu0 %v499
    %946 = vmatpush1.msra.mxu0 %v498
    %947 = vmatprep.subr.mxu0 %v457
    %948 = vmatpush1.msra.mxu0 %v456
    %949 = vmatprep.subr.mxu0 %v455
    %950 = vmatpush1.msra.mxu0 %v454
    %951 = vmatprep.subr.mxu0 %v453
    %952 = vmatpush1.msra.mxu0 %v452
    %953 = vmatprep.subr.mxu0 %v451
    %954 = vmatpush1.msra.mxu0 %v450
    %955 = vmatprep.subr.mxu0 %v745
    %956 = vmatpush2.msra.mxu0 %v744
    %957 = vmatprep.subr.mxu0 %v743
    %958 = vmatpush2.msra.mxu0 %v742
    %959 = vmatprep.subr.mxu0 %v741
    %960 = vmatpush2.msra.mxu0 %v740
    %961 = vmatprep.subr.mxu0 %v739
    %962 = vmatpush2.msra.mxu0 %v738
    %963 = vmatprep.subr.mxu0 %v697
    %964 = vmatpush2.msra.mxu0 %v696
    %965 = vmatprep.subr.mxu0 %v695
    %966 = vmatpush2.msra.mxu0 %v694
    %967 = vmatprep.subr.mxu0 %v693
    %968 = vmatpush2.msra.mxu0 %v692
    %969 = vmatprep.subr.mxu0 %v691
    %970 = vmatpush2.msra.mxu0 %v690
    %971 = vmatprep.subr.mxu0 %v395
    %972 = vmatpush2.msra.mxu0 %v394
    %973 = vmatprep.subr.mxu0 %v393
    %974 = vmatpush2.msra.mxu0 %v392
    %975 = vmatprep.subr.mxu0 %v391
    %976 = vmatpush2.msra.mxu0 %v390
    %977 = vmatprep.subr.mxu0 %v389
    %978 = vmatpush2.msra.mxu0 %v388
    %979 = vmatprep.subr.mxu0 %v649
    %980 = vmatpush2.msra.mxu0 %v648
    %981 = vmatprep.subr.mxu0 %v647
    %982 = vmatpush2.msra.mxu0 %v646
    %983 = vmatprep.subr.mxu0 %v645
    %984 = vmatpush2.msra.mxu0 %v644
    %985 = vmatprep.subr.mxu0 %v643
    %986 = vmatpush2.msra.mxu0 %v642
    %987 = vmatprep.mubr.f32.mxu0 %v397
    %988 = vmatmul.mubr.f32.gmra.mxu0 %v396
    %v989 = vpop.f32.mrf.mxu0
    %v990 = vadd.f32 %v893, %v989
    %v991 = vpop.f32.mrf.mxu0
    %v992 = vadd.f32 %v893, %v991
    %993 = vmatprep.mubr.f32.mxu0 %v400
    %994 = vmatmul.mubr.f32.gmra.mxu0 %v399
    %v995 = vpop.f32.mrf.mxu0
    %v996 = vadd.f32 %v898, %v995
    %v997 = vpop.f32.mrf.mxu0
    %v998 = vadd.f32 %v898, %v997
    %999 = vmatprep.mubr.f32.mxu0 %v403
    %1000 = vmatmul.mubr.f32.gmra.mxu0 %v402
    %v1001 = vpop.f32.mrf.mxu0
    %v1002 = vadd.f32 %v903, %v1001
    %v1003 = vpop.f32.mrf.mxu0
    %v1004 = vadd.f32 %v903, %v1003
    %1005 = vmatprep.mubr.f32.mxu0 %v406
    %1006 = vmatmul.mubr.f32.gmra.mxu0 %v405
    %v1007 = vpop.f32.mrf.mxu0
    %v1008 = vadd.f32 %v908, %v1007
    %v1009 = vpop.f32.mrf.mxu0
    %v1010 = vadd.f32 %v908, %v1009
    %1011 = vdwg.mxu0
    %1012 = vmatprep.subr.mxu0 0.0
    %1013 = vmatpush1.msra.mxu0 0.0
    %1014 = vmatprep.subr.mxu0 0.0
    %1015 = vmatpush1.msra.mxu0 0.0
    %1016 = vmatprep.subr.mxu0 0.0
    %1017 = vmatpush1.msra.mxu0 0.0
    %1018 = vmatprep.subr.mxu0 0.0
    %1019 = vmatpush1.msra.mxu0 0.0
    %1020 = vmatprep.subr.mxu0 %v889
    %1021 = vmatpush1.msra.mxu0 %v888
    %1022 = vmatprep.subr.mxu0 %v887
    %1023 = vmatpush1.msra.mxu0 %v886
    %1024 = vmatprep.subr.mxu0 %v885
    %1025 = vmatpush1.msra.mxu0 %v884
    %1026 = vmatprep.subr.mxu0 %v883
    %1027 = vmatpush1.msra.mxu0 %v882
    %1028 = vmatprep.subr.mxu0 %v841
    %1029 = vmatpush1.msra.mxu0 %v840
    %1030 = vmatprep.subr.mxu0 %v839
    %1031 = vmatpush1.msra.mxu0 %v838
    %1032 = vmatprep.subr.mxu0 %v837
    %1033 = vmatpush1.msra.mxu0 %v836
    %1034 = vmatprep.subr.mxu0 %v835
    %1035 = vmatpush1.msra.mxu0 %v834
    %1036 = vmatprep.subr.mxu0 %v793
    %1037 = vmatpush1.msra.mxu0 %v792
    %1038 = vmatprep.subr.mxu0 %v791
    %1039 = vmatpush1.msra.mxu0 %v790
    %1040 = vmatprep.subr.mxu0 %v789
    %1041 = vmatpush1.msra.mxu0 %v788
    %1042 = vmatprep.subr.mxu0 %v787
    %1043 = vmatpush1.msra.mxu0 %v786
    %1044 = vmatprep.subr.mxu0 0.0
    %1045 = vmatpush2.msra.mxu0 0.0
    %1046 = vmatprep.subr.mxu0 0.0
    %1047 = vmatpush2.msra.mxu0 0.0
    %1048 = vmatprep.subr.mxu0 0.0
    %1049 = vmatpush2.msra.mxu0 0.0
    %1050 = vmatprep.subr.mxu0 0.0
    %1051 = vmatpush2.msra.mxu0 0.0
    %1052 = vmatprep.subr.mxu0 0.0
    %1053 = vmatpush2.msra.mxu0 0.0
    %1054 = vmatprep.subr.mxu0 0.0
    %1055 = vmatpush2.msra.mxu0 0.0
    %1056 = vmatprep.subr.mxu0 0.0
    %1057 = vmatpush2.msra.mxu0 0.0
    %1058 = vmatprep.subr.mxu0 0.0
    %1059 = vmatpush2.msra.mxu0 0.0
    %1060 = vmatprep.subr.mxu0 0.0
    %1061 = vmatpush2.msra.mxu0 0.0
    %1062 = vmatprep.subr.mxu0 0.0
    %1063 = vmatpush2.msra.mxu0 0.0
    %1064 = vmatprep.subr.mxu0 0.0
    %1065 = vmatpush2.msra.mxu0 0.0
    %1066 = vmatprep.subr.mxu0 0.0
    %1067 = vmatpush2.msra.mxu0 0.0
    %1068 = vmatprep.subr.mxu0 0.0
    %1069 = vmatpush2.msra.mxu0 0.0
    %1070 = vmatprep.subr.mxu0 0.0
    %1071 = vmatpush2.msra.mxu0 0.0
    %1072 = vmatprep.subr.mxu0 0.0
    %1073 = vmatpush2.msra.mxu0 0.0
    %1074 = vmatprep.subr.mxu0 0.0
    %1075 = vmatpush2.msra.mxu0 0.0
    %1076 = vmatprep.mubr.f32.mxu0 0.0
    %1077 = vmatmul.mubr.f32.gmra.mxu0 %v912
    %v1078 = vpop.f32.mrf.mxu0
    %v1079 = vadd.f32 %v990, %v1078
    %v1080 = vpop.f32.mrf.mxu0
    %v1081 = vadd.f32 %v992, %v1080
    %1082 = vmatprep.mubr.f32.mxu0 0.0
    %1083 = vmatmul.mubr.f32.gmra.mxu0 %v915
    %v1084 = vpop.f32.mrf.mxu0
    %v1085 = vadd.f32 %v996, %v1084
    %v1086 = vpop.f32.mrf.mxu0
    %v1087 = vadd.f32 %v998, %v1086
    %1088 = vmatprep.mubr.f32.mxu0 0.0
    %1089 = vmatmul.mubr.f32.gmra.mxu0 %v918
    %v1090 = vpop.f32.mrf.mxu0
    %v1091 = vadd.f32 %v1002, %v1090
    %v1092 = vpop.f32.mrf.mxu0
    %v1093 = vadd.f32 %v1004, %v1092
    %1094 = vmatprep.mubr.f32.mxu0 0.0
    %1095 = vmatmul.mubr.f32.gmra.mxu0 %v921
    %v1096 = vpop.f32.mrf.mxu0
    %v1097 = vadd.f32 %v1008, %v1096
    %v1098 = vpop.f32.mrf.mxu0
    %v1099 = vadd.f32 %v1010, %v1098
    %1100 = vdwg.mxu0
    %1102 = vset.pattern.permute.xlu0 0
    %1103 = vperm.xlu0 %1102, %v318
    %v1104 = vpop.permute.xlu0 %1103
    %1107 = vset.pattern.permute.xlu0 0
    %1108 = vperm.xlu0 %1107, %v319
    %v1109 = vpop.permute.xlu0 %1108
    %1112 = vset.pattern.permute.xlu0 0
    %1113 = vperm.xlu0 %1112, %v320
    %v1114 = vpop.permute.xlu0 %1113
    %1117 = vset.pattern.permute.xlu0 0
    %1118 = vperm.xlu0 %1117, %v321
    %v1119 = vpop.permute.xlu0 %1118
    %v1121 = vmul.f32 %v1079, %v1104
    %v1122 = vmul.f32 %v1081, %v1104
    %v1123 = vmul.f32 %v1085, %v1109
    %v1124 = vmul.f32 %v1087, %v1109
    %v1125 = vmul.f32 %v1091, %v1114
    %v1126 = vmul.f32 %v1093, %v1114
    %v1127 = vmul.f32 %v1097, %v1119
    %v1128 = vmul.f32 %v1099, %v1119
    %1130 = vset.pattern.permute.xlu0 0
    %1131 = vperm.xlu0 %1130, %v323
    %v1132 = vpop.permute.xlu0 %1131
    %1135 = vset.pattern.permute.xlu0 0
    %1136 = vperm.xlu0 %1135, %v324
    %v1137 = vpop.permute.xlu0 %1136
    %1140 = vset.pattern.permute.xlu0 0
    %1141 = vperm.xlu0 %1140, %v325
    %v1142 = vpop.permute.xlu0 %1141
    %1145 = vset.pattern.permute.xlu0 0
    %1146 = vperm.xlu0 %1145, %v326
    %v1147 = vpop.permute.xlu0 %1146
    %v1149 = vadd.f32 %v1121, %v1132
    %v1150 = vadd.f32 %v1122, %v1132
    %v1151 = vadd.f32 %v1123, %v1137
    %v1152 = vadd.f32 %v1124, %v1137
    %v1153 = vadd.f32 %v1125, %v1142
    %v1154 = vadd.f32 %v1126, %v1142
    %v1155 = vadd.f32 %v1127, %v1147
    %v1156 = vadd.f32 %v1128, %v1147
    %v1157 = vmax.f32 %v1149, 0.0
    %v1158 = vmax.f32 %v1150, 0.0
    %v1159 = vmax.f32 %v1151, 0.0
    %v1160 = vmax.f32 %v1152, 0.0
    %v1161 = vmax.f32 %v1153, 0.0
    %v1162 = vmax.f32 %v1154, 0.0
    %v1163 = vmax.f32 %v1155, 0.0
    %v1164 = vmax.f32 %v1156, 0.0
    %s1165 = scalar_lea.vmem %s4, 96
    %v1166 = vld [vmem:[%s1165] sm:$0xff]
    %v1167 = vld [vmem:[%s1165 + $0x8] sm:$0xff]
    %v1168 = vld [vmem:[%s1165 + $0x10] sm:$0xff]
    %v1169 = vld [vmem:[%s1165 + $0x18] sm:$0xff]
    %v1170 = vld [vmem:[%s1165 + $0x20] sm:$0xff]
    %v1171 = vld [vmem:[%s1165 + $0x28] sm:$0xff]
    %v1172 = vld [vmem:[%s1165 + $0x30] sm:$0xff]
    %v1173 = vld [vmem:[%s1165 + $0x38] sm:$0xff]
    %v1174 = vld [vmem:[%s1165 + $0x40] sm:$0xff]
    %v1175 = vld [vmem:[%s1165 + $0x48] sm:$0xff]
    %v1176 = vld [vmem:[%s1165 + $0x50] sm:$0xff]
    %v1177 = vld [vmem:[%s1165 + $0x58] sm:$0xff]
    %1178 = vrot.lane.b32.xlu0 %v1157, 5
    %v1179 = vpop.permute.xlu0 %1178
    %1180 = vrot.lane.b32.xlu0 %v1159, 5
    %v1181 = vpop.permute.xlu0 %1180
    %1182 = vrot.lane.b32.xlu0 %v1161, 5
    %v1183 = vpop.permute.xlu0 %1182
    %1184 = vrot.lane.b32.xlu0 %v1163, 5
    %v1185 = vpop.permute.xlu0 %1184
    %1186 = vrot.lane.b32.xlu0 %v1158, 5
    %v1187 = vpop.permute.xlu0 %1186
    %1188 = vrot.lane.b32.xlu0 %v1160, 5
    %v1189 = vpop.permute.xlu0 %1188
    %1190 = vrot.lane.b32.xlu0 %v1162, 5
    %v1191 = vpop.permute.xlu0 %1190
    %1192 = vrot.lane.b32.xlu0 %v1164, 5
    %v1193 = vpop.permute.xlu0 %1192
    %v1194 = vsel %vm426, %v1179, %v1187
    %v1195 = vsel %vm426, %v1181, %v1189
    %v1196 = vsel %vm426, %v1183, %v1191
    %v1197 = vsel %vm426, %v1185, %v1193
    %v1198 = vsel %vm426, %v1187, %v1179
    %v1199 = vsel %vm426, %v1189, %v1181
    %v1200 = vsel %vm426, %v1191, %v1183
    %v1201 = vsel %vm426, %v1193, %v1185
    %v1202 = vsel %vm448, %v1198, 0.0
    %v1203 = vsel %vm449, %v1194, 0.0
    %v1204 = vsel %vm448, %v1199, 0.0
    %v1205 = vsel %vm449, %v1195, 0.0
    %v1206 = vsel %vm448, %v1200, 0.0
    %v1207 = vsel %vm449, %v1196, 0.0
    %v1208 = vsel %vm448, %v1201, 0.0
    %v1209 = vsel %vm449, %v1197, 0.0
    %1210 = vrot.lane.b32.xlu0 %v1157, 4
    %v1211 = vpop.permute.xlu0 %1210
    %1212 = vrot.lane.b32.xlu0 %v1159, 4
    %v1213 = vpop.permute.xlu0 %1212
    %1214 = vrot.lane.b32.xlu0 %v1161, 4
    %v1215 = vpop.permute.xlu0 %1214
    %1216 = vrot.lane.b32.xlu0 %v1163, 4
    %v1217 = vpop.permute.xlu0 %1216
    %1218 = vrot.lane.b32.xlu0 %v1158, 4
    %v1219 = vpop.permute.xlu0 %1218
    %1220 = vrot.lane.b32.xlu0 %v1160, 4
    %v1221 = vpop.permute.xlu0 %1220
    %1222 = vrot.lane.b32.xlu0 %v1162, 4
    %v1223 = vpop.permute.xlu0 %1222
    %1224 = vrot.lane.b32.xlu0 %v1164, 4
    %v1225 = vpop.permute.xlu0 %1224
    %v1226 = vsel %vm474, %v1211, %v1219
    %v1227 = vsel %vm474, %v1213, %v1221
    %v1228 = vsel %vm474, %v1215, %v1223
    %v1229 = vsel %vm474, %v1217, %v1225
    %v1230 = vsel %vm474, %v1219, %v1211
    %v1231 = vsel %vm474, %v1221, %v1213
    %v1232 = vsel %vm474, %v1223, %v1215
    %v1233 = vsel %vm474, %v1225, %v1217
    %v1234 = vsel %vm496, %v1230, 0.0
    %v1235 = vsel %vm497, %v1226, 0.0
    %v1236 = vsel %vm496, %v1231, 0.0
    %v1237 = vsel %vm497, %v1227, 0.0
    %v1238 = vsel %vm496, %v1232, 0.0
    %v1239 = vsel %vm497, %v1228, 0.0
    %v1240 = vsel %vm496, %v1233, 0.0
    %v1241 = vsel %vm497, %v1229, 0.0
    %1242 = vrot.lane.b32.xlu0 %v1157, 3
    %v1243 = vpop.permute.xlu0 %1242
    %1244 = vrot.lane.b32.xlu0 %v1159, 3
    %v1245 = vpop.permute.xlu0 %1244
    %1246 = vrot.lane.b32.xlu0 %v1161, 3
    %v1247 = vpop.permute.xlu0 %1246
    %1248 = vrot.lane.b32.xlu0 %v1163, 3
    %v1249 = vpop.permute.xlu0 %1248
    %1250 = vrot.lane.b32.xlu0 %v1158, 3
    %v1251 = vpop.permute.xlu0 %1250
    %1252 = vrot.lane.b32.xlu0 %v1160, 3
    %v1253 = vpop.permute.xlu0 %1252
    %1254 = vrot.lane.b32.xlu0 %v1162, 3
    %v1255 = vpop.permute.xlu0 %1254
    %1256 = vrot.lane.b32.xlu0 %v1164, 3
    %v1257 = vpop.permute.xlu0 %1256
    %v1258 = vsel %vm522, %v1243, %v1251
    %v1259 = vsel %vm522, %v1245, %v1253
    %v1260 = vsel %vm522, %v1247, %v1255
    %v1261 = vsel %vm522, %v1249, %v1257
    %v1262 = vsel %vm522, %v1251, %v1243
    %v1263 = vsel %vm522, %v1253, %v1245
    %v1264 = vsel %vm522, %v1255, %v1247
    %v1265 = vsel %vm522, %v1257, %v1249
    %v1266 = vsel %vm544, %v1262, 0.0
    %v1267 = vsel %vm545, %v1258, 0.0
    %v1268 = vsel %vm544, %v1263, 0.0
    %v1269 = vsel %vm545, %v1259, 0.0
    %v1270 = vsel %vm544, %v1264, 0.0
    %v1271 = vsel %vm545, %v1260, 0.0
    %v1272 = vsel %vm544, %v1265, 0.0
    %v1273 = vsel %vm545, %v1261, 0.0
    %1274 = vrot.lane.b32.xlu0 %v1157, 2
    %v1275 = vpop.permute.xlu0 %1274
    %1276 = vrot.lane.b32.xlu0 %v1159, 2
    %v1277 = vpop.permute.xlu0 %1276
    %1278 = vrot.lane.b32.xlu0 %v1161, 2
    %v1279 = vpop.permute.xlu0 %1278
    %1280 = vrot.lane.b32.xlu0 %v1163, 2
    %v1281 = vpop.permute.xlu0 %1280
    %1282 = vrot.lane.b32.xlu0 %v1158, 2
    %v1283 = vpop.permute.xlu0 %1282
    %1284 = vrot.lane.b32.xlu0 %v1160, 2
    %v1285 = vpop.permute.xlu0 %1284
    %1286 = vrot.lane.b32.xlu0 %v1162, 2
    %v1287 = vpop.permute.xlu0 %1286
    %1288 = vrot.lane.b32.xlu0 %v1164, 2
    %v1289 = vpop.permute.xlu0 %1288
    %v1290 = vsel %vm570, %v1275, %v1283
    %v1291 = vsel %vm570, %v1277, %v1285
    %v1292 = vsel %vm570, %v1279, %v1287
    %v1293 = vsel %vm570, %v1281, %v1289
    %v1294 = vsel %vm570, %v1283, %v1275
    %v1295 = vsel %vm570, %v1285, %v1277
    %v1296 = vsel %vm570, %v1287, %v1279
    %v1297 = vsel %vm570, %v1289, %v1281
    %v1298 = vsel %vm592, %v1294, 0.0
    %v1299 = vsel %vm593, %v1290, 0.0
    %v1300 = vsel %vm592, %v1295, 0.0
    %v1301 = vsel %vm593, %v1291, 0.0
    %v1302 = vsel %vm592, %v1296, 0.0
    %v1303 = vsel %vm593, %v1292, 0.0
    %v1304 = vsel %vm592, %v1297, 0.0
    %v1305 = vsel %vm593, %v1293, 0.0
    %1306 = vrot.lane.b32.xlu0 %v1157, 1
    %v1307 = vpop.permute.xlu0 %1306
    %1308 = vrot.lane.b32.xlu0 %v1159, 1
    %v1309 = vpop.permute.xlu0 %1308
    %1310 = vrot.lane.b32.xlu0 %v1161, 1
    %v1311 = vpop.permute.xlu0 %1310
    %1312 = vrot.lane.b32.xlu0 %v1163, 1
    %v1313 = vpop.permute.xlu0 %1312
    %1314 = vrot.lane.b32.xlu0 %v1158, 1
    %v1315 = vpop.permute.xlu0 %1314
    %1316 = vrot.lane.b32.xlu0 %v1160, 1
    %v1317 = vpop.permute.xlu0 %1316
    %1318 = vrot.lane.b32.xlu0 %v1162, 1
    %v1319 = vpop.permute.xlu0 %1318
    %1320 = vrot.lane.b32.xlu0 %v1164, 1
    %v1321 = vpop.permute.xlu0 %1320
    %v1322 = vsel %vm618, %v1307, %v1315
    %v1323 = vsel %vm618, %v1309, %v1317
    %v1324 = vsel %vm618, %v1311, %v1319
    %v1325 = vsel %vm618, %v1313, %v1321
    %v1326 = vsel %vm618, %v1315, %v1307
    %v1327 = vsel %vm618, %v1317, %v1309
    %v1328 = vsel %vm618, %v1319, %v1311
    %v1329 = vsel %vm618, %v1321, %v1313
    %v1330 = vsel %vm640, %v1326, 0.0
    %v1331 = vsel %vm641, %v1322, 0.0
    %v1332 = vsel %vm640, %v1327, 0.0
    %v1333 = vsel %vm641, %v1323, 0.0
    %v1334 = vsel %vm640, %v1328, 0.0
    %v1335 = vsel %vm641, %v1324, 0.0
    %v1336 = vsel %vm640, %v1329, 0.0
    %v1337 = vsel %vm641, %v1325, 0.0
    %1338 = vrot.lane.b32.xlu0 %v1157, 127
    %v1339 = vpop.permute.xlu0 %1338
    %1340 = vrot.lane.b32.xlu0 %v1159, 127
    %v1341 = vpop.permute.xlu0 %1340
    %1342 = vrot.lane.b32.xlu0 %v1161, 127
    %v1343 = vpop.permute.xlu0 %1342
    %1344 = vrot.lane.b32.xlu0 %v1163, 127
    %v1345 = vpop.permute.xlu0 %1344
    %1346 = vrot.lane.b32.xlu0 %v1158, 127
    %v1347 = vpop.permute.xlu0 %1346
    %1348 = vrot.lane.b32.xlu0 %v1160, 127
    %v1349 = vpop.permute.xlu0 %1348
    %1350 = vrot.lane.b32.xlu0 %v1162, 127
    %v1351 = vpop.permute.xlu0 %1350
    %1352 = vrot.lane.b32.xlu0 %v1164, 127
    %v1353 = vpop.permute.xlu0 %1352
    %v1354 = vsel %vm666, %v1339, %v1347
    %v1355 = vsel %vm666, %v1341, %v1349
    %v1356 = vsel %vm666, %v1343, %v1351
    %v1357 = vsel %vm666, %v1345, %v1353
    %v1358 = vsel %vm666, %v1347, %v1339
    %v1359 = vsel %vm666, %v1349, %v1341
    %v1360 = vsel %vm666, %v1351, %v1343
    %v1361 = vsel %vm666, %v1353, %v1345
    %v1362 = vsel %vm688, %v1354, 0.0
    %v1363 = vsel %vm689, %v1358, 0.0
    %v1364 = vsel %vm688, %v1355, 0.0
    %v1365 = vsel %vm689, %v1359, 0.0
    %v1366 = vsel %vm688, %v1356, 0.0
    %v1367 = vsel %vm689, %v1360, 0.0
    %v1368 = vsel %vm688, %v1357, 0.0
    %v1369 = vsel %vm689, %v1361, 0.0
    %1370 = vrot.lane.b32.xlu0 %v1157, 126
    %v1371 = vpop.permute.xlu0 %1370
    %1372 = vrot.lane.b32.xlu0 %v1159, 126
    %v1373 = vpop.permute.xlu0 %1372
    %1374 = vrot.lane.b32.xlu0 %v1161, 126
    %v1375 = vpop.permute.xlu0 %1374
    %1376 = vrot.lane.b32.xlu0 %v1163, 126
    %v1377 = vpop.permute.xlu0 %1376
    %1378 = vrot.lane.b32.xlu0 %v1158, 126
    %v1379 = vpop.permute.xlu0 %1378
    %1380 = vrot.lane.b32.xlu0 %v1160, 126
    %v1381 = vpop.permute.xlu0 %1380
    %1382 = vrot.lane.b32.xlu0 %v1162, 126
    %v1383 = vpop.permute.xlu0 %1382
    %1384 = vrot.lane.b32.xlu0 %v1164, 126
    %v1385 = vpop.permute.xlu0 %1384
    %v1386 = vsel %vm714, %v1371, %v1379
    %v1387 = vsel %vm714, %v1373, %v1381
    %v1388 = vsel %vm714, %v1375, %v1383
    %v1389 = vsel %vm714, %v1377, %v1385
    %v1390 = vsel %vm714, %v1379, %v1371
    %v1391 = vsel %vm714, %v1381, %v1373
    %v1392 = vsel %vm714, %v1383, %v1375
    %v1393 = vsel %vm714, %v1385, %v1377
    %v1394 = vsel %vm736, %v1386, 0.0
    %v1395 = vsel %vm737, %v1390, 0.0
    %v1396 = vsel %vm736, %v1387, 0.0
    %v1397 = vsel %vm737, %v1391, 0.0
    %v1398 = vsel %vm736, %v1388, 0.0
    %v1399 = vsel %vm737, %v1392, 0.0
    %v1400 = vsel %vm736, %v1389, 0.0
    %v1401 = vsel %vm737, %v1393, 0.0
    %1402 = vrot.lane.b32.xlu0 %v1157, 125
    %v1403 = vpop.permute.xlu0 %1402
    %1404 = vrot.lane.b32.xlu0 %v1159, 125
    %v1405 = vpop.permute.xlu0 %1404
    %1406 = vrot.lane.b32.xlu0 %v1161, 125
    %v1407 = vpop.permute.xlu0 %1406
    %1408 = vrot.lane.b32.xlu0 %v1163, 125
    %v1409 = vpop.permute.xlu0 %1408
    %1410 = vrot.lane.b32.xlu0 %v1158, 125
    %v1411 = vpop.permute.xlu0 %1410
    %1412 = vrot.lane.b32.xlu0 %v1160, 125
    %v1413 = vpop.permute.xlu0 %1412
    %1414 = vrot.lane.b32.xlu0 %v1162, 125
    %v1415 = vpop.permute.xlu0 %1414
    %1416 = vrot.lane.b32.xlu0 %v1164, 125
    %v1417 = vpop.permute.xlu0 %1416
    %v1418 = vsel %vm762, %v1403, %v1411
    %v1419 = vsel %vm762, %v1405, %v1413
    %v1420 = vsel %vm762, %v1407, %v1415
    %v1421 = vsel %vm762, %v1409, %v1417
    %v1422 = vsel %vm762, %v1411, %v1403
    %v1423 = vsel %vm762, %v1413, %v1405
    %v1424 = vsel %vm762, %v1415, %v1407
    %v1425 = vsel %vm762, %v1417, %v1409
    %v1426 = vsel %vm784, %v1418, 0.0
    %v1427 = vsel %vm785, %v1422, 0.0
    %v1428 = vsel %vm784, %v1419, 0.0
    %v1429 = vsel %vm785, %v1423, 0.0
    %v1430 = vsel %vm784, %v1420, 0.0
    %v1431 = vsel %vm785, %v1424, 0.0
    %v1432 = vsel %vm784, %v1421, 0.0
    %v1433 = vsel %vm785, %v1425, 0.0
    %1434 = vrot.lane.b32.xlu0 %v1157, 124
    %v1435 = vpop.permute.xlu0 %1434
    %1436 = vrot.lane.b32.xlu0 %v1159, 124
    %v1437 = vpop.permute.xlu0 %1436
    %1438 = vrot.lane.b32.xlu0 %v1161, 124
    %v1439 = vpop.permute.xlu0 %1438
    %1440 = vrot.lane.b32.xlu0 %v1163, 124
    %v1441 = vpop.permute.xlu0 %1440
    %1442 = vrot.lane.b32.xlu0 %v1158, 124
    %v1443 = vpop.permute.xlu0 %1442
    %1444 = vrot.lane.b32.xlu0 %v1160, 124
    %v1445 = vpop.permute.xlu0 %1444
    %1446 = vrot.lane.b32.xlu0 %v1162, 124
    %v1447 = vpop.permute.xlu0 %1446
    %1448 = vrot.lane.b32.xlu0 %v1164, 124
    %v1449 = vpop.permute.xlu0 %1448
    %v1450 = vsel %vm810, %v1435, %v1443
    %v1451 = vsel %vm810, %v1437, %v1445
    %v1452 = vsel %vm810, %v1439, %v1447
    %v1453 = vsel %vm810, %v1441, %v1449
    %v1454 = vsel %vm810, %v1443, %v1435
    %v1455 = vsel %vm810, %v1445, %v1437
    %v1456 = vsel %vm810, %v1447, %v1439
    %v1457 = vsel %vm810, %v1449, %v1441
    %v1458 = vsel %vm832, %v1450, 0.0
    %v1459 = vsel %vm833, %v1454, 0.0
    %v1460 = vsel %vm832, %v1451, 0.0
    %v1461 = vsel %vm833, %v1455, 0.0
    %v1462 = vsel %vm832, %v1452, 0.0
    %v1463 = vsel %vm833, %v1456, 0.0
    %v1464 = vsel %vm832, %v1453, 0.0
    %v1465 = vsel %vm833, %v1457, 0.0
    %1466 = vrot.lane.b32.xlu0 %v1157, 123
    %v1467 = vpop.permute.xlu0 %1466
    %1468 = vrot.lane.b32.xlu0 %v1159, 123
    %v1469 = vpop.permute.xlu0 %1468
    %1470 = vrot.lane.b32.xlu0 %v1161, 123
    %v1471 = vpop.permute.xlu0 %1470
    %1472 = vrot.lane.b32.xlu0 %v1163, 123
    %v1473 = vpop.permute.xlu0 %1472
    %1474 = vrot.lane.b32.xlu0 %v1158, 123
    %v1475 = vpop.permute.xlu0 %1474
    %1476 = vrot.lane.b32.xlu0 %v1160, 123
    %v1477 = vpop.permute.xlu0 %1476
    %1478 = vrot.lane.b32.xlu0 %v1162, 123
    %v1479 = vpop.permute.xlu0 %1478
    %1480 = vrot.lane.b32.xlu0 %v1164, 123
    %v1481 = vpop.permute.xlu0 %1480
    %v1482 = vsel %vm858, %v1467, %v1475
    %v1483 = vsel %vm858, %v1469, %v1477
    %v1484 = vsel %vm858, %v1471, %v1479
    %v1485 = vsel %vm858, %v1473, %v1481
    %v1486 = vsel %vm858, %v1475, %v1467
    %v1487 = vsel %vm858, %v1477, %v1469
    %v1488 = vsel %vm858, %v1479, %v1471
    %v1489 = vsel %vm858, %v1481, %v1473
    %v1490 = vsel %vm880, %v1482, 0.0
    %v1491 = vsel %vm881, %v1486, 0.0
    %v1492 = vsel %vm880, %v1483, 0.0
    %v1493 = vsel %vm881, %v1487, 0.0
    %v1494 = vsel %vm880, %v1484, 0.0
    %v1495 = vsel %vm881, %v1488, 0.0
    %v1496 = vsel %vm880, %v1485, 0.0
    %v1497 = vsel %vm881, %v1489, 0.0
    %1499 = vset.pattern.permute.xlu0 0
    %1500 = vperm.xlu0 %1499, %v328
    %v1501 = vpop.permute.xlu0 %1500
    %1504 = vset.pattern.permute.xlu0 0
    %1505 = vperm.xlu0 %1504, %v329
    %v1506 = vpop.permute.xlu0 %1505
    %1509 = vset.pattern.permute.xlu0 0
    %1510 = vperm.xlu0 %1509, %v330
    %v1511 = vpop.permute.xlu0 %1510
    %1514 = vset.pattern.permute.xlu0 0
    %1515 = vperm.xlu0 %1514, %v331
    %v1516 = vpop.permute.xlu0 %1515
    %v1519 = vsel %vm910, %v1168, 0
    %v1522 = vsel %vm910, %v1171, 0
    %v1525 = vsel %vm910, %v1174, 0
    %v1528 = vsel %vm910, %v1177, 0
    %1530 = vmatprep.subr.mxu0 %v1305
    %1531 = vmatpush1.msra.mxu0 %v1304
    %1532 = vmatprep.subr.mxu0 %v1303
    %1533 = vmatpush1.msra.mxu0 %v1302
    %1534 = vmatprep.subr.mxu0 %v1301
    %1535 = vmatpush1.msra.mxu0 %v1300
    %1536 = vmatprep.subr.mxu0 %v1299
    %1537 = vmatpush1.msra.mxu0 %v1298
    %1538 = vmatprep.subr.mxu0 %v1273
    %1539 = vmatpush1.msra.mxu0 %v1272
    %1540 = vmatprep.subr.mxu0 %v1271
    %1541 = vmatpush1.msra.mxu0 %v1270
    %1542 = vmatprep.subr.mxu0 %v1269
    %1543 = vmatpush1.msra.mxu0 %v1268
    %1544 = vmatprep.subr.mxu0 %v1267
    %1545 = vmatpush1.msra.mxu0 %v1266
    %1546 = vmatprep.subr.mxu0 %v1241
    %1547 = vmatpush1.msra.mxu0 %v1240
    %1548 = vmatprep.subr.mxu0 %v1239
    %1549 = vmatpush1.msra.mxu0 %v1238
    %1550 = vmatprep.subr.mxu0 %v1237
    %1551 = vmatpush1.msra.mxu0 %v1236
    %1552 = vmatprep.subr.mxu0 %v1235
    %1553 = vmatpush1.msra.mxu0 %v1234
    %1554 = vmatprep.subr.mxu0 %v1209
    %1555 = vmatpush1.msra.mxu0 %v1208
    %1556 = vmatprep.subr.mxu0 %v1207
    %1557 = vmatpush1.msra.mxu0 %v1206
    %1558 = vmatprep.subr.mxu0 %v1205
    %1559 = vmatpush1.msra.mxu0 %v1204
    %1560 = vmatprep.subr.mxu0 %v1203
    %1561 = vmatpush1.msra.mxu0 %v1202
    %1562 = vmatprep.subr.mxu0 %v1401
    %1563 = vmatpush2.msra.mxu0 %v1400
    %1564 = vmatprep.subr.mxu0 %v1399
    %1565 = vmatpush2.msra.mxu0 %v1398
    %1566 = vmatprep.subr.mxu0 %v1397
    %1567 = vmatpush2.msra.mxu0 %v1396
    %1568 = vmatprep.subr.mxu0 %v1395
    %1569 = vmatpush2.msra.mxu0 %v1394
    %1570 = vmatprep.subr.mxu0 %v1369
    %1571 = vmatpush2.msra.mxu0 %v1368
    %1572 = vmatprep.subr.mxu0 %v1367
    %1573 = vmatpush2.msra.mxu0 %v1366
    %1574 = vmatprep.subr.mxu0 %v1365
    %1575 = vmatpush2.msra.mxu0 %v1364
    %1576 = vmatprep.subr.mxu0 %v1363
    %1577 = vmatpush2.msra.mxu0 %v1362
    %1578 = vmatprep.subr.mxu0 %v1164
    %1579 = vmatpush2.msra.mxu0 %v1163
    %1580 = vmatprep.subr.mxu0 %v1162
    %1581 = vmatpush2.msra.mxu0 %v1161
    %1582 = vmatprep.subr.mxu0 %v1160
    %1583 = vmatpush2.msra.mxu0 %v1159
    %1584 = vmatprep.subr.mxu0 %v1158
    %1585 = vmatpush2.msra.mxu0 %v1157
    %1586 = vmatprep.subr.mxu0 %v1337
    %1587 = vmatpush2.msra.mxu0 %v1336
    %1588 = vmatprep.subr.mxu0 %v1335
    %1589 = vmatpush2.msra.mxu0 %v1334
    %1590 = vmatprep.subr.mxu0 %v1333
    %1591 = vmatpush2.msra.mxu0 %v1332
    %1592 = vmatprep.subr.mxu0 %v1331
    %1593 = vmatpush2.msra.mxu0 %v1330
    %1594 = vmatprep.mubr.f32.mxu0 %v1167
    %1595 = vmatmul.mubr.f32.gmra.mxu0 %v1166
    %v1596 = vpop.f32.mrf.mxu0
    %v1597 = vadd.f32 %v1501, %v1596
    %v1598 = vpop.f32.mrf.mxu0
    %v1599 = vadd.f32 %v1501, %v1598
    %1600 = vmatprep.mubr.f32.mxu0 %v1170
    %1601 = vmatmul.mubr.f32.gmra.mxu0 %v1169
    %v1602 = vpop.f32.mrf.mxu0
    %v1603 = vadd.f32 %v1506, %v1602
    %v1604 = vpop.f32.mrf.mxu0
    %v1605 = vadd.f32 %v1506, %v1604
    %1606 = vmatprep.mubr.f32.mxu0 %v1173
    %1607 = vmatmul.mubr.f32.gmra.mxu0 %v1172
    %v1608 = vpop.f32.mrf.mxu0
    %v1609 = vadd.f32 %v1511, %v1608
    %v1610 = vpop.f32.mrf.mxu0
    %v1611 = vadd.f32 %v1511, %v1610
    %1612 = vmatprep.mubr.f32.mxu0 %v1176
    %1613 = vmatmul.mubr.f32.gmra.mxu0 %v1175
    %v1614 = vpop.f32.mrf.mxu0
    %v1615 = vadd.f32 %v1516, %v1614
    %v1616 = vpop.f32.mrf.mxu0
    %v1617 = vadd.f32 %v1516, %v1616
    %1618 = vdwg.mxu0
    %1619 = vmatprep.subr.mxu0 0.0
    %1620 = vmatpush1.msra.mxu0 0.0
    %1621 = vmatprep.subr.mxu0 0.0
    %1622 = vmatpush1.msra.mxu0 0.0
    %1623 = vmatprep.subr.mxu0 0.0
    %1624 = vmatpush1.msra.mxu0 0.0
    %1625 = vmatprep.subr.mxu0 0.0
    %1626 = vmatpush1.msra.mxu0 0.0
    %1627 = vmatprep.subr.mxu0 %v1497
    %1628 = vmatpush1.msra.mxu0 %v1496
    %1629 = vmatprep.subr.mxu0 %v1495
    %1630 = vmatpush1.msra.mxu0 %v1494
    %1631 = vmatprep.subr.mxu0 %v1493
    %1632 = vmatpush1.msra.mxu0 %v1492
    %1633 = vmatprep.subr.mxu0 %v1491
    %1634 = vmatpush1.msra.mxu0 %v1490
    %1635 = vmatprep.subr.mxu0 %v1465
    %1636 = vmatpush1.msra.mxu0 %v1464
    %1637 = vmatprep.subr.mxu0 %v1463
    %1638 = vmatpush1.msra.mxu0 %v1462
    %1639 = vmatprep.subr.mxu0 %v1461
    %1640 = vmatpush1.msra.mxu0 %v1460
    %1641 = vmatprep.subr.mxu0 %v1459
    %1642 = vmatpush1.msra.mxu0 %v1458
    %1643 = vmatprep.subr.mxu0 %v1433
    %1644 = vmatpush1.msra.mxu0 %v1432
    %1645 = vmatprep.subr.mxu0 %v1431
    %1646 = vmatpush1.msra.mxu0 %v1430
    %1647 = vmatprep.subr.mxu0 %v1429
    %1648 = vmatpush1.msra.mxu0 %v1428
    %1649 = vmatprep.subr.mxu0 %v1427
    %1650 = vmatpush1.msra.mxu0 %v1426
    %1651 = vmatprep.subr.mxu0 0.0
    %1652 = vmatpush2.msra.mxu0 0.0
    %1653 = vmatprep.subr.mxu0 0.0
    %1654 = vmatpush2.msra.mxu0 0.0
    %1655 = vmatprep.subr.mxu0 0.0
    %1656 = vmatpush2.msra.mxu0 0.0
    %1657 = vmatprep.subr.mxu0 0.0
    %1658 = vmatpush2.msra.mxu0 0.0
    %1659 = vmatprep.subr.mxu0 0.0
    %1660 = vmatpush2.msra.mxu0 0.0
    %1661 = vmatprep.subr.mxu0 0.0
    %1662 = vmatpush2.msra.mxu0 0.0
    %1663 = vmatprep.subr.mxu0 0.0
    %1664 = vmatpush2.msra.mxu0 0.0
    %1665 = vmatprep.subr.mxu0 0.0
    %1666 = vmatpush2.msra.mxu0 0.0
    %1667 = vmatprep.subr.mxu0 0.0
    %1668 = vmatpush2.msra.mxu0 0.0
    %1669 = vmatprep.subr.mxu0 0.0
    %1670 = vmatpush2.msra.mxu0 0.0
    %1671 = vmatprep.subr.mxu0 0.0
    %1672 = vmatpush2.msra.mxu0 0.0
    %1673 = vmatprep.subr.mxu0 0.0
    %1674 = vmatpush2.msra.mxu0 0.0
    %1675 = vmatprep.subr.mxu0 0.0
    %1676 = vmatpush2.msra.mxu0 0.0
    %1677 = vmatprep.subr.mxu0 0.0
    %1678 = vmatpush2.msra.mxu0 0.0
    %1679 = vmatprep.subr.mxu0 0.0
    %1680 = vmatpush2.msra.mxu0 0.0
    %1681 = vmatprep.subr.mxu0 0.0
    %1682 = vmatpush2.msra.mxu0 0.0
    %1683 = vmatprep.mubr.f32.mxu0 0.0
    %1684 = vmatmul.mubr.f32.gmra.mxu0 %v1519
    %v1685 = vpop.f32.mrf.mxu0
    %v1686 = vadd.f32 %v1597, %v1685
    %v1687 = vpop.f32.mrf.mxu0
    %v1688 = vadd.f32 %v1599, %v1687
    %1689 = vmatprep.mubr.f32.mxu0 0.0
    %1690 = vmatmul.mubr.f32.gmra.mxu0 %v1522
    %v1691 = vpop.f32.mrf.mxu0
    %v1692 = vadd.f32 %v1603, %v1691
    %v1693 = vpop.f32.mrf.mxu0
    %v1694 = vadd.f32 %v1605, %v1693
    %1695 = vmatprep.mubr.f32.mxu0 0.0
    %1696 = vmatmul.mubr.f32.gmra.mxu0 %v1525
    %v1697 = vpop.f32.mrf.mxu0
    %v1698 = vadd.f32 %v1609, %v1697
    %v1699 = vpop.f32.mrf.mxu0
    %v1700 = vadd.f32 %v1611, %v1699
    %1701 = vmatprep.mubr.f32.mxu0 0.0
    %1702 = vmatmul.mubr.f32.gmra.mxu0 %v1528
    %v1703 = vpop.f32.mrf.mxu0
    %v1704 = vadd.f32 %v1615, %v1703
    %v1705 = vpop.f32.mrf.mxu0
    %v1706 = vadd.f32 %v1617, %v1705
    %1707 = vdwg.mxu0
    %v1708 = vadd.f32 %v150, %v1686
    %v1709 = vadd.f32 %v152, %v1688
    %v1710 = vadd.f32 %v156, %v1692
    %v1711 = vadd.f32 %v158, %v1694
    %v1712 = vadd.f32 %v162, %v1698
    %v1713 = vadd.f32 %v164, %v1700
    %v1714 = vadd.f32 %v168, %v1704
    %v1715 = vadd.f32 %v170, %v1706
    %s1716 = scalar_lea.vmem %s5, 192
    %v1717 = vld [vmem:[%s1716] sm:$0xff]
    %v1718 = vld [vmem:[%s1716 + $0x8] sm:$0xff]
    %v1719 = vld [vmem:[%s1716 + $0x10] sm:$0xff]
    %v1720 = vld [vmem:[%s1716 + $0x18] sm:$0xff]
    %s1721 = scalar_lea.vmem %s5, 224
    %v1722 = vld [vmem:[%s1721] sm:$0xff]
    %v1723 = vld [vmem:[%s1721 + $0x8] sm:$0xff]
    %v1724 = vld [vmem:[%s1721 + $0x10] sm:$0xff]
    %v1725 = vld [vmem:[%s1721 + $0x18] sm:$0xff]
    %s1726 = scalar_lea.vmem %s5, 256
    %v1727 = vld [vmem:[%s1726] sm:$0xff]
    %v1728 = vld [vmem:[%s1726 + $0x8] sm:$0xff]
    %v1729 = vld [vmem:[%s1726 + $0x10] sm:$0xff]
    %v1730 = vld [vmem:[%s1726 + $0x18] sm:$0xff]
    %s1731 = scalar_lea.vmem %s5, 288
    %v1732 = vld [vmem:[%s1731] sm:$0xff]
    %v1733 = vld [vmem:[%s1731 + $0x8] sm:$0xff]
    %v1734 = vld [vmem:[%s1731 + $0x10] sm:$0xff]
    %v1735 = vld [vmem:[%s1731 + $0x18] sm:$0xff]
    %s1736 = scalar_lea.vmem %s5, 320
    %v1737 = vld [vmem:[%s1736] sm:$0xff]
    %v1738 = vld [vmem:[%s1736 + $0x8] sm:$0xff]
    %v1739 = vld [vmem:[%s1736 + $0x10] sm:$0xff]
    %v1740 = vld [vmem:[%s1736 + $0x18] sm:$0xff]
    %s1741 = scalar_lea.vmem %s5, 352
    %v1742 = vld [vmem:[%s1741] sm:$0xff]
    %v1743 = vld [vmem:[%s1741 + $0x8] sm:$0xff]
    %v1744 = vld [vmem:[%s1741 + $0x10] sm:$0xff]
    %v1745 = vld [vmem:[%s1741 + $0x18] sm:$0xff]
    %1747 = vset.pattern.permute.xlu0 0
    %1748 = vperm.xlu0 %1747, %v1717
    %v1749 = vpop.permute.xlu0 %1748
    %1752 = vset.pattern.permute.xlu0 0
    %1753 = vperm.xlu0 %1752, %v1718
    %v1754 = vpop.permute.xlu0 %1753
    %1757 = vset.pattern.permute.xlu0 0
    %1758 = vperm.xlu0 %1757, %v1719
    %v1759 = vpop.permute.xlu0 %1758
    %1762 = vset.pattern.permute.xlu0 0
    %1763 = vperm.xlu0 %1762, %v1720
    %v1764 = vpop.permute.xlu0 %1763
    %v1766 = vmul.f32 %v1708, %v1749
    %v1767 = vmul.f32 %v1709, %v1749
    %v1768 = vmul.f32 %v1710, %v1754
    %v1769 = vmul.f32 %v1711, %v1754
    %v1770 = vmul.f32 %v1712, %v1759
    %v1771 = vmul.f32 %v1713, %v1759
    %v1772 = vmul.f32 %v1714, %v1764
    %v1773 = vmul.f32 %v1715, %v1764
    %1775 = vset.pattern.permute.xlu0 0
    %1776 = vperm.xlu0 %1775, %v1722
    %v1777 = vpop.permute.xlu0 %1776
    %1780 = vset.pattern.permute.xlu0 0
    %1781 = vperm.xlu0 %1780, %v1723
    %v1782 = vpop.permute.xlu0 %1781
    %1785 = vset.pattern.permute.xlu0 0
    %1786 = vperm.xlu0 %1785, %v1724
    %v1787 = vpop.permute.xlu0 %1786
    %1790 = vset.pattern.permute.xlu0 0
    %1791 = vperm.xlu0 %1790, %v1725
    %v1792 = vpop.permute.xlu0 %1791
    %v1794 = vadd.f32 %v1766, %v1777
    %v1795 = vadd.f32 %v1767, %v1777
    %v1796 = vadd.f32 %v1768, %v1782
    %v1797 = vadd.f32 %v1769, %v1782
    %v1798 = vadd.f32 %v1770, %v1787
    %v1799 = vadd.f32 %v1771, %v1787
    %v1800 = vadd.f32 %v1772, %v1792
    %v1801 = vadd.f32 %v1773, %v1792
    %v1802 = vmax.f32 %v1794, 0.0
    %v1803 = vmax.f32 %v1795, 0.0
    %v1804 = vmax.f32 %v1796, 0.0
    %v1805 = vmax.f32 %v1797, 0.0
    %v1806 = vmax.f32 %v1798, 0.0
    %v1807 = vmax.f32 %v1799, 0.0
    %v1808 = vmax.f32 %v1800, 0.0
    %v1809 = vmax.f32 %v1801, 0.0
    %s1810 = scalar_lea.vmem %s4, 192
    %v1811 = vld [vmem:[%s1810] sm:$0xff]
    %v1812 = vld [vmem:[%s1810 + $0x8] sm:$0xff]
    %v1813 = vld [vmem:[%s1810 + $0x10] sm:$0xff]
    %v1814 = vld [vmem:[%s1810 + $0x18] sm:$0xff]
    %v1815 = vld [vmem:[%s1810 + $0x20] sm:$0xff]
    %v1816 = vld [vmem:[%s1810 + $0x28] sm:$0xff]
    %v1817 = vld [vmem:[%s1810 + $0x30] sm:$0xff]
    %v1818 = vld [vmem:[%s1810 + $0x38] sm:$0xff]
    %v1819 = vld [vmem:[%s1810 + $0x40] sm:$0xff]
    %v1820 = vld [vmem:[%s1810 + $0x48] sm:$0xff]
    %v1821 = vld [vmem:[%s1810 + $0x50] sm:$0xff]
    %v1822 = vld [vmem:[%s1810 + $0x58] sm:$0xff]
    %1823 = vrot.lane.b32.xlu0 %v1802, 5
    %v1824 = vpop.permute.xlu0 %1823
    %1825 = vrot.lane.b32.xlu0 %v1804, 5
    %v1826 = vpop.permute.xlu0 %1825
    %1827 = vrot.lane.b32.xlu0 %v1806, 5
    %v1828 = vpop.permute.xlu0 %1827
    %1829 = vrot.lane.b32.xlu0 %v1808, 5
    %v1830 = vpop.permute.xlu0 %1829
    %1831 = vrot.lane.b32.xlu0 %v1803, 5
    %v1832 = vpop.permute.xlu0 %1831
    %1833 = vrot.lane.b32.xlu0 %v1805, 5
    %v1834 = vpop.permute.xlu0 %1833
    %1835 = vrot.lane.b32.xlu0 %v1807, 5
    %v1836 = vpop.permute.xlu0 %1835
    %1837 = vrot.lane.b32.xlu0 %v1809, 5
    %v1838 = vpop.permute.xlu0 %1837
    %v1839 = vsel %vm426, %v1824, %v1832
    %v1840 = vsel %vm426, %v1826, %v1834
    %v1841 = vsel %vm426, %v1828, %v1836
    %v1842 = vsel %vm426, %v1830, %v1838
    %v1843 = vsel %vm426, %v1832, %v1824
    %v1844 = vsel %vm426, %v1834, %v1826
    %v1845 = vsel %vm426, %v1836, %v1828
    %v1846 = vsel %vm426, %v1838, %v1830
    %v1847 = vsel %vm448, %v1843, 0.0
    %v1848 = vsel %vm449, %v1839, 0.0
    %v1849 = vsel %vm448, %v1844, 0.0
    %v1850 = vsel %vm449, %v1840, 0.0
    %v1851 = vsel %vm448, %v1845, 0.0
    %v1852 = vsel %vm449, %v1841, 0.0
    %v1853 = vsel %vm448, %v1846, 0.0
    %v1854 = vsel %vm449, %v1842, 0.0
    %1855 = vrot.lane.b32.xlu0 %v1802, 4
    %v1856 = vpop.permute.xlu0 %1855
    %1857 = vrot.lane.b32.xlu0 %v1804, 4
    %v1858 = vpop.permute.xlu0 %1857
    %1859 = vrot.lane.b32.xlu0 %v1806, 4
    %v1860 = vpop.permute.xlu0 %1859
    %1861 = vrot.lane.b32.xlu0 %v1808, 4
    %v1862 = vpop.permute.xlu0 %1861
    %1863 = vrot.lane.b32.xlu0 %v1803, 4
    %v1864 = vpop.permute.xlu0 %1863
    %1865 = vrot.lane.b32.xlu0 %v1805, 4
    %v1866 = vpop.permute.xlu0 %1865
    %1867 = vrot.lane.b32.xlu0 %v1807, 4
    %v1868 = vpop.permute.xlu0 %1867
    %1869 = vrot.lane.b32.xlu0 %v1809, 4
    %v1870 = vpop.permute.xlu0 %1869
    %v1871 = vsel %vm474, %v1856, %v1864
    %v1872 = vsel %vm474, %v1858, %v1866
    %v1873 = vsel %vm474, %v1860, %v1868
    %v1874 = vsel %vm474, %v1862, %v1870
    %v1875 = vsel %vm474, %v1864, %v1856
    %v1876 = vsel %vm474, %v1866, %v1858
    %v1877 = vsel %vm474, %v1868, %v1860
    %v1878 = vsel %vm474, %v1870, %v1862
    %v1879 = vsel %vm496, %v1875, 0.0
    %v1880 = vsel %vm497, %v1871, 0.0
    %v1881 = vsel %vm496, %v1876, 0.0
    %v1882 = vsel %vm497, %v1872, 0.0
    %v1883 = vsel %vm496, %v1877, 0.0
    %v1884 = vsel %vm497, %v1873, 0.0
    %v1885 = vsel %vm496, %v1878, 0.0
    %v1886 = vsel %vm497, %v1874, 0.0
    %1887 = vrot.lane.b32.xlu0 %v1802, 3
    %v1888 = vpop.permute.xlu0 %1887
    %1889 = vrot.lane.b32.xlu0 %v1804, 3
    %v1890 = vpop.permute.xlu0 %1889
    %1891 = vrot.lane.b32.xlu0 %v1806, 3
    %v1892 = vpop.permute.xlu0 %1891
    %1893 = vrot.lane.b32.xlu0 %v1808, 3
    %v1894 = vpop.permute.xlu0 %1893
    %1895 = vrot.lane.b32.xlu0 %v1803, 3
    %v1896 = vpop.permute.xlu0 %1895
    %1897 = vrot.lane.b32.xlu0 %v1805, 3
    %v1898 = vpop.permute.xlu0 %1897
    %1899 = vrot.lane.b32.xlu0 %v1807, 3
    %v1900 = vpop.permute.xlu0 %1899
    %1901 = vrot.lane.b32.xlu0 %v1809, 3
    %v1902 = vpop.permute.xlu0 %1901
    %v1903 = vsel %vm522, %v1888, %v1896
    %v1904 = vsel %vm522, %v1890, %v1898
    %v1905 = vsel %vm522, %v1892, %v1900
    %v1906 = vsel %vm522, %v1894, %v1902
    %v1907 = vsel %vm522, %v1896, %v1888
    %v1908 = vsel %vm522, %v1898, %v1890
    %v1909 = vsel %vm522, %v1900, %v1892
    %v1910 = vsel %vm522, %v1902, %v1894
    %v1911 = vsel %vm544, %v1907, 0.0
    %v1912 = vsel %vm545, %v1903, 0.0
    %v1913 = vsel %vm544, %v1908, 0.0
    %v1914 = vsel %vm545, %v1904, 0.0
    %v1915 = vsel %vm544, %v1909, 0.0
    %v1916 = vsel %vm545, %v1905, 0.0
    %v1917 = vsel %vm544, %v1910, 0.0
    %v1918 = vsel %vm545, %v1906, 0.0
    %1919 = vrot.lane.b32.xlu0 %v1802, 2
    %v1920 = vpop.permute.xlu0 %1919
    %1921 = vrot.lane.b32.xlu0 %v1804, 2
    %v1922 = vpop.permute.xlu0 %1921
    %1923 = vrot.lane.b32.xlu0 %v1806, 2
    %v1924 = vpop.permute.xlu0 %1923
    %1925 = vrot.lane.b32.xlu0 %v1808, 2
    %v1926 = vpop.permute.xlu0 %1925
    %1927 = vrot.lane.b32.xlu0 %v1803, 2
    %v1928 = vpop.permute.xlu0 %1927
    %1929 = vrot.lane.b32.xlu0 %v1805, 2
    %v1930 = vpop.permute.xlu0 %1929
    %1931 = vrot.lane.b32.xlu0 %v1807, 2
    %v1932 = vpop.permute.xlu0 %1931
    %1933 = vrot.lane.b32.xlu0 %v1809, 2
    %v1934 = vpop.permute.xlu0 %1933
    %v1935 = vsel %vm570, %v1920, %v1928
    %v1936 = vsel %vm570, %v1922, %v1930
    %v1937 = vsel %vm570, %v1924, %v1932
    %v1938 = vsel %vm570, %v1926, %v1934
    %v1939 = vsel %vm570, %v1928, %v1920
    %v1940 = vsel %vm570, %v1930, %v1922
    %v1941 = vsel %vm570, %v1932, %v1924
    %v1942 = vsel %vm570, %v1934, %v1926
    %v1943 = vsel %vm592, %v1939, 0.0
    %v1944 = vsel %vm593, %v1935, 0.0
    %v1945 = vsel %vm592, %v1940, 0.0
    %v1946 = vsel %vm593, %v1936, 0.0
    %v1947 = vsel %vm592, %v1941, 0.0
    %v1948 = vsel %vm593, %v1937, 0.0
    %v1949 = vsel %vm592, %v1942, 0.0
    %v1950 = vsel %vm593, %v1938, 0.0
    %1951 = vrot.lane.b32.xlu0 %v1802, 1
    %v1952 = vpop.permute.xlu0 %1951
    %1953 = vrot.lane.b32.xlu0 %v1804, 1
    %v1954 = vpop.permute.xlu0 %1953
    %1955 = vrot.lane.b32.xlu0 %v1806, 1
    %v1956 = vpop.permute.xlu0 %1955
    %1957 = vrot.lane.b32.xlu0 %v1808, 1
    %v1958 = vpop.permute.xlu0 %1957
    %1959 = vrot.lane.b32.xlu0 %v1803, 1
    %v1960 = vpop.permute.xlu0 %1959
    %1961 = vrot.lane.b32.xlu0 %v1805, 1
    %v1962 = vpop.permute.xlu0 %1961
    %1963 = vrot.lane.b32.xlu0 %v1807, 1
    %v1964 = vpop.permute.xlu0 %1963
    %1965 = vrot.lane.b32.xlu0 %v1809, 1
    %v1966 = vpop.permute.xlu0 %1965
    %v1967 = vsel %vm618, %v1952, %v1960
    %v1968 = vsel %vm618, %v1954, %v1962
    %v1969 = vsel %vm618, %v1956, %v1964
    %v1970 = vsel %vm618, %v1958, %v1966
    %v1971 = vsel %vm618, %v1960, %v1952
    %v1972 = vsel %vm618, %v1962, %v1954
    %v1973 = vsel %vm618, %v1964, %v1956
    %v1974 = vsel %vm618, %v1966, %v1958
    %v1975 = vsel %vm640, %v1971, 0.0
    %v1976 = vsel %vm641, %v1967, 0.0
    %v1977 = vsel %vm640, %v1972, 0.0
    %v1978 = vsel %vm641, %v1968, 0.0
    %v1979 = vsel %vm640, %v1973, 0.0
    %v1980 = vsel %vm641, %v1969, 0.0
    %v1981 = vsel %vm640, %v1974, 0.0
    %v1982 = vsel %vm641, %v1970, 0.0
    %1983 = vrot.lane.b32.xlu0 %v1802, 127
    %v1984 = vpop.permute.xlu0 %1983
    %1985 = vrot.lane.b32.xlu0 %v1804, 127
    %v1986 = vpop.permute.xlu0 %1985
    %1987 = vrot.lane.b32.xlu0 %v1806, 127
    %v1988 = vpop.permute.xlu0 %1987
    %1989 = vrot.lane.b32.xlu0 %v1808, 127
    %v1990 = vpop.permute.xlu0 %1989
    %1991 = vrot.lane.b32.xlu0 %v1803, 127
    %v1992 = vpop.permute.xlu0 %1991
    %1993 = vrot.lane.b32.xlu0 %v1805, 127
    %v1994 = vpop.permute.xlu0 %1993
    %1995 = vrot.lane.b32.xlu0 %v1807, 127
    %v1996 = vpop.permute.xlu0 %1995
    %1997 = vrot.lane.b32.xlu0 %v1809, 127
    %v1998 = vpop.permute.xlu0 %1997
    %v1999 = vsel %vm666, %v1984, %v1992
    %v2000 = vsel %vm666, %v1986, %v1994
    %v2001 = vsel %vm666, %v1988, %v1996
    %v2002 = vsel %vm666, %v1990, %v1998
    %v2003 = vsel %vm666, %v1992, %v1984
    %v2004 = vsel %vm666, %v1994, %v1986
    %v2005 = vsel %vm666, %v1996, %v1988
    %v2006 = vsel %vm666, %v1998, %v1990
    %v2007 = vsel %vm688, %v1999, 0.0
    %v2008 = vsel %vm689, %v2003, 0.0
    %v2009 = vsel %vm688, %v2000, 0.0
    %v2010 = vsel %vm689, %v2004, 0.0
    %v2011 = vsel %vm688, %v2001, 0.0
    %v2012 = vsel %vm689, %v2005, 0.0
    %v2013 = vsel %vm688, %v2002, 0.0
    %v2014 = vsel %vm689, %v2006, 0.0
    %2015 = vrot.lane.b32.xlu0 %v1802, 126
    %v2016 = vpop.permute.xlu0 %2015
    %2017 = vrot.lane.b32.xlu0 %v1804, 126
    %v2018 = vpop.permute.xlu0 %2017
    %2019 = vrot.lane.b32.xlu0 %v1806, 126
    %v2020 = vpop.permute.xlu0 %2019
    %2021 = vrot.lane.b32.xlu0 %v1808, 126
    %v2022 = vpop.permute.xlu0 %2021
    %2023 = vrot.lane.b32.xlu0 %v1803, 126
    %v2024 = vpop.permute.xlu0 %2023
    %2025 = vrot.lane.b32.xlu0 %v1805, 126
    %v2026 = vpop.permute.xlu0 %2025
    %2027 = vrot.lane.b32.xlu0 %v1807, 126
    %v2028 = vpop.permute.xlu0 %2027
    %2029 = vrot.lane.b32.xlu0 %v1809, 126
    %v2030 = vpop.permute.xlu0 %2029
    %v2031 = vsel %vm714, %v2016, %v2024
    %v2032 = vsel %vm714, %v2018, %v2026
    %v2033 = vsel %vm714, %v2020, %v2028
    %v2034 = vsel %vm714, %v2022, %v2030
    %v2035 = vsel %vm714, %v2024, %v2016
    %v2036 = vsel %vm714, %v2026, %v2018
    %v2037 = vsel %vm714, %v2028, %v2020
    %v2038 = vsel %vm714, %v2030, %v2022
    %v2039 = vsel %vm736, %v2031, 0.0
    %v2040 = vsel %vm737, %v2035, 0.0
    %v2041 = vsel %vm736, %v2032, 0.0
    %v2042 = vsel %vm737, %v2036, 0.0
    %v2043 = vsel %vm736, %v2033, 0.0
    %v2044 = vsel %vm737, %v2037, 0.0
    %v2045 = vsel %vm736, %v2034, 0.0
    %v2046 = vsel %vm737, %v2038, 0.0
    %2047 = vrot.lane.b32.xlu0 %v1802, 125
    %v2048 = vpop.permute.xlu0 %2047
    %2049 = vrot.lane.b32.xlu0 %v1804, 125
    %v2050 = vpop.permute.xlu0 %2049
    %2051 = vrot.lane.b32.xlu0 %v1806, 125
    %v2052 = vpop.permute.xlu0 %2051
    %2053 = vrot.lane.b32.xlu0 %v1808, 125
    %v2054 = vpop.permute.xlu0 %2053
    %2055 = vrot.lane.b32.xlu0 %v1803, 125
    %v2056 = vpop.permute.xlu0 %2055
    %2057 = vrot.lane.b32.xlu0 %v1805, 125
    %v2058 = vpop.permute.xlu0 %2057
    %2059 = vrot.lane.b32.xlu0 %v1807, 125
    %v2060 = vpop.permute.xlu0 %2059
    %2061 = vrot.lane.b32.xlu0 %v1809, 125
    %v2062 = vpop.permute.xlu0 %2061
    %v2063 = vsel %vm762, %v2048, %v2056
    %v2064 = vsel %vm762, %v2050, %v2058
    %v2065 = vsel %vm762, %v2052, %v2060
    %v2066 = vsel %vm762, %v2054, %v2062
    %v2067 = vsel %vm762, %v2056, %v2048
    %v2068 = vsel %vm762, %v2058, %v2050
    %v2069 = vsel %vm762, %v2060, %v2052
    %v2070 = vsel %vm762, %v2062, %v2054
    %v2071 = vsel %vm784, %v2063, 0.0
    %v2072 = vsel %vm785, %v2067, 0.0
    %v2073 = vsel %vm784, %v2064, 0.0
    %v2074 = vsel %vm785, %v2068, 0.0
    %v2075 = vsel %vm784, %v2065, 0.0
    %v2076 = vsel %vm785, %v2069, 0.0
    %v2077 = vsel %vm784, %v2066, 0.0
    %v2078 = vsel %vm785, %v2070, 0.0
    %2079 = vrot.lane.b32.xlu0 %v1802, 124
    %v2080 = vpop.permute.xlu0 %2079
    %2081 = vrot.lane.b32.xlu0 %v1804, 124
    %v2082 = vpop.permute.xlu0 %2081
    %2083 = vrot.lane.b32.xlu0 %v1806, 124
    %v2084 = vpop.permute.xlu0 %2083
    %2085 = vrot.lane.b32.xlu0 %v1808, 124
    %v2086 = vpop.permute.xlu0 %2085
    %2087 = vrot.lane.b32.xlu0 %v1803, 124
    %v2088 = vpop.permute.xlu0 %2087
    %2089 = vrot.lane.b32.xlu0 %v1805, 124
    %v2090 = vpop.permute.xlu0 %2089
    %2091 = vrot.lane.b32.xlu0 %v1807, 124
    %v2092 = vpop.permute.xlu0 %2091
    %2093 = vrot.lane.b32.xlu0 %v1809, 124
    %v2094 = vpop.permute.xlu0 %2093
    %v2095 = vsel %vm810, %v2080, %v2088
    %v2096 = vsel %vm810, %v2082, %v2090
    %v2097 = vsel %vm810, %v2084, %v2092
    %v2098 = vsel %vm810, %v2086, %v2094
    %v2099 = vsel %vm810, %v2088, %v2080
    %v2100 = vsel %vm810, %v2090, %v2082
    %v2101 = vsel %vm810, %v2092, %v2084
    %v2102 = vsel %vm810, %v2094, %v2086
    %v2103 = vsel %vm832, %v2095, 0.0
    %v2104 = vsel %vm833, %v2099, 0.0
    %v2105 = vsel %vm832, %v2096, 0.0
    %v2106 = vsel %vm833, %v2100, 0.0
    %v2107 = vsel %vm832, %v2097, 0.0
    %v2108 = vsel %vm833, %v2101, 0.0
    %v2109 = vsel %vm832, %v2098, 0.0
    %v2110 = vsel %vm833, %v2102, 0.0
    %2111 = vrot.lane.b32.xlu0 %v1802, 123
    %v2112 = vpop.permute.xlu0 %2111
    %2113 = vrot.lane.b32.xlu0 %v1804, 123
    %v2114 = vpop.permute.xlu0 %2113
    %2115 = vrot.lane.b32.xlu0 %v1806, 123
    %v2116 = vpop.permute.xlu0 %2115
    %2117 = vrot.lane.b32.xlu0 %v1808, 123
    %v2118 = vpop.permute.xlu0 %2117
    %2119 = vrot.lane.b32.xlu0 %v1803, 123
    %v2120 = vpop.permute.xlu0 %2119
    %2121 = vrot.lane.b32.xlu0 %v1805, 123
    %v2122 = vpop.permute.xlu0 %2121
    %2123 = vrot.lane.b32.xlu0 %v1807, 123
    %v2124 = vpop.permute.xlu0 %2123
    %2125 = vrot.lane.b32.xlu0 %v1809, 123
    %v2126 = vpop.permute.xlu0 %2125
    %v2127 = vsel %vm858, %v2112, %v2120
    %v2128 = vsel %vm858, %v2114, %v2122
    %v2129 = vsel %vm858, %v2116, %v2124
    %v2130 = vsel %vm858, %v2118, %v2126
    %v2131 = vsel %vm858, %v2120, %v2112
    %v2132 = vsel %vm858, %v2122, %v2114
    %v2133 = vsel %vm858, %v2124, %v2116
    %v2134 = vsel %vm858, %v2126, %v2118
    %v2135 = vsel %vm880, %v2127, 0.0
    %v2136 = vsel %vm881, %v2131, 0.0
    %v2137 = vsel %vm880, %v2128, 0.0
    %v2138 = vsel %vm881, %v2132, 0.0
    %v2139 = vsel %vm880, %v2129, 0.0
    %v2140 = vsel %vm881, %v2133, 0.0
    %v2141 = vsel %vm880, %v2130, 0.0
    %v2142 = vsel %vm881, %v2134, 0.0
    %2144 = vset.pattern.permute.xlu0 0
    %2145 = vperm.xlu0 %2144, %v1727
    %v2146 = vpop.permute.xlu0 %2145
    %2149 = vset.pattern.permute.xlu0 0
    %2150 = vperm.xlu0 %2149, %v1728
    %v2151 = vpop.permute.xlu0 %2150
    %2154 = vset.pattern.permute.xlu0 0
    %2155 = vperm.xlu0 %2154, %v1729
    %v2156 = vpop.permute.xlu0 %2155
    %2159 = vset.pattern.permute.xlu0 0
    %2160 = vperm.xlu0 %2159, %v1730
    %v2161 = vpop.permute.xlu0 %2160
    %v2164 = vsel %vm910, %v1813, 0
    %v2167 = vsel %vm910, %v1816, 0
    %v2170 = vsel %vm910, %v1819, 0
    %v2173 = vsel %vm910, %v1822, 0
    %2175 = vmatprep.subr.mxu0 %v1950
    %2176 = vmatpush1.msra.mxu0 %v1949
    %2177 = vmatprep.subr.mxu0 %v1948
    %2178 = vmatpush1.msra.mxu0 %v1947
    %2179 = vmatprep.subr.mxu0 %v1946
    %2180 = vmatpush1.msra.mxu0 %v1945
    %2181 = vmatprep.subr.mxu0 %v1944
    %2182 = vmatpush1.msra.mxu0 %v1943
    %2183 = vmatprep.subr.mxu0 %v1918
    %2184 = vmatpush1.msra.mxu0 %v1917
    %2185 = vmatprep.subr.mxu0 %v1916
    %2186 = vmatpush1.msra.mxu0 %v1915
    %2187 = vmatprep.subr.mxu0 %v1914
    %2188 = vmatpush1.msra.mxu0 %v1913
    %2189 = vmatprep.subr.mxu0 %v1912
    %2190 = vmatpush1.msra.mxu0 %v1911
    %2191 = vmatprep.subr.mxu0 %v1886
    %2192 = vmatpush1.msra.mxu0 %v1885
    %2193 = vmatprep.subr.mxu0 %v1884
    %2194 = vmatpush1.msra.mxu0 %v1883
    %2195 = vmatprep.subr.mxu0 %v1882
    %2196 = vmatpush1.msra.mxu0 %v1881
    %2197 = vmatprep.subr.mxu0 %v1880
    %2198 = vmatpush1.msra.mxu0 %v1879
    %2199 = vmatprep.subr.mxu0 %v1854
    %2200 = vmatpush1.msra.mxu0 %v1853
    %2201 = vmatprep.subr.mxu0 %v1852
    %2202 = vmatpush1.msra.mxu0 %v1851
    %2203 = vmatprep.subr.mxu0 %v1850
    %2204 = vmatpush1.msra.mxu0 %v1849
    %2205 = vmatprep.subr.mxu0 %v1848
    %2206 = vmatpush1.msra.mxu0 %v1847
    %2207 = vmatprep.subr.mxu0 %v2046
    %2208 = vmatpush2.msra.mxu0 %v2045
    %2209 = vmatprep.subr.mxu0 %v2044
    %2210 = vmatpush2.msra.mxu0 %v2043
    %2211 = vmatprep.subr.mxu0 %v2042
    %2212 = vmatpush2.msra.mxu0 %v2041
    %2213 = vmatprep.subr.mxu0 %v2040
    %2214 = vmatpush2.msra.mxu0 %v2039
    %2215 = vmatprep.subr.mxu0 %v2014
    %2216 = vmatpush2.msra.mxu0 %v2013
    %2217 = vmatprep.subr.mxu0 %v2012
    %2218 = vmatpush2.msra.mxu0 %v2011
    %2219 = vmatprep.subr.mxu0 %v2010
    %2220 = vmatpush2.msra.mxu0 %v2009
    %2221 = vmatprep.subr.mxu0 %v2008
    %2222 = vmatpush2.msra.mxu0 %v2007
    %2223 = vmatprep.subr.mxu0 %v1809
    %2224 = vmatpush2.msra.mxu0 %v1808
    %2225 = vmatprep.subr.mxu0 %v1807
    %2226 = vmatpush2.msra.mxu0 %v1806
    %2227 = vmatprep.subr.mxu0 %v1805
    %2228 = vmatpush2.msra.mxu0 %v1804
    %2229 = vmatprep.subr.mxu0 %v1803
    %2230 = vmatpush2.msra.mxu0 %v1802
    %2231 = vmatprep.subr.mxu0 %v1982
    %2232 = vmatpush2.msra.mxu0 %v1981
    %2233 = vmatprep.subr.mxu0 %v1980
    %2234 = vmatpush2.msra.mxu0 %v1979
    %2235 = vmatprep.subr.mxu0 %v1978
    %2236 = vmatpush2.msra.mxu0 %v1977
    %2237 = vmatprep.subr.mxu0 %v1976
    %2238 = vmatpush2.msra.mxu0 %v1975
    %2239 = vmatprep.mubr.f32.mxu0 %v1812
    %2240 = vmatmul.mubr.f32.gmra.mxu0 %v1811
    %v2241 = vpop.f32.mrf.mxu0
    %v2242 = vadd.f32 %v2146, %v2241
    %v2243 = vpop.f32.mrf.mxu0
    %v2244 = vadd.f32 %v2146, %v2243
    %2245 = vmatprep.mubr.f32.mxu0 %v1815
    %2246 = vmatmul.mubr.f32.gmra.mxu0 %v1814
    %v2247 = vpop.f32.mrf.mxu0
    %v2248 = vadd.f32 %v2151, %v2247
    %v2249 = vpop.f32.mrf.mxu0
    %v2250 = vadd.f32 %v2151, %v2249
    %2251 = vmatprep.mubr.f32.mxu0 %v1818
    %2252 = vmatmul.mubr.f32.gmra.mxu0 %v1817
    %v2253 = vpop.f32.mrf.mxu0
    %v2254 = vadd.f32 %v2156, %v2253
    %v2255 = vpop.f32.mrf.mxu0
    %v2256 = vadd.f32 %v2156, %v2255
    %2257 = vmatprep.mubr.f32.mxu0 %v1821
    %2258 = vmatmul.mubr.f32.gmra.mxu0 %v1820
    %v2259 = vpop.f32.mrf.mxu0
    %v2260 = vadd.f32 %v2161, %v2259
    %v2261 = vpop.f32.mrf.mxu0
    %v2262 = vadd.f32 %v2161, %v2261
    %2263 = vdwg.mxu0
    %2264 = vmatprep.subr.mxu0 0.0
    %2265 = vmatpush1.msra.mxu0 0.0
    %2266 = vmatprep.subr.mxu0 0.0
    %2267 = vmatpush1.msra.mxu0 0.0
    %2268 = vmatprep.subr.mxu0 0.0
    %2269 = vmatpush1.msra.mxu0 0.0
    %2270 = vmatprep.subr.mxu0 0.0
    %2271 = vmatpush1.msra.mxu0 0.0
    %2272 = vmatprep.subr.mxu0 %v2142
    %2273 = vmatpush1.msra.mxu0 %v2141
    %2274 = vmatprep.subr.mxu0 %v2140
    %2275 = vmatpush1.msra.mxu0 %v2139
    %2276 = vmatprep.subr.mxu0 %v2138
    %2277 = vmatpush1.msra.mxu0 %v2137
    %2278 = vmatprep.subr.mxu0 %v2136
    %2279 = vmatpush1.msra.mxu0 %v2135
    %2280 = vmatprep.subr.mxu0 %v2110
    %2281 = vmatpush1.msra.mxu0 %v2109
    %2282 = vmatprep.subr.mxu0 %v2108
    %2283 = vmatpush1.msra.mxu0 %v2107
    %2284 = vmatprep.subr.mxu0 %v2106
    %2285 = vmatpush1.msra.mxu0 %v2105
    %2286 = vmatprep.subr.mxu0 %v2104
    %2287 = vmatpush1.msra.mxu0 %v2103
    %2288 = vmatprep.subr.mxu0 %v2078
    %2289 = vmatpush1.msra.mxu0 %v2077
    %2290 = vmatprep.subr.mxu0 %v2076
    %2291 = vmatpush1.msra.mxu0 %v2075
    %2292 = vmatprep.subr.mxu0 %v2074
    %2293 = vmatpush1.msra.mxu0 %v2073
    %2294 = vmatprep.subr.mxu0 %v2072
    %2295 = vmatpush1.msra.mxu0 %v2071
    %2296 = vmatprep.subr.mxu0 0.0
    %2297 = vmatpush2.msra.mxu0 0.0
    %2298 = vmatprep.subr.mxu0 0.0
    %2299 = vmatpush2.msra.mxu0 0.0
    %2300 = vmatprep.subr.mxu0 0.0
    %2301 = vmatpush2.msra.mxu0 0.0
    %2302 = vmatprep.subr.mxu0 0.0
    %2303 = vmatpush2.msra.mxu0 0.0
    %2304 = vmatprep.subr.mxu0 0.0
    %2305 = vmatpush2.msra.mxu0 0.0
    %2306 = vmatprep.subr.mxu0 0.0
    %2307 = vmatpush2.msra.mxu0 0.0
    %2308 = vmatprep.subr.mxu0 0.0
    %2309 = vmatpush2.msra.mxu0 0.0
    %2310 = vmatprep.subr.mxu0 0.0
    %2311 = vmatpush2.msra.mxu0 0.0
    %2312 = vmatprep.subr.mxu0 0.0
    %2313 = vmatpush2.msra.mxu0 0.0
    %2314 = vmatprep.subr.mxu0 0.0
    %2315 = vmatpush2.msra.mxu0 0.0
    %2316 = vmatprep.subr.mxu0 0.0
    %2317 = vmatpush2.msra.mxu0 0.0
    %2318 = vmatprep.subr.mxu0 0.0
    %2319 = vmatpush2.msra.mxu0 0.0
    %2320 = vmatprep.subr.mxu0 0.0
    %2321 = vmatpush2.msra.mxu0 0.0
    %2322 = vmatprep.subr.mxu0 0.0
    %2323 = vmatpush2.msra.mxu0 0.0
    %2324 = vmatprep.subr.mxu0 0.0
    %2325 = vmatpush2.msra.mxu0 0.0
    %2326 = vmatprep.subr.mxu0 0.0
    %2327 = vmatpush2.msra.mxu0 0.0
    %2328 = vmatprep.mubr.f32.mxu0 0.0
    %2329 = vmatmul.mubr.f32.gmra.mxu0 %v2164
    %v2330 = vpop.f32.mrf.mxu0
    %v2331 = vadd.f32 %v2242, %v2330
    %v2332 = vpop.f32.mrf.mxu0
    %v2333 = vadd.f32 %v2244, %v2332
    %2334 = vmatprep.mubr.f32.mxu0 0.0
    %2335 = vmatmul.mubr.f32.gmra.mxu0 %v2167
    %v2336 = vpop.f32.mrf.mxu0
    %v2337 = vadd.f32 %v2248, %v2336
    %v2338 = vpop.f32.mrf.mxu0
    %v2339 = vadd.f32 %v2250, %v2338
    %2340 = vmatprep.mubr.f32.mxu0 0.0
    %2341 = vmatmul.mubr.f32.gmra.mxu0 %v2170
    %v2342 = vpop.f32.mrf.mxu0
    %v2343 = vadd.f32 %v2254, %v2342
    %v2344 = vpop.f32.mrf.mxu0
    %v2345 = vadd.f32 %v2256, %v2344
    %2346 = vmatprep.mubr.f32.mxu0 0.0
    %2347 = vmatmul.mubr.f32.gmra.mxu0 %v2173
    %v2348 = vpop.f32.mrf.mxu0
    %v2349 = vadd.f32 %v2260, %v2348
    %v2350 = vpop.f32.mrf.mxu0
    %v2351 = vadd.f32 %v2262, %v2350
    %2352 = vdwg.mxu0
    %2354 = vset.pattern.permute.xlu0 0
    %2355 = vperm.xlu0 %2354, %v1732
    %v2356 = vpop.permute.xlu0 %2355
    %2359 = vset.pattern.permute.xlu0 0
    %2360 = vperm.xlu0 %2359, %v1733
    %v2361 = vpop.permute.xlu0 %2360
    %2364 = vset.pattern.permute.xlu0 0
    %2365 = vperm.xlu0 %2364, %v1734
    %v2366 = vpop.permute.xlu0 %2365
    %2369 = vset.pattern.permute.xlu0 0
    %2370 = vperm.xlu0 %2369, %v1735
    %v2371 = vpop.permute.xlu0 %2370
    %v2373 = vmul.f32 %v2331, %v2356
    %v2374 = vmul.f32 %v2333, %v2356
    %v2375 = vmul.f32 %v2337, %v2361
    %v2376 = vmul.f32 %v2339, %v2361
    %v2377 = vmul.f32 %v2343, %v2366
    %v2378 = vmul.f32 %v2345, %v2366
    %v2379 = vmul.f32 %v2349, %v2371
    %v2380 = vmul.f32 %v2351, %v2371
    %2382 = vset.pattern.permute.xlu0 0
    %2383 = vperm.xlu0 %2382, %v1737
    %v2384 = vpop.permute.xlu0 %2383
    %2387 = vset.pattern.permute.xlu0 0
    %2388 = vperm.xlu0 %2387, %v1738
    %v2389 = vpop.permute.xlu0 %2388
    %2392 = vset.pattern.permute.xlu0 0
    %2393 = vperm.xlu0 %2392, %v1739
    %v2394 = vpop.permute.xlu0 %2393
    %2397 = vset.pattern.permute.xlu0 0
    %2398 = vperm.xlu0 %2397, %v1740
    %v2399 = vpop.permute.xlu0 %2398
    %v2401 = vadd.f32 %v2373, %v2384
    %v2402 = vadd.f32 %v2374, %v2384
    %v2403 = vadd.f32 %v2375, %v2389
    %v2404 = vadd.f32 %v2376, %v2389
    %v2405 = vadd.f32 %v2377, %v2394
    %v2406 = vadd.f32 %v2378, %v2394
    %v2407 = vadd.f32 %v2379, %v2399
    %v2408 = vadd.f32 %v2380, %v2399
    %v2409 = vmax.f32 %v2401, 0.0
    %v2410 = vmax.f32 %v2402, 0.0
    %v2411 = vmax.f32 %v2403, 0.0
    %v2412 = vmax.f32 %v2404, 0.0
    %v2413 = vmax.f32 %v2405, 0.0
    %v2414 = vmax.f32 %v2406, 0.0
    %v2415 = vmax.f32 %v2407, 0.0
    %v2416 = vmax.f32 %v2408, 0.0
    %s2417 = scalar_lea.vmem %s4, 288
    %v2418 = vld [vmem:[%s2417] sm:$0xff]
    %v2419 = vld [vmem:[%s2417 + $0x8] sm:$0xff]
    %v2420 = vld [vmem:[%s2417 + $0x10] sm:$0xff]
    %v2421 = vld [vmem:[%s2417 + $0x18] sm:$0xff]
    %v2422 = vld [vmem:[%s2417 + $0x20] sm:$0xff]
    %v2423 = vld [vmem:[%s2417 + $0x28] sm:$0xff]
    %v2424 = vld [vmem:[%s2417 + $0x30] sm:$0xff]
    %v2425 = vld [vmem:[%s2417 + $0x38] sm:$0xff]
    %v2426 = vld [vmem:[%s2417 + $0x40] sm:$0xff]
    %v2427 = vld [vmem:[%s2417 + $0x48] sm:$0xff]
    %v2428 = vld [vmem:[%s2417 + $0x50] sm:$0xff]
    %v2429 = vld [vmem:[%s2417 + $0x58] sm:$0xff]
    %2430 = vrot.lane.b32.xlu0 %v2409, 5
    %v2431 = vpop.permute.xlu0 %2430
    %2432 = vrot.lane.b32.xlu0 %v2411, 5
    %v2433 = vpop.permute.xlu0 %2432
    %2434 = vrot.lane.b32.xlu0 %v2413, 5
    %v2435 = vpop.permute.xlu0 %2434
    %2436 = vrot.lane.b32.xlu0 %v2415, 5
    %v2437 = vpop.permute.xlu0 %2436
    %2438 = vrot.lane.b32.xlu0 %v2410, 5
    %v2439 = vpop.permute.xlu0 %2438
    %2440 = vrot.lane.b32.xlu0 %v2412, 5
    %v2441 = vpop.permute.xlu0 %2440
    %2442 = vrot.lane.b32.xlu0 %v2414, 5
    %v2443 = vpop.permute.xlu0 %2442
    %2444 = vrot.lane.b32.xlu0 %v2416, 5
    %v2445 = vpop.permute.xlu0 %2444
    %v2446 = vsel %vm426, %v2431, %v2439
    %v2447 = vsel %vm426, %v2433, %v2441
    %v2448 = vsel %vm426, %v2435, %v2443
    %v2449 = vsel %vm426, %v2437, %v2445
    %v2450 = vsel %vm426, %v2439, %v2431
    %v2451 = vsel %vm426, %v2441, %v2433
    %v2452 = vsel %vm426, %v2443, %v2435
    %v2453 = vsel %vm426, %v2445, %v2437
    %v2454 = vsel %vm448, %v2450, 0.0
    %v2455 = vsel %vm449, %v2446, 0.0
    %v2456 = vsel %vm448, %v2451, 0.0
    %v2457 = vsel %vm449, %v2447, 0.0
    %v2458 = vsel %vm448, %v2452, 0.0
    %v2459 = vsel %vm449, %v2448, 0.0
    %v2460 = vsel %vm448, %v2453, 0.0
    %v2461 = vsel %vm449, %v2449, 0.0
    %2462 = vrot.lane.b32.xlu0 %v2409, 4
    %v2463 = vpop.permute.xlu0 %2462
    %2464 = vrot.lane.b32.xlu0 %v2411, 4
    %v2465 = vpop.permute.xlu0 %2464
    %2466 = vrot.lane.b32.xlu0 %v2413, 4
    %v2467 = vpop.permute.xlu0 %2466
    %2468 = vrot.lane.b32.xlu0 %v2415, 4
    %v2469 = vpop.permute.xlu0 %2468
    %2470 = vrot.lane.b32.xlu0 %v2410, 4
    %v2471 = vpop.permute.xlu0 %2470
    %2472 = vrot.lane.b32.xlu0 %v2412, 4
    %v2473 = vpop.permute.xlu0 %2472
    %2474 = vrot.lane.b32.xlu0 %v2414, 4
    %v2475 = vpop.permute.xlu0 %2474
    %2476 = vrot.lane.b32.xlu0 %v2416, 4
    %v2477 = vpop.permute.xlu0 %2476
    %v2478 = vsel %vm474, %v2463, %v2471
    %v2479 = vsel %vm474, %v2465, %v2473
    %v2480 = vsel %vm474, %v2467, %v2475
    %v2481 = vsel %vm474, %v2469, %v2477
    %v2482 = vsel %vm474, %v2471, %v2463
    %v2483 = vsel %vm474, %v2473, %v2465
    %v2484 = vsel %vm474, %v2475, %v2467
    %v2485 = vsel %vm474, %v2477, %v2469
    %v2486 = vsel %vm496, %v2482, 0.0
    %v2487 = vsel %vm497, %v2478, 0.0
    %v2488 = vsel %vm496, %v2483, 0.0
    %v2489 = vsel %vm497, %v2479, 0.0
    %v2490 = vsel %vm496, %v2484, 0.0
    %v2491 = vsel %vm497, %v2480, 0.0
    %v2492 = vsel %vm496, %v2485, 0.0
    %v2493 = vsel %vm497, %v2481, 0.0
    %2494 = vrot.lane.b32.xlu0 %v2409, 3
    %v2495 = vpop.permute.xlu0 %2494
    %2496 = vrot.lane.b32.xlu0 %v2411, 3
    %v2497 = vpop.permute.xlu0 %2496
    %2498 = vrot.lane.b32.xlu0 %v2413, 3
    %v2499 = vpop.permute.xlu0 %2498
    %2500 = vrot.lane.b32.xlu0 %v2415, 3
    %v2501 = vpop.permute.xlu0 %2500
    %2502 = vrot.lane.b32.xlu0 %v2410, 3
    %v2503 = vpop.permute.xlu0 %2502
    %2504 = vrot.lane.b32.xlu0 %v2412, 3
    %v2505 = vpop.permute.xlu0 %2504
    %2506 = vrot.lane.b32.xlu0 %v2414, 3
    %v2507 = vpop.permute.xlu0 %2506
    %2508 = vrot.lane.b32.xlu0 %v2416, 3
    %v2509 = vpop.permute.xlu0 %2508
    %v2510 = vsel %vm522, %v2495, %v2503
    %v2511 = vsel %vm522, %v2497, %v2505
    %v2512 = vsel %vm522, %v2499, %v2507
    %v2513 = vsel %vm522, %v2501, %v2509
    %v2514 = vsel %vm522, %v2503, %v2495
    %v2515 = vsel %vm522, %v2505, %v2497
    %v2516 = vsel %vm522, %v2507, %v2499
    %v2517 = vsel %vm522, %v2509, %v2501
    %v2518 = vsel %vm544, %v2514, 0.0
    %v2519 = vsel %vm545, %v2510, 0.0
    %v2520 = vsel %vm544, %v2515, 0.0
    %v2521 = vsel %vm545, %v2511, 0.0
    %v2522 = vsel %vm544, %v2516, 0.0
    %v2523 = vsel %vm545, %v2512, 0.0
    %v2524 = vsel %vm544, %v2517, 0.0
    %v2525 = vsel %vm545, %v2513, 0.0
    %2526 = vrot.lane.b32.xlu0 %v2409, 2
    %v2527 = vpop.permute.xlu0 %2526
    %2528 = vrot.lane.b32.xlu0 %v2411, 2
    %v2529 = vpop.permute.xlu0 %2528
    %2530 = vrot.lane.b32.xlu0 %v2413, 2
    %v2531 = vpop.permute.xlu0 %2530
    %2532 = vrot.lane.b32.xlu0 %v2415, 2
    %v2533 = vpop.permute.xlu0 %2532
    %2534 = vrot.lane.b32.xlu0 %v2410, 2
    %v2535 = vpop.permute.xlu0 %2534
    %2536 = vrot.lane.b32.xlu0 %v2412, 2
    %v2537 = vpop.permute.xlu0 %2536
    %2538 = vrot.lane.b32.xlu0 %v2414, 2
    %v2539 = vpop.permute.xlu0 %2538
    %2540 = vrot.lane.b32.xlu0 %v2416, 2
    %v2541 = vpop.permute.xlu0 %2540
    %v2542 = vsel %vm570, %v2527, %v2535
    %v2543 = vsel %vm570, %v2529, %v2537
    %v2544 = vsel %vm570, %v2531, %v2539
    %v2545 = vsel %vm570, %v2533, %v2541
    %v2546 = vsel %vm570, %v2535, %v2527
    %v2547 = vsel %vm570, %v2537, %v2529
    %v2548 = vsel %vm570, %v2539, %v2531
    %v2549 = vsel %vm570, %v2541, %v2533
    %v2550 = vsel %vm592, %v2546, 0.0
    %v2551 = vsel %vm593, %v2542, 0.0
    %v2552 = vsel %vm592, %v2547, 0.0
    %v2553 = vsel %vm593, %v2543, 0.0
    %v2554 = vsel %vm592, %v2548, 0.0
    %v2555 = vsel %vm593, %v2544, 0.0
    %v2556 = vsel %vm592, %v2549, 0.0
    %v2557 = vsel %vm593, %v2545, 0.0
    %2558 = vrot.lane.b32.xlu0 %v2409, 1
    %v2559 = vpop.permute.xlu0 %2558
    %2560 = vrot.lane.b32.xlu0 %v2411, 1
    %v2561 = vpop.permute.xlu0 %2560
    %2562 = vrot.lane.b32.xlu0 %v2413, 1
    %v2563 = vpop.permute.xlu0 %2562
    %2564 = vrot.lane.b32.xlu0 %v2415, 1
    %v2565 = vpop.permute.xlu0 %2564
    %2566 = vrot.lane.b32.xlu0 %v2410, 1
    %v2567 = vpop.permute.xlu0 %2566
    %2568 = vrot.lane.b32.xlu0 %v2412, 1
    %v2569 = vpop.permute.xlu0 %2568
    %2570 = vrot.lane.b32.xlu0 %v2414, 1
    %v2571 = vpop.permute.xlu0 %2570
    %2572 = vrot.lane.b32.xlu0 %v2416, 1
    %v2573 = vpop.permute.xlu0 %2572
    %v2574 = vsel %vm618, %v2559, %v2567
    %v2575 = vsel %vm618, %v2561, %v2569
    %v2576 = vsel %vm618, %v2563, %v2571
    %v2577 = vsel %vm618, %v2565, %v2573
    %v2578 = vsel %vm618, %v2567, %v2559
    %v2579 = vsel %vm618, %v2569, %v2561
    %v2580 = vsel %vm618, %v2571, %v2563
    %v2581 = vsel %vm618, %v2573, %v2565
    %v2582 = vsel %vm640, %v2578, 0.0
    %v2583 = vsel %vm641, %v2574, 0.0
    %v2584 = vsel %vm640, %v2579, 0.0
    %v2585 = vsel %vm641, %v2575, 0.0
    %v2586 = vsel %vm640, %v2580, 0.0
    %v2587 = vsel %vm641, %v2576, 0.0
    %v2588 = vsel %vm640, %v2581, 0.0
    %v2589 = vsel %vm641, %v2577, 0.0
    %2590 = vrot.lane.b32.xlu0 %v2409, 127
    %v2591 = vpop.permute.xlu0 %2590
    %2592 = vrot.lane.b32.xlu0 %v2411, 127
    %v2593 = vpop.permute.xlu0 %2592
    %2594 = vrot.lane.b32.xlu0 %v2413, 127
    %v2595 = vpop.permute.xlu0 %2594
    %2596 = vrot.lane.b32.xlu0 %v2415, 127
    %v2597 = vpop.permute.xlu0 %2596
    %2598 = vrot.lane.b32.xlu0 %v2410, 127
    %v2599 = vpop.permute.xlu0 %2598
    %2600 = vrot.lane.b32.xlu0 %v2412, 127
    %v2601 = vpop.permute.xlu0 %2600
    %2602 = vrot.lane.b32.xlu0 %v2414, 127
    %v2603 = vpop.permute.xlu0 %2602
    %2604 = vrot.lane.b32.xlu0 %v2416, 127
    %v2605 = vpop.permute.xlu0 %2604
    %v2606 = vsel %vm666, %v2591, %v2599
    %v2607 = vsel %vm666, %v2593, %v2601
    %v2608 = vsel %vm666, %v2595, %v2603
    %v2609 = vsel %vm666, %v2597, %v2605
    %v2610 = vsel %vm666, %v2599, %v2591
    %v2611 = vsel %vm666, %v2601, %v2593
    %v2612 = vsel %vm666, %v2603, %v2595
    %v2613 = vsel %vm666, %v2605, %v2597
    %v2614 = vsel %vm688, %v2606, 0.0
    %v2615 = vsel %vm689, %v2610, 0.0
    %v2616 = vsel %vm688, %v2607, 0.0
    %v2617 = vsel %vm689, %v2611, 0.0
    %v2618 = vsel %vm688, %v2608, 0.0
    %v2619 = vsel %vm689, %v2612, 0.0
    %v2620 = vsel %vm688, %v2609, 0.0
    %v2621 = vsel %vm689, %v2613, 0.0
    %2622 = vrot.lane.b32.xlu0 %v2409, 126
    %v2623 = vpop.permute.xlu0 %2622
    %2624 = vrot.lane.b32.xlu0 %v2411, 126
    %v2625 = vpop.permute.xlu0 %2624
    %2626 = vrot.lane.b32.xlu0 %v2413, 126
    %v2627 = vpop.permute.xlu0 %2626
    %2628 = vrot.lane.b32.xlu0 %v2415, 126
    %v2629 = vpop.permute.xlu0 %2628
    %2630 = vrot.lane.b32.xlu0 %v2410, 126
    %v2631 = vpop.permute.xlu0 %2630
    %2632 = vrot.lane.b32.xlu0 %v2412, 126
    %v2633 = vpop.permute.xlu0 %2632
    %2634 = vrot.lane.b32.xlu0 %v2414, 126
    %v2635 = vpop.permute.xlu0 %2634
    %2636 = vrot.lane.b32.xlu0 %v2416, 126
    %v2637 = vpop.permute.xlu0 %2636
    %v2638 = vsel %vm714, %v2623, %v2631
    %v2639 = vsel %vm714, %v2625, %v2633
    %v2640 = vsel %vm714, %v2627, %v2635
    %v2641 = vsel %vm714, %v2629, %v2637
    %v2642 = vsel %vm714, %v2631, %v2623
    %v2643 = vsel %vm714, %v2633, %v2625
    %v2644 = vsel %vm714, %v2635, %v2627
    %v2645 = vsel %vm714, %v2637, %v2629
    %v2646 = vsel %vm736, %v2638, 0.0
    %v2647 = vsel %vm737, %v2642, 0.0
    %v2648 = vsel %vm736, %v2639, 0.0
    %v2649 = vsel %vm737, %v2643, 0.0
    %v2650 = vsel %vm736, %v2640, 0.0
    %v2651 = vsel %vm737, %v2644, 0.0
    %v2652 = vsel %vm736, %v2641, 0.0
    %v2653 = vsel %vm737, %v2645, 0.0
    %2654 = vrot.lane.b32.xlu0 %v2409, 125
    %v2655 = vpop.permute.xlu0 %2654
    %2656 = vrot.lane.b32.xlu0 %v2411, 125
    %v2657 = vpop.permute.xlu0 %2656
    %2658 = vrot.lane.b32.xlu0 %v2413, 125
    %v2659 = vpop.permute.xlu0 %2658
    %2660 = vrot.lane.b32.xlu0 %v2415, 125
    %v2661 = vpop.permute.xlu0 %2660
    %2662 = vrot.lane.b32.xlu0 %v2410, 125
    %v2663 = vpop.permute.xlu0 %2662
    %2664 = vrot.lane.b32.xlu0 %v2412, 125
    %v2665 = vpop.permute.xlu0 %2664
    %2666 = vrot.lane.b32.xlu0 %v2414, 125
    %v2667 = vpop.permute.xlu0 %2666
    %2668 = vrot.lane.b32.xlu0 %v2416, 125
    %v2669 = vpop.permute.xlu0 %2668
    %v2670 = vsel %vm762, %v2655, %v2663
    %v2671 = vsel %vm762, %v2657, %v2665
    %v2672 = vsel %vm762, %v2659, %v2667
    %v2673 = vsel %vm762, %v2661, %v2669
    %v2674 = vsel %vm762, %v2663, %v2655
    %v2675 = vsel %vm762, %v2665, %v2657
    %v2676 = vsel %vm762, %v2667, %v2659
    %v2677 = vsel %vm762, %v2669, %v2661
    %v2678 = vsel %vm784, %v2670, 0.0
    %v2679 = vsel %vm785, %v2674, 0.0
    %v2680 = vsel %vm784, %v2671, 0.0
    %v2681 = vsel %vm785, %v2675, 0.0
    %v2682 = vsel %vm784, %v2672, 0.0
    %v2683 = vsel %vm785, %v2676, 0.0
    %v2684 = vsel %vm784, %v2673, 0.0
    %v2685 = vsel %vm785, %v2677, 0.0
    %2686 = vrot.lane.b32.xlu0 %v2409, 124
    %v2687 = vpop.permute.xlu0 %2686
    %2688 = vrot.lane.b32.xlu0 %v2411, 124
    %v2689 = vpop.permute.xlu0 %2688
    %2690 = vrot.lane.b32.xlu0 %v2413, 124
    %v2691 = vpop.permute.xlu0 %2690
    %2692 = vrot.lane.b32.xlu0 %v2415, 124
    %v2693 = vpop.permute.xlu0 %2692
    %2694 = vrot.lane.b32.xlu0 %v2410, 124
    %v2695 = vpop.permute.xlu0 %2694
    %2696 = vrot.lane.b32.xlu0 %v2412, 124
    %v2697 = vpop.permute.xlu0 %2696
    %2698 = vrot.lane.b32.xlu0 %v2414, 124
    %v2699 = vpop.permute.xlu0 %2698
    %2700 = vrot.lane.b32.xlu0 %v2416, 124
    %v2701 = vpop.permute.xlu0 %2700
    %v2702 = vsel %vm810, %v2687, %v2695
    %v2703 = vsel %vm810, %v2689, %v2697
    %v2704 = vsel %vm810, %v2691, %v2699
    %v2705 = vsel %vm810, %v2693, %v2701
    %v2706 = vsel %vm810, %v2695, %v2687
    %v2707 = vsel %vm810, %v2697, %v2689
    %v2708 = vsel %vm810, %v2699, %v2691
    %v2709 = vsel %vm810, %v2701, %v2693
    %v2710 = vsel %vm832, %v2702, 0.0
    %v2711 = vsel %vm833, %v2706, 0.0
    %v2712 = vsel %vm832, %v2703, 0.0
    %v2713 = vsel %vm833, %v2707, 0.0
    %v2714 = vsel %vm832, %v2704, 0.0
    %v2715 = vsel %vm833, %v2708, 0.0
    %v2716 = vsel %vm832, %v2705, 0.0
    %v2717 = vsel %vm833, %v2709, 0.0
    %2718 = vrot.lane.b32.xlu0 %v2409, 123
    %v2719 = vpop.permute.xlu0 %2718
    %2720 = vrot.lane.b32.xlu0 %v2411, 123
    %v2721 = vpop.permute.xlu0 %2720
    %2722 = vrot.lane.b32.xlu0 %v2413, 123
    %v2723 = vpop.permute.xlu0 %2722
    %2724 = vrot.lane.b32.xlu0 %v2415, 123
    %v2725 = vpop.permute.xlu0 %2724
    %2726 = vrot.lane.b32.xlu0 %v2410, 123
    %v2727 = vpop.permute.xlu0 %2726
    %2728 = vrot.lane.b32.xlu0 %v2412, 123
    %v2729 = vpop.permute.xlu0 %2728
    %2730 = vrot.lane.b32.xlu0 %v2414, 123
    %v2731 = vpop.permute.xlu0 %2730
    %2732 = vrot.lane.b32.xlu0 %v2416, 123
    %v2733 = vpop.permute.xlu0 %2732
    %v2734 = vsel %vm858, %v2719, %v2727
    %v2735 = vsel %vm858, %v2721, %v2729
    %v2736 = vsel %vm858, %v2723, %v2731
    %v2737 = vsel %vm858, %v2725, %v2733
    %v2738 = vsel %vm858, %v2727, %v2719
    %v2739 = vsel %vm858, %v2729, %v2721
    %v2740 = vsel %vm858, %v2731, %v2723
    %v2741 = vsel %vm858, %v2733, %v2725
    %v2742 = vsel %vm880, %v2734, 0.0
    %v2743 = vsel %vm881, %v2738, 0.0
    %v2744 = vsel %vm880, %v2735, 0.0
    %v2745 = vsel %vm881, %v2739, 0.0
    %v2746 = vsel %vm880, %v2736, 0.0
    %v2747 = vsel %vm881, %v2740, 0.0
    %v2748 = vsel %vm880, %v2737, 0.0
    %v2749 = vsel %vm881, %v2741, 0.0
    %2751 = vset.pattern.permute.xlu0 0
    %2752 = vperm.xlu0 %2751, %v1742
    %v2753 = vpop.permute.xlu0 %2752
    %2756 = vset.pattern.permute.xlu0 0
    %2757 = vperm.xlu0 %2756, %v1743
    %v2758 = vpop.permute.xlu0 %2757
    %2761 = vset.pattern.permute.xlu0 0
    %2762 = vperm.xlu0 %2761, %v1744
    %v2763 = vpop.permute.xlu0 %2762
    %2766 = vset.pattern.permute.xlu0 0
    %2767 = vperm.xlu0 %2766, %v1745
    %v2768 = vpop.permute.xlu0 %2767
    %v2771 = vsel %vm910, %v2420, 0
    %v2774 = vsel %vm910, %v2423, 0
    %v2777 = vsel %vm910, %v2426, 0
    %v2780 = vsel %vm910, %v2429, 0
    %2782 = vmatprep.subr.mxu0 %v2557
    %2783 = vmatpush1.msra.mxu0 %v2556
    %2784 = vmatprep.subr.mxu0 %v2555
    %2785 = vmatpush1.msra.mxu0 %v2554
    %2786 = vmatprep.subr.mxu0 %v2553
    %2787 = vmatpush1.msra.mxu0 %v2552
    %2788 = vmatprep.subr.mxu0 %v2551
    %2789 = vmatpush1.msra.mxu0 %v2550
    %2790 = vmatprep.subr.mxu0 %v2525
    %2791 = vmatpush1.msra.mxu0 %v2524
    %2792 = vmatprep.subr.mxu0 %v2523
    %2793 = vmatpush1.msra.mxu0 %v2522
    %2794 = vmatprep.subr.mxu0 %v2521
    %2795 = vmatpush1.msra.mxu0 %v2520
    %2796 = vmatprep.subr.mxu0 %v2519
    %2797 = vmatpush1.msra.mxu0 %v2518
    %2798 = vmatprep.subr.mxu0 %v2493
    %2799 = vmatpush1.msra.mxu0 %v2492
    %2800 = vmatprep.subr.mxu0 %v2491
    %2801 = vmatpush1.msra.mxu0 %v2490
    %2802 = vmatprep.subr.mxu0 %v2489
    %2803 = vmatpush1.msra.mxu0 %v2488
    %2804 = vmatprep.subr.mxu0 %v2487
    %2805 = vmatpush1.msra.mxu0 %v2486
    %2806 = vmatprep.subr.mxu0 %v2461
    %2807 = vmatpush1.msra.mxu0 %v2460
    %2808 = vmatprep.subr.mxu0 %v2459
    %2809 = vmatpush1.msra.mxu0 %v2458
    %2810 = vmatprep.subr.mxu0 %v2457
    %2811 = vmatpush1.msra.mxu0 %v2456
    %2812 = vmatprep.subr.mxu0 %v2455
    %2813 = vmatpush1.msra.mxu0 %v2454
    %2814 = vmatprep.subr.mxu0 %v2653
    %2815 = vmatpush2.msra.mxu0 %v2652
    %2816 = vmatprep.subr.mxu0 %v2651
    %2817 = vmatpush2.msra.mxu0 %v2650
    %2818 = vmatprep.subr.mxu0 %v2649
    %2819 = vmatpush2.msra.mxu0 %v2648
    %2820 = vmatprep.subr.mxu0 %v2647
    %2821 = vmatpush2.msra.mxu0 %v2646
    %2822 = vmatprep.subr.mxu0 %v2621
    %2823 = vmatpush2.msra.mxu0 %v2620
    %2824 = vmatprep.subr.mxu0 %v2619
    %2825 = vmatpush2.msra.mxu0 %v2618
    %2826 = vmatprep.subr.mxu0 %v2617
    %2827 = vmatpush2.msra.mxu0 %v2616
    %2828 = vmatprep.subr.mxu0 %v2615
    %2829 = vmatpush2.msra.mxu0 %v2614
    %2830 = vmatprep.subr.mxu0 %v2416
    %2831 = vmatpush2.msra.mxu0 %v2415
    %2832 = vmatprep.subr.mxu0 %v2414
    %2833 = vmatpush2.msra.mxu0 %v2413
    %2834 = vmatprep.subr.mxu0 %v2412
    %2835 = vmatpush2.msra.mxu0 %v2411
    %2836 = vmatprep.subr.mxu0 %v2410
    %2837 = vmatpush2.msra.mxu0 %v2409
    %2838 = vmatprep.subr.mxu0 %v2589
    %2839 = vmatpush2.msra.mxu0 %v2588
    %2840 = vmatprep.subr.mxu0 %v2587
    %2841 = vmatpush2.msra.mxu0 %v2586
    %2842 = vmatprep.subr.mxu0 %v2585
    %2843 = vmatpush2.msra.mxu0 %v2584
    %2844 = vmatprep.subr.mxu0 %v2583
    %2845 = vmatpush2.msra.mxu0 %v2582
    %2846 = vmatprep.mubr.f32.mxu0 %v2419
    %2847 = vmatmul.mubr.f32.gmra.mxu0 %v2418
    %v2848 = vpop.f32.mrf.mxu0
    %v2849 = vadd.f32 %v2753, %v2848
    %v2850 = vpop.f32.mrf.mxu0
    %v2851 = vadd.f32 %v2753, %v2850
    %2852 = vmatprep.mubr.f32.mxu0 %v2422
    %2853 = vmatmul.mubr.f32.gmra.mxu0 %v2421
    %v2854 = vpop.f32.mrf.mxu0
    %v2855 = vadd.f32 %v2758, %v2854
    %v2856 = vpop.f32.mrf.mxu0
    %v2857 = vadd.f32 %v2758, %v2856
    %2858 = vmatprep.mubr.f32.mxu0 %v2425
    %2859 = vmatmul.mubr.f32.gmra.mxu0 %v2424
    %v2860 = vpop.f32.mrf.mxu0
    %v2861 = vadd.f32 %v2763, %v2860
    %v2862 = vpop.f32.mrf.mxu0
    %v2863 = vadd.f32 %v2763, %v2862
    %2864 = vmatprep.mubr.f32.mxu0 %v2428
    %2865 = vmatmul.mubr.f32.gmra.mxu0 %v2427
    %v2866 = vpop.f32.mrf.mxu0
    %v2867 = vadd.f32 %v2768, %v2866
    %v2868 = vpop.f32.mrf.mxu0
    %v2869 = vadd.f32 %v2768, %v2868
    %2870 = vdwg.mxu0
    %2871 = vmatprep.subr.mxu0 0.0
    %2872 = vmatpush1.msra.mxu0 0.0
    %2873 = vmatprep.subr.mxu0 0.0
    %2874 = vmatpush1.msra.mxu0 0.0
    %2875 = vmatprep.subr.mxu0 0.0
    %2876 = vmatpush1.msra.mxu0 0.0
    %2877 = vmatprep.subr.mxu0 0.0
    %2878 = vmatpush1.msra.mxu0 0.0
    %2879 = vmatprep.subr.mxu0 %v2749
    %2880 = vmatpush1.msra.mxu0 %v2748
    %2881 = vmatprep.subr.mxu0 %v2747
    %2882 = vmatpush1.msra.mxu0 %v2746
    %2883 = vmatprep.subr.mxu0 %v2745
    %2884 = vmatpush1.msra.mxu0 %v2744
    %2885 = vmatprep.subr.mxu0 %v2743
    %2886 = vmatpush1.msra.mxu0 %v2742
    %2887 = vmatprep.subr.mxu0 %v2717
    %2888 = vmatpush1.msra.mxu0 %v2716
    %2889 = vmatprep.subr.mxu0 %v2715
    %2890 = vmatpush1.msra.mxu0 %v2714
    %2891 = vmatprep.subr.mxu0 %v2713
    %2892 = vmatpush1.msra.mxu0 %v2712
    %2893 = vmatprep.subr.mxu0 %v2711
    %2894 = vmatpush1.msra.mxu0 %v2710
    %2895 = vmatprep.subr.mxu0 %v2685
    %2896 = vmatpush1.msra.mxu0 %v2684
    %2897 = vmatprep.subr.mxu0 %v2683
    %2898 = vmatpush1.msra.mxu0 %v2682
    %2899 = vmatprep.subr.mxu0 %v2681
    %2900 = vmatpush1.msra.mxu0 %v2680
    %2901 = vmatprep.subr.mxu0 %v2679
    %2902 = vmatpush1.msra.mxu0 %v2678
    %2903 = vmatprep.subr.mxu0 0.0
    %2904 = vmatpush2.msra.mxu0 0.0
    %2905 = vmatprep.subr.mxu0 0.0
    %2906 = vmatpush2.msra.mxu0 0.0
    %2907 = vmatprep.subr.mxu0 0.0
    %2908 = vmatpush2.msra.mxu0 0.0
    %2909 = vmatprep.subr.mxu0 0.0
    %2910 = vmatpush2.msra.mxu0 0.0
    %2911 = vmatprep.subr.mxu0 0.0
    %2912 = vmatpush2.msra.mxu0 0.0
    %2913 = vmatprep.subr.mxu0 0.0
    %2914 = vmatpush2.msra.mxu0 0.0
    %2915 = vmatprep.subr.mxu0 0.0
    %2916 = vmatpush2.msra.mxu0 0.0
    %2917 = vmatprep.subr.mxu0 0.0
    %2918 = vmatpush2.msra.mxu0 0.0
    %2919 = vmatprep.subr.mxu0 0.0
    %2920 = vmatpush2.msra.mxu0 0.0
    %2921 = vmatprep.subr.mxu0 0.0
    %2922 = vmatpush2.msra.mxu0 0.0
    %2923 = vmatprep.subr.mxu0 0.0
    %2924 = vmatpush2.msra.mxu0 0.0
    %2925 = vmatprep.subr.mxu0 0.0
    %2926 = vmatpush2.msra.mxu0 0.0
    %2927 = vmatprep.subr.mxu0 0.0
    %2928 = vmatpush2.msra.mxu0 0.0
    %2929 = vmatprep.subr.mxu0 0.0
    %2930 = vmatpush2.msra.mxu0 0.0
    %2931 = vmatprep.subr.mxu0 0.0
    %2932 = vmatpush2.msra.mxu0 0.0
    %2933 = vmatprep.subr.mxu0 0.0
    %2934 = vmatpush2.msra.mxu0 0.0
    %2935 = vmatprep.mubr.f32.mxu0 0.0
    %2936 = vmatmul.mubr.f32.gmra.mxu0 %v2771
    %v2937 = vpop.f32.mrf.mxu0
    %v2938 = vadd.f32 %v2849, %v2937
    %v2939 = vpop.f32.mrf.mxu0
    %v2940 = vadd.f32 %v2851, %v2939
    %2941 = vmatprep.mubr.f32.mxu0 0.0
    %2942 = vmatmul.mubr.f32.gmra.mxu0 %v2774
    %v2943 = vpop.f32.mrf.mxu0
    %v2944 = vadd.f32 %v2855, %v2943
    %v2945 = vpop.f32.mrf.mxu0
    %v2946 = vadd.f32 %v2857, %v2945
    %2947 = vmatprep.mubr.f32.mxu0 0.0
    %2948 = vmatmul.mubr.f32.gmra.mxu0 %v2777
    %v2949 = vpop.f32.mrf.mxu0
    %v2950 = vadd.f32 %v2861, %v2949
    %v2951 = vpop.f32.mrf.mxu0
    %v2952 = vadd.f32 %v2863, %v2951
    %2953 = vmatprep.mubr.f32.mxu0 0.0
    %2954 = vmatmul.mubr.f32.gmra.mxu0 %v2780
    %v2955 = vpop.f32.mrf.mxu0
    %v2956 = vadd.f32 %v2867, %v2955
    %v2957 = vpop.f32.mrf.mxu0
    %v2958 = vadd.f32 %v2869, %v2957
    %2959 = vdwg.mxu0
    %v2960 = vadd.f32 %v1708, %v2938
    %v2961 = vadd.f32 %v1709, %v2940
    %v2962 = vadd.f32 %v1710, %v2944
    %v2963 = vadd.f32 %v1711, %v2946
    %v2964 = vadd.f32 %v1712, %v2950
    %v2965 = vadd.f32 %v1713, %v2952
    %v2966 = vadd.f32 %v1714, %v2956
    %v2967 = vadd.f32 %v1715, %v2958
    %s2968 = scalar_lea.vmem %s5, 384
    %v2969 = vld [vmem:[%s2968] sm:$0xff]
    %v2970 = vld [vmem:[%s2968 + $0x8] sm:$0xff]
    %v2971 = vld [vmem:[%s2968 + $0x10] sm:$0xff]
    %v2972 = vld [vmem:[%s2968 + $0x18] sm:$0xff]
    %s2973 = scalar_lea.vmem %s5, 416
    %v2974 = vld [vmem:[%s2973] sm:$0xff]
    %v2975 = vld [vmem:[%s2973 + $0x8] sm:$0xff]
    %v2976 = vld [vmem:[%s2973 + $0x10] sm:$0xff]
    %v2977 = vld [vmem:[%s2973 + $0x18] sm:$0xff]
    %s2978 = scalar_lea.vmem %s5, 448
    %v2979 = vld [vmem:[%s2978] sm:$0xff]
    %v2980 = vld [vmem:[%s2978 + $0x8] sm:$0xff]
    %v2981 = vld [vmem:[%s2978 + $0x10] sm:$0xff]
    %v2982 = vld [vmem:[%s2978 + $0x18] sm:$0xff]
    %s2983 = scalar_lea.vmem %s5, 480
    %v2984 = vld [vmem:[%s2983] sm:$0xff]
    %v2985 = vld [vmem:[%s2983 + $0x8] sm:$0xff]
    %v2986 = vld [vmem:[%s2983 + $0x10] sm:$0xff]
    %v2987 = vld [vmem:[%s2983 + $0x18] sm:$0xff]
    %s2988 = scalar_lea.vmem %s5, 512
    %v2989 = vld [vmem:[%s2988] sm:$0xff]
    %v2990 = vld [vmem:[%s2988 + $0x8] sm:$0xff]
    %v2991 = vld [vmem:[%s2988 + $0x10] sm:$0xff]
    %v2992 = vld [vmem:[%s2988 + $0x18] sm:$0xff]
    %s2993 = scalar_lea.vmem %s5, 544
    %v2994 = vld [vmem:[%s2993] sm:$0xff]
    %v2995 = vld [vmem:[%s2993 + $0x8] sm:$0xff]
    %v2996 = vld [vmem:[%s2993 + $0x10] sm:$0xff]
    %v2997 = vld [vmem:[%s2993 + $0x18] sm:$0xff]
    %2999 = vset.pattern.permute.xlu0 0
    %3000 = vperm.xlu0 %2999, %v2969
    %v3001 = vpop.permute.xlu0 %3000
    %3004 = vset.pattern.permute.xlu0 0
    %3005 = vperm.xlu0 %3004, %v2970
    %v3006 = vpop.permute.xlu0 %3005
    %3009 = vset.pattern.permute.xlu0 0
    %3010 = vperm.xlu0 %3009, %v2971
    %v3011 = vpop.permute.xlu0 %3010
    %3014 = vset.pattern.permute.xlu0 0
    %3015 = vperm.xlu0 %3014, %v2972
    %v3016 = vpop.permute.xlu0 %3015
    %v3018 = vmul.f32 %v2960, %v3001
    %v3019 = vmul.f32 %v2961, %v3001
    %v3020 = vmul.f32 %v2962, %v3006
    %v3021 = vmul.f32 %v2963, %v3006
    %v3022 = vmul.f32 %v2964, %v3011
    %v3023 = vmul.f32 %v2965, %v3011
    %v3024 = vmul.f32 %v2966, %v3016
    %v3025 = vmul.f32 %v2967, %v3016
    %3027 = vset.pattern.permute.xlu0 0
    %3028 = vperm.xlu0 %3027, %v2974
    %v3029 = vpop.permute.xlu0 %3028
    %3032 = vset.pattern.permute.xlu0 0
    %3033 = vperm.xlu0 %3032, %v2975
    %v3034 = vpop.permute.xlu0 %3033
    %3037 = vset.pattern.permute.xlu0 0
    %3038 = vperm.xlu0 %3037, %v2976
    %v3039 = vpop.permute.xlu0 %3038
    %3042 = vset.pattern.permute.xlu0 0
    %3043 = vperm.xlu0 %3042, %v2977
    %v3044 = vpop.permute.xlu0 %3043
    %v3046 = vadd.f32 %v3018, %v3029
    %v3047 = vadd.f32 %v3019, %v3029
    %v3048 = vadd.f32 %v3020, %v3034
    %v3049 = vadd.f32 %v3021, %v3034
    %v3050 = vadd.f32 %v3022, %v3039
    %v3051 = vadd.f32 %v3023, %v3039
    %v3052 = vadd.f32 %v3024, %v3044
    %v3053 = vadd.f32 %v3025, %v3044
    %v3054 = vmax.f32 %v3046, 0.0
    %v3055 = vmax.f32 %v3047, 0.0
    %v3056 = vmax.f32 %v3048, 0.0
    %v3057 = vmax.f32 %v3049, 0.0
    %v3058 = vmax.f32 %v3050, 0.0
    %v3059 = vmax.f32 %v3051, 0.0
    %v3060 = vmax.f32 %v3052, 0.0
    %v3061 = vmax.f32 %v3053, 0.0
    %s3062 = scalar_lea.vmem %s4, 384
    %v3063 = vld [vmem:[%s3062] sm:$0xff]
    %v3064 = vld [vmem:[%s3062 + $0x8] sm:$0xff]
    %v3065 = vld [vmem:[%s3062 + $0x10] sm:$0xff]
    %v3066 = vld [vmem:[%s3062 + $0x18] sm:$0xff]
    %v3067 = vld [vmem:[%s3062 + $0x20] sm:$0xff]
    %v3068 = vld [vmem:[%s3062 + $0x28] sm:$0xff]
    %v3069 = vld [vmem:[%s3062 + $0x30] sm:$0xff]
    %v3070 = vld [vmem:[%s3062 + $0x38] sm:$0xff]
    %v3071 = vld [vmem:[%s3062 + $0x40] sm:$0xff]
    %v3072 = vld [vmem:[%s3062 + $0x48] sm:$0xff]
    %v3073 = vld [vmem:[%s3062 + $0x50] sm:$0xff]
    %v3074 = vld [vmem:[%s3062 + $0x58] sm:$0xff]
    %3075 = vrot.lane.b32.xlu0 %v3054, 5
    %v3076 = vpop.permute.xlu0 %3075
    %3077 = vrot.lane.b32.xlu0 %v3056, 5
    %v3078 = vpop.permute.xlu0 %3077
    %3079 = vrot.lane.b32.xlu0 %v3058, 5
    %v3080 = vpop.permute.xlu0 %3079
    %3081 = vrot.lane.b32.xlu0 %v3060, 5
    %v3082 = vpop.permute.xlu0 %3081
    %3083 = vrot.lane.b32.xlu0 %v3055, 5
    %v3084 = vpop.permute.xlu0 %3083
    %3085 = vrot.lane.b32.xlu0 %v3057, 5
    %v3086 = vpop.permute.xlu0 %3085
    %3087 = vrot.lane.b32.xlu0 %v3059, 5
    %v3088 = vpop.permute.xlu0 %3087
    %3089 = vrot.lane.b32.xlu0 %v3061, 5
    %v3090 = vpop.permute.xlu0 %3089
    %v3091 = vsel %vm426, %v3076, %v3084
    %v3092 = vsel %vm426, %v3078, %v3086
    %v3093 = vsel %vm426, %v3080, %v3088
    %v3094 = vsel %vm426, %v3082, %v3090
    %v3095 = vsel %vm426, %v3084, %v3076
    %v3096 = vsel %vm426, %v3086, %v3078
    %v3097 = vsel %vm426, %v3088, %v3080
    %v3098 = vsel %vm426, %v3090, %v3082
    %v3099 = vsel %vm448, %v3095, 0.0
    %v3100 = vsel %vm449, %v3091, 0.0
    %v3101 = vsel %vm448, %v3096, 0.0
    %v3102 = vsel %vm449, %v3092, 0.0
    %v3103 = vsel %vm448, %v3097, 0.0
    %v3104 = vsel %vm449, %v3093, 0.0
    %v3105 = vsel %vm448, %v3098, 0.0
    %v3106 = vsel %vm449, %v3094, 0.0
    %3107 = vrot.lane.b32.xlu0 %v3054, 4
    %v3108 = vpop.permute.xlu0 %3107
    %3109 = vrot.lane.b32.xlu0 %v3056, 4
    %v3110 = vpop.permute.xlu0 %3109
    %3111 = vrot.lane.b32.xlu0 %v3058, 4
    %v3112 = vpop.permute.xlu0 %3111
    %3113 = vrot.lane.b32.xlu0 %v3060, 4
    %v3114 = vpop.permute.xlu0 %3113
    %3115 = vrot.lane.b32.xlu0 %v3055, 4
    %v3116 = vpop.permute.xlu0 %3115
    %3117 = vrot.lane.b32.xlu0 %v3057, 4
    %v3118 = vpop.permute.xlu0 %3117
    %3119 = vrot.lane.b32.xlu0 %v3059, 4
    %v3120 = vpop.permute.xlu0 %3119
    %3121 = vrot.lane.b32.xlu0 %v3061, 4
    %v3122 = vpop.permute.xlu0 %3121
    %v3123 = vsel %vm474, %v3108, %v3116
    %v3124 = vsel %vm474, %v3110, %v3118
    %v3125 = vsel %vm474, %v3112, %v3120
    %v3126 = vsel %vm474, %v3114, %v3122
    %v3127 = vsel %vm474, %v3116, %v3108
    %v3128 = vsel %vm474, %v3118, %v3110
    %v3129 = vsel %vm474, %v3120, %v3112
    %v3130 = vsel %vm474, %v3122, %v3114
    %v3131 = vsel %vm496, %v3127, 0.0
    %v3132 = vsel %vm497, %v3123, 0.0
    %v3133 = vsel %vm496, %v3128, 0.0
    %v3134 = vsel %vm497, %v3124, 0.0
    %v3135 = vsel %vm496, %v3129, 0.0
    %v3136 = vsel %vm497, %v3125, 0.0
    %v3137 = vsel %vm496, %v3130, 0.0
    %v3138 = vsel %vm497, %v3126, 0.0
    %3139 = vrot.lane.b32.xlu0 %v3054, 3
    %v3140 = vpop.permute.xlu0 %3139
    %3141 = vrot.lane.b32.xlu0 %v3056, 3
    %v3142 = vpop.permute.xlu0 %3141
    %3143 = vrot.lane.b32.xlu0 %v3058, 3
    %v3144 = vpop.permute.xlu0 %3143
    %3145 = vrot.lane.b32.xlu0 %v3060, 3
    %v3146 = vpop.permute.xlu0 %3145
    %3147 = vrot.lane.b32.xlu0 %v3055, 3
    %v3148 = vpop.permute.xlu0 %3147
    %3149 = vrot.lane.b32.xlu0 %v3057, 3
    %v3150 = vpop.permute.xlu0 %3149
    %3151 = vrot.lane.b32.xlu0 %v3059, 3
    %v3152 = vpop.permute.xlu0 %3151
    %3153 = vrot.lane.b32.xlu0 %v3061, 3
    %v3154 = vpop.permute.xlu0 %3153
    %v3155 = vsel %vm522, %v3140, %v3148
    %v3156 = vsel %vm522, %v3142, %v3150
    %v3157 = vsel %vm522, %v3144, %v3152
    %v3158 = vsel %vm522, %v3146, %v3154
    %v3159 = vsel %vm522, %v3148, %v3140
    %v3160 = vsel %vm522, %v3150, %v3142
    %v3161 = vsel %vm522, %v3152, %v3144
    %v3162 = vsel %vm522, %v3154, %v3146
    %v3163 = vsel %vm544, %v3159, 0.0
    %v3164 = vsel %vm545, %v3155, 0.0
    %v3165 = vsel %vm544, %v3160, 0.0
    %v3166 = vsel %vm545, %v3156, 0.0
    %v3167 = vsel %vm544, %v3161, 0.0
    %v3168 = vsel %vm545, %v3157, 0.0
    %v3169 = vsel %vm544, %v3162, 0.0
    %v3170 = vsel %vm545, %v3158, 0.0
    %3171 = vrot.lane.b32.xlu0 %v3054, 2
    %v3172 = vpop.permute.xlu0 %3171
    %3173 = vrot.lane.b32.xlu0 %v3056, 2
    %v3174 = vpop.permute.xlu0 %3173
    %3175 = vrot.lane.b32.xlu0 %v3058, 2
    %v3176 = vpop.permute.xlu0 %3175
    %3177 = vrot.lane.b32.xlu0 %v3060, 2
    %v3178 = vpop.permute.xlu0 %3177
    %3179 = vrot.lane.b32.xlu0 %v3055, 2
    %v3180 = vpop.permute.xlu0 %3179
    %3181 = vrot.lane.b32.xlu0 %v3057, 2
    %v3182 = vpop.permute.xlu0 %3181
    %3183 = vrot.lane.b32.xlu0 %v3059, 2
    %v3184 = vpop.permute.xlu0 %3183
    %3185 = vrot.lane.b32.xlu0 %v3061, 2
    %v3186 = vpop.permute.xlu0 %3185
    %v3187 = vsel %vm570, %v3172, %v3180
    %v3188 = vsel %vm570, %v3174, %v3182
    %v3189 = vsel %vm570, %v3176, %v3184
    %v3190 = vsel %vm570, %v3178, %v3186
    %v3191 = vsel %vm570, %v3180, %v3172
    %v3192 = vsel %vm570, %v3182, %v3174
    %v3193 = vsel %vm570, %v3184, %v3176
    %v3194 = vsel %vm570, %v3186, %v3178
    %v3195 = vsel %vm592, %v3191, 0.0
    %v3196 = vsel %vm593, %v3187, 0.0
    %v3197 = vsel %vm592, %v3192, 0.0
    %v3198 = vsel %vm593, %v3188, 0.0
    %v3199 = vsel %vm592, %v3193, 0.0
    %v3200 = vsel %vm593, %v3189, 0.0
    %v3201 = vsel %vm592, %v3194, 0.0
    %v3202 = vsel %vm593, %v3190, 0.0
    %3203 = vrot.lane.b32.xlu0 %v3054, 1
    %v3204 = vpop.permute.xlu0 %3203
    %3205 = vrot.lane.b32.xlu0 %v3056, 1
    %v3206 = vpop.permute.xlu0 %3205
    %3207 = vrot.lane.b32.xlu0 %v3058, 1
    %v3208 = vpop.permute.xlu0 %3207
    %3209 = vrot.lane.b32.xlu0 %v3060, 1
    %v3210 = vpop.permute.xlu0 %3209
    %3211 = vrot.lane.b32.xlu0 %v3055, 1
    %v3212 = vpop.permute.xlu0 %3211
    %3213 = vrot.lane.b32.xlu0 %v3057, 1
    %v3214 = vpop.permute.xlu0 %3213
    %3215 = vrot.lane.b32.xlu0 %v3059, 1
    %v3216 = vpop.permute.xlu0 %3215
    %3217 = vrot.lane.b32.xlu0 %v3061, 1
    %v3218 = vpop.permute.xlu0 %3217
    %v3219 = vsel %vm618, %v3204, %v3212
    %v3220 = vsel %vm618, %v3206, %v3214
    %v3221 = vsel %vm618, %v3208, %v3216
    %v3222 = vsel %vm618, %v3210, %v3218
    %v3223 = vsel %vm618, %v3212, %v3204
    %v3224 = vsel %vm618, %v3214, %v3206
    %v3225 = vsel %vm618, %v3216, %v3208
    %v3226 = vsel %vm618, %v3218, %v3210
    %v3227 = vsel %vm640, %v3223, 0.0
    %v3228 = vsel %vm641, %v3219, 0.0
    %v3229 = vsel %vm640, %v3224, 0.0
    %v3230 = vsel %vm641, %v3220, 0.0
    %v3231 = vsel %vm640, %v3225, 0.0
    %v3232 = vsel %vm641, %v3221, 0.0
    %v3233 = vsel %vm640, %v3226, 0.0
    %v3234 = vsel %vm641, %v3222, 0.0
    %3235 = vrot.lane.b32.xlu0 %v3054, 127
    %v3236 = vpop.permute.xlu0 %3235
    %3237 = vrot.lane.b32.xlu0 %v3056, 127
    %v3238 = vpop.permute.xlu0 %3237
    %3239 = vrot.lane.b32.xlu0 %v3058, 127
    %v3240 = vpop.permute.xlu0 %3239
    %3241 = vrot.lane.b32.xlu0 %v3060, 127
    %v3242 = vpop.permute.xlu0 %3241
    %3243 = vrot.lane.b32.xlu0 %v3055, 127
    %v3244 = vpop.permute.xlu0 %3243
    %3245 = vrot.lane.b32.xlu0 %v3057, 127
    %v3246 = vpop.permute.xlu0 %3245
    %3247 = vrot.lane.b32.xlu0 %v3059, 127
    %v3248 = vpop.permute.xlu0 %3247
    %3249 = vrot.lane.b32.xlu0 %v3061, 127
    %v3250 = vpop.permute.xlu0 %3249
    %v3251 = vsel %vm666, %v3236, %v3244
    %v3252 = vsel %vm666, %v3238, %v3246
    %v3253 = vsel %vm666, %v3240, %v3248
    %v3254 = vsel %vm666, %v3242, %v3250
    %v3255 = vsel %vm666, %v3244, %v3236
    %v3256 = vsel %vm666, %v3246, %v3238
    %v3257 = vsel %vm666, %v3248, %v3240
    %v3258 = vsel %vm666, %v3250, %v3242
    %v3259 = vsel %vm688, %v3251, 0.0
    %v3260 = vsel %vm689, %v3255, 0.0
    %v3261 = vsel %vm688, %v3252, 0.0
    %v3262 = vsel %vm689, %v3256, 0.0
    %v3263 = vsel %vm688, %v3253, 0.0
    %v3264 = vsel %vm689, %v3257, 0.0
    %v3265 = vsel %vm688, %v3254, 0.0
    %v3266 = vsel %vm689, %v3258, 0.0
    %3267 = vrot.lane.b32.xlu0 %v3054, 126
    %v3268 = vpop.permute.xlu0 %3267
    %3269 = vrot.lane.b32.xlu0 %v3056, 126
    %v3270 = vpop.permute.xlu0 %3269
    %3271 = vrot.lane.b32.xlu0 %v3058, 126
    %v3272 = vpop.permute.xlu0 %3271
    %3273 = vrot.lane.b32.xlu0 %v3060, 126
    %v3274 = vpop.permute.xlu0 %3273
    %3275 = vrot.lane.b32.xlu0 %v3055, 126
    %v3276 = vpop.permute.xlu0 %3275
    %3277 = vrot.lane.b32.xlu0 %v3057, 126
    %v3278 = vpop.permute.xlu0 %3277
    %3279 = vrot.lane.b32.xlu0 %v3059, 126
    %v3280 = vpop.permute.xlu0 %3279
    %3281 = vrot.lane.b32.xlu0 %v3061, 126
    %v3282 = vpop.permute.xlu0 %3281
    %v3283 = vsel %vm714, %v3268, %v3276
    %v3284 = vsel %vm714, %v3270, %v3278
    %v3285 = vsel %vm714, %v3272, %v3280
    %v3286 = vsel %vm714, %v3274, %v3282
    %v3287 = vsel %vm714, %v3276, %v3268
    %v3288 = vsel %vm714, %v3278, %v3270
    %v3289 = vsel %vm714, %v3280, %v3272
    %v3290 = vsel %vm714, %v3282, %v3274
    %v3291 = vsel %vm736, %v3283, 0.0
    %v3292 = vsel %vm737, %v3287, 0.0
    %v3293 = vsel %vm736, %v3284, 0.0
    %v3294 = vsel %vm737, %v3288, 0.0
    %v3295 = vsel %vm736, %v3285, 0.0
    %v3296 = vsel %vm737, %v3289, 0.0
    %v3297 = vsel %vm736, %v3286, 0.0
    %v3298 = vsel %vm737, %v3290, 0.0
    %3299 = vrot.lane.b32.xlu0 %v3054, 125
    %v3300 = vpop.permute.xlu0 %3299
    %3301 = vrot.lane.b32.xlu0 %v3056, 125
    %v3302 = vpop.permute.xlu0 %3301
    %3303 = vrot.lane.b32.xlu0 %v3058, 125
    %v3304 = vpop.permute.xlu0 %3303
    %3305 = vrot.lane.b32.xlu0 %v3060, 125
    %v3306 = vpop.permute.xlu0 %3305
    %3307 = vrot.lane.b32.xlu0 %v3055, 125
    %v3308 = vpop.permute.xlu0 %3307
    %3309 = vrot.lane.b32.xlu0 %v3057, 125
    %v3310 = vpop.permute.xlu0 %3309
    %3311 = vrot.lane.b32.xlu0 %v3059, 125
    %v3312 = vpop.permute.xlu0 %3311
    %3313 = vrot.lane.b32.xlu0 %v3061, 125
    %v3314 = vpop.permute.xlu0 %3313
    %v3315 = vsel %vm762, %v3300, %v3308
    %v3316 = vsel %vm762, %v3302, %v3310
    %v3317 = vsel %vm762, %v3304, %v3312
    %v3318 = vsel %vm762, %v3306, %v3314
    %v3319 = vsel %vm762, %v3308, %v3300
    %v3320 = vsel %vm762, %v3310, %v3302
    %v3321 = vsel %vm762, %v3312, %v3304
    %v3322 = vsel %vm762, %v3314, %v3306
    %v3323 = vsel %vm784, %v3315, 0.0
    %v3324 = vsel %vm785, %v3319, 0.0
    %v3325 = vsel %vm784, %v3316, 0.0
    %v3326 = vsel %vm785, %v3320, 0.0
    %v3327 = vsel %vm784, %v3317, 0.0
    %v3328 = vsel %vm785, %v3321, 0.0
    %v3329 = vsel %vm784, %v3318, 0.0
    %v3330 = vsel %vm785, %v3322, 0.0
    %3331 = vrot.lane.b32.xlu0 %v3054, 124
    %v3332 = vpop.permute.xlu0 %3331
    %3333 = vrot.lane.b32.xlu0 %v3056, 124
    %v3334 = vpop.permute.xlu0 %3333
    %3335 = vrot.lane.b32.xlu0 %v3058, 124
    %v3336 = vpop.permute.xlu0 %3335
    %3337 = vrot.lane.b32.xlu0 %v3060, 124
    %v3338 = vpop.permute.xlu0 %3337
    %3339 = vrot.lane.b32.xlu0 %v3055, 124
    %v3340 = vpop.permute.xlu0 %3339
    %3341 = vrot.lane.b32.xlu0 %v3057, 124
    %v3342 = vpop.permute.xlu0 %3341
    %3343 = vrot.lane.b32.xlu0 %v3059, 124
    %v3344 = vpop.permute.xlu0 %3343
    %3345 = vrot.lane.b32.xlu0 %v3061, 124
    %v3346 = vpop.permute.xlu0 %3345
    %v3347 = vsel %vm810, %v3332, %v3340
    %v3348 = vsel %vm810, %v3334, %v3342
    %v3349 = vsel %vm810, %v3336, %v3344
    %v3350 = vsel %vm810, %v3338, %v3346
    %v3351 = vsel %vm810, %v3340, %v3332
    %v3352 = vsel %vm810, %v3342, %v3334
    %v3353 = vsel %vm810, %v3344, %v3336
    %v3354 = vsel %vm810, %v3346, %v3338
    %v3355 = vsel %vm832, %v3347, 0.0
    %v3356 = vsel %vm833, %v3351, 0.0
    %v3357 = vsel %vm832, %v3348, 0.0
    %v3358 = vsel %vm833, %v3352, 0.0
    %v3359 = vsel %vm832, %v3349, 0.0
    %v3360 = vsel %vm833, %v3353, 0.0
    %v3361 = vsel %vm832, %v3350, 0.0
    %v3362 = vsel %vm833, %v3354, 0.0
    %3363 = vrot.lane.b32.xlu0 %v3054, 123
    %v3364 = vpop.permute.xlu0 %3363
    %3365 = vrot.lane.b32.xlu0 %v3056, 123
    %v3366 = vpop.permute.xlu0 %3365
    %3367 = vrot.lane.b32.xlu0 %v3058, 123
    %v3368 = vpop.permute.xlu0 %3367
    %3369 = vrot.lane.b32.xlu0 %v3060, 123
    %v3370 = vpop.permute.xlu0 %3369
    %3371 = vrot.lane.b32.xlu0 %v3055, 123
    %v3372 = vpop.permute.xlu0 %3371
    %3373 = vrot.lane.b32.xlu0 %v3057, 123
    %v3374 = vpop.permute.xlu0 %3373
    %3375 = vrot.lane.b32.xlu0 %v3059, 123
    %v3376 = vpop.permute.xlu0 %3375
    %3377 = vrot.lane.b32.xlu0 %v3061, 123
    %v3378 = vpop.permute.xlu0 %3377
    %v3379 = vsel %vm858, %v3364, %v3372
    %v3380 = vsel %vm858, %v3366, %v3374
    %v3381 = vsel %vm858, %v3368, %v3376
    %v3382 = vsel %vm858, %v3370, %v3378
    %v3383 = vsel %vm858, %v3372, %v3364
    %v3384 = vsel %vm858, %v3374, %v3366
    %v3385 = vsel %vm858, %v3376, %v3368
    %v3386 = vsel %vm858, %v3378, %v3370
    %v3387 = vsel %vm880, %v3379, 0.0
    %v3388 = vsel %vm881, %v3383, 0.0
    %v3389 = vsel %vm880, %v3380, 0.0
    %v3390 = vsel %vm881, %v3384, 0.0
    %v3391 = vsel %vm880, %v3381, 0.0
    %v3392 = vsel %vm881, %v3385, 0.0
    %v3393 = vsel %vm880, %v3382, 0.0
    %v3394 = vsel %vm881, %v3386, 0.0
    %3396 = vset.pattern.permute.xlu0 0
    %3397 = vperm.xlu0 %3396, %v2979
    %v3398 = vpop.permute.xlu0 %3397
    %3401 = vset.pattern.permute.xlu0 0
    %3402 = vperm.xlu0 %3401, %v2980
    %v3403 = vpop.permute.xlu0 %3402
    %3406 = vset.pattern.permute.xlu0 0
    %3407 = vperm.xlu0 %3406, %v2981
    %v3408 = vpop.permute.xlu0 %3407
    %3411 = vset.pattern.permute.xlu0 0
    %3412 = vperm.xlu0 %3411, %v2982
    %v3413 = vpop.permute.xlu0 %3412
    %v3416 = vsel %vm910, %v3065, 0
    %v3419 = vsel %vm910, %v3068, 0
    %v3422 = vsel %vm910, %v3071, 0
    %v3425 = vsel %vm910, %v3074, 0
    %3427 = vmatprep.subr.mxu0 %v3202
    %3428 = vmatpush1.msra.mxu0 %v3201
    %3429 = vmatprep.subr.mxu0 %v3200
    %3430 = vmatpush1.msra.mxu0 %v3199
    %3431 = vmatprep.subr.mxu0 %v3198
    %3432 = vmatpush1.msra.mxu0 %v3197
    %3433 = vmatprep.subr.mxu0 %v3196
    %3434 = vmatpush1.msra.mxu0 %v3195
    %3435 = vmatprep.subr.mxu0 %v3170
    %3436 = vmatpush1.msra.mxu0 %v3169
    %3437 = vmatprep.subr.mxu0 %v3168
    %3438 = vmatpush1.msra.mxu0 %v3167
    %3439 = vmatprep.subr.mxu0 %v3166
    %3440 = vmatpush1.msra.mxu0 %v3165
    %3441 = vmatprep.subr.mxu0 %v3164
    %3442 = vmatpush1.msra.mxu0 %v3163
    %3443 = vmatprep.subr.mxu0 %v3138
    %3444 = vmatpush1.msra.mxu0 %v3137
    %3445 = vmatprep.subr.mxu0 %v3136
    %3446 = vmatpush1.msra.mxu0 %v3135
    %3447 = vmatprep.subr.mxu0 %v3134
    %3448 = vmatpush1.msra.mxu0 %v3133
    %3449 = vmatprep.subr.mxu0 %v3132
    %3450 = vmatpush1.msra.mxu0 %v3131
    %3451 = vmatprep.subr.mxu0 %v3106
    %3452 = vmatpush1.msra.mxu0 %v3105
    %3453 = vmatprep.subr.mxu0 %v3104
    %3454 = vmatpush1.msra.mxu0 %v3103
    %3455 = vmatprep.subr.mxu0 %v3102
    %3456 = vmatpush1.msra.mxu0 %v3101
    %3457 = vmatprep.subr.mxu0 %v3100
    %3458 = vmatpush1.msra.mxu0 %v3099
    %3459 = vmatprep.subr.mxu0 %v3298
    %3460 = vmatpush2.msra.mxu0 %v3297
    %3461 = vmatprep.subr.mxu0 %v3296
    %3462 = vmatpush2.msra.mxu0 %v3295
    %3463 = vmatprep.subr.mxu0 %v3294
    %3464 = vmatpush2.msra.mxu0 %v3293
    %3465 = vmatprep.subr.mxu0 %v3292
    %3466 = vmatpush2.msra.mxu0 %v3291
    %3467 = vmatprep.subr.mxu0 %v3266
    %3468 = vmatpush2.msra.mxu0 %v3265
    %3469 = vmatprep.subr.mxu0 %v3264
    %3470 = vmatpush2.msra.mxu0 %v3263
    %3471 = vmatprep.subr.mxu0 %v3262
    %3472 = vmatpush2.msra.mxu0 %v3261
    %3473 = vmatprep.subr.mxu0 %v3260
    %3474 = vmatpush2.msra.mxu0 %v3259
    %3475 = vmatprep.subr.mxu0 %v3061
    %3476 = vmatpush2.msra.mxu0 %v3060
    %3477 = vmatprep.subr.mxu0 %v3059
    %3478 = vmatpush2.msra.mxu0 %v3058
    %3479 = vmatprep.subr.mxu0 %v3057
    %3480 = vmatpush2.msra.mxu0 %v3056
    %3481 = vmatprep.subr.mxu0 %v3055
    %3482 = vmatpush2.msra.mxu0 %v3054
    %3483 = vmatprep.subr.mxu0 %v3234
    %3484 = vmatpush2.msra.mxu0 %v3233
    %3485 = vmatprep.subr.mxu0 %v3232
    %3486 = vmatpush2.msra.mxu0 %v3231
    %3487 = vmatprep.subr.mxu0 %v3230
    %3488 = vmatpush2.msra.mxu0 %v3229
    %3489 = vmatprep.subr.mxu0 %v3228
    %3490 = vmatpush2.msra.mxu0 %v3227
    %3491 = vmatprep.mubr.f32.mxu0 %v3064
    %3492 = vmatmul.mubr.f32.gmra.mxu0 %v3063
    %v3493 = vpop.f32.mrf.mxu0
    %v3494 = vadd.f32 %v3398, %v3493
    %v3495 = vpop.f32.mrf.mxu0
    %v3496 = vadd.f32 %v3398, %v3495
    %3497 = vmatprep.mubr.f32.mxu0 %v3067
    %3498 = vmatmul.mubr.f32.gmra.mxu0 %v3066
    %v3499 = vpop.f32.mrf.mxu0
    %v3500 = vadd.f32 %v3403, %v3499
    %v3501 = vpop.f32.mrf.mxu0
    %v3502 = vadd.f32 %v3403, %v3501
    %3503 = vmatprep.mubr.f32.mxu0 %v3070
    %3504 = vmatmul.mubr.f32.gmra.mxu0 %v3069
    %v3505 = vpop.f32.mrf.mxu0
    %v3506 = vadd.f32 %v3408, %v3505
    %v3507 = vpop.f32.mrf.mxu0
    %v3508 = vadd.f32 %v3408, %v3507
    %3509 = vmatprep.mubr.f32.mxu0 %v3073
    %3510 = vmatmul.mubr.f32.gmra.mxu0 %v3072
    %v3511 = vpop.f32.mrf.mxu0
    %v3512 = vadd.f32 %v3413, %v3511
    %v3513 = vpop.f32.mrf.mxu0
    %v3514 = vadd.f32 %v3413, %v3513
    %3515 = vdwg.mxu0
    %3516 = vmatprep.subr.mxu0 0.0
    %3517 = vmatpush1.msra.mxu0 0.0
    %3518 = vmatprep.subr.mxu0 0.0
    %3519 = vmatpush1.msra.mxu0 0.0
    %3520 = vmatprep.subr.mxu0 0.0
    %3521 = vmatpush1.msra.mxu0 0.0
    %3522 = vmatprep.subr.mxu0 0.0
    %3523 = vmatpush1.msra.mxu0 0.0
    %3524 = vmatprep.subr.mxu0 %v3394
    %3525 = vmatpush1.msra.mxu0 %v3393
    %3526 = vmatprep.subr.mxu0 %v3392
    %3527 = vmatpush1.msra.mxu0 %v3391
    %3528 = vmatprep.subr.mxu0 %v3390
    %3529 = vmatpush1.msra.mxu0 %v3389
    %3530 = vmatprep.subr.mxu0 %v3388
    %3531 = vmatpush1.msra.mxu0 %v3387
    %3532 = vmatprep.subr.mxu0 %v3362
    %3533 = vmatpush1.msra.mxu0 %v3361
    %3534 = vmatprep.subr.mxu0 %v3360
    %3535 = vmatpush1.msra.mxu0 %v3359
    %3536 = vmatprep.subr.mxu0 %v3358
    %3537 = vmatpush1.msra.mxu0 %v3357
    %3538 = vmatprep.subr.mxu0 %v3356
    %3539 = vmatpush1.msra.mxu0 %v3355
    %3540 = vmatprep.subr.mxu0 %v3330
    %3541 = vmatpush1.msra.mxu0 %v3329
    %3542 = vmatprep.subr.mxu0 %v3328
    %3543 = vmatpush1.msra.mxu0 %v3327
    %3544 = vmatprep.subr.mxu0 %v3326
    %3545 = vmatpush1.msra.mxu0 %v3325
    %3546 = vmatprep.subr.mxu0 %v3324
    %3547 = vmatpush1.msra.mxu0 %v3323
    %3548 = vmatprep.subr.mxu0 0.0
    %3549 = vmatpush2.msra.mxu0 0.0
    %3550 = vmatprep.subr.mxu0 0.0
    %3551 = vmatpush2.msra.mxu0 0.0
    %3552 = vmatprep.subr.mxu0 0.0
    %3553 = vmatpush2.msra.mxu0 0.0
    %3554 = vmatprep.subr.mxu0 0.0
    %3555 = vmatpush2.msra.mxu0 0.0
    %3556 = vmatprep.subr.mxu0 0.0
    %3557 = vmatpush2.msra.mxu0 0.0
    %3558 = vmatprep.subr.mxu0 0.0
    %3559 = vmatpush2.msra.mxu0 0.0
    %3560 = vmatprep.subr.mxu0 0.0
    %3561 = vmatpush2.msra.mxu0 0.0
    %3562 = vmatprep.subr.mxu0 0.0
    %3563 = vmatpush2.msra.mxu0 0.0
    %3564 = vmatprep.subr.mxu0 0.0
    %3565 = vmatpush2.msra.mxu0 0.0
    %3566 = vmatprep.subr.mxu0 0.0
    %3567 = vmatpush2.msra.mxu0 0.0
    %3568 = vmatprep.subr.mxu0 0.0
    %3569 = vmatpush2.msra.mxu0 0.0
    %3570 = vmatprep.subr.mxu0 0.0
    %3571 = vmatpush2.msra.mxu0 0.0
    %3572 = vmatprep.subr.mxu0 0.0
    %3573 = vmatpush2.msra.mxu0 0.0
    %3574 = vmatprep.subr.mxu0 0.0
    %3575 = vmatpush2.msra.mxu0 0.0
    %3576 = vmatprep.subr.mxu0 0.0
    %3577 = vmatpush2.msra.mxu0 0.0
    %3578 = vmatprep.subr.mxu0 0.0
    %3579 = vmatpush2.msra.mxu0 0.0
    %3580 = vmatprep.mubr.f32.mxu0 0.0
    %3581 = vmatmul.mubr.f32.gmra.mxu0 %v3416
    %v3582 = vpop.f32.mrf.mxu0
    %v3583 = vadd.f32 %v3494, %v3582
    %v3584 = vpop.f32.mrf.mxu0
    %v3585 = vadd.f32 %v3496, %v3584
    %3586 = vmatprep.mubr.f32.mxu0 0.0
    %3587 = vmatmul.mubr.f32.gmra.mxu0 %v3419
    %v3588 = vpop.f32.mrf.mxu0
    %v3589 = vadd.f32 %v3500, %v3588
    %v3590 = vpop.f32.mrf.mxu0
    %v3591 = vadd.f32 %v3502, %v3590
    %3592 = vmatprep.mubr.f32.mxu0 0.0
    %3593 = vmatmul.mubr.f32.gmra.mxu0 %v3422
    %v3594 = vpop.f32.mrf.mxu0
    %v3595 = vadd.f32 %v3506, %v3594
    %v3596 = vpop.f32.mrf.mxu0
    %v3597 = vadd.f32 %v3508, %v3596
    %3598 = vmatprep.mubr.f32.mxu0 0.0
    %3599 = vmatmul.mubr.f32.gmra.mxu0 %v3425
    %v3600 = vpop.f32.mrf.mxu0
    %v3601 = vadd.f32 %v3512, %v3600
    %v3602 = vpop.f32.mrf.mxu0
    %v3603 = vadd.f32 %v3514, %v3602
    %3604 = vdwg.mxu0
    %3606 = vset.pattern.permute.xlu0 0
    %3607 = vperm.xlu0 %3606, %v2984
    %v3608 = vpop.permute.xlu0 %3607
    %3611 = vset.pattern.permute.xlu0 0
    %3612 = vperm.xlu0 %3611, %v2985
    %v3613 = vpop.permute.xlu0 %3612
    %3616 = vset.pattern.permute.xlu0 0
    %3617 = vperm.xlu0 %3616, %v2986
    %v3618 = vpop.permute.xlu0 %3617
    %3621 = vset.pattern.permute.xlu0 0
    %3622 = vperm.xlu0 %3621, %v2987
    %v3623 = vpop.permute.xlu0 %3622
    %v3625 = vmul.f32 %v3583, %v3608
    %v3626 = vmul.f32 %v3585, %v3608
    %v3627 = vmul.f32 %v3589, %v3613
    %v3628 = vmul.f32 %v3591, %v3613
    %v3629 = vmul.f32 %v3595, %v3618
    %v3630 = vmul.f32 %v3597, %v3618
    %v3631 = vmul.f32 %v3601, %v3623
    %v3632 = vmul.f32 %v3603, %v3623
    %3634 = vset.pattern.permute.xlu0 0
    %3635 = vperm.xlu0 %3634, %v2989
    %v3636 = vpop.permute.xlu0 %3635
    %3639 = vset.pattern.permute.xlu0 0
    %3640 = vperm.xlu0 %3639, %v2990
    %v3641 = vpop.permute.xlu0 %3640
    %3644 = vset.pattern.permute.xlu0 0
    %3645 = vperm.xlu0 %3644, %v2991
    %v3646 = vpop.permute.xlu0 %3645
    %3649 = vset.pattern.permute.xlu0 0
    %3650 = vperm.xlu0 %3649, %v2992
    %v3651 = vpop.permute.xlu0 %3650
    %v3653 = vadd.f32 %v3625, %v3636
    %v3654 = vadd.f32 %v3626, %v3636
    %v3655 = vadd.f32 %v3627, %v3641
    %v3656 = vadd.f32 %v3628, %v3641
    %v3657 = vadd.f32 %v3629, %v3646
    %v3658 = vadd.f32 %v3630, %v3646
    %v3659 = vadd.f32 %v3631, %v3651
    %v3660 = vadd.f32 %v3632, %v3651
    %v3661 = vmax.f32 %v3653, 0.0
    %v3662 = vmax.f32 %v3654, 0.0
    %v3663 = vmax.f32 %v3655, 0.0
    %v3664 = vmax.f32 %v3656, 0.0
    %v3665 = vmax.f32 %v3657, 0.0
    %v3666 = vmax.f32 %v3658, 0.0
    %v3667 = vmax.f32 %v3659, 0.0
    %v3668 = vmax.f32 %v3660, 0.0
    %s3669 = scalar_lea.vmem %s4, 480
    %v3670 = vld [vmem:[%s3669] sm:$0xff]
    %v3671 = vld [vmem:[%s3669 + $0x8] sm:$0xff]
    %v3672 = vld [vmem:[%s3669 + $0x10] sm:$0xff]
    %v3673 = vld [vmem:[%s3669 + $0x18] sm:$0xff]
    %v3674 = vld [vmem:[%s3669 + $0x20] sm:$0xff]
    %v3675 = vld [vmem:[%s3669 + $0x28] sm:$0xff]
    %v3676 = vld [vmem:[%s3669 + $0x30] sm:$0xff]
    %v3677 = vld [vmem:[%s3669 + $0x38] sm:$0xff]
    %v3678 = vld [vmem:[%s3669 + $0x40] sm:$0xff]
    %v3679 = vld [vmem:[%s3669 + $0x48] sm:$0xff]
    %v3680 = vld [vmem:[%s3669 + $0x50] sm:$0xff]
    %v3681 = vld [vmem:[%s3669 + $0x58] sm:$0xff]
    %3682 = vrot.lane.b32.xlu0 %v3661, 5
    %v3683 = vpop.permute.xlu0 %3682
    %3684 = vrot.lane.b32.xlu0 %v3663, 5
    %v3685 = vpop.permute.xlu0 %3684
    %3686 = vrot.lane.b32.xlu0 %v3665, 5
    %v3687 = vpop.permute.xlu0 %3686
    %3688 = vrot.lane.b32.xlu0 %v3667, 5
    %v3689 = vpop.permute.xlu0 %3688
    %3690 = vrot.lane.b32.xlu0 %v3662, 5
    %v3691 = vpop.permute.xlu0 %3690
    %3692 = vrot.lane.b32.xlu0 %v3664, 5
    %v3693 = vpop.permute.xlu0 %3692
    %3694 = vrot.lane.b32.xlu0 %v3666, 5
    %v3695 = vpop.permute.xlu0 %3694
    %3696 = vrot.lane.b32.xlu0 %v3668, 5
    %v3697 = vpop.permute.xlu0 %3696
    %v3698 = vsel %vm426, %v3683, %v3691
    %v3699 = vsel %vm426, %v3685, %v3693
    %v3700 = vsel %vm426, %v3687, %v3695
    %v3701 = vsel %vm426, %v3689, %v3697
    %v3702 = vsel %vm426, %v3691, %v3683
    %v3703 = vsel %vm426, %v3693, %v3685
    %v3704 = vsel %vm426, %v3695, %v3687
    %v3705 = vsel %vm426, %v3697, %v3689
    %v3706 = vsel %vm448, %v3702, 0.0
    %v3707 = vsel %vm449, %v3698, 0.0
    %v3708 = vsel %vm448, %v3703, 0.0
    %v3709 = vsel %vm449, %v3699, 0.0
    %v3710 = vsel %vm448, %v3704, 0.0
    %v3711 = vsel %vm449, %v3700, 0.0
    %v3712 = vsel %vm448, %v3705, 0.0
    %v3713 = vsel %vm449, %v3701, 0.0
    %3714 = vrot.lane.b32.xlu0 %v3661, 4
    %v3715 = vpop.permute.xlu0 %3714
    %3716 = vrot.lane.b32.xlu0 %v3663, 4
    %v3717 = vpop.permute.xlu0 %3716
    %3718 = vrot.lane.b32.xlu0 %v3665, 4
    %v3719 = vpop.permute.xlu0 %3718
    %3720 = vrot.lane.b32.xlu0 %v3667, 4
    %v3721 = vpop.permute.xlu0 %3720
    %3722 = vrot.lane.b32.xlu0 %v3662, 4
    %v3723 = vpop.permute.xlu0 %3722
    %3724 = vrot.lane.b32.xlu0 %v3664, 4
    %v3725 = vpop.permute.xlu0 %3724
    %3726 = vrot.lane.b32.xlu0 %v3666, 4
    %v3727 = vpop.permute.xlu0 %3726
    %3728 = vrot.lane.b32.xlu0 %v3668, 4
    %v3729 = vpop.permute.xlu0 %3728
    %v3730 = vsel %vm474, %v3715, %v3723
    %v3731 = vsel %vm474, %v3717, %v3725
    %v3732 = vsel %vm474, %v3719, %v3727
    %v3733 = vsel %vm474, %v3721, %v3729
    %v3734 = vsel %vm474, %v3723, %v3715
    %v3735 = vsel %vm474, %v3725, %v3717
    %v3736 = vsel %vm474, %v3727, %v3719
    %v3737 = vsel %vm474, %v3729, %v3721
    %v3738 = vsel %vm496, %v3734, 0.0
    %v3739 = vsel %vm497, %v3730, 0.0
    %v3740 = vsel %vm496, %v3735, 0.0
    %v3741 = vsel %vm497, %v3731, 0.0
    %v3742 = vsel %vm496, %v3736, 0.0
    %v3743 = vsel %vm497, %v3732, 0.0
    %v3744 = vsel %vm496, %v3737, 0.0
    %v3745 = vsel %vm497, %v3733, 0.0
    %3746 = vrot.lane.b32.xlu0 %v3661, 3
    %v3747 = vpop.permute.xlu0 %3746
    %3748 = vrot.lane.b32.xlu0 %v3663, 3
    %v3749 = vpop.permute.xlu0 %3748
    %3750 = vrot.lane.b32.xlu0 %v3665, 3
    %v3751 = vpop.permute.xlu0 %3750
    %3752 = vrot.lane.b32.xlu0 %v3667, 3
    %v3753 = vpop.permute.xlu0 %3752
    %3754 = vrot.lane.b32.xlu0 %v3662, 3
    %v3755 = vpop.permute.xlu0 %3754
    %3756 = vrot.lane.b32.xlu0 %v3664, 3
    %v3757 = vpop.permute.xlu0 %3756
    %3758 = vrot.lane.b32.xlu0 %v3666, 3
    %v3759 = vpop.permute.xlu0 %3758
    %3760 = vrot.lane.b32.xlu0 %v3668, 3
    %v3761 = vpop.permute.xlu0 %3760
    %v3762 = vsel %vm522, %v3747, %v3755
    %v3763 = vsel %vm522, %v3749, %v3757
    %v3764 = vsel %vm522, %v3751, %v3759
    %v3765 = vsel %vm522, %v3753, %v3761
    %v3766 = vsel %vm522, %v3755, %v3747
    %v3767 = vsel %vm522, %v3757, %v3749
    %v3768 = vsel %vm522, %v3759, %v3751
    %v3769 = vsel %vm522, %v3761, %v3753
    %v3770 = vsel %vm544, %v3766, 0.0
    %v3771 = vsel %vm545, %v3762, 0.0
    %v3772 = vsel %vm544, %v3767, 0.0
    %v3773 = vsel %vm545, %v3763, 0.0
    %v3774 = vsel %vm544, %v3768, 0.0
    %v3775 = vsel %vm545, %v3764, 0.0
    %v3776 = vsel %vm544, %v3769, 0.0
    %v3777 = vsel %vm545, %v3765, 0.0
    %3778 = vrot.lane.b32.xlu0 %v3661, 2
    %v3779 = vpop.permute.xlu0 %3778
    %3780 = vrot.lane.b32.xlu0 %v3663, 2
    %v3781 = vpop.permute.xlu0 %3780
    %3782 = vrot.lane.b32.xlu0 %v3665, 2
    %v3783 = vpop.permute.xlu0 %3782
    %3784 = vrot.lane.b32.xlu0 %v3667, 2
    %v3785 = vpop.permute.xlu0 %3784
    %3786 = vrot.lane.b32.xlu0 %v3662, 2
    %v3787 = vpop.permute.xlu0 %3786
    %3788 = vrot.lane.b32.xlu0 %v3664, 2
    %v3789 = vpop.permute.xlu0 %3788
    %3790 = vrot.lane.b32.xlu0 %v3666, 2
    %v3791 = vpop.permute.xlu0 %3790
    %3792 = vrot.lane.b32.xlu0 %v3668, 2
    %v3793 = vpop.permute.xlu0 %3792
    %v3794 = vsel %vm570, %v3779, %v3787
    %v3795 = vsel %vm570, %v3781, %v3789
    %v3796 = vsel %vm570, %v3783, %v3791
    %v3797 = vsel %vm570, %v3785, %v3793
    %v3798 = vsel %vm570, %v3787, %v3779
    %v3799 = vsel %vm570, %v3789, %v3781
    %v3800 = vsel %vm570, %v3791, %v3783
    %v3801 = vsel %vm570, %v3793, %v3785
    %v3802 = vsel %vm592, %v3798, 0.0
    %v3803 = vsel %vm593, %v3794, 0.0
    %v3804 = vsel %vm592, %v3799, 0.0
    %v3805 = vsel %vm593, %v3795, 0.0
    %v3806 = vsel %vm592, %v3800, 0.0
    %v3807 = vsel %vm593, %v3796, 0.0
    %v3808 = vsel %vm592, %v3801, 0.0
    %v3809 = vsel %vm593, %v3797, 0.0
    %3810 = vrot.lane.b32.xlu0 %v3661, 1
    %v3811 = vpop.permute.xlu0 %3810
    %3812 = vrot.lane.b32.xlu0 %v3663, 1
    %v3813 = vpop.permute.xlu0 %3812
    %3814 = vrot.lane.b32.xlu0 %v3665, 1
    %v3815 = vpop.permute.xlu0 %3814
    %3816 = vrot.lane.b32.xlu0 %v3667, 1
    %v3817 = vpop.permute.xlu0 %3816
    %3818 = vrot.lane.b32.xlu0 %v3662, 1
    %v3819 = vpop.permute.xlu0 %3818
    %3820 = vrot.lane.b32.xlu0 %v3664, 1
    %v3821 = vpop.permute.xlu0 %3820
    %3822 = vrot.lane.b32.xlu0 %v3666, 1
    %v3823 = vpop.permute.xlu0 %3822
    %3824 = vrot.lane.b32.xlu0 %v3668, 1
    %v3825 = vpop.permute.xlu0 %3824
    %v3826 = vsel %vm618, %v3811, %v3819
    %v3827 = vsel %vm618, %v3813, %v3821
    %v3828 = vsel %vm618, %v3815, %v3823
    %v3829 = vsel %vm618, %v3817, %v3825
    %v3830 = vsel %vm618, %v3819, %v3811
    %v3831 = vsel %vm618, %v3821, %v3813
    %v3832 = vsel %vm618, %v3823, %v3815
    %v3833 = vsel %vm618, %v3825, %v3817
    %v3834 = vsel %vm640, %v3830, 0.0
    %v3835 = vsel %vm641, %v3826, 0.0
    %v3836 = vsel %vm640, %v3831, 0.0
    %v3837 = vsel %vm641, %v3827, 0.0
    %v3838 = vsel %vm640, %v3832, 0.0
    %v3839 = vsel %vm641, %v3828, 0.0
    %v3840 = vsel %vm640, %v3833, 0.0
    %v3841 = vsel %vm641, %v3829, 0.0
    %3842 = vrot.lane.b32.xlu0 %v3661, 127
    %v3843 = vpop.permute.xlu0 %3842
    %3844 = vrot.lane.b32.xlu0 %v3663, 127
    %v3845 = vpop.permute.xlu0 %3844
    %3846 = vrot.lane.b32.xlu0 %v3665, 127
    %v3847 = vpop.permute.xlu0 %3846
    %3848 = vrot.lane.b32.xlu0 %v3667, 127
    %v3849 = vpop.permute.xlu0 %3848
    %3850 = vrot.lane.b32.xlu0 %v3662, 127
    %v3851 = vpop.permute.xlu0 %3850
    %3852 = vrot.lane.b32.xlu0 %v3664, 127
    %v3853 = vpop.permute.xlu0 %3852
    %3854 = vrot.lane.b32.xlu0 %v3666, 127
    %v3855 = vpop.permute.xlu0 %3854
    %3856 = vrot.lane.b32.xlu0 %v3668, 127
    %v3857 = vpop.permute.xlu0 %3856
    %v3858 = vsel %vm666, %v3843, %v3851
    %v3859 = vsel %vm666, %v3845, %v3853
    %v3860 = vsel %vm666, %v3847, %v3855
    %v3861 = vsel %vm666, %v3849, %v3857
    %v3862 = vsel %vm666, %v3851, %v3843
    %v3863 = vsel %vm666, %v3853, %v3845
    %v3864 = vsel %vm666, %v3855, %v3847
    %v3865 = vsel %vm666, %v3857, %v3849
    %v3866 = vsel %vm688, %v3858, 0.0
    %v3867 = vsel %vm689, %v3862, 0.0
    %v3868 = vsel %vm688, %v3859, 0.0
    %v3869 = vsel %vm689, %v3863, 0.0
    %v3870 = vsel %vm688, %v3860, 0.0
    %v3871 = vsel %vm689, %v3864, 0.0
    %v3872 = vsel %vm688, %v3861, 0.0
    %v3873 = vsel %vm689, %v3865, 0.0
    %3874 = vrot.lane.b32.xlu0 %v3661, 126
    %v3875 = vpop.permute.xlu0 %3874
    %3876 = vrot.lane.b32.xlu0 %v3663, 126
    %v3877 = vpop.permute.xlu0 %3876
    %3878 = vrot.lane.b32.xlu0 %v3665, 126
    %v3879 = vpop.permute.xlu0 %3878
    %3880 = vrot.lane.b32.xlu0 %v3667, 126
    %v3881 = vpop.permute.xlu0 %3880
    %3882 = vrot.lane.b32.xlu0 %v3662, 126
    %v3883 = vpop.permute.xlu0 %3882
    %3884 = vrot.lane.b32.xlu0 %v3664, 126
    %v3885 = vpop.permute.xlu0 %3884
    %3886 = vrot.lane.b32.xlu0 %v3666, 126
    %v3887 = vpop.permute.xlu0 %3886
    %3888 = vrot.lane.b32.xlu0 %v3668, 126
    %v3889 = vpop.permute.xlu0 %3888
    %v3890 = vsel %vm714, %v3875, %v3883
    %v3891 = vsel %vm714, %v3877, %v3885
    %v3892 = vsel %vm714, %v3879, %v3887
    %v3893 = vsel %vm714, %v3881, %v3889
    %v3894 = vsel %vm714, %v3883, %v3875
    %v3895 = vsel %vm714, %v3885, %v3877
    %v3896 = vsel %vm714, %v3887, %v3879
    %v3897 = vsel %vm714, %v3889, %v3881
    %v3898 = vsel %vm736, %v3890, 0.0
    %v3899 = vsel %vm737, %v3894, 0.0
    %v3900 = vsel %vm736, %v3891, 0.0
    %v3901 = vsel %vm737, %v3895, 0.0
    %v3902 = vsel %vm736, %v3892, 0.0
    %v3903 = vsel %vm737, %v3896, 0.0
    %v3904 = vsel %vm736, %v3893, 0.0
    %v3905 = vsel %vm737, %v3897, 0.0
    %3906 = vrot.lane.b32.xlu0 %v3661, 125
    %v3907 = vpop.permute.xlu0 %3906
    %3908 = vrot.lane.b32.xlu0 %v3663, 125
    %v3909 = vpop.permute.xlu0 %3908
    %3910 = vrot.lane.b32.xlu0 %v3665, 125
    %v3911 = vpop.permute.xlu0 %3910
    %3912 = vrot.lane.b32.xlu0 %v3667, 125
    %v3913 = vpop.permute.xlu0 %3912
    %3914 = vrot.lane.b32.xlu0 %v3662, 125
    %v3915 = vpop.permute.xlu0 %3914
    %3916 = vrot.lane.b32.xlu0 %v3664, 125
    %v3917 = vpop.permute.xlu0 %3916
    %3918 = vrot.lane.b32.xlu0 %v3666, 125
    %v3919 = vpop.permute.xlu0 %3918
    %3920 = vrot.lane.b32.xlu0 %v3668, 125
    %v3921 = vpop.permute.xlu0 %3920
    %v3922 = vsel %vm762, %v3907, %v3915
    %v3923 = vsel %vm762, %v3909, %v3917
    %v3924 = vsel %vm762, %v3911, %v3919
    %v3925 = vsel %vm762, %v3913, %v3921
    %v3926 = vsel %vm762, %v3915, %v3907
    %v3927 = vsel %vm762, %v3917, %v3909
    %v3928 = vsel %vm762, %v3919, %v3911
    %v3929 = vsel %vm762, %v3921, %v3913
    %v3930 = vsel %vm784, %v3922, 0.0
    %v3931 = vsel %vm785, %v3926, 0.0
    %v3932 = vsel %vm784, %v3923, 0.0
    %v3933 = vsel %vm785, %v3927, 0.0
    %v3934 = vsel %vm784, %v3924, 0.0
    %v3935 = vsel %vm785, %v3928, 0.0
    %v3936 = vsel %vm784, %v3925, 0.0
    %v3937 = vsel %vm785, %v3929, 0.0
    %3938 = vrot.lane.b32.xlu0 %v3661, 124
    %v3939 = vpop.permute.xlu0 %3938
    %3940 = vrot.lane.b32.xlu0 %v3663, 124
    %v3941 = vpop.permute.xlu0 %3940
    %3942 = vrot.lane.b32.xlu0 %v3665, 124
    %v3943 = vpop.permute.xlu0 %3942
    %3944 = vrot.lane.b32.xlu0 %v3667, 124
    %v3945 = vpop.permute.xlu0 %3944
    %3946 = vrot.lane.b32.xlu0 %v3662, 124
    %v3947 = vpop.permute.xlu0 %3946
    %3948 = vrot.lane.b32.xlu0 %v3664, 124
    %v3949 = vpop.permute.xlu0 %3948
    %3950 = vrot.lane.b32.xlu0 %v3666, 124
    %v3951 = vpop.permute.xlu0 %3950
    %3952 = vrot.lane.b32.xlu0 %v3668, 124
    %v3953 = vpop.permute.xlu0 %3952
    %v3954 = vsel %vm810, %v3939, %v3947
    %v3955 = vsel %vm810, %v3941, %v3949
    %v3956 = vsel %vm810, %v3943, %v3951
    %v3957 = vsel %vm810, %v3945, %v3953
    %v3958 = vsel %vm810, %v3947, %v3939
    %v3959 = vsel %vm810, %v3949, %v3941
    %v3960 = vsel %vm810, %v3951, %v3943
    %v3961 = vsel %vm810, %v3953, %v3945
    %v3962 = vsel %vm832, %v3954, 0.0
    %v3963 = vsel %vm833, %v3958, 0.0
    %v3964 = vsel %vm832, %v3955, 0.0
    %v3965 = vsel %vm833, %v3959, 0.0
    %v3966 = vsel %vm832, %v3956, 0.0
    %v3967 = vsel %vm833, %v3960, 0.0
    %v3968 = vsel %vm832, %v3957, 0.0
    %v3969 = vsel %vm833, %v3961, 0.0
    %3970 = vrot.lane.b32.xlu0 %v3661, 123
    %v3971 = vpop.permute.xlu0 %3970
    %3972 = vrot.lane.b32.xlu0 %v3663, 123
    %v3973 = vpop.permute.xlu0 %3972
    %3974 = vrot.lane.b32.xlu0 %v3665, 123
    %v3975 = vpop.permute.xlu0 %3974
    %3976 = vrot.lane.b32.xlu0 %v3667, 123
    %v3977 = vpop.permute.xlu0 %3976
    %3978 = vrot.lane.b32.xlu0 %v3662, 123
    %v3979 = vpop.permute.xlu0 %3978
    %3980 = vrot.lane.b32.xlu0 %v3664, 123
    %v3981 = vpop.permute.xlu0 %3980
    %3982 = vrot.lane.b32.xlu0 %v3666, 123
    %v3983 = vpop.permute.xlu0 %3982
    %3984 = vrot.lane.b32.xlu0 %v3668, 123
    %v3985 = vpop.permute.xlu0 %3984
    %v3986 = vsel %vm858, %v3971, %v3979
    %v3987 = vsel %vm858, %v3973, %v3981
    %v3988 = vsel %vm858, %v3975, %v3983
    %v3989 = vsel %vm858, %v3977, %v3985
    %v3990 = vsel %vm858, %v3979, %v3971
    %v3991 = vsel %vm858, %v3981, %v3973
    %v3992 = vsel %vm858, %v3983, %v3975
    %v3993 = vsel %vm858, %v3985, %v3977
    %v3994 = vsel %vm880, %v3986, 0.0
    %v3995 = vsel %vm881, %v3990, 0.0
    %v3996 = vsel %vm880, %v3987, 0.0
    %v3997 = vsel %vm881, %v3991, 0.0
    %v3998 = vsel %vm880, %v3988, 0.0
    %v3999 = vsel %vm881, %v3992, 0.0
    %v4000 = vsel %vm880, %v3989, 0.0
    %v4001 = vsel %vm881, %v3993, 0.0
    %4003 = vset.pattern.permute.xlu0 0
    %4004 = vperm.xlu0 %4003, %v2994
    %v4005 = vpop.permute.xlu0 %4004
    %4008 = vset.pattern.permute.xlu0 0
    %4009 = vperm.xlu0 %4008, %v2995
    %v4010 = vpop.permute.xlu0 %4009
    %4013 = vset.pattern.permute.xlu0 0
    %4014 = vperm.xlu0 %4013, %v2996
    %v4015 = vpop.permute.xlu0 %4014
    %4018 = vset.pattern.permute.xlu0 0
    %4019 = vperm.xlu0 %4018, %v2997
    %v4020 = vpop.permute.xlu0 %4019
    %v4023 = vsel %vm910, %v3672, 0
    %v4026 = vsel %vm910, %v3675, 0
    %v4029 = vsel %vm910, %v3678, 0
    %v4032 = vsel %vm910, %v3681, 0
    %4034 = vmatprep.subr.mxu0 %v3809
    %4035 = vmatpush1.msra.mxu0 %v3808
    %4036 = vmatprep.subr.mxu0 %v3807
    %4037 = vmatpush1.msra.mxu0 %v3806
    %4038 = vmatprep.subr.mxu0 %v3805
    %4039 = vmatpush1.msra.mxu0 %v3804
    %4040 = vmatprep.subr.mxu0 %v3803
    %4041 = vmatpush1.msra.mxu0 %v3802
    %4042 = vmatprep.subr.mxu0 %v3777
    %4043 = vmatpush1.msra.mxu0 %v3776
    %4044 = vmatprep.subr.mxu0 %v3775
    %4045 = vmatpush1.msra.mxu0 %v3774
    %4046 = vmatprep.subr.mxu0 %v3773
    %4047 = vmatpush1.msra.mxu0 %v3772
    %4048 = vmatprep.subr.mxu0 %v3771
    %4049 = vmatpush1.msra.mxu0 %v3770
    %4050 = vmatprep.subr.mxu0 %v3745
    %4051 = vmatpush1.msra.mxu0 %v3744
    %4052 = vmatprep.subr.mxu0 %v3743
    %4053 = vmatpush1.msra.mxu0 %v3742
    %4054 = vmatprep.subr.mxu0 %v3741
    %4055 = vmatpush1.msra.mxu0 %v3740
    %4056 = vmatprep.subr.mxu0 %v3739
    %4057 = vmatpush1.msra.mxu0 %v3738
    %4058 = vmatprep.subr.mxu0 %v3713
    %4059 = vmatpush1.msra.mxu0 %v3712
    %4060 = vmatprep.subr.mxu0 %v3711
    %4061 = vmatpush1.msra.mxu0 %v3710
    %4062 = vmatprep.subr.mxu0 %v3709
    %4063 = vmatpush1.msra.mxu0 %v3708
    %4064 = vmatprep.subr.mxu0 %v3707
    %4065 = vmatpush1.msra.mxu0 %v3706
    %4066 = vmatprep.subr.mxu0 %v3905
    %4067 = vmatpush2.msra.mxu0 %v3904
    %4068 = vmatprep.subr.mxu0 %v3903
    %4069 = vmatpush2.msra.mxu0 %v3902
    %4070 = vmatprep.subr.mxu0 %v3901
    %4071 = vmatpush2.msra.mxu0 %v3900
    %4072 = vmatprep.subr.mxu0 %v3899
    %4073 = vmatpush2.msra.mxu0 %v3898
    %4074 = vmatprep.subr.mxu0 %v3873
    %4075 = vmatpush2.msra.mxu0 %v3872
    %4076 = vmatprep.subr.mxu0 %v3871
    %4077 = vmatpush2.msra.mxu0 %v3870
    %4078 = vmatprep.subr.mxu0 %v3869
    %4079 = vmatpush2.msra.mxu0 %v3868
    %4080 = vmatprep.subr.mxu0 %v3867
    %4081 = vmatpush2.msra.mxu0 %v3866
    %4082 = vmatprep.subr.mxu0 %v3668
    %4083 = vmatpush2.msra.mxu0 %v3667
    %4084 = vmatprep.subr.mxu0 %v3666
    %4085 = vmatpush2.msra.mxu0 %v3665
    %4086 = vmatprep.subr.mxu0 %v3664
    %4087 = vmatpush2.msra.mxu0 %v3663
    %4088 = vmatprep.subr.mxu0 %v3662
    %4089 = vmatpush2.msra.mxu0 %v3661
    %4090 = vmatprep.subr.mxu0 %v3841
    %4091 = vmatpush2.msra.mxu0 %v3840
    %4092 = vmatprep.subr.mxu0 %v3839
    %4093 = vmatpush2.msra.mxu0 %v3838
    %4094 = vmatprep.subr.mxu0 %v3837
    %4095 = vmatpush2.msra.mxu0 %v3836
    %4096 = vmatprep.subr.mxu0 %v3835
    %4097 = vmatpush2.msra.mxu0 %v3834
    %4098 = vmatprep.mubr.f32.mxu0 %v3671
    %4099 = vmatmul.mubr.f32.gmra.mxu0 %v3670
    %v4100 = vpop.f32.mrf.mxu0
    %v4101 = vadd.f32 %v4005, %v4100
    %v4102 = vpop.f32.mrf.mxu0
    %v4103 = vadd.f32 %v4005, %v4102
    %4104 = vmatprep.mubr.f32.mxu0 %v3674
    %4105 = vmatmul.mubr.f32.gmra.mxu0 %v3673
    %v4106 = vpop.f32.mrf.mxu0
    %v4107 = vadd.f32 %v4010, %v4106
    %v4108 = vpop.f32.mrf.mxu0
    %v4109 = vadd.f32 %v4010, %v4108
    %4110 = vmatprep.mubr.f32.mxu0 %v3677
    %4111 = vmatmul.mubr.f32.gmra.mxu0 %v3676
    %v4112 = vpop.f32.mrf.mxu0
    %v4113 = vadd.f32 %v4015, %v4112
    %v4114 = vpop.f32.mrf.mxu0
    %v4115 = vadd.f32 %v4015, %v4114
    %4116 = vmatprep.mubr.f32.mxu0 %v3680
    %4117 = vmatmul.mubr.f32.gmra.mxu0 %v3679
    %v4118 = vpop.f32.mrf.mxu0
    %v4119 = vadd.f32 %v4020, %v4118
    %v4120 = vpop.f32.mrf.mxu0
    %v4121 = vadd.f32 %v4020, %v4120
    %4122 = vdwg.mxu0
    %4123 = vmatprep.subr.mxu0 0.0
    %4124 = vmatpush1.msra.mxu0 0.0
    %4125 = vmatprep.subr.mxu0 0.0
    %4126 = vmatpush1.msra.mxu0 0.0
    %4127 = vmatprep.subr.mxu0 0.0
    %4128 = vmatpush1.msra.mxu0 0.0
    %4129 = vmatprep.subr.mxu0 0.0
    %4130 = vmatpush1.msra.mxu0 0.0
    %4131 = vmatprep.subr.mxu0 %v4001
    %4132 = vmatpush1.msra.mxu0 %v4000
    %4133 = vmatprep.subr.mxu0 %v3999
    %4134 = vmatpush1.msra.mxu0 %v3998
    %4135 = vmatprep.subr.mxu0 %v3997
    %4136 = vmatpush1.msra.mxu0 %v3996
    %4137 = vmatprep.subr.mxu0 %v3995
    %4138 = vmatpush1.msra.mxu0 %v3994
    %4139 = vmatprep.subr.mxu0 %v3969
    %4140 = vmatpush1.msra.mxu0 %v3968
    %4141 = vmatprep.subr.mxu0 %v3967
    %4142 = vmatpush1.msra.mxu0 %v3966
    %4143 = vmatprep.subr.mxu0 %v3965
    %4144 = vmatpush1.msra.mxu0 %v3964
    %4145 = vmatprep.subr.mxu0 %v3963
    %4146 = vmatpush1.msra.mxu0 %v3962
    %4147 = vmatprep.subr.mxu0 %v3937
    %4148 = vmatpush1.msra.mxu0 %v3936
    %4149 = vmatprep.subr.mxu0 %v3935
    %4150 = vmatpush1.msra.mxu0 %v3934
    %4151 = vmatprep.subr.mxu0 %v3933
    %4152 = vmatpush1.msra.mxu0 %v3932
    %4153 = vmatprep.subr.mxu0 %v3931
    %4154 = vmatpush1.msra.mxu0 %v3930
    %4155 = vmatprep.subr.mxu0 0.0
    %4156 = vmatpush2.msra.mxu0 0.0
    %4157 = vmatprep.subr.mxu0 0.0
    %4158 = vmatpush2.msra.mxu0 0.0
    %4159 = vmatprep.subr.mxu0 0.0
    %4160 = vmatpush2.msra.mxu0 0.0
    %4161 = vmatprep.subr.mxu0 0.0
    %4162 = vmatpush2.msra.mxu0 0.0
    %4163 = vmatprep.subr.mxu0 0.0
    %4164 = vmatpush2.msra.mxu0 0.0
    %4165 = vmatprep.subr.mxu0 0.0
    %4166 = vmatpush2.msra.mxu0 0.0
    %4167 = vmatprep.subr.mxu0 0.0
    %4168 = vmatpush2.msra.mxu0 0.0
    %4169 = vmatprep.subr.mxu0 0.0
    %4170 = vmatpush2.msra.mxu0 0.0
    %4171 = vmatprep.subr.mxu0 0.0
    %4172 = vmatpush2.msra.mxu0 0.0
    %4173 = vmatprep.subr.mxu0 0.0
    %4174 = vmatpush2.msra.mxu0 0.0
    %4175 = vmatprep.subr.mxu0 0.0
    %4176 = vmatpush2.msra.mxu0 0.0
    %4177 = vmatprep.subr.mxu0 0.0
    %4178 = vmatpush2.msra.mxu0 0.0
    %4179 = vmatprep.subr.mxu0 0.0
    %4180 = vmatpush2.msra.mxu0 0.0
    %4181 = vmatprep.subr.mxu0 0.0
    %4182 = vmatpush2.msra.mxu0 0.0
    %4183 = vmatprep.subr.mxu0 0.0
    %4184 = vmatpush2.msra.mxu0 0.0
    %4185 = vmatprep.subr.mxu0 0.0
    %4186 = vmatpush2.msra.mxu0 0.0
    %4187 = vmatprep.mubr.f32.mxu0 0.0
    %4188 = vmatmul.mubr.f32.gmra.mxu0 %v4023
    %v4189 = vpop.f32.mrf.mxu0
    %v4190 = vadd.f32 %v4101, %v4189
    %v4191 = vpop.f32.mrf.mxu0
    %v4192 = vadd.f32 %v4103, %v4191
    %4193 = vmatprep.mubr.f32.mxu0 0.0
    %4194 = vmatmul.mubr.f32.gmra.mxu0 %v4026
    %v4195 = vpop.f32.mrf.mxu0
    %v4196 = vadd.f32 %v4107, %v4195
    %v4197 = vpop.f32.mrf.mxu0
    %v4198 = vadd.f32 %v4109, %v4197
    %4199 = vmatprep.mubr.f32.mxu0 0.0
    %4200 = vmatmul.mubr.f32.gmra.mxu0 %v4029
    %v4201 = vpop.f32.mrf.mxu0
    %v4202 = vadd.f32 %v4113, %v4201
    %v4203 = vpop.f32.mrf.mxu0
    %v4204 = vadd.f32 %v4115, %v4203
    %4205 = vmatprep.mubr.f32.mxu0 0.0
    %4206 = vmatmul.mubr.f32.gmra.mxu0 %v4032
    %v4207 = vpop.f32.mrf.mxu0
    %v4208 = vadd.f32 %v4119, %v4207
    %v4209 = vpop.f32.mrf.mxu0
    %v4210 = vadd.f32 %v4121, %v4209
    %4211 = vdwg.mxu0
    %v4212 = vadd.f32 %v2960, %v4190
    %v4213 = vadd.f32 %v2961, %v4192
    %v4214 = vadd.f32 %v2962, %v4196
    %v4215 = vadd.f32 %v2963, %v4198
    %v4216 = vadd.f32 %v2964, %v4202
    %v4217 = vadd.f32 %v2965, %v4204
    %v4218 = vadd.f32 %v2966, %v4208
    %v4219 = vadd.f32 %v2967, %v4210
    %s4220 = scalar_lea.vmem %s5, 576
    %v4221 = vld [vmem:[%s4220] sm:$0xff]
    %v4222 = vld [vmem:[%s4220 + $0x8] sm:$0xff]
    %v4223 = vld [vmem:[%s4220 + $0x10] sm:$0xff]
    %v4224 = vld [vmem:[%s4220 + $0x18] sm:$0xff]
    %s4225 = scalar_lea.vmem %s5, 608
    %v4226 = vld [vmem:[%s4225] sm:$0xff]
    %v4227 = vld [vmem:[%s4225 + $0x8] sm:$0xff]
    %v4228 = vld [vmem:[%s4225 + $0x10] sm:$0xff]
    %v4229 = vld [vmem:[%s4225 + $0x18] sm:$0xff]
    %s4230 = scalar_lea.vmem %s5, 640
    %v4231 = vld [vmem:[%s4230] sm:$0xff]
    %v4232 = vld [vmem:[%s4230 + $0x8] sm:$0xff]
    %v4233 = vld [vmem:[%s4230 + $0x10] sm:$0xff]
    %v4234 = vld [vmem:[%s4230 + $0x18] sm:$0xff]
    %s4235 = scalar_lea.vmem %s5, 672
    %v4236 = vld [vmem:[%s4235] sm:$0xff]
    %v4237 = vld [vmem:[%s4235 + $0x8] sm:$0xff]
    %v4238 = vld [vmem:[%s4235 + $0x10] sm:$0xff]
    %v4239 = vld [vmem:[%s4235 + $0x18] sm:$0xff]
    %s4240 = scalar_lea.vmem %s5, 704
    %v4241 = vld [vmem:[%s4240] sm:$0xff]
    %v4242 = vld [vmem:[%s4240 + $0x8] sm:$0xff]
    %v4243 = vld [vmem:[%s4240 + $0x10] sm:$0xff]
    %v4244 = vld [vmem:[%s4240 + $0x18] sm:$0xff]
    %s4245 = scalar_lea.vmem %s5, 736
    %v4246 = vld [vmem:[%s4245] sm:$0xff]
    %v4247 = vld [vmem:[%s4245 + $0x8] sm:$0xff]
    %v4248 = vld [vmem:[%s4245 + $0x10] sm:$0xff]
    %v4249 = vld [vmem:[%s4245 + $0x18] sm:$0xff]
    %4251 = vset.pattern.permute.xlu0 0
    %4252 = vperm.xlu0 %4251, %v4221
    %v4253 = vpop.permute.xlu0 %4252
    %4256 = vset.pattern.permute.xlu0 0
    %4257 = vperm.xlu0 %4256, %v4222
    %v4258 = vpop.permute.xlu0 %4257
    %4261 = vset.pattern.permute.xlu0 0
    %4262 = vperm.xlu0 %4261, %v4223
    %v4263 = vpop.permute.xlu0 %4262
    %4266 = vset.pattern.permute.xlu0 0
    %4267 = vperm.xlu0 %4266, %v4224
    %v4268 = vpop.permute.xlu0 %4267
    %v4270 = vmul.f32 %v4212, %v4253
    %v4271 = vmul.f32 %v4213, %v4253
    %v4272 = vmul.f32 %v4214, %v4258
    %v4273 = vmul.f32 %v4215, %v4258
    %v4274 = vmul.f32 %v4216, %v4263
    %v4275 = vmul.f32 %v4217, %v4263
    %v4276 = vmul.f32 %v4218, %v4268
    %v4277 = vmul.f32 %v4219, %v4268
    %4279 = vset.pattern.permute.xlu0 0
    %4280 = vperm.xlu0 %4279, %v4226
    %v4281 = vpop.permute.xlu0 %4280
    %4284 = vset.pattern.permute.xlu0 0
    %4285 = vperm.xlu0 %4284, %v4227
    %v4286 = vpop.permute.xlu0 %4285
    %4289 = vset.pattern.permute.xlu0 0
    %4290 = vperm.xlu0 %4289, %v4228
    %v4291 = vpop.permute.xlu0 %4290
    %4294 = vset.pattern.permute.xlu0 0
    %4295 = vperm.xlu0 %4294, %v4229
    %v4296 = vpop.permute.xlu0 %4295
    %v4298 = vadd.f32 %v4270, %v4281
    %v4299 = vadd.f32 %v4271, %v4281
    %v4300 = vadd.f32 %v4272, %v4286
    %v4301 = vadd.f32 %v4273, %v4286
    %v4302 = vadd.f32 %v4274, %v4291
    %v4303 = vadd.f32 %v4275, %v4291
    %v4304 = vadd.f32 %v4276, %v4296
    %v4305 = vadd.f32 %v4277, %v4296
    %v4306 = vmax.f32 %v4298, 0.0
    %v4307 = vmax.f32 %v4299, 0.0
    %v4308 = vmax.f32 %v4300, 0.0
    %v4309 = vmax.f32 %v4301, 0.0
    %v4310 = vmax.f32 %v4302, 0.0
    %v4311 = vmax.f32 %v4303, 0.0
    %v4312 = vmax.f32 %v4304, 0.0
    %v4313 = vmax.f32 %v4305, 0.0
    %s4314 = scalar_lea.vmem %s4, 576
    %v4315 = vld [vmem:[%s4314] sm:$0xff]
    %v4316 = vld [vmem:[%s4314 + $0x8] sm:$0xff]
    %v4317 = vld [vmem:[%s4314 + $0x10] sm:$0xff]
    %v4318 = vld [vmem:[%s4314 + $0x18] sm:$0xff]
    %v4319 = vld [vmem:[%s4314 + $0x20] sm:$0xff]
    %v4320 = vld [vmem:[%s4314 + $0x28] sm:$0xff]
    %v4321 = vld [vmem:[%s4314 + $0x30] sm:$0xff]
    %v4322 = vld [vmem:[%s4314 + $0x38] sm:$0xff]
    %v4323 = vld [vmem:[%s4314 + $0x40] sm:$0xff]
    %v4324 = vld [vmem:[%s4314 + $0x48] sm:$0xff]
    %v4325 = vld [vmem:[%s4314 + $0x50] sm:$0xff]
    %v4326 = vld [vmem:[%s4314 + $0x58] sm:$0xff]
    %4327 = vrot.lane.b32.xlu0 %v4306, 5
    %v4328 = vpop.permute.xlu0 %4327
    %4329 = vrot.lane.b32.xlu0 %v4308, 5
    %v4330 = vpop.permute.xlu0 %4329
    %4331 = vrot.lane.b32.xlu0 %v4310, 5
    %v4332 = vpop.permute.xlu0 %4331
    %4333 = vrot.lane.b32.xlu0 %v4312, 5
    %v4334 = vpop.permute.xlu0 %4333
    %4335 = vrot.lane.b32.xlu0 %v4307, 5
    %v4336 = vpop.permute.xlu0 %4335
    %4337 = vrot.lane.b32.xlu0 %v4309, 5
    %v4338 = vpop.permute.xlu0 %4337
    %4339 = vrot.lane.b32.xlu0 %v4311, 5
    %v4340 = vpop.permute.xlu0 %4339
    %4341 = vrot.lane.b32.xlu0 %v4313, 5
    %v4342 = vpop.permute.xlu0 %4341
    %v4343 = vsel %vm426, %v4328, %v4336
    %v4344 = vsel %vm426, %v4330, %v4338
    %v4345 = vsel %vm426, %v4332, %v4340
    %v4346 = vsel %vm426, %v4334, %v4342
    %v4347 = vsel %vm426, %v4336, %v4328
    %v4348 = vsel %vm426, %v4338, %v4330
    %v4349 = vsel %vm426, %v4340, %v4332
    %v4350 = vsel %vm426, %v4342, %v4334
    %v4351 = vsel %vm448, %v4347, 0.0
    %v4352 = vsel %vm449, %v4343, 0.0
    %v4353 = vsel %vm448, %v4348, 0.0
    %v4354 = vsel %vm449, %v4344, 0.0
    %v4355 = vsel %vm448, %v4349, 0.0
    %v4356 = vsel %vm449, %v4345, 0.0
    %v4357 = vsel %vm448, %v4350, 0.0
    %v4358 = vsel %vm449, %v4346, 0.0
    %4359 = vrot.lane.b32.xlu0 %v4306, 4
    %v4360 = vpop.permute.xlu0 %4359
    %4361 = vrot.lane.b32.xlu0 %v4308, 4
    %v4362 = vpop.permute.xlu0 %4361
    %4363 = vrot.lane.b32.xlu0 %v4310, 4
    %v4364 = vpop.permute.xlu0 %4363
    %4365 = vrot.lane.b32.xlu0 %v4312, 4
    %v4366 = vpop.permute.xlu0 %4365
    %4367 = vrot.lane.b32.xlu0 %v4307, 4
    %v4368 = vpop.permute.xlu0 %4367
    %4369 = vrot.lane.b32.xlu0 %v4309, 4
    %v4370 = vpop.permute.xlu0 %4369
    %4371 = vrot.lane.b32.xlu0 %v4311, 4
    %v4372 = vpop.permute.xlu0 %4371
    %4373 = vrot.lane.b32.xlu0 %v4313, 4
    %v4374 = vpop.permute.xlu0 %4373
    %v4375 = vsel %vm474, %v4360, %v4368
    %v4376 = vsel %vm474, %v4362, %v4370
    %v4377 = vsel %vm474, %v4364, %v4372
    %v4378 = vsel %vm474, %v4366, %v4374
    %v4379 = vsel %vm474, %v4368, %v4360
    %v4380 = vsel %vm474, %v4370, %v4362
    %v4381 = vsel %vm474, %v4372, %v4364
    %v4382 = vsel %vm474, %v4374, %v4366
    %v4383 = vsel %vm496, %v4379, 0.0
    %v4384 = vsel %vm497, %v4375, 0.0
    %v4385 = vsel %vm496, %v4380, 0.0
    %v4386 = vsel %vm497, %v4376, 0.0
    %v4387 = vsel %vm496, %v4381, 0.0
    %v4388 = vsel %vm497, %v4377, 0.0
    %v4389 = vsel %vm496, %v4382, 0.0
    %v4390 = vsel %vm497, %v4378, 0.0
    %4391 = vrot.lane.b32.xlu0 %v4306, 3
    %v4392 = vpop.permute.xlu0 %4391
    %4393 = vrot.lane.b32.xlu0 %v4308, 3
    %v4394 = vpop.permute.xlu0 %4393
    %4395 = vrot.lane.b32.xlu0 %v4310, 3
    %v4396 = vpop.permute.xlu0 %4395
    %4397 = vrot.lane.b32.xlu0 %v4312, 3
    %v4398 = vpop.permute.xlu0 %4397
    %4399 = vrot.lane.b32.xlu0 %v4307, 3
    %v4400 = vpop.permute.xlu0 %4399
    %4401 = vrot.lane.b32.xlu0 %v4309, 3
    %v4402 = vpop.permute.xlu0 %4401
    %4403 = vrot.lane.b32.xlu0 %v4311, 3
    %v4404 = vpop.permute.xlu0 %4403
    %4405 = vrot.lane.b32.xlu0 %v4313, 3
    %v4406 = vpop.permute.xlu0 %4405
    %v4407 = vsel %vm522, %v4392, %v4400
    %v4408 = vsel %vm522, %v4394, %v4402
    %v4409 = vsel %vm522, %v4396, %v4404
    %v4410 = vsel %vm522, %v4398, %v4406
    %v4411 = vsel %vm522, %v4400, %v4392
    %v4412 = vsel %vm522, %v4402, %v4394
    %v4413 = vsel %vm522, %v4404, %v4396
    %v4414 = vsel %vm522, %v4406, %v4398
    %v4415 = vsel %vm544, %v4411, 0.0
    %v4416 = vsel %vm545, %v4407, 0.0
    %v4417 = vsel %vm544, %v4412, 0.0
    %v4418 = vsel %vm545, %v4408, 0.0
    %v4419 = vsel %vm544, %v4413, 0.0
    %v4420 = vsel %vm545, %v4409, 0.0
    %v4421 = vsel %vm544, %v4414, 0.0
    %v4422 = vsel %vm545, %v4410, 0.0
    %4423 = vrot.lane.b32.xlu0 %v4306, 2
    %v4424 = vpop.permute.xlu0 %4423
    %4425 = vrot.lane.b32.xlu0 %v4308, 2
    %v4426 = vpop.permute.xlu0 %4425
    %4427 = vrot.lane.b32.xlu0 %v4310, 2
    %v4428 = vpop.permute.xlu0 %4427
    %4429 = vrot.lane.b32.xlu0 %v4312, 2
    %v4430 = vpop.permute.xlu0 %4429
    %4431 = vrot.lane.b32.xlu0 %v4307, 2
    %v4432 = vpop.permute.xlu0 %4431
    %4433 = vrot.lane.b32.xlu0 %v4309, 2
    %v4434 = vpop.permute.xlu0 %4433
    %4435 = vrot.lane.b32.xlu0 %v4311, 2
    %v4436 = vpop.permute.xlu0 %4435
    %4437 = vrot.lane.b32.xlu0 %v4313, 2
    %v4438 = vpop.permute.xlu0 %4437
    %v4439 = vsel %vm570, %v4424, %v4432
    %v4440 = vsel %vm570, %v4426, %v4434
    %v4441 = vsel %vm570, %v4428, %v4436
    %v4442 = vsel %vm570, %v4430, %v4438
    %v4443 = vsel %vm570, %v4432, %v4424
    %v4444 = vsel %vm570, %v4434, %v4426
    %v4445 = vsel %vm570, %v4436, %v4428
    %v4446 = vsel %vm570, %v4438, %v4430
    %v4447 = vsel %vm592, %v4443, 0.0
    %v4448 = vsel %vm593, %v4439, 0.0
    %v4449 = vsel %vm592, %v4444, 0.0
    %v4450 = vsel %vm593, %v4440, 0.0
    %v4451 = vsel %vm592, %v4445, 0.0
    %v4452 = vsel %vm593, %v4441, 0.0
    %v4453 = vsel %vm592, %v4446, 0.0
    %v4454 = vsel %vm593, %v4442, 0.0
    %4455 = vrot.lane.b32.xlu0 %v4306, 1
    %v4456 = vpop.permute.xlu0 %4455
    %4457 = vrot.lane.b32.xlu0 %v4308, 1
    %v4458 = vpop.permute.xlu0 %4457
    %4459 = vrot.lane.b32.xlu0 %v4310, 1
    %v4460 = vpop.permute.xlu0 %4459
    %4461 = vrot.lane.b32.xlu0 %v4312, 1
    %v4462 = vpop.permute.xlu0 %4461
    %4463 = vrot.lane.b32.xlu0 %v4307, 1
    %v4464 = vpop.permute.xlu0 %4463
    %4465 = vrot.lane.b32.xlu0 %v4309, 1
    %v4466 = vpop.permute.xlu0 %4465
    %4467 = vrot.lane.b32.xlu0 %v4311, 1
    %v4468 = vpop.permute.xlu0 %4467
    %4469 = vrot.lane.b32.xlu0 %v4313, 1
    %v4470 = vpop.permute.xlu0 %4469
    %v4471 = vsel %vm618, %v4456, %v4464
    %v4472 = vsel %vm618, %v4458, %v4466
    %v4473 = vsel %vm618, %v4460, %v4468
    %v4474 = vsel %vm618, %v4462, %v4470
    %v4475 = vsel %vm618, %v4464, %v4456
    %v4476 = vsel %vm618, %v4466, %v4458
    %v4477 = vsel %vm618, %v4468, %v4460
    %v4478 = vsel %vm618, %v4470, %v4462
    %v4479 = vsel %vm640, %v4475, 0.0
    %v4480 = vsel %vm641, %v4471, 0.0
    %v4481 = vsel %vm640, %v4476, 0.0
    %v4482 = vsel %vm641, %v4472, 0.0
    %v4483 = vsel %vm640, %v4477, 0.0
    %v4484 = vsel %vm641, %v4473, 0.0
    %v4485 = vsel %vm640, %v4478, 0.0
    %v4486 = vsel %vm641, %v4474, 0.0
    %4487 = vrot.lane.b32.xlu0 %v4306, 127
    %v4488 = vpop.permute.xlu0 %4487
    %4489 = vrot.lane.b32.xlu0 %v4308, 127
    %v4490 = vpop.permute.xlu0 %4489
    %4491 = vrot.lane.b32.xlu0 %v4310, 127
    %v4492 = vpop.permute.xlu0 %4491
    %4493 = vrot.lane.b32.xlu0 %v4312, 127
    %v4494 = vpop.permute.xlu0 %4493
    %4495 = vrot.lane.b32.xlu0 %v4307, 127
    %v4496 = vpop.permute.xlu0 %4495
    %4497 = vrot.lane.b32.xlu0 %v4309, 127
    %v4498 = vpop.permute.xlu0 %4497
    %4499 = vrot.lane.b32.xlu0 %v4311, 127
    %v4500 = vpop.permute.xlu0 %4499
    %4501 = vrot.lane.b32.xlu0 %v4313, 127
    %v4502 = vpop.permute.xlu0 %4501
    %v4503 = vsel %vm666, %v4488, %v4496
    %v4504 = vsel %vm666, %v4490, %v4498
    %v4505 = vsel %vm666, %v4492, %v4500
    %v4506 = vsel %vm666, %v4494, %v4502
    %v4507 = vsel %vm666, %v4496, %v4488
    %v4508 = vsel %vm666, %v4498, %v4490
    %v4509 = vsel %vm666, %v4500, %v4492
    %v4510 = vsel %vm666, %v4502, %v4494
    %v4511 = vsel %vm688, %v4503, 0.0
    %v4512 = vsel %vm689, %v4507, 0.0
    %v4513 = vsel %vm688, %v4504, 0.0
    %v4514 = vsel %vm689, %v4508, 0.0
    %v4515 = vsel %vm688, %v4505, 0.0
    %v4516 = vsel %vm689, %v4509, 0.0
    %v4517 = vsel %vm688, %v4506, 0.0
    %v4518 = vsel %vm689, %v4510, 0.0
    %4519 = vrot.lane.b32.xlu0 %v4306, 126
    %v4520 = vpop.permute.xlu0 %4519
    %4521 = vrot.lane.b32.xlu0 %v4308, 126
    %v4522 = vpop.permute.xlu0 %4521
    %4523 = vrot.lane.b32.xlu0 %v4310, 126
    %v4524 = vpop.permute.xlu0 %4523
    %4525 = vrot.lane.b32.xlu0 %v4312, 126
    %v4526 = vpop.permute.xlu0 %4525
    %4527 = vrot.lane.b32.xlu0 %v4307, 126
    %v4528 = vpop.permute.xlu0 %4527
    %4529 = vrot.lane.b32.xlu0 %v4309, 126
    %v4530 = vpop.permute.xlu0 %4529
    %4531 = vrot.lane.b32.xlu0 %v4311, 126
    %v4532 = vpop.permute.xlu0 %4531
    %4533 = vrot.lane.b32.xlu0 %v4313, 126
    %v4534 = vpop.permute.xlu0 %4533
    %v4535 = vsel %vm714, %v4520, %v4528
    %v4536 = vsel %vm714, %v4522, %v4530
    %v4537 = vsel %vm714, %v4524, %v4532
    %v4538 = vsel %vm714, %v4526, %v4534
    %v4539 = vsel %vm714, %v4528, %v4520
    %v4540 = vsel %vm714, %v4530, %v4522
    %v4541 = vsel %vm714, %v4532, %v4524
    %v4542 = vsel %vm714, %v4534, %v4526
    %v4543 = vsel %vm736, %v4535, 0.0
    %v4544 = vsel %vm737, %v4539, 0.0
    %v4545 = vsel %vm736, %v4536, 0.0
    %v4546 = vsel %vm737, %v4540, 0.0
    %v4547 = vsel %vm736, %v4537, 0.0
    %v4548 = vsel %vm737, %v4541, 0.0
    %v4549 = vsel %vm736, %v4538, 0.0
    %v4550 = vsel %vm737, %v4542, 0.0
    %4551 = vrot.lane.b32.xlu0 %v4306, 125
    %v4552 = vpop.permute.xlu0 %4551
    %4553 = vrot.lane.b32.xlu0 %v4308, 125
    %v4554 = vpop.permute.xlu0 %4553
    %4555 = vrot.lane.b32.xlu0 %v4310, 125
    %v4556 = vpop.permute.xlu0 %4555
    %4557 = vrot.lane.b32.xlu0 %v4312, 125
    %v4558 = vpop.permute.xlu0 %4557
    %4559 = vrot.lane.b32.xlu0 %v4307, 125
    %v4560 = vpop.permute.xlu0 %4559
    %4561 = vrot.lane.b32.xlu0 %v4309, 125
    %v4562 = vpop.permute.xlu0 %4561
    %4563 = vrot.lane.b32.xlu0 %v4311, 125
    %v4564 = vpop.permute.xlu0 %4563
    %4565 = vrot.lane.b32.xlu0 %v4313, 125
    %v4566 = vpop.permute.xlu0 %4565
    %v4567 = vsel %vm762, %v4552, %v4560
    %v4568 = vsel %vm762, %v4554, %v4562
    %v4569 = vsel %vm762, %v4556, %v4564
    %v4570 = vsel %vm762, %v4558, %v4566
    %v4571 = vsel %vm762, %v4560, %v4552
    %v4572 = vsel %vm762, %v4562, %v4554
    %v4573 = vsel %vm762, %v4564, %v4556
    %v4574 = vsel %vm762, %v4566, %v4558
    %v4575 = vsel %vm784, %v4567, 0.0
    %v4576 = vsel %vm785, %v4571, 0.0
    %v4577 = vsel %vm784, %v4568, 0.0
    %v4578 = vsel %vm785, %v4572, 0.0
    %v4579 = vsel %vm784, %v4569, 0.0
    %v4580 = vsel %vm785, %v4573, 0.0
    %v4581 = vsel %vm784, %v4570, 0.0
    %v4582 = vsel %vm785, %v4574, 0.0
    %4583 = vrot.lane.b32.xlu0 %v4306, 124
    %v4584 = vpop.permute.xlu0 %4583
    %4585 = vrot.lane.b32.xlu0 %v4308, 124
    %v4586 = vpop.permute.xlu0 %4585
    %4587 = vrot.lane.b32.xlu0 %v4310, 124
    %v4588 = vpop.permute.xlu0 %4587
    %4589 = vrot.lane.b32.xlu0 %v4312, 124
    %v4590 = vpop.permute.xlu0 %4589
    %4591 = vrot.lane.b32.xlu0 %v4307, 124
    %v4592 = vpop.permute.xlu0 %4591
    %4593 = vrot.lane.b32.xlu0 %v4309, 124
    %v4594 = vpop.permute.xlu0 %4593
    %4595 = vrot.lane.b32.xlu0 %v4311, 124
    %v4596 = vpop.permute.xlu0 %4595
    %4597 = vrot.lane.b32.xlu0 %v4313, 124
    %v4598 = vpop.permute.xlu0 %4597
    %v4599 = vsel %vm810, %v4584, %v4592
    %v4600 = vsel %vm810, %v4586, %v4594
    %v4601 = vsel %vm810, %v4588, %v4596
    %v4602 = vsel %vm810, %v4590, %v4598
    %v4603 = vsel %vm810, %v4592, %v4584
    %v4604 = vsel %vm810, %v4594, %v4586
    %v4605 = vsel %vm810, %v4596, %v4588
    %v4606 = vsel %vm810, %v4598, %v4590
    %v4607 = vsel %vm832, %v4599, 0.0
    %v4608 = vsel %vm833, %v4603, 0.0
    %v4609 = vsel %vm832, %v4600, 0.0
    %v4610 = vsel %vm833, %v4604, 0.0
    %v4611 = vsel %vm832, %v4601, 0.0
    %v4612 = vsel %vm833, %v4605, 0.0
    %v4613 = vsel %vm832, %v4602, 0.0
    %v4614 = vsel %vm833, %v4606, 0.0
    %4615 = vrot.lane.b32.xlu0 %v4306, 123
    %v4616 = vpop.permute.xlu0 %4615
    %4617 = vrot.lane.b32.xlu0 %v4308, 123
    %v4618 = vpop.permute.xlu0 %4617
    %4619 = vrot.lane.b32.xlu0 %v4310, 123
    %v4620 = vpop.permute.xlu0 %4619
    %4621 = vrot.lane.b32.xlu0 %v4312, 123
    %v4622 = vpop.permute.xlu0 %4621
    %4623 = vrot.lane.b32.xlu0 %v4307, 123
    %v4624 = vpop.permute.xlu0 %4623
    %4625 = vrot.lane.b32.xlu0 %v4309, 123
    %v4626 = vpop.permute.xlu0 %4625
    %4627 = vrot.lane.b32.xlu0 %v4311, 123
    %v4628 = vpop.permute.xlu0 %4627
    %4629 = vrot.lane.b32.xlu0 %v4313, 123
    %v4630 = vpop.permute.xlu0 %4629
    %v4631 = vsel %vm858, %v4616, %v4624
    %v4632 = vsel %vm858, %v4618, %v4626
    %v4633 = vsel %vm858, %v4620, %v4628
    %v4634 = vsel %vm858, %v4622, %v4630
    %v4635 = vsel %vm858, %v4624, %v4616
    %v4636 = vsel %vm858, %v4626, %v4618
    %v4637 = vsel %vm858, %v4628, %v4620
    %v4638 = vsel %vm858, %v4630, %v4622
    %v4639 = vsel %vm880, %v4631, 0.0
    %v4640 = vsel %vm881, %v4635, 0.0
    %v4641 = vsel %vm880, %v4632, 0.0
    %v4642 = vsel %vm881, %v4636, 0.0
    %v4643 = vsel %vm880, %v4633, 0.0
    %v4644 = vsel %vm881, %v4637, 0.0
    %v4645 = vsel %vm880, %v4634, 0.0
    %v4646 = vsel %vm881, %v4638, 0.0
    %4648 = vset.pattern.permute.xlu0 0
    %4649 = vperm.xlu0 %4648, %v4231
    %v4650 = vpop.permute.xlu0 %4649
    %4653 = vset.pattern.permute.xlu0 0
    %4654 = vperm.xlu0 %4653, %v4232
    %v4655 = vpop.permute.xlu0 %4654
    %4658 = vset.pattern.permute.xlu0 0
    %4659 = vperm.xlu0 %4658, %v4233
    %v4660 = vpop.permute.xlu0 %4659
    %4663 = vset.pattern.permute.xlu0 0
    %4664 = vperm.xlu0 %4663, %v4234
    %v4665 = vpop.permute.xlu0 %4664
    %v4668 = vsel %vm910, %v4317, 0
    %v4671 = vsel %vm910, %v4320, 0
    %v4674 = vsel %vm910, %v4323, 0
    %v4677 = vsel %vm910, %v4326, 0
    %4679 = vmatprep.subr.mxu0 %v4454
    %4680 = vmatpush1.msra.mxu0 %v4453
    %4681 = vmatprep.subr.mxu0 %v4452
    %4682 = vmatpush1.msra.mxu0 %v4451
    %4683 = vmatprep.subr.mxu0 %v4450
    %4684 = vmatpush1.msra.mxu0 %v4449
    %4685 = vmatprep.subr.mxu0 %v4448
    %4686 = vmatpush1.msra.mxu0 %v4447
    %4687 = vmatprep.subr.mxu0 %v4422
    %4688 = vmatpush1.msra.mxu0 %v4421
    %4689 = vmatprep.subr.mxu0 %v4420
    %4690 = vmatpush1.msra.mxu0 %v4419
    %4691 = vmatprep.subr.mxu0 %v4418
    %4692 = vmatpush1.msra.mxu0 %v4417
    %4693 = vmatprep.subr.mxu0 %v4416
    %4694 = vmatpush1.msra.mxu0 %v4415
    %4695 = vmatprep.subr.mxu0 %v4390
    %4696 = vmatpush1.msra.mxu0 %v4389
    %4697 = vmatprep.subr.mxu0 %v4388
    %4698 = vmatpush1.msra.mxu0 %v4387
    %4699 = vmatprep.subr.mxu0 %v4386
    %4700 = vmatpush1.msra.mxu0 %v4385
    %4701 = vmatprep.subr.mxu0 %v4384
    %4702 = vmatpush1.msra.mxu0 %v4383
    %4703 = vmatprep.subr.mxu0 %v4358
    %4704 = vmatpush1.msra.mxu0 %v4357
    %4705 = vmatprep.subr.mxu0 %v4356
    %4706 = vmatpush1.msra.mxu0 %v4355
    %4707 = vmatprep.subr.mxu0 %v4354
    %4708 = vmatpush1.msra.mxu0 %v4353
    %4709 = vmatprep.subr.mxu0 %v4352
    %4710 = vmatpush1.msra.mxu0 %v4351
    %4711 = vmatprep.subr.mxu0 %v4550
    %4712 = vmatpush2.msra.mxu0 %v4549
    %4713 = vmatprep.subr.mxu0 %v4548
    %4714 = vmatpush2.msra.mxu0 %v4547
    %4715 = vmatprep.subr.mxu0 %v4546
    %4716 = vmatpush2.msra.mxu0 %v4545
    %4717 = vmatprep.subr.mxu0 %v4544
    %4718 = vmatpush2.msra.mxu0 %v4543
    %4719 = vmatprep.subr.mxu0 %v4518
    %4720 = vmatpush2.msra.mxu0 %v4517
    %4721 = vmatprep.subr.mxu0 %v4516
    %4722 = vmatpush2.msra.mxu0 %v4515
    %4723 = vmatprep.subr.mxu0 %v4514
    %4724 = vmatpush2.msra.mxu0 %v4513
    %4725 = vmatprep.subr.mxu0 %v4512
    %4726 = vmatpush2.msra.mxu0 %v4511
    %4727 = vmatprep.subr.mxu0 %v4313
    %4728 = vmatpush2.msra.mxu0 %v4312
    %4729 = vmatprep.subr.mxu0 %v4311
    %4730 = vmatpush2.msra.mxu0 %v4310
    %4731 = vmatprep.subr.mxu0 %v4309
    %4732 = vmatpush2.msra.mxu0 %v4308
    %4733 = vmatprep.subr.mxu0 %v4307
    %4734 = vmatpush2.msra.mxu0 %v4306
    %4735 = vmatprep.subr.mxu0 %v4486
    %4736 = vmatpush2.msra.mxu0 %v4485
    %4737 = vmatprep.subr.mxu0 %v4484
    %4738 = vmatpush2.msra.mxu0 %v4483
    %4739 = vmatprep.subr.mxu0 %v4482
    %4740 = vmatpush2.msra.mxu0 %v4481
    %4741 = vmatprep.subr.mxu0 %v4480
    %4742 = vmatpush2.msra.mxu0 %v4479
    %4743 = vmatprep.mubr.f32.mxu0 %v4316
    %4744 = vmatmul.mubr.f32.gmra.mxu0 %v4315
    %v4745 = vpop.f32.mrf.mxu0
    %v4746 = vadd.f32 %v4650, %v4745
    %v4747 = vpop.f32.mrf.mxu0
    %v4748 = vadd.f32 %v4650, %v4747
    %4749 = vmatprep.mubr.f32.mxu0 %v4319
    %4750 = vmatmul.mubr.f32.gmra.mxu0 %v4318
    %v4751 = vpop.f32.mrf.mxu0
    %v4752 = vadd.f32 %v4655, %v4751
    %v4753 = vpop.f32.mrf.mxu0
    %v4754 = vadd.f32 %v4655, %v4753
    %4755 = vmatprep.mubr.f32.mxu0 %v4322
    %4756 = vmatmul.mubr.f32.gmra.mxu0 %v4321
    %v4757 = vpop.f32.mrf.mxu0
    %v4758 = vadd.f32 %v4660, %v4757
    %v4759 = vpop.f32.mrf.mxu0
    %v4760 = vadd.f32 %v4660, %v4759
    %4761 = vmatprep.mubr.f32.mxu0 %v4325
    %4762 = vmatmul.mubr.f32.gmra.mxu0 %v4324
    %v4763 = vpop.f32.mrf.mxu0
    %v4764 = vadd.f32 %v4665, %v4763
    %v4765 = vpop.f32.mrf.mxu0
    %v4766 = vadd.f32 %v4665, %v4765
    %4767 = vdwg.mxu0
    %4768 = vmatprep.subr.mxu0 0.0
    %4769 = vmatpush1.msra.mxu0 0.0
    %4770 = vmatprep.subr.mxu0 0.0
    %4771 = vmatpush1.msra.mxu0 0.0
    %4772 = vmatprep.subr.mxu0 0.0
    %4773 = vmatpush1.msra.mxu0 0.0
    %4774 = vmatprep.subr.mxu0 0.0
    %4775 = vmatpush1.msra.mxu0 0.0
    %4776 = vmatprep.subr.mxu0 %v4646
    %4777 = vmatpush1.msra.mxu0 %v4645
    %4778 = vmatprep.subr.mxu0 %v4644
    %4779 = vmatpush1.msra.mxu0 %v4643
    %4780 = vmatprep.subr.mxu0 %v4642
    %4781 = vmatpush1.msra.mxu0 %v4641
    %4782 = vmatprep.subr.mxu0 %v4640
    %4783 = vmatpush1.msra.mxu0 %v4639
    %4784 = vmatprep.subr.mxu0 %v4614
    %4785 = vmatpush1.msra.mxu0 %v4613
    %4786 = vmatprep.subr.mxu0 %v4612
    %4787 = vmatpush1.msra.mxu0 %v4611
    %4788 = vmatprep.subr.mxu0 %v4610
    %4789 = vmatpush1.msra.mxu0 %v4609
    %4790 = vmatprep.subr.mxu0 %v4608
    %4791 = vmatpush1.msra.mxu0 %v4607
    %4792 = vmatprep.subr.mxu0 %v4582
    %4793 = vmatpush1.msra.mxu0 %v4581
    %4794 = vmatprep.subr.mxu0 %v4580
    %4795 = vmatpush1.msra.mxu0 %v4579
    %4796 = vmatprep.subr.mxu0 %v4578
    %4797 = vmatpush1.msra.mxu0 %v4577
    %4798 = vmatprep.subr.mxu0 %v4576
    %4799 = vmatpush1.msra.mxu0 %v4575
    %4800 = vmatprep.subr.mxu0 0.0
    %4801 = vmatpush2.msra.mxu0 0.0
    %4802 = vmatprep.subr.mxu0 0.0
    %4803 = vmatpush2.msra.mxu0 0.0
    %4804 = vmatprep.subr.mxu0 0.0
    %4805 = vmatpush2.msra.mxu0 0.0
    %4806 = vmatprep.subr.mxu0 0.0
    %4807 = vmatpush2.msra.mxu0 0.0
    %4808 = vmatprep.subr.mxu0 0.0
    %4809 = vmatpush2.msra.mxu0 0.0
    %4810 = vmatprep.subr.mxu0 0.0
    %4811 = vmatpush2.msra.mxu0 0.0
    %4812 = vmatprep.subr.mxu0 0.0
    %4813 = vmatpush2.msra.mxu0 0.0
    %4814 = vmatprep.subr.mxu0 0.0
    %4815 = vmatpush2.msra.mxu0 0.0
    %4816 = vmatprep.subr.mxu0 0.0
    %4817 = vmatpush2.msra.mxu0 0.0
    %4818 = vmatprep.subr.mxu0 0.0
    %4819 = vmatpush2.msra.mxu0 0.0
    %4820 = vmatprep.subr.mxu0 0.0
    %4821 = vmatpush2.msra.mxu0 0.0
    %4822 = vmatprep.subr.mxu0 0.0
    %4823 = vmatpush2.msra.mxu0 0.0
    %4824 = vmatprep.subr.mxu0 0.0
    %4825 = vmatpush2.msra.mxu0 0.0
    %4826 = vmatprep.subr.mxu0 0.0
    %4827 = vmatpush2.msra.mxu0 0.0
    %4828 = vmatprep.subr.mxu0 0.0
    %4829 = vmatpush2.msra.mxu0 0.0
    %4830 = vmatprep.subr.mxu0 0.0
    %4831 = vmatpush2.msra.mxu0 0.0
    %4832 = vmatprep.mubr.f32.mxu0 0.0
    %4833 = vmatmul.mubr.f32.gmra.mxu0 %v4668
    %v4834 = vpop.f32.mrf.mxu0
    %v4835 = vadd.f32 %v4746, %v4834
    %v4836 = vpop.f32.mrf.mxu0
    %v4837 = vadd.f32 %v4748, %v4836
    %4838 = vmatprep.mubr.f32.mxu0 0.0
    %4839 = vmatmul.mubr.f32.gmra.mxu0 %v4671
    %v4840 = vpop.f32.mrf.mxu0
    %v4841 = vadd.f32 %v4752, %v4840
    %v4842 = vpop.f32.mrf.mxu0
    %v4843 = vadd.f32 %v4754, %v4842
    %4844 = vmatprep.mubr.f32.mxu0 0.0
    %4845 = vmatmul.mubr.f32.gmra.mxu0 %v4674
    %v4846 = vpop.f32.mrf.mxu0
    %v4847 = vadd.f32 %v4758, %v4846
    %v4848 = vpop.f32.mrf.mxu0
    %v4849 = vadd.f32 %v4760, %v4848
    %4850 = vmatprep.mubr.f32.mxu0 0.0
    %4851 = vmatmul.mubr.f32.gmra.mxu0 %v4677
    %v4852 = vpop.f32.mrf.mxu0
    %v4853 = vadd.f32 %v4764, %v4852
    %v4854 = vpop.f32.mrf.mxu0
    %v4855 = vadd.f32 %v4766, %v4854
    %4856 = vdwg.mxu0
    %4858 = vset.pattern.permute.xlu0 0
    %4859 = vperm.xlu0 %4858, %v4236
    %v4860 = vpop.permute.xlu0 %4859
    %4863 = vset.pattern.permute.xlu0 0
    %4864 = vperm.xlu0 %4863, %v4237
    %v4865 = vpop.permute.xlu0 %4864
    %4868 = vset.pattern.permute.xlu0 0
    %4869 = vperm.xlu0 %4868, %v4238
    %v4870 = vpop.permute.xlu0 %4869
    %4873 = vset.pattern.permute.xlu0 0
    %4874 = vperm.xlu0 %4873, %v4239
    %v4875 = vpop.permute.xlu0 %4874
    %v4877 = vmul.f32 %v4835, %v4860
    %v4878 = vmul.f32 %v4837, %v4860
    %v4879 = vmul.f32 %v4841, %v4865
    %v4880 = vmul.f32 %v4843, %v4865
    %v4881 = vmul.f32 %v4847, %v4870
    %v4882 = vmul.f32 %v4849, %v4870
    %v4883 = vmul.f32 %v4853, %v4875
    %v4884 = vmul.f32 %v4855, %v4875
    %4886 = vset.pattern.permute.xlu0 0
    %4887 = vperm.xlu0 %4886, %v4241
    %v4888 = vpop.permute.xlu0 %4887
    %4891 = vset.pattern.permute.xlu0 0
    %4892 = vperm.xlu0 %4891, %v4242
    %v4893 = vpop.permute.xlu0 %4892
    %4896 = vset.pattern.permute.xlu0 0
    %4897 = vperm.xlu0 %4896, %v4243
    %v4898 = vpop.permute.xlu0 %4897
    %4901 = vset.pattern.permute.xlu0 0
    %4902 = vperm.xlu0 %4901, %v4244
    %v4903 = vpop.permute.xlu0 %4902
    %v4905 = vadd.f32 %v4877, %v4888
    %v4906 = vadd.f32 %v4878, %v4888
    %v4907 = vadd.f32 %v4879, %v4893
    %v4908 = vadd.f32 %v4880, %v4893
    %v4909 = vadd.f32 %v4881, %v4898
    %v4910 = vadd.f32 %v4882, %v4898
    %v4911 = vadd.f32 %v4883, %v4903
    %v4912 = vadd.f32 %v4884, %v4903
    %v4913 = vmax.f32 %v4905, 0.0
    %v4914 = vmax.f32 %v4906, 0.0
    %v4915 = vmax.f32 %v4907, 0.0
    %v4916 = vmax.f32 %v4908, 0.0
    %v4917 = vmax.f32 %v4909, 0.0
    %v4918 = vmax.f32 %v4910, 0.0
    %v4919 = vmax.f32 %v4911, 0.0
    %v4920 = vmax.f32 %v4912, 0.0
    %s4921 = scalar_lea.vmem %s4, 672
    %v4922 = vld [vmem:[%s4921] sm:$0xff]
    %v4923 = vld [vmem:[%s4921 + $0x8] sm:$0xff]
    %v4924 = vld [vmem:[%s4921 + $0x10] sm:$0xff]
    %v4925 = vld [vmem:[%s4921 + $0x18] sm:$0xff]
    %v4926 = vld [vmem:[%s4921 + $0x20] sm:$0xff]
    %v4927 = vld [vmem:[%s4921 + $0x28] sm:$0xff]
    %v4928 = vld [vmem:[%s4921 + $0x30] sm:$0xff]
    %v4929 = vld [vmem:[%s4921 + $0x38] sm:$0xff]
    %v4930 = vld [vmem:[%s4921 + $0x40] sm:$0xff]
    %v4931 = vld [vmem:[%s4921 + $0x48] sm:$0xff]
    %v4932 = vld [vmem:[%s4921 + $0x50] sm:$0xff]
    %v4933 = vld [vmem:[%s4921 + $0x58] sm:$0xff]
    %4934 = vrot.lane.b32.xlu0 %v4913, 5
    %v4935 = vpop.permute.xlu0 %4934
    %4936 = vrot.lane.b32.xlu0 %v4915, 5
    %v4937 = vpop.permute.xlu0 %4936
    %4938 = vrot.lane.b32.xlu0 %v4917, 5
    %v4939 = vpop.permute.xlu0 %4938
    %4940 = vrot.lane.b32.xlu0 %v4919, 5
    %v4941 = vpop.permute.xlu0 %4940
    %4942 = vrot.lane.b32.xlu0 %v4914, 5
    %v4943 = vpop.permute.xlu0 %4942
    %4944 = vrot.lane.b32.xlu0 %v4916, 5
    %v4945 = vpop.permute.xlu0 %4944
    %4946 = vrot.lane.b32.xlu0 %v4918, 5
    %v4947 = vpop.permute.xlu0 %4946
    %4948 = vrot.lane.b32.xlu0 %v4920, 5
    %v4949 = vpop.permute.xlu0 %4948
    %v4950 = vsel %vm426, %v4935, %v4943
    %v4951 = vsel %vm426, %v4937, %v4945
    %v4952 = vsel %vm426, %v4939, %v4947
    %v4953 = vsel %vm426, %v4941, %v4949
    %v4954 = vsel %vm426, %v4943, %v4935
    %v4955 = vsel %vm426, %v4945, %v4937
    %v4956 = vsel %vm426, %v4947, %v4939
    %v4957 = vsel %vm426, %v4949, %v4941
    %v4958 = vsel %vm448, %v4954, 0.0
    %v4959 = vsel %vm449, %v4950, 0.0
    %v4960 = vsel %vm448, %v4955, 0.0
    %v4961 = vsel %vm449, %v4951, 0.0
    %v4962 = vsel %vm448, %v4956, 0.0
    %v4963 = vsel %vm449, %v4952, 0.0
    %v4964 = vsel %vm448, %v4957, 0.0
    %v4965 = vsel %vm449, %v4953, 0.0
    %4966 = vrot.lane.b32.xlu0 %v4913, 4
    %v4967 = vpop.permute.xlu0 %4966
    %4968 = vrot.lane.b32.xlu0 %v4915, 4
    %v4969 = vpop.permute.xlu0 %4968
    %4970 = vrot.lane.b32.xlu0 %v4917, 4
    %v4971 = vpop.permute.xlu0 %4970
    %4972 = vrot.lane.b32.xlu0 %v4919, 4
    %v4973 = vpop.permute.xlu0 %4972
    %4974 = vrot.lane.b32.xlu0 %v4914, 4
    %v4975 = vpop.permute.xlu0 %4974
    %4976 = vrot.lane.b32.xlu0 %v4916, 4
    %v4977 = vpop.permute.xlu0 %4976
    %4978 = vrot.lane.b32.xlu0 %v4918, 4
    %v4979 = vpop.permute.xlu0 %4978
    %4980 = vrot.lane.b32.xlu0 %v4920, 4
    %v4981 = vpop.permute.xlu0 %4980
    %v4982 = vsel %vm474, %v4967, %v4975
    %v4983 = vsel %vm474, %v4969, %v4977
    %v4984 = vsel %vm474, %v4971, %v4979
    %v4985 = vsel %vm474, %v4973, %v4981
    %v4986 = vsel %vm474, %v4975, %v4967
    %v4987 = vsel %vm474, %v4977, %v4969
    %v4988 = vsel %vm474, %v4979, %v4971
    %v4989 = vsel %vm474, %v4981, %v4973
    %v4990 = vsel %vm496, %v4986, 0.0
    %v4991 = vsel %vm497, %v4982, 0.0
    %v4992 = vsel %vm496, %v4987, 0.0
    %v4993 = vsel %vm497, %v4983, 0.0
    %v4994 = vsel %vm496, %v4988, 0.0
    %v4995 = vsel %vm497, %v4984, 0.0
    %v4996 = vsel %vm496, %v4989, 0.0
    %v4997 = vsel %vm497, %v4985, 0.0
    %4998 = vrot.lane.b32.xlu0 %v4913, 3
    %v4999 = vpop.permute.xlu0 %4998
    %5000 = vrot.lane.b32.xlu0 %v4915, 3
    %v5001 = vpop.permute.xlu0 %5000
    %5002 = vrot.lane.b32.xlu0 %v4917, 3
    %v5003 = vpop.permute.xlu0 %5002
    %5004 = vrot.lane.b32.xlu0 %v4919, 3
    %v5005 = vpop.permute.xlu0 %5004
    %5006 = vrot.lane.b32.xlu0 %v4914, 3
    %v5007 = vpop.permute.xlu0 %5006
    %5008 = vrot.lane.b32.xlu0 %v4916, 3
    %v5009 = vpop.permute.xlu0 %5008
    %5010 = vrot.lane.b32.xlu0 %v4918, 3
    %v5011 = vpop.permute.xlu0 %5010
    %5012 = vrot.lane.b32.xlu0 %v4920, 3
    %v5013 = vpop.permute.xlu0 %5012
    %v5014 = vsel %vm522, %v4999, %v5007
    %v5015 = vsel %vm522, %v5001, %v5009
    %v5016 = vsel %vm522, %v5003, %v5011
    %v5017 = vsel %vm522, %v5005, %v5013
    %v5018 = vsel %vm522, %v5007, %v4999
    %v5019 = vsel %vm522, %v5009, %v5001
    %v5020 = vsel %vm522, %v5011, %v5003
    %v5021 = vsel %vm522, %v5013, %v5005
    %v5022 = vsel %vm544, %v5018, 0.0
    %v5023 = vsel %vm545, %v5014, 0.0
    %v5024 = vsel %vm544, %v5019, 0.0
    %v5025 = vsel %vm545, %v5015, 0.0
    %v5026 = vsel %vm544, %v5020, 0.0
    %v5027 = vsel %vm545, %v5016, 0.0
    %v5028 = vsel %vm544, %v5021, 0.0
    %v5029 = vsel %vm545, %v5017, 0.0
    %5030 = vrot.lane.b32.xlu0 %v4913, 2
    %v5031 = vpop.permute.xlu0 %5030
    %5032 = vrot.lane.b32.xlu0 %v4915, 2
    %v5033 = vpop.permute.xlu0 %5032
    %5034 = vrot.lane.b32.xlu0 %v4917, 2
    %v5035 = vpop.permute.xlu0 %5034
    %5036 = vrot.lane.b32.xlu0 %v4919, 2
    %v5037 = vpop.permute.xlu0 %5036
    %5038 = vrot.lane.b32.xlu0 %v4914, 2
    %v5039 = vpop.permute.xlu0 %5038
    %5040 = vrot.lane.b32.xlu0 %v4916, 2
    %v5041 = vpop.permute.xlu0 %5040
    %5042 = vrot.lane.b32.xlu0 %v4918, 2
    %v5043 = vpop.permute.xlu0 %5042
    %5044 = vrot.lane.b32.xlu0 %v4920, 2
    %v5045 = vpop.permute.xlu0 %5044
    %v5046 = vsel %vm570, %v5031, %v5039
    %v5047 = vsel %vm570, %v5033, %v5041
    %v5048 = vsel %vm570, %v5035, %v5043
    %v5049 = vsel %vm570, %v5037, %v5045
    %v5050 = vsel %vm570, %v5039, %v5031
    %v5051 = vsel %vm570, %v5041, %v5033
    %v5052 = vsel %vm570, %v5043, %v5035
    %v5053 = vsel %vm570, %v5045, %v5037
    %v5054 = vsel %vm592, %v5050, 0.0
    %v5055 = vsel %vm593, %v5046, 0.0
    %v5056 = vsel %vm592, %v5051, 0.0
    %v5057 = vsel %vm593, %v5047, 0.0
    %v5058 = vsel %vm592, %v5052, 0.0
    %v5059 = vsel %vm593, %v5048, 0.0
    %v5060 = vsel %vm592, %v5053, 0.0
    %v5061 = vsel %vm593, %v5049, 0.0
    %5062 = vrot.lane.b32.xlu0 %v4913, 1
    %v5063 = vpop.permute.xlu0 %5062
    %5064 = vrot.lane.b32.xlu0 %v4915, 1
    %v5065 = vpop.permute.xlu0 %5064
    %5066 = vrot.lane.b32.xlu0 %v4917, 1
    %v5067 = vpop.permute.xlu0 %5066
    %5068 = vrot.lane.b32.xlu0 %v4919, 1
    %v5069 = vpop.permute.xlu0 %5068
    %5070 = vrot.lane.b32.xlu0 %v4914, 1
    %v5071 = vpop.permute.xlu0 %5070
    %5072 = vrot.lane.b32.xlu0 %v4916, 1
    %v5073 = vpop.permute.xlu0 %5072
    %5074 = vrot.lane.b32.xlu0 %v4918, 1
    %v5075 = vpop.permute.xlu0 %5074
    %5076 = vrot.lane.b32.xlu0 %v4920, 1
    %v5077 = vpop.permute.xlu0 %5076
    %v5078 = vsel %vm618, %v5063, %v5071
    %v5079 = vsel %vm618, %v5065, %v5073
    %v5080 = vsel %vm618, %v5067, %v5075
    %v5081 = vsel %vm618, %v5069, %v5077
    %v5082 = vsel %vm618, %v5071, %v5063
    %v5083 = vsel %vm618, %v5073, %v5065
    %v5084 = vsel %vm618, %v5075, %v5067
    %v5085 = vsel %vm618, %v5077, %v5069
    %v5086 = vsel %vm640, %v5082, 0.0
    %v5087 = vsel %vm641, %v5078, 0.0
    %v5088 = vsel %vm640, %v5083, 0.0
    %v5089 = vsel %vm641, %v5079, 0.0
    %v5090 = vsel %vm640, %v5084, 0.0
    %v5091 = vsel %vm641, %v5080, 0.0
    %v5092 = vsel %vm640, %v5085, 0.0
    %v5093 = vsel %vm641, %v5081, 0.0
    %5094 = vrot.lane.b32.xlu0 %v4913, 127
    %v5095 = vpop.permute.xlu0 %5094
    %5096 = vrot.lane.b32.xlu0 %v4915, 127
    %v5097 = vpop.permute.xlu0 %5096
    %5098 = vrot.lane.b32.xlu0 %v4917, 127
    %v5099 = vpop.permute.xlu0 %5098
    %5100 = vrot.lane.b32.xlu0 %v4919, 127
    %v5101 = vpop.permute.xlu0 %5100
    %5102 = vrot.lane.b32.xlu0 %v4914, 127
    %v5103 = vpop.permute.xlu0 %5102
    %5104 = vrot.lane.b32.xlu0 %v4916, 127
    %v5105 = vpop.permute.xlu0 %5104
    %5106 = vrot.lane.b32.xlu0 %v4918, 127
    %v5107 = vpop.permute.xlu0 %5106
    %5108 = vrot.lane.b32.xlu0 %v4920, 127
    %v5109 = vpop.permute.xlu0 %5108
    %v5110 = vsel %vm666, %v5095, %v5103
    %v5111 = vsel %vm666, %v5097, %v5105
    %v5112 = vsel %vm666, %v5099, %v5107
    %v5113 = vsel %vm666, %v5101, %v5109
    %v5114 = vsel %vm666, %v5103, %v5095
    %v5115 = vsel %vm666, %v5105, %v5097
    %v5116 = vsel %vm666, %v5107, %v5099
    %v5117 = vsel %vm666, %v5109, %v5101
    %v5118 = vsel %vm688, %v5110, 0.0
    %v5119 = vsel %vm689, %v5114, 0.0
    %v5120 = vsel %vm688, %v5111, 0.0
    %v5121 = vsel %vm689, %v5115, 0.0
    %v5122 = vsel %vm688, %v5112, 0.0
    %v5123 = vsel %vm689, %v5116, 0.0
    %v5124 = vsel %vm688, %v5113, 0.0
    %v5125 = vsel %vm689, %v5117, 0.0
    %5126 = vrot.lane.b32.xlu0 %v4913, 126
    %v5127 = vpop.permute.xlu0 %5126
    %5128 = vrot.lane.b32.xlu0 %v4915, 126
    %v5129 = vpop.permute.xlu0 %5128
    %5130 = vrot.lane.b32.xlu0 %v4917, 126
    %v5131 = vpop.permute.xlu0 %5130
    %5132 = vrot.lane.b32.xlu0 %v4919, 126
    %v5133 = vpop.permute.xlu0 %5132
    %5134 = vrot.lane.b32.xlu0 %v4914, 126
    %v5135 = vpop.permute.xlu0 %5134
    %5136 = vrot.lane.b32.xlu0 %v4916, 126
    %v5137 = vpop.permute.xlu0 %5136
    %5138 = vrot.lane.b32.xlu0 %v4918, 126
    %v5139 = vpop.permute.xlu0 %5138
    %5140 = vrot.lane.b32.xlu0 %v4920, 126
    %v5141 = vpop.permute.xlu0 %5140
    %v5142 = vsel %vm714, %v5127, %v5135
    %v5143 = vsel %vm714, %v5129, %v5137
    %v5144 = vsel %vm714, %v5131, %v5139
    %v5145 = vsel %vm714, %v5133, %v5141
    %v5146 = vsel %vm714, %v5135, %v5127
    %v5147 = vsel %vm714, %v5137, %v5129
    %v5148 = vsel %vm714, %v5139, %v5131
    %v5149 = vsel %vm714, %v5141, %v5133
    %v5150 = vsel %vm736, %v5142, 0.0
    %v5151 = vsel %vm737, %v5146, 0.0
    %v5152 = vsel %vm736, %v5143, 0.0
    %v5153 = vsel %vm737, %v5147, 0.0
    %v5154 = vsel %vm736, %v5144, 0.0
    %v5155 = vsel %vm737, %v5148, 0.0
    %v5156 = vsel %vm736, %v5145, 0.0
    %v5157 = vsel %vm737, %v5149, 0.0
    %5158 = vrot.lane.b32.xlu0 %v4913, 125
    %v5159 = vpop.permute.xlu0 %5158
    %5160 = vrot.lane.b32.xlu0 %v4915, 125
    %v5161 = vpop.permute.xlu0 %5160
    %5162 = vrot.lane.b32.xlu0 %v4917, 125
    %v5163 = vpop.permute.xlu0 %5162
    %5164 = vrot.lane.b32.xlu0 %v4919, 125
    %v5165 = vpop.permute.xlu0 %5164
    %5166 = vrot.lane.b32.xlu0 %v4914, 125
    %v5167 = vpop.permute.xlu0 %5166
    %5168 = vrot.lane.b32.xlu0 %v4916, 125
    %v5169 = vpop.permute.xlu0 %5168
    %5170 = vrot.lane.b32.xlu0 %v4918, 125
    %v5171 = vpop.permute.xlu0 %5170
    %5172 = vrot.lane.b32.xlu0 %v4920, 125
    %v5173 = vpop.permute.xlu0 %5172
    %v5174 = vsel %vm762, %v5159, %v5167
    %v5175 = vsel %vm762, %v5161, %v5169
    %v5176 = vsel %vm762, %v5163, %v5171
    %v5177 = vsel %vm762, %v5165, %v5173
    %v5178 = vsel %vm762, %v5167, %v5159
    %v5179 = vsel %vm762, %v5169, %v5161
    %v5180 = vsel %vm762, %v5171, %v5163
    %v5181 = vsel %vm762, %v5173, %v5165
    %v5182 = vsel %vm784, %v5174, 0.0
    %v5183 = vsel %vm785, %v5178, 0.0
    %v5184 = vsel %vm784, %v5175, 0.0
    %v5185 = vsel %vm785, %v5179, 0.0
    %v5186 = vsel %vm784, %v5176, 0.0
    %v5187 = vsel %vm785, %v5180, 0.0
    %v5188 = vsel %vm784, %v5177, 0.0
    %v5189 = vsel %vm785, %v5181, 0.0
    %5190 = vrot.lane.b32.xlu0 %v4913, 124
    %v5191 = vpop.permute.xlu0 %5190
    %5192 = vrot.lane.b32.xlu0 %v4915, 124
    %v5193 = vpop.permute.xlu0 %5192
    %5194 = vrot.lane.b32.xlu0 %v4917, 124
    %v5195 = vpop.permute.xlu0 %5194
    %5196 = vrot.lane.b32.xlu0 %v4919, 124
    %v5197 = vpop.permute.xlu0 %5196
    %5198 = vrot.lane.b32.xlu0 %v4914, 124
    %v5199 = vpop.permute.xlu0 %5198
    %5200 = vrot.lane.b32.xlu0 %v4916, 124
    %v5201 = vpop.permute.xlu0 %5200
    %5202 = vrot.lane.b32.xlu0 %v4918, 124
    %v5203 = vpop.permute.xlu0 %5202
    %5204 = vrot.lane.b32.xlu0 %v4920, 124
    %v5205 = vpop.permute.xlu0 %5204
    %v5206 = vsel %vm810, %v5191, %v5199
    %v5207 = vsel %vm810, %v5193, %v5201
    %v5208 = vsel %vm810, %v5195, %v5203
    %v5209 = vsel %vm810, %v5197, %v5205
    %v5210 = vsel %vm810, %v5199, %v5191
    %v5211 = vsel %vm810, %v5201, %v5193
    %v5212 = vsel %vm810, %v5203, %v5195
    %v5213 = vsel %vm810, %v5205, %v5197
    %v5214 = vsel %vm832, %v5206, 0.0
    %v5215 = vsel %vm833, %v5210, 0.0
    %v5216 = vsel %vm832, %v5207, 0.0
    %v5217 = vsel %vm833, %v5211, 0.0
    %v5218 = vsel %vm832, %v5208, 0.0
    %v5219 = vsel %vm833, %v5212, 0.0
    %v5220 = vsel %vm832, %v5209, 0.0
    %v5221 = vsel %vm833, %v5213, 0.0
    %5222 = vrot.lane.b32.xlu0 %v4913, 123
    %v5223 = vpop.permute.xlu0 %5222
    %5224 = vrot.lane.b32.xlu0 %v4915, 123
    %v5225 = vpop.permute.xlu0 %5224
    %5226 = vrot.lane.b32.xlu0 %v4917, 123
    %v5227 = vpop.permute.xlu0 %5226
    %5228 = vrot.lane.b32.xlu0 %v4919, 123
    %v5229 = vpop.permute.xlu0 %5228
    %5230 = vrot.lane.b32.xlu0 %v4914, 123
    %v5231 = vpop.permute.xlu0 %5230
    %5232 = vrot.lane.b32.xlu0 %v4916, 123
    %v5233 = vpop.permute.xlu0 %5232
    %5234 = vrot.lane.b32.xlu0 %v4918, 123
    %v5235 = vpop.permute.xlu0 %5234
    %5236 = vrot.lane.b32.xlu0 %v4920, 123
    %v5237 = vpop.permute.xlu0 %5236
    %v5238 = vsel %vm858, %v5223, %v5231
    %v5239 = vsel %vm858, %v5225, %v5233
    %v5240 = vsel %vm858, %v5227, %v5235
    %v5241 = vsel %vm858, %v5229, %v5237
    %v5242 = vsel %vm858, %v5231, %v5223
    %v5243 = vsel %vm858, %v5233, %v5225
    %v5244 = vsel %vm858, %v5235, %v5227
    %v5245 = vsel %vm858, %v5237, %v5229
    %v5246 = vsel %vm880, %v5238, 0.0
    %v5247 = vsel %vm881, %v5242, 0.0
    %v5248 = vsel %vm880, %v5239, 0.0
    %v5249 = vsel %vm881, %v5243, 0.0
    %v5250 = vsel %vm880, %v5240, 0.0
    %v5251 = vsel %vm881, %v5244, 0.0
    %v5252 = vsel %vm880, %v5241, 0.0
    %v5253 = vsel %vm881, %v5245, 0.0
    %5255 = vset.pattern.permute.xlu0 0
    %5256 = vperm.xlu0 %5255, %v4246
    %v5257 = vpop.permute.xlu0 %5256
    %5260 = vset.pattern.permute.xlu0 0
    %5261 = vperm.xlu0 %5260, %v4247
    %v5262 = vpop.permute.xlu0 %5261
    %5265 = vset.pattern.permute.xlu0 0
    %5266 = vperm.xlu0 %5265, %v4248
    %v5267 = vpop.permute.xlu0 %5266
    %5270 = vset.pattern.permute.xlu0 0
    %5271 = vperm.xlu0 %5270, %v4249
    %v5272 = vpop.permute.xlu0 %5271
    %v5275 = vsel %vm910, %v4924, 0
    %v5278 = vsel %vm910, %v4927, 0
    %v5281 = vsel %vm910, %v4930, 0
    %v5284 = vsel %vm910, %v4933, 0
    %5286 = vmatprep.subr.mxu0 %v5061
    %5287 = vmatpush1.msra.mxu0 %v5060
    %5288 = vmatprep.subr.mxu0 %v5059
    %5289 = vmatpush1.msra.mxu0 %v5058
    %5290 = vmatprep.subr.mxu0 %v5057
    %5291 = vmatpush1.msra.mxu0 %v5056
    %5292 = vmatprep.subr.mxu0 %v5055
    %5293 = vmatpush1.msra.mxu0 %v5054
    %5294 = vmatprep.subr.mxu0 %v5029
    %5295 = vmatpush1.msra.mxu0 %v5028
    %5296 = vmatprep.subr.mxu0 %v5027
    %5297 = vmatpush1.msra.mxu0 %v5026
    %5298 = vmatprep.subr.mxu0 %v5025
    %5299 = vmatpush1.msra.mxu0 %v5024
    %5300 = vmatprep.subr.mxu0 %v5023
    %5301 = vmatpush1.msra.mxu0 %v5022
    %5302 = vmatprep.subr.mxu0 %v4997
    %5303 = vmatpush1.msra.mxu0 %v4996
    %5304 = vmatprep.subr.mxu0 %v4995
    %5305 = vmatpush1.msra.mxu0 %v4994
    %5306 = vmatprep.subr.mxu0 %v4993
    %5307 = vmatpush1.msra.mxu0 %v4992
    %5308 = vmatprep.subr.mxu0 %v4991
    %5309 = vmatpush1.msra.mxu0 %v4990
    %5310 = vmatprep.subr.mxu0 %v4965
    %5311 = vmatpush1.msra.mxu0 %v4964
    %5312 = vmatprep.subr.mxu0 %v4963
    %5313 = vmatpush1.msra.mxu0 %v4962
    %5314 = vmatprep.subr.mxu0 %v4961
    %5315 = vmatpush1.msra.mxu0 %v4960
    %5316 = vmatprep.subr.mxu0 %v4959
    %5317 = vmatpush1.msra.mxu0 %v4958
    %5318 = vmatprep.subr.mxu0 %v5157
    %5319 = vmatpush2.msra.mxu0 %v5156
    %5320 = vmatprep.subr.mxu0 %v5155
    %5321 = vmatpush2.msra.mxu0 %v5154
    %5322 = vmatprep.subr.mxu0 %v5153
    %5323 = vmatpush2.msra.mxu0 %v5152
    %5324 = vmatprep.subr.mxu0 %v5151
    %5325 = vmatpush2.msra.mxu0 %v5150
    %5326 = vmatprep.subr.mxu0 %v5125
    %5327 = vmatpush2.msra.mxu0 %v5124
    %5328 = vmatprep.subr.mxu0 %v5123
    %5329 = vmatpush2.msra.mxu0 %v5122
    %5330 = vmatprep.subr.mxu0 %v5121
    %5331 = vmatpush2.msra.mxu0 %v5120
    %5332 = vmatprep.subr.mxu0 %v5119
    %5333 = vmatpush2.msra.mxu0 %v5118
    %5334 = vmatprep.subr.mxu0 %v4920
    %5335 = vmatpush2.msra.mxu0 %v4919
    %5336 = vmatprep.subr.mxu0 %v4918
    %5337 = vmatpush2.msra.mxu0 %v4917
    %5338 = vmatprep.subr.mxu0 %v4916
    %5339 = vmatpush2.msra.mxu0 %v4915
    %5340 = vmatprep.subr.mxu0 %v4914
    %5341 = vmatpush2.msra.mxu0 %v4913
    %5342 = vmatprep.subr.mxu0 %v5093
    %5343 = vmatpush2.msra.mxu0 %v5092
    %5344 = vmatprep.subr.mxu0 %v5091
    %5345 = vmatpush2.msra.mxu0 %v5090
    %5346 = vmatprep.subr.mxu0 %v5089
    %5347 = vmatpush2.msra.mxu0 %v5088
    %5348 = vmatprep.subr.mxu0 %v5087
    %5349 = vmatpush2.msra.mxu0 %v5086
    %5350 = vmatprep.mubr.f32.mxu0 %v4923
    %5351 = vmatmul.mubr.f32.gmra.mxu0 %v4922
    %v5352 = vpop.f32.mrf.mxu0
    %v5353 = vadd.f32 %v5257, %v5352
    %v5354 = vpop.f32.mrf.mxu0
    %v5355 = vadd.f32 %v5257, %v5354
    %5356 = vmatprep.mubr.f32.mxu0 %v4926
    %5357 = vmatmul.mubr.f32.gmra.mxu0 %v4925
    %v5358 = vpop.f32.mrf.mxu0
    %v5359 = vadd.f32 %v5262, %v5358
    %v5360 = vpop.f32.mrf.mxu0
    %v5361 = vadd.f32 %v5262, %v5360
    %5362 = vmatprep.mubr.f32.mxu0 %v4929
    %5363 = vmatmul.mubr.f32.gmra.mxu0 %v4928
    %v5364 = vpop.f32.mrf.mxu0
    %v5365 = vadd.f32 %v5267, %v5364
    %v5366 = vpop.f32.mrf.mxu0
    %v5367 = vadd.f32 %v5267, %v5366
    %5368 = vmatprep.mubr.f32.mxu0 %v4932
    %5369 = vmatmul.mubr.f32.gmra.mxu0 %v4931
    %v5370 = vpop.f32.mrf.mxu0
    %v5371 = vadd.f32 %v5272, %v5370
    %v5372 = vpop.f32.mrf.mxu0
    %v5373 = vadd.f32 %v5272, %v5372
    %5374 = vdwg.mxu0
    %5375 = vmatprep.subr.mxu0 0.0
    %5376 = vmatpush1.msra.mxu0 0.0
    %5377 = vmatprep.subr.mxu0 0.0
    %5378 = vmatpush1.msra.mxu0 0.0
    %5379 = vmatprep.subr.mxu0 0.0
    %5380 = vmatpush1.msra.mxu0 0.0
    %5381 = vmatprep.subr.mxu0 0.0
    %5382 = vmatpush1.msra.mxu0 0.0
    %5383 = vmatprep.subr.mxu0 %v5253
    %5384 = vmatpush1.msra.mxu0 %v5252
    %5385 = vmatprep.subr.mxu0 %v5251
    %5386 = vmatpush1.msra.mxu0 %v5250
    %5387 = vmatprep.subr.mxu0 %v5249
    %5388 = vmatpush1.msra.mxu0 %v5248
    %5389 = vmatprep.subr.mxu0 %v5247
    %5390 = vmatpush1.msra.mxu0 %v5246
    %5391 = vmatprep.subr.mxu0 %v5221
    %5392 = vmatpush1.msra.mxu0 %v5220
    %5393 = vmatprep.subr.mxu0 %v5219
    %5394 = vmatpush1.msra.mxu0 %v5218
    %5395 = vmatprep.subr.mxu0 %v5217
    %5396 = vmatpush1.msra.mxu0 %v5216
    %5397 = vmatprep.subr.mxu0 %v5215
    %5398 = vmatpush1.msra.mxu0 %v5214
    %5399 = vmatprep.subr.mxu0 %v5189
    %5400 = vmatpush1.msra.mxu0 %v5188
    %5401 = vmatprep.subr.mxu0 %v5187
    %5402 = vmatpush1.msra.mxu0 %v5186
    %5403 = vmatprep.subr.mxu0 %v5185
    %5404 = vmatpush1.msra.mxu0 %v5184
    %5405 = vmatprep.subr.mxu0 %v5183
    %5406 = vmatpush1.msra.mxu0 %v5182
    %5407 = vmatprep.subr.mxu0 0.0
    %5408 = vmatpush2.msra.mxu0 0.0
    %5409 = vmatprep.subr.mxu0 0.0
    %5410 = vmatpush2.msra.mxu0 0.0
    %5411 = vmatprep.subr.mxu0 0.0
    %5412 = vmatpush2.msra.mxu0 0.0
    %5413 = vmatprep.subr.mxu0 0.0
    %5414 = vmatpush2.msra.mxu0 0.0
    %5415 = vmatprep.subr.mxu0 0.0
    %5416 = vmatpush2.msra.mxu0 0.0
    %5417 = vmatprep.subr.mxu0 0.0
    %5418 = vmatpush2.msra.mxu0 0.0
    %5419 = vmatprep.subr.mxu0 0.0
    %5420 = vmatpush2.msra.mxu0 0.0
    %5421 = vmatprep.subr.mxu0 0.0
    %5422 = vmatpush2.msra.mxu0 0.0
    %5423 = vmatprep.subr.mxu0 0.0
    %5424 = vmatpush2.msra.mxu0 0.0
    %5425 = vmatprep.subr.mxu0 0.0
    %5426 = vmatpush2.msra.mxu0 0.0
    %5427 = vmatprep.subr.mxu0 0.0
    %5428 = vmatpush2.msra.mxu0 0.0
    %5429 = vmatprep.subr.mxu0 0.0
    %5430 = vmatpush2.msra.mxu0 0.0
    %5431 = vmatprep.subr.mxu0 0.0
    %5432 = vmatpush2.msra.mxu0 0.0
    %5433 = vmatprep.subr.mxu0 0.0
    %5434 = vmatpush2.msra.mxu0 0.0
    %5435 = vmatprep.subr.mxu0 0.0
    %5436 = vmatpush2.msra.mxu0 0.0
    %5437 = vmatprep.subr.mxu0 0.0
    %5438 = vmatpush2.msra.mxu0 0.0
    %5439 = vmatprep.mubr.f32.mxu0 0.0
    %5440 = vmatmul.mubr.f32.gmra.mxu0 %v5275
    %v5441 = vpop.f32.mrf.mxu0
    %v5442 = vadd.f32 %v5353, %v5441
    %v5443 = vpop.f32.mrf.mxu0
    %v5444 = vadd.f32 %v5355, %v5443
    %5445 = vmatprep.mubr.f32.mxu0 0.0
    %5446 = vmatmul.mubr.f32.gmra.mxu0 %v5278
    %v5447 = vpop.f32.mrf.mxu0
    %v5448 = vadd.f32 %v5359, %v5447
    %v5449 = vpop.f32.mrf.mxu0
    %v5450 = vadd.f32 %v5361, %v5449
    %5451 = vmatprep.mubr.f32.mxu0 0.0
    %5452 = vmatmul.mubr.f32.gmra.mxu0 %v5281
    %v5453 = vpop.f32.mrf.mxu0
    %v5454 = vadd.f32 %v5365, %v5453
    %v5455 = vpop.f32.mrf.mxu0
    %v5456 = vadd.f32 %v5367, %v5455
    %5457 = vmatprep.mubr.f32.mxu0 0.0
    %5458 = vmatmul.mubr.f32.gmra.mxu0 %v5284
    %v5459 = vpop.f32.mrf.mxu0
    %v5460 = vadd.f32 %v5371, %v5459
    %v5461 = vpop.f32.mrf.mxu0
    %v5462 = vadd.f32 %v5373, %v5461
    %5463 = vdwg.mxu0
    %v5464 = vadd.f32 %v4212, %v5442
    %v5465 = vadd.f32 %v4213, %v5444
    %v5466 = vadd.f32 %v4214, %v5448
    %v5467 = vadd.f32 %v4215, %v5450
    %v5468 = vadd.f32 %v4216, %v5454
    %v5469 = vadd.f32 %v4217, %v5456
    %v5470 = vadd.f32 %v4218, %v5460
    %v5471 = vadd.f32 %v4219, %v5462
    %s5472 = scalar_lea.vmem %s3, 32
    %v5473 = vld [vmem:[%s5472] sm:$0xff]
    %v5474 = vld [vmem:[%s5472 + $0x8] sm:$0xff]
    %v5475 = vld [vmem:[%s5472 + $0x10] sm:$0xff]
    %v5476 = vld [vmem:[%s5472 + $0x18] sm:$0xff]
    %v5478 = vsel %vm201, %v5473, 0
    %v5481 = vsel %vm201, %v5474, 0
    %v5484 = vsel %vm201, %v5475, 0
    %v5487 = vsel %vm201, %v5476, 0
    %5489 = vmatprep.subr.mxu0 0.0
    %5490 = vmatpush1.msra.mxu0 0.0
    %5491 = vmatprep.subr.mxu0 0.0
    %5492 = vmatpush1.msra.mxu0 0.0
    %5493 = vmatprep.subr.mxu0 0.0
    %5494 = vmatpush1.msra.mxu0 0.0
    %5495 = vmatprep.subr.mxu0 0.0
    %5496 = vmatpush1.msra.mxu0 0.0
    %5497 = vmatprep.subr.mxu0 0.0
    %5498 = vmatpush1.msra.mxu0 0.0
    %5499 = vmatprep.subr.mxu0 0.0
    %5500 = vmatpush1.msra.mxu0 0.0
    %5501 = vmatprep.subr.mxu0 0.0
    %5502 = vmatpush1.msra.mxu0 0.0
    %5503 = vmatprep.subr.mxu0 0.0
    %5504 = vmatpush1.msra.mxu0 0.0
    %5505 = vmatprep.subr.mxu0 0.0
    %5506 = vmatpush1.msra.mxu0 0.0
    %5507 = vmatprep.subr.mxu0 0.0
    %5508 = vmatpush1.msra.mxu0 0.0
    %5509 = vmatprep.subr.mxu0 0.0
    %5510 = vmatpush1.msra.mxu0 0.0
    %5511 = vmatprep.subr.mxu0 0.0
    %5512 = vmatpush1.msra.mxu0 0.0
    %5513 = vmatprep.subr.mxu0 %v5471
    %5514 = vmatpush1.msra.mxu0 %v5470
    %5515 = vmatprep.subr.mxu0 %v5469
    %5516 = vmatpush1.msra.mxu0 %v5468
    %5517 = vmatprep.subr.mxu0 %v5467
    %5518 = vmatpush1.msra.mxu0 %v5466
    %5519 = vmatprep.subr.mxu0 %v5465
    %5520 = vmatpush1.msra.mxu0 %v5464
    %5521 = vmatprep.subr.mxu0 0.0
    %5522 = vmatpush2.msra.mxu0 0.0
    %5523 = vmatprep.subr.mxu0 0.0
    %5524 = vmatpush2.msra.mxu0 0.0
    %5525 = vmatprep.subr.mxu0 0.0
    %5526 = vmatpush2.msra.mxu0 0.0
    %5527 = vmatprep.subr.mxu0 0.0
    %5528 = vmatpush2.msra.mxu0 0.0
    %5529 = vmatprep.subr.mxu0 0.0
    %5530 = vmatpush2.msra.mxu0 0.0
    %5531 = vmatprep.subr.mxu0 0.0
    %5532 = vmatpush2.msra.mxu0 0.0
    %5533 = vmatprep.subr.mxu0 0.0
    %5534 = vmatpush2.msra.mxu0 0.0
    %5535 = vmatprep.subr.mxu0 0.0
    %5536 = vmatpush2.msra.mxu0 0.0
    %5537 = vmatprep.subr.mxu0 0.0
    %5538 = vmatpush2.msra.mxu0 0.0
    %5539 = vmatprep.subr.mxu0 0.0
    %5540 = vmatpush2.msra.mxu0 0.0
    %5541 = vmatprep.subr.mxu0 0.0
    %5542 = vmatpush2.msra.mxu0 0.0
    %5543 = vmatprep.subr.mxu0 0.0
    %5544 = vmatpush2.msra.mxu0 0.0
    %5545 = vmatprep.subr.mxu0 0.0
    %5546 = vmatpush2.msra.mxu0 0.0
    %5547 = vmatprep.subr.mxu0 0.0
    %5548 = vmatpush2.msra.mxu0 0.0
    %5549 = vmatprep.subr.mxu0 0.0
    %5550 = vmatpush2.msra.mxu0 0.0
    %5551 = vmatprep.subr.mxu0 0.0
    %5552 = vmatpush2.msra.mxu0 0.0
    %5553 = vmatprep.mubr.f32.mxu0 0.0
    %5554 = vmatmul.mubr.f32.gmra.mxu0 %v5478
    %v5555 = vpop.f32.mrf.mxu0
    %v5556 = vadd.f32 0.0, %v5555
    %v5557 = vpop.f32.mrf.mxu0
    %v5558 = vadd.f32 0.0, %v5557
    %5559 = vmatprep.mubr.f32.mxu0 0.0
    %5560 = vmatmul.mubr.f32.gmra.mxu0 %v5481
    %v5561 = vpop.f32.mrf.mxu0
    %v5562 = vadd.f32 0.0, %v5561
    %v5563 = vpop.f32.mrf.mxu0
    %v5564 = vadd.f32 0.0, %v5563
    %5565 = vmatprep.mubr.f32.mxu0 0.0
    %5566 = vmatmul.mubr.f32.gmra.mxu0 %v5484
    %v5567 = vpop.f32.mrf.mxu0
    %v5568 = vadd.f32 0.0, %v5567
    %v5569 = vpop.f32.mrf.mxu0
    %v5570 = vadd.f32 0.0, %v5569
    %5571 = vmatprep.mubr.f32.mxu0 0.0
    %5572 = vmatmul.mubr.f32.gmra.mxu0 %v5487
    %v5573 = vpop.f32.mrf.mxu0
    %v5574 = vadd.f32 0.0, %v5573
    %v5575 = vpop.f32.mrf.mxu0
    %v5576 = vadd.f32 0.0, %v5575
    %5577 = vdwg.mxu0
    %v5578 = vadd.f32 %v281, %v5556
    %v5579 = vadd.f32 %v283, %v5558
    %v5580 = vadd.f32 %v287, %v5562
    %v5581 = vadd.f32 %v289, %v5564
    %v5582 = vadd.f32 %v293, %v5568
    %v5583 = vadd.f32 %v295, %v5570
    %v5584 = vadd.f32 %v299, %v5574
    %v5585 = vadd.f32 %v301, %v5576
    %s5586 = scalar_lea.vmem %s6, 64
    %v5587 = vld [vmem:[%s5586] sm:$0xff]
    %v5588 = vld [vmem:[%s5586 + $0x8] sm:$0xff]
    %v5589 = vld [vmem:[%s5586 + $0x10] sm:$0xff]
    %v5590 = vld [vmem:[%s5586 + $0x18] sm:$0xff]
    %5592 = vset.pattern.permute.xlu0 0
    %5593 = vperm.xlu0 %5592, %v5587
    %v5594 = vpop.permute.xlu0 %5593
    %5597 = vset.pattern.permute.xlu0 0
    %5598 = vperm.xlu0 %5597, %v5588
    %v5599 = vpop.permute.xlu0 %5598
    %5602 = vset.pattern.permute.xlu0 0
    %5603 = vperm.xlu0 %5602, %v5589
    %v5604 = vpop.permute.xlu0 %5603
    %5607 = vset.pattern.permute.xlu0 0
    %5608 = vperm.xlu0 %5607, %v5590
    %v5609 = vpop.permute.xlu0 %5608
    %v5611 = vadd.f32 %v5578, %v5594
    %v5612 = vadd.f32 %v5579, %v5594
    %v5613 = vadd.f32 %v5580, %v5599
    %v5614 = vadd.f32 %v5581, %v5599
    %v5615 = vadd.f32 %v5582, %v5604
    %v5616 = vadd.f32 %v5583, %v5604
    %v5617 = vadd.f32 %v5584, %v5609
    %v5618 = vadd.f32 %v5585, %v5609
    %v5619 = vld [vmem:[%s7] sm:$0x7]
    %v5620 = vld [vmem:[%s8] sm:$0x7]
    %5622 = vset.pattern.permute.xlu0 0
    %5623 = vperm.xlu0 %5622, %v5620
    %v5624 = vpop.permute.xlu0 %5623
    %v5627 = vsel %vm201, %v5619, 0
    %5629 = vmatprep.subr.mxu0 0.0
    %5630 = vmatpush1.msra.mxu0 0.0
    %5631 = vmatprep.subr.mxu0 0.0
    %5632 = vmatpush1.msra.mxu0 0.0
    %5633 = vmatprep.subr.mxu0 0.0
    %5634 = vmatpush1.msra.mxu0 0.0
    %5635 = vmatprep.subr.mxu0 0.0
    %5636 = vmatpush1.msra.mxu0 0.0
    %5637 = vmatprep.subr.mxu0 0.0
    %5638 = vmatpush1.msra.mxu0 0.0
    %5639 = vmatprep.subr.mxu0 0.0
    %5640 = vmatpush1.msra.mxu0 0.0
    %5641 = vmatprep.subr.mxu0 0.0
    %5642 = vmatpush1.msra.mxu0 0.0
    %5643 = vmatprep.subr.mxu0 0.0
    %5644 = vmatpush1.msra.mxu0 0.0
    %5645 = vmatprep.subr.mxu0 0.0
    %5646 = vmatpush1.msra.mxu0 0.0
    %5647 = vmatprep.subr.mxu0 0.0
    %5648 = vmatpush1.msra.mxu0 0.0
    %5649 = vmatprep.subr.mxu0 0.0
    %5650 = vmatpush1.msra.mxu0 0.0
    %5651 = vmatprep.subr.mxu0 0.0
    %5652 = vmatpush1.msra.mxu0 0.0
    %5653 = vmatprep.subr.mxu0 %v5618
    %5654 = vmatpush1.msra.mxu0 %v5617
    %5655 = vmatprep.subr.mxu0 %v5616
    %5656 = vmatpush1.msra.mxu0 %v5615
    %5657 = vmatprep.subr.mxu0 %v5614
    %5658 = vmatpush1.msra.mxu0 %v5613
    %5659 = vmatprep.subr.mxu0 %v5612
    %5660 = vmatpush1.msra.mxu0 %v5611
    %5661 = vmatprep.subr.mxu0 0.0
    %5662 = vmatpush2.msra.mxu0 0.0
    %5663 = vmatprep.subr.mxu0 0.0
    %5664 = vmatpush2.msra.mxu0 0.0
    %5665 = vmatprep.subr.mxu0 0.0
    %5666 = vmatpush2.msra.mxu0 0.0
    %5667 = vmatprep.subr.mxu0 0.0
    %5668 = vmatpush2.msra.mxu0 0.0
    %5669 = vmatprep.subr.mxu0 0.0
    %5670 = vmatpush2.msra.mxu0 0.0
    %5671 = vmatprep.subr.mxu0 0.0
    %5672 = vmatpush2.msra.mxu0 0.0
    %5673 = vmatprep.subr.mxu0 0.0
    %5674 = vmatpush2.msra.mxu0 0.0
    %5675 = vmatprep.subr.mxu0 0.0
    %5676 = vmatpush2.msra.mxu0 0.0
    %5677 = vmatprep.subr.mxu0 0.0
    %5678 = vmatpush2.msra.mxu0 0.0
    %5679 = vmatprep.subr.mxu0 0.0
    %5680 = vmatpush2.msra.mxu0 0.0
    %5681 = vmatprep.subr.mxu0 0.0
    %5682 = vmatpush2.msra.mxu0 0.0
    %5683 = vmatprep.subr.mxu0 0.0
    %5684 = vmatpush2.msra.mxu0 0.0
    %5685 = vmatprep.subr.mxu0 0.0
    %5686 = vmatpush2.msra.mxu0 0.0
    %5687 = vmatprep.subr.mxu0 0.0
    %5688 = vmatpush2.msra.mxu0 0.0
    %5689 = vmatprep.subr.mxu0 0.0
    %5690 = vmatpush2.msra.mxu0 0.0
    %5691 = vmatprep.subr.mxu0 0.0
    %5692 = vmatpush2.msra.mxu0 0.0
    %5693 = vmatprep.mubr.f32.mxu0 0.0
    %5694 = vmatmul.mubr.f32.gmra.mxu0 %v5627
    %v5695 = vpop.f32.mrf.mxu0
    %v5696 = vadd.f32 %v5624, %v5695
    %v5697 = vpop.f32.mrf.mxu0
    %v5698 = vadd.f32 %v5624, %v5697
    %5699 = vdwg.mxu0
    %v5702 = vcombine.low %v5696, %v5698
    %5704 = vst [vmem:[#allocation2] sm:$0x77] %v5702
    // Predicated region
    $region38: #{tpu_custom_call.1} parent=1 // pred_check
      _
    $region39: #{tpu_custom_call.1} parent=1 // pred_check_branch
      %5706 = sbr.rel (0) target = $region41
    $region40: #{tpu_custom_call.1} parent=1 // pred_region
      %s5708 = ssub.s32 128, 128
      %5709 = vsyncadd [#allocation3], %s5708
      %s5711 = sshll.u32 [#allocation2], 4
      %s5712 = int_to_ptr.vmem [resolvable:$true] %s5711
      %5714 = dma.vmem_to_hbm [thread:$0]  %s5712, 128, %s9, [#allocation3]
    $region41: #{tpu_custom_call.1} parent=1 // pred_fallthru
      _
    // Predicated region
    $region42: #{tpu_custom_call.1} parent=1 // pred_check
      _
    $region43: #{tpu_custom_call.1} parent=1 // pred_check_branch
      %5716 = sbr.rel (0) target = $region45
    $region44: #{tpu_custom_call.1} parent=1 // pred_region
      %5717 = dma.done [#allocation3], 128
    $region45: #{tpu_custom_call.1} parent=1 // pred_fallthru
      _
    %5718 = vsyncpa [#allocation3], 1

</llo_original>
